<compile_context>
chip_gen: v7x
topology: tpu7x:2x2x1
jax: 0.10.0
libtpu: 0.0.40
codegen_flags: <defaults>
</compile_context>

<pallas_src>
import math
import functools

import jax
import jax.numpy as jnp
from jax.experimental import pallas as pl
from jax.experimental.pallas import tpu as pltpu

NEG_INF = -1e9   # stand-in for float('-inf') in additive attention masks
LN_EPS = 1e-5
VMEM_LIMIT_BYTES = 48 * 1024 * 1024   # safe on v5e/v6e (128 MiB) and v7x (64 MiB)


def _pick_tile(dim, cap):
    """Largest aligned tile <= cap that evenly divides dim; full extent otherwise."""
    if dim <= cap:
        return dim
    for t in (cap, 512, 256, 128):
        if t <= cap and dim % t == 0:
            return t
    return dim


# ----------------------------------------------------------------------------
# Pallas kernels
# ----------------------------------------------------------------------------

def _linear_kernel(x_ref, w_ref, b_ref, o_ref, acc_ref, *, relu):
    # y = x @ w + b with K-axis accumulation in a VMEM f32 scratch.
    @pl.when(pl.program_id(2) == 0)
    def _():
        acc_ref[...] = jnp.zeros_like(acc_ref)

    acc_ref[...] += jnp.dot(x_ref[...].astype(jnp.bfloat16), w_ref[...],
                            preferred_element_type=jnp.float32)

    @pl.when(pl.program_id(2) == pl.num_programs(2) - 1)
    def _():
        y = acc_ref[...] + b_ref[...]
        if relu:
            y = jnp.maximum(y, 0.0)
        o_ref[...] = y.astype(o_ref.dtype)


def pallas_linear(x, w_bf16, b_f32, relu=False, out_dtype=jnp.float32):
    """y = x @ w + b.  x:(M,K) f32/bf16, w:(K,N) bf16, b:(1,N) f32 -> (M,N)."""
    M, K = x.shape
    N = w_bf16.shape[1]
    tm = _pick_tile(M, 256)
    tn = _pick_tile(N, 512)
    tk = _pick_tile(K, 512)
    return pl.pallas_call(
        functools.partial(_linear_kernel, relu=relu),
        out_shape=jax.ShapeDtypeStruct((M, N), out_dtype),
        grid=(M // tm, N // tn, K // tk),
        in_specs=[
            pl.BlockSpec((tm, tk), lambda i, j, k: (i, k)),
            pl.BlockSpec((tk, tn), lambda i, j, k: (k, j)),
            pl.BlockSpec((1, tn), lambda i, j, k: (0, j)),
        ],
        out_specs=pl.BlockSpec((tm, tn), lambda i, j, k: (i, j)),
        scratch_shapes=[pltpu.VMEM((tm, tn), jnp.float32)],
        compiler_params=pltpu.CompilerParams(
            dimension_semantics=("parallel", "parallel", "arbitrary"),
            vmem_limit_bytes=VMEM_LIMIT_BYTES),
    )(x, w_bf16, b_f32)


def _linear_res_ln_kernel(x_ref, w_ref, b_ref, res_ref, g_ref, be_ref, o_ref,
                          acc_ref):
    # out-projection + residual add + LayerNorm, all in one kernel.
    @pl.when(pl.program_id(1) == 0)
    def _():
        acc_ref[...] = jnp.zeros_like(acc_ref)

    acc_ref[...] += jnp.dot(x_ref[...].astype(jnp.bfloat16), w_ref[...],
                            preferred_element_type=jnp.float32)

    @pl.when(pl.program_id(1) == pl.num_programs(1) - 1)
    def _():
        h = res_ref[...] + acc_ref[...] + b_ref[...]
        mu = jnp.mean(h, axis=-1, keepdims=True)
        var = jnp.mean(jnp.square(h - mu), axis=-1, keepdims=True)
        o_ref[...] = ((h - mu) * jax.lax.rsqrt(var + LN_EPS)
                      * g_ref[...] + be_ref[...])


def pallas_linear_res_ln(x, w_bf16, b_f32, resid_f32, gamma, beta):
    """LayerNorm(resid + (x @ w + b)).  LN is over the full N=E axis."""
    M, K = x.shape
    N = w_bf16.shape[1]
    tm = _pick_tile(M, 256)
    tk = _pick_tile(K, 512)
    return pl.pallas_call(
        _linear_res_ln_kernel,
        out_shape=jax.ShapeDtypeStruct((M, N), jnp.float32),
        grid=(M // tm, K // tk),
        in_specs=[
            pl.BlockSpec((tm, tk), lambda i, k: (i, k)),
            pl.BlockSpec((tk, N), lambda i, k: (k, 0)),
            pl.BlockSpec((1, N), lambda i, k: (0, 0)),
            pl.BlockSpec((tm, N), lambda i, k: (i, 0)),
            pl.BlockSpec((1, N), lambda i, k: (0, 0)),
            pl.BlockSpec((1, N), lambda i, k: (0, 0)),
        ],
        out_specs=pl.BlockSpec((tm, N), lambda i, k: (i, 0)),
        scratch_shapes=[pltpu.VMEM((tm, N), jnp.float32)],
        compiler_params=pltpu.CompilerParams(
            dimension_semantics=("parallel", "arbitrary"),
            vmem_limit_bytes=VMEM_LIMIT_BYTES),
    )(x, w_bf16, b_f32, resid_f32, gamma, beta)


def _ffn_res_ln_kernel(x_ref, w1_ref, b1_ref, w2_ref, b2_ref, g_ref, be_ref,
                       o_ref):
    # lin1 + relu + lin2 + residual add + LayerNorm; the (tm, dim_ff)
    # intermediate lives entirely in VMEM / vregs.
    xv = x_ref[...]                                   # (tm, E) f32 residual
    h = jnp.dot(xv.astype(jnp.bfloat16), w1_ref[...],
                preferred_element_type=jnp.float32) + b1_ref[...]
    h = jnp.maximum(h, 0.0)
    y = jnp.dot(h.astype(jnp.bfloat16), w2_ref[...],
                preferred_element_type=jnp.float32) + b2_ref[...]
    r = xv + y
    mu = jnp.mean(r, axis=-1, keepdims=True)
    var = jnp.mean(jnp.square(r - mu), axis=-1, keepdims=True)
    o_ref[...] = (r - mu) * jax.lax.rsqrt(var + LN_EPS) * g_ref[...] + be_ref[...]


def pallas_ffn_res_ln(x_f32, w1, b1, w2, b2, gamma, beta):
    """LayerNorm(x + lin2(relu(lin1(x)))).  Grid over M rows; weights are
    fetched once (constant-index BlockSpecs -> revolving buffers)."""
    M, E = x_f32.shape
    F = w1.shape[1]
    tm = _pick_tile(M, 256)
    return pl.pallas_call(
        _ffn_res_ln_kernel,
        out_shape=jax.ShapeDtypeStruct((M, E), jnp.float32),
        grid=(M // tm,),
        in_specs=[
            pl.BlockSpec((tm, E), lambda i: (i, 0)),
            pl.BlockSpec((E, F), lambda i: (0, 0)),
            pl.BlockSpec((1, F), lambda i: (0, 0)),
            pl.BlockSpec((F, E), lambda i: (0, 0)),
            pl.BlockSpec((1, E), lambda i: (0, 0)),
            pl.BlockSpec((1, E), lambda i: (0, 0)),
            pl.BlockSpec((1, E), lambda i: (0, 0)),
        ],
        out_specs=pl.BlockSpec((tm, E), lambda i: (i, 0)),
        compiler_params=pltpu.CompilerParams(
            dimension_semantics=("parallel",),
            vmem_limit_bytes=VMEM_LIMIT_BYTES),
    )(x_f32, w1, b1, w2, b2, gamma, beta)


def _head_attend(q, k, v, bias):
    # Per-head softmax(q k^T + bias) v.  Scale is folded into the Q weights.
    s = jnp.einsum('qd,kd->qk', q, k,
                   preferred_element_type=jnp.float32) + bias
    s = s - jnp.max(s, axis=-1, keepdims=True)
    p = jnp.exp(s)
    p = p * pl.reciprocal(jnp.sum(p, axis=-1, keepdims=True), approx=True)
    return jnp.einsum('qk,kd->qd', p.astype(jnp.bfloat16), v,
                      preferred_element_type=jnp.float32)


def _self_attn_kernel(qkv_ref, am_ref, kpm_ref, o_ref, *, nhead):
    # qkv_ref: (1, L, 3E) bf16 packed; one batch item per grid step.
    E = qkv_ref.shape[2] // 3
    D = E // nhead
    bias = am_ref[...] + kpm_ref[0]            # (L, S) additive mask, f32
    for h in range(nhead):                      # one head live at a time
        q = qkv_ref[0, :, h * D:(h + 1) * D]
        k = qkv_ref[0, :, E + h * D:E + (h + 1) * D]
        v = qkv_ref[0, :, 2 * E + h * D:2 * E + (h + 1) * D]
        o_ref[0, :, h * D:(h + 1) * D] = _head_attend(q, k, v, bias).astype(o_ref.dtype)


def _cross_attn_kernel(q_ref, kv_ref, am_ref, kpm_ref, o_ref, *, nhead):
    # q_ref: (1, L, E) bf16; kv_ref: (1, S, 2E) bf16 packed.
    E = q_ref.shape[2]
    D = E // nhead
    bias = am_ref[...] + kpm_ref[0]
    for h in range(nhead):
        q = q_ref[0, :, h * D:(h + 1) * D]
        k = kv_ref[0, :, h * D:(h + 1) * D]
        v = kv_ref[0, :, E + h * D:E + (h + 1) * D]
        o_ref[0, :, h * D:(h + 1) * D] = _head_attend(q, k, v, bias).astype(o_ref.dtype)


def _attn_compiler_params():
    return pltpu.CompilerParams(dimension_semantics=("parallel",),
                                vmem_limit_bytes=VMEM_LIMIT_BYTES)


def pallas_self_attention(qkv, attn_mask, kpm_add, nhead):
    """qkv:(N,L,3E) bf16, attn_mask:(L,L) f32, kpm_add:(N,1,L) f32 -> (N,L,E) bf16."""
    N, L, E3 = qkv.shape
    E = E3 // 3
    return pl.pallas_call(
        functools.partial(_self_attn_kernel, nhead=nhead),
        out_shape=jax.ShapeDtypeStruct((N, L, E), jnp.bfloat16),
        grid=(N,),
        in_specs=[
            pl.BlockSpec((1, L, E3), lambda b: (b, 0, 0)),
            pl.BlockSpec((L, L), lambda b: (0, 0)),
            pl.BlockSpec((1, 1, L), lambda b: (b, 0, 0)),
        ],
        out_specs=pl.BlockSpec((1, L, E), lambda b: (b, 0, 0)),
        compiler_params=_attn_compiler_params(),
    )(qkv, attn_mask, kpm_add)


def pallas_cross_attention(q, kv, attn_mask, kpm_add, nhead):
    """q:(N,L,E) bf16, kv:(N,S,2E) bf16, attn_mask:(L,S), kpm_add:(N,1,S) -> (N,L,E) bf16."""
    N, L, E = q.shape
    S = kv.shape[1]
    return pl.pallas_call(
        functools.partial(_cross_attn_kernel, nhead=nhead),
        out_shape=jax.ShapeDtypeStruct((N, L, E), jnp.bfloat16),
        grid=(N,),
        in_specs=[
            pl.BlockSpec((1, L, E), lambda b: (b, 0, 0)),
            pl.BlockSpec((1, S, 2 * E), lambda b: (b, 0, 0)),
            pl.BlockSpec((L, S), lambda b: (0, 0)),
            pl.BlockSpec((1, 1, S), lambda b: (b, 0, 0)),
        ],
        out_specs=pl.BlockSpec((1, L, E), lambda b: (b, 0, 0)),
        compiler_params=_attn_compiler_params(),
    )(q, kv, attn_mask, kpm_add)


# ----------------------------------------------------------------------------
# Model pieces built on the kernels
# ----------------------------------------------------------------------------

def token_embedding(tokens, table, emb_size):
    # TODO(synk): embedding gather stays in plain JAX (data-dependent gather).
    return jnp.take(table, tokens, axis=0) * math.sqrt(emb_size)


def make_pos_embedding(emb_size, maxlen=5000):
    den = jnp.exp(-jnp.arange(0, emb_size, 2, dtype=jnp.float32)
                  * math.log(10000.0) / emb_size)
    pos = jnp.arange(0, maxlen, dtype=jnp.float32)[:, None]
    pe = jnp.zeros((maxlen, emb_size), dtype=jnp.float32)
    pe = pe.at[:, 0::2].set(jnp.sin(pos * den))
    pe = pe.at[:, 1::2].set(jnp.cos(pos * den))
    return pe[:, None, :]  # (maxlen, 1, E)


def positional_encoding(x, pos_embedding):
    # dropout is identity in eval mode
    S = x.shape[0]
    return x + pos_embedding[:S]


def _kpm_additive(key_padding_mask, N, S):
    if key_padding_mask is None:
        return jnp.zeros((N, 1, S), jnp.float32)
    return jnp.where(key_padding_mask, NEG_INF, 0.0).astype(jnp.float32)[:, None, :]


def self_attention_block(x, w_in, b_in, w_out, b_out, ln_g, ln_b, nhead,
                         attn_mask, key_padding_mask):
    """Fused-QKV nn.MultiheadAttention + residual + LayerNorm (post-norm)."""
    L, N, E = x.shape
    x2d = x.reshape(L * N, E)

    qkv = pallas_linear(x2d, w_in, b_in, out_dtype=jnp.bfloat16)     # (L*N, 3E)
    qkv = qkv.reshape(L, N, 3 * E).transpose(1, 0, 2)                # (N, L, 3E)

    am = (attn_mask.astype(jnp.float32) if attn_mask is not None
          else jnp.zeros((L, L), jnp.float32))
    kpm_add = _kpm_additive(key_padding_mask, N, L)

    o = pallas_self_attention(qkv, am, kpm_add, nhead)               # (N, L, E) bf16
    o2d = o.transpose(1, 0, 2).reshape(L * N, E)

    out = pallas_linear_res_ln(o2d, w_out, b_out, x2d, ln_g, ln_b)
    return out.reshape(L, N, E)


def cross_attention_block(x, memory, p, nhead, mem_key_padding_mask):
    L, N, E = x.shape
    S = memory.shape[0]
    x2d = x.reshape(L * N, E)

    q = pallas_linear(x2d, p["ca_q_w"], p["ca_q_b"], out_dtype=jnp.bfloat16)
    q = q.reshape(L, N, E).transpose(1, 0, 2)                        # (N, L, E)
    kv = pallas_linear(memory.reshape(S * N, E), p["ca_kv_w"], p["ca_kv_b"],
                       out_dtype=jnp.bfloat16)
    kv = kv.reshape(S, N, 2 * E).transpose(1, 0, 2)                  # (N, S, 2E)

    am = jnp.zeros((L, S), jnp.float32)                              # memory_mask=None
    kpm_add = _kpm_additive(mem_key_padding_mask, N, S)

    o = pallas_cross_attention(q, kv, am, kpm_add, nhead)            # (N, L, E) bf16
    o2d = o.transpose(1, 0, 2).reshape(L * N, E)

    out = pallas_linear_res_ln(o2d, p["ca_out_w"], p["ca_out_b"], x2d,
                               p["ln2_g"], p["ln2_b"])
    return out.reshape(L, N, E)


def encoder_layer(x, p, nhead, src_mask, src_kpm):
    # post-norm, relu (PyTorch TransformerEncoderLayer defaults)
    x = self_attention_block(x, p["sa_in_w"], p["sa_in_b"], p["sa_out_w"],
                             p["sa_out_b"], p["ln1_g"], p["ln1_b"], nhead,
                             src_mask, src_kpm)
    L, N, E = x.shape
    y = pallas_ffn_res_ln(x.reshape(L * N, E), p["lin1_w"], p["lin1_b"],
                          p["lin2_w"], p["lin2_b"], p["ln2_g"], p["ln2_b"])
    return y.reshape(L, N, E)


def decoder_layer(x, memory, p, nhead, tgt_mask, tgt_kpm, mem_kpm):
    x = self_attention_block(x, p["sa_in_w"], p["sa_in_b"], p["sa_out_w"],
                             p["sa_out_b"], p["ln1_g"], p["ln1_b"], nhead,
                             tgt_mask, tgt_kpm)
    x = cross_attention_block(x, memory, p, nhead, mem_kpm)
    L, N, E = x.shape
    y = pallas_ffn_res_ln(x.reshape(L * N, E), p["lin1_w"], p["lin1_b"],
                          p["lin2_w"], p["lin2_b"], p["ln3_g"], p["ln3_b"])
    return y.reshape(L, N, E)


def seq2seq_transformer_forward(params, src, tgt, src_mask, tgt_mask,
                                src_padding_mask, tgt_padding_mask,
                                memory_key_padding_mask, *, emb_size, nhead):
    pos = params["pos_embedding"]
    src_emb = positional_encoding(token_embedding(src, params["src_emb"], emb_size), pos)
    tgt_emb = positional_encoding(token_embedding(tgt, params["tgt_emb"], emb_size), pos)

    memory = src_emb
    for p in params["enc_layers"]:
        memory = encoder_layer(memory, p, nhead, src_mask, src_padding_mask)

    outs = tgt_emb
    for p in params["dec_layers"]:
        outs = decoder_layer(outs, memory, p, nhead, tgt_mask,
                             tgt_padding_mask, memory_key_padding_mask)

    L, N, E = outs.shape
    logits = pallas_linear(outs.reshape(L * N, E), params["gen_w"], params["gen_b"])
    return logits.reshape(L, N, params["gen_w"].shape[1])


# ----------------------------------------------------------------------------
# Deterministic parameter init.
# Weights are stored pre-transposed (in_features, out_features) in bf16 so the
# kernels compute x @ W directly; biases pre-broadcast to (1, N) f32.
# The attention 1/sqrt(D) scale is folded into the Q projection weights/bias.
# Cross-attention q / kv projections are pre-split (no per-call weight slices).
# ----------------------------------------------------------------------------

def init_params(key, num_enc, num_dec, emb_size, nhead, src_vocab, tgt_vocab, dim_ff):
    E, F = emb_size, dim_ff
    D = E // nhead
    scale = 1.0 / math.sqrt(D)

    def nrm(k, shape):
        return 0.02 * jax.random.normal(k, shape, jnp.float32)

    def w_bf16(k, shape):
        return nrm(k, shape).astype(jnp.bfloat16)

    keys = iter(jax.random.split(key, 256))

    def self_attn_params():
        w = nrm(next(keys), (E, 3 * E))
        w = w.at[:, :E].multiply(scale)          # fold 1/sqrt(D) into Q columns
        return {
            "sa_in_w": w.astype(jnp.bfloat16),
            "sa_in_b": jnp.zeros((1, 3 * E), jnp.float32),
            "sa_out_w": w_bf16(next(keys), (E, E)),
            "sa_out_b": jnp.zeros((1, E), jnp.float32),
        }

    def cross_attn_params():
        wq = nrm(next(keys), (E, E)) * scale      # fold 1/sqrt(D) into Q proj
        return {
            "ca_q_w": wq.astype(jnp.bfloat16),
            "ca_q_b": jnp.zeros((1, E), jnp.float32),
            "ca_kv_w": w_bf16(next(keys), (E, 2 * E)),
            "ca_kv_b": jnp.zeros((1, 2 * E), jnp.float32),
            "ca_out_w": w_bf16(next(keys), (E, E)),
            "ca_out_b": jnp.zeros((1, E), jnp.float32),
        }

    def ffn_params():
        return {
            "lin1_w": w_bf16(next(keys), (E, F)),
            "lin1_b": jnp.zeros((1, F), jnp.float32),
            "lin2_w": w_bf16(next(keys), (F, E)),
            "lin2_b": jnp.zeros((1, E), jnp.float32),
        }

    def ln(name):
        return {name + "_g": jnp.ones((1, E), jnp.float32),
                name + "_b": jnp.zeros((1, E), jnp.float32)}

    enc_layers = []
    for _ in range(num_enc):
        p = {}
        p.update(self_attn_params())
        p.update(ffn_params())
        p.update(ln("ln1"))
        p.update(ln("ln2"))
        enc_layers.append(p)

    dec_layers = []
    for _ in range(num_dec):
        p = {}
        p.update(self_attn_params())
        p.update(cross_attn_params())
        p.update(ffn_params())
        p.update(ln("ln1"))
        p.update(ln("ln2"))
        p.update(ln("ln3"))
        dec_layers.append(p)

    return {
        "src_emb": nrm(next(keys), (src_vocab, E)),
        "tgt_emb": nrm(next(keys), (tgt_vocab, E)),
        "enc_layers": enc_layers,
        "dec_layers": dec_layers,
        "gen_w": w_bf16(next(keys), (E, tgt_vocab)),
        "gen_b": jnp.zeros((1, tgt_vocab), jnp.float32),
        "pos_embedding": make_pos_embedding(E, maxlen=5000),
    }


# ----------------------------------------------------------------------------
# Demo
# ----------------------------------------------------------------------------

if __name__ == "__main__":
    NUM_ENC, NUM_DEC = 2, 2
    EMB, NHEAD, FFN = 32, 4, 64
    SRC_VOCAB, TGT_VOCAB = 37, 41
    S_SRC, S_TGT, N = 8, 10, 2

    root = jax.random.PRNGKey(0)
    k_param, k_src, k_tgt = jax.random.split(root, 3)

    params = init_params(k_param, NUM_ENC, NUM_DEC, EMB, NHEAD,
                         SRC_VOCAB, TGT_VOCAB, FFN)

    src = jax.random.randint(k_src, (S_SRC, N), 0, SRC_VOCAB, dtype=jnp.int32)
    tgt = jax.random.randint(k_tgt, (S_TGT, N), 0, TGT_VOCAB, dtype=jnp.int32)

    # src_mask: all-zero float mask; tgt_mask: causal (upper triangle masked)
    src_mask = jnp.zeros((S_SRC, S_SRC), jnp.float32)
    tgt_mask = jnp.where(
        jnp.arange(S_TGT)[None, :] > jnp.arange(S_TGT)[:, None], NEG_INF, 0.0
    ).astype(jnp.float32)

    # padding masks: True = padded position
    src_padding_mask = jnp.zeros((N, S_SRC), jnp.bool_).at[1, -2:].set(True)
    tgt_padding_mask = jnp.zeros((N, S_TGT), jnp.bool_).at[1, -3:].set(True)
    memory_key_padding_mask = src_padding_mask

    fwd = jax.jit(functools.partial(seq2seq_transformer_forward,
                                    emb_size=EMB, nhead=NHEAD))
    out = fwd(params, src, tgt, src_mask, tgt_mask,
              src_padding_mask, tgt_padding_mask, memory_key_padding_mask)
    out = jax.block_until_ready(out)

    assert out.shape == (S_TGT, N, TGT_VOCAB), out.shape
    assert bool(jnp.all(jnp.isfinite(out)))
    print("KERNEL_OK")
</pallas_src>

<mosaic_0001>
module attributes {stable_mosaic.version = 11 : i64} {
  func.func @_linear_kernel(%arg0: i32, %arg1: i32, %arg2: i32, %arg3: memref<16x32xf32, #tpu.memory_space<vmem>>, %arg4: memref<32x96xbf16, #tpu.memory_space<vmem>>, %arg5: memref<1x96xf32, #tpu.memory_space<vmem>>, %arg6: memref<16x96xbf16, #tpu.memory_space<vmem>>, %arg7: memref<16x96xf32, #tpu.memory_space<vmem>>) attributes {dimension_semantics = [#tpu.dimension_semantics<parallel>, #tpu.dimension_semantics<parallel>, #tpu.dimension_semantics<arbitrary>], iteration_bounds = array<i64: 1, 1, 1>, scalar_prefetch = 0 : i64, scratch_operands = 1 : i64, tpu.core_type = #tpu.core_type<tc>, window_params = [{transform_indices = @transform_0, window_bounds = array<i64: 16, 32>}, {transform_indices = @transform_1, window_bounds = array<i64: 32, 96>}, {transform_indices = @transform_2, window_bounds = array<i64: 1, 96>}, {transform_indices = @transform_3, window_bounds = array<i64: 16, 96>}]} {
    %c0_i32 = arith.constant 0 : i32
    %0 = arith.cmpi eq, %arg2, %c0_i32 : i32
    %1 = arith.extui %0 : i1 to i32
    %c0_i32_0 = arith.constant 0 : i32
    %2 = arith.cmpi ne, %1, %c0_i32_0 : i32
    scf.if %2 {
      %cst_10 = arith.constant 0.000000e+00 : f32
      %13 = vector.broadcast %cst_10 : f32 to vector<16x96xf32>
      %c0_11 = arith.constant 0 : index
      %c0_12 = arith.constant 0 : index
      %14 = vector.load %arg7[%c0_11, %c0_12] : memref<16x96xf32, #tpu.memory_space<vmem>>, vector<16x96xf32>
      tpu.vector_store %arg7[%c0_11, %c0_12], %13 {strides = array<i32>} : memref<16x96xf32, #tpu.memory_space<vmem>>, vector<16x96xf32>,
    } else {
    }
    %c0 = arith.constant 0 : index
    %c0_1 = arith.constant 0 : index
    %3 = vector.load %arg7[%c0, %c0_1] : memref<16x96xf32, #tpu.memory_space<vmem>>, vector<16x96xf32>
    %c0_2 = arith.constant 0 : index
    %c0_3 = arith.constant 0 : index
    %4 = vector.load %arg3[%c0_2, %c0_3] : memref<16x32xf32, #tpu.memory_space<vmem>>, vector<16x32xf32>
    %5 = arith.truncf %4 : vector<16x32xf32> to vector<16x32xbf16>
    %c0_4 = arith.constant 0 : index
    %c0_5 = arith.constant 0 : index
    %6 = vector.load %arg4[%c0_4, %c0_5] : memref<32x96xbf16, #tpu.memory_space<vmem>>, vector<32x96xbf16>
    %cst = arith.constant dense<0.000000e+00> : vector<16x96xf32>
    %7 = tpu.matmul %5, %6, %cst {dimension_numbers = #tpu.dot_dimension_numbers<[1], [0], [0], [1], [0, 0, 1, 1], [], []>} : vector<16x32xbf16>, vector<32x96xbf16>, vector<16x96xf32> -> vector<16x96xf32>
    %8 = arith.addf %3, %7 : vector<16x96xf32>
    %c0_6 = arith.constant 0 : index
    %c0_7 = arith.constant 0 : index
    %9 = vector.load %arg7[%c0_6, %c0_7] : memref<16x96xf32, #tpu.memory_space<vmem>>, vector<16x96xf32>
    tpu.vector_store %arg7[%c0_6, %c0_7], %8 {strides = array<i32>} : memref<16x96xf32, #tpu.memory_space<vmem>>, vector<16x96xf32>,
    %c0_i32_8 = arith.constant 0 : i32
    %10 = arith.cmpi eq, %arg2, %c0_i32_8 : i32
    %11 = arith.extui %10 : i1 to i32
    %c0_i32_9 = arith.constant 0 : i32
    %12 = arith.cmpi ne, %11, %c0_i32_9 : i32
    scf.if %12 {
      %c0_10 = arith.constant 0 : index
      %c0_11 = arith.constant 0 : index
      %13 = vector.load %arg7[%c0_10, %c0_11] : memref<16x96xf32, #tpu.memory_space<vmem>>, vector<16x96xf32>
      %c0_12 = arith.constant 0 : index
      %c0_13 = arith.constant 0 : index
      %14 = vector.load %arg5[%c0_12, %c0_13] : memref<1x96xf32, #tpu.memory_space<vmem>>, vector<1x96xf32>
      %15 = vector.broadcast %14 : vector<1x96xf32> to vector<16x96xf32>
      %16 = arith.addf %13, %15 : vector<16x96xf32>
      %17 = arith.truncf %16 : vector<16x96xf32> to vector<16x96xbf16>
      %c0_14 = arith.constant 0 : index
      %c0_15 = arith.constant 0 : index
      %18 = vector.load %arg6[%c0_14, %c0_15] : memref<16x96xbf16, #tpu.memory_space<vmem>>, vector<16x96xbf16>
      tpu.vector_store %arg6[%c0_14, %c0_15], %17 {strides = array<i32>} : memref<16x96xbf16, #tpu.memory_space<vmem>>, vector<16x96xbf16>,
    } else {
    }
    return
  }
  func.func @transform_0(%arg0: i32, %arg1: i32, %arg2: i32) -> (i32, i32) {
    %c0_i32 = arith.constant 0 : i32
    return %arg0, %arg2 : i32, i32
  }
  func.func @transform_1(%arg0: i32, %arg1: i32, %arg2: i32) -> (i32, i32) {
    %c0_i32 = arith.constant 0 : i32
    return %arg2, %arg1 : i32, i32
  }
  func.func @transform_2(%arg0: i32, %arg1: i32, %arg2: i32) -> (i32, i32) {
    %c0_i32 = arith.constant 0 : i32
    %c0_i32_0 = arith.constant 0 : i32
    return %c0_i32, %arg1 : i32, i32
  }
  func.func @transform_3(%arg0: i32, %arg1: i32, %arg2: i32) -> (i32, i32) {
    %c0_i32 = arith.constant 0 : i32
    return %arg0, %arg1 : i32, i32
  }
}

module attributes {stable_mosaic.version = 11 : i64} {
  func.func @_self_attn_kernel(%arg0: i32, %arg1: memref<1x8x96xbf16, #tpu.memory_space<vmem>>, %arg2: memref<8x8xf32, #tpu.memory_space<vmem>>, %arg3: memref<1x1x8xf32, #tpu.memory_space<vmem>>, %arg4: memref<1x8x32xbf16, #tpu.memory_space<vmem>>) attributes {dimension_semantics = [#tpu.dimension_semantics<parallel>], iteration_bounds = array<i64: 2>, scalar_prefetch = 0 : i64, scratch_operands = 0 : i64, tpu.core_type = #tpu.core_type<tc>, window_params = [{transform_indices = @transform_0, window_bounds = array<i64: 1, 8, 96>}, {pipeline_mode = #tpu.pipeline_mode<synchronous>, transform_indices = @transform_1, window_bounds = array<i64: 8, 8>}, {transform_indices = @transform_2, window_bounds = array<i64: 1, 1, 8>}, {transform_indices = @transform_3, window_bounds = array<i64: 1, 8, 32>}]} {
    %c0 = arith.constant 0 : index
    %c0_0 = arith.constant 0 : index
    %0 = vector.load %arg2[%c0, %c0_0] : memref<8x8xf32, #tpu.memory_space<vmem>>, vector<8x8xf32>
    %c0_1 = arith.constant 0 : index
    %c0_2 = arith.constant 0 : index
    %c0_3 = arith.constant 0 : index
    %1 = vector.load %arg3[%c0_1, %c0_2, %c0_3] : memref<1x1x8xf32, #tpu.memory_space<vmem>>, vector<1x1x8xf32>
    %2 = vector.shape_cast %1 : vector<1x1x8xf32> to vector<1x8xf32>
    %3 = vector.broadcast %2 : vector<1x8xf32> to vector<8x8xf32>
    %4 = arith.addf %0, %3 : vector<8x8xf32>
    %c0_4 = arith.constant 0 : index
    %c0_5 = arith.constant 0 : index
    %c0_6 = arith.constant 0 : index
    %5 = vector.load %arg1[%c0_4, %c0_5, %c0_6] : memref<1x8x96xbf16, #tpu.memory_space<vmem>>, vector<1x8x8xbf16>
    %6 = vector.shape_cast %5 : vector<1x8x8xbf16> to vector<8x8xbf16>
    %c0_7 = arith.constant 0 : index
    %c0_8 = arith.constant 0 : index
    %c32 = arith.constant 32 : index
    %7 = vector.load %arg1[%c0_7, %c0_8, %c32] : memref<1x8x96xbf16, #tpu.memory_space<vmem>>, vector<1x8x8xbf16>
    %8 = vector.shape_cast %7 : vector<1x8x8xbf16> to vector<8x8xbf16>
    %c0_9 = arith.constant 0 : index
    %c0_10 = arith.constant 0 : index
    %c64 = arith.constant 64 : index
    %9 = vector.load %arg1[%c0_9, %c0_10, %c64] : memref<1x8x96xbf16, #tpu.memory_space<vmem>>, vector<1x8x8xbf16>
    %10 = vector.shape_cast %9 : vector<1x8x8xbf16> to vector<8x8xbf16>
    "tpu.trace_start"() <{level = 10 : i32, message = "qd,kd->qk"}> : () -> ()
    %cst = arith.constant dense<0.000000e+00> : vector<8x8xf32>
    %11 = tpu.matmul %6, %8, %cst {dimension_numbers = #tpu.dot_dimension_numbers<[1], [1], [0], [0], [0, 0, 1, 0], [], []>} : vector<8x8xbf16>, vector<8x8xbf16>, vector<8x8xf32> -> vector<8x8xf32>
    "tpu.trace_stop"() : () -> ()
    %12 = arith.addf %11, %4 : vector<8x8xf32>
    %cst_11 = arith.constant dense<0xFF800000> : vector<8xf32>
    %13 = vector.multi_reduction <maximumf>, %12, %cst_11 [1] : vector<8x8xf32> to vector<8xf32>
    %14 = vector.shape_cast %13 : vector<8xf32> to vector<8x1xf32>
    %15 = vector.broadcast %14 : vector<8x1xf32> to vector<8x8xf32>
    %16 = arith.subf %12, %15 : vector<8x8xf32>
    %17 = math.exp %16 : vector<8x8xf32>
    %cst_12 = arith.constant dense<0.000000e+00> : vector<8xf32>
    %18 = vector.multi_reduction <add>, %17, %cst_12 [1] : vector<8x8xf32> to vector<8xf32>
    %19 = vector.shape_cast %18 : vector<8xf32> to vector<8x1xf32>
    %20 = tpu.reciprocal %19 {approx = true} : vector<8x1xf32> -> vector<8x1xf32>
    %21 = vector.broadcast %20 : vector<8x1xf32> to vector<8x8xf32>
    %22 = arith.mulf %17, %21 : vector<8x8xf32>
    %23 = arith.truncf %22 : vector<8x8xf32> to vector<8x8xbf16>
    "tpu.trace_start"() <{level = 10 : i32, message = "qk,kd->qd"}> : () -> ()
    %cst_13 = arith.constant dense<0.000000e+00> : vector<8x8xf32>
    %24 = tpu.matmul %23, %10, %cst_13 {dimension_numbers = #tpu.dot_dimension_numbers<[1], [0], [0], [1], [0, 0, 1, 1], [], []>} : vector<8x8xbf16>, vector<8x8xbf16>, vector<8x8xf32> -> vector<8x8xf32>
    "tpu.trace_stop"() : () -> ()
    %25 = arith.truncf %24 : vector<8x8xf32> to vector<8x8xbf16>
    %c0_14 = arith.constant 0 : index
    %c0_15 = arith.constant 0 : index
    %c0_16 = arith.constant 0 : index
    %26 = vector.load %arg4[%c0_14, %c0_15, %c0_16] : memref<1x8x32xbf16, #tpu.memory_space<vmem>>, vector<1x8x8xbf16>
    %27 = vector.shape_cast %26 : vector<1x8x8xbf16> to vector<8x8xbf16>
    %28 = vector.shape_cast %25 : vector<8x8xbf16> to vector<1x8x8xbf16>
    tpu.vector_store %arg4[%c0_14, %c0_15, %c0_16], %28 {strides = array<i32>} : memref<1x8x32xbf16, #tpu.memory_space<vmem>>, vector<1x8x8xbf16>,
    %c0_17 = arith.constant 0 : index
    %c0_18 = arith.constant 0 : index
    %c8 = arith.constant 8 : index
    %29 = vector.load %arg1[%c0_17, %c0_18, %c8] : memref<1x8x96xbf16, #tpu.memory_space<vmem>>, vector<1x8x8xbf16>
    %30 = vector.shape_cast %29 : vector<1x8x8xbf16> to vector<8x8xbf16>
    %c0_19 = arith.constant 0 : index
    %c0_20 = arith.constant 0 : index
    %c40 = arith.constant 40 : index
    %31 = vector.load %arg1[%c0_19, %c0_20, %c40] : memref<1x8x96xbf16, #tpu.memory_space<vmem>>, vector<1x8x8xbf16>
    %32 = vector.shape_cast %31 : vector<1x8x8xbf16> to vector<8x8xbf16>
    %c0_21 = arith.constant 0 : index
    %c0_22 = arith.constant 0 : index
    %c72 = arith.constant 72 : index
    %33 = vector.load %arg1[%c0_21, %c0_22, %c72] : memref<1x8x96xbf16, #tpu.memory_space<vmem>>, vector<1x8x8xbf16>
    %34 = vector.shape_cast %33 : vector<1x8x8xbf16> to vector<8x8xbf16>
    "tpu.trace_start"() <{level = 10 : i32, message = "qd,kd->qk"}> : () -> ()
    %cst_23 = arith.constant dense<0.000000e+00> : vector<8x8xf32>
    %35 = tpu.matmul %30, %32, %cst_23 {dimension_numbers = #tpu.dot_dimension_numbers<[1], [1], [0], [0], [0, 0, 1, 0], [], []>} : vector<8x8xbf16>, vector<8x8xbf16>, vector<8x8xf32> -> vector<8x8xf32>
    "tpu.trace_stop"() : () -> ()
    %36 = arith.addf %35, %4 : vector<8x8xf32>
    %cst_24 = arith.constant dense<0xFF800000> : vector<8xf32>
    %37 = vector.multi_reduction <maximumf>, %36, %cst_24 [1] : vector<8x8xf32> to vector<8xf32>
    %38 = vector.shape_cast %37 : vector<8xf32> to vector<8x1xf32>
    %39 = vector.broadcast %38 : vector<8x1xf32> to vector<8x8xf32>
    %40 = arith.subf %36, %39 : vector<8x8xf32>
    %41 = math.exp %40 : vector<8x8xf32>
    %cst_25 = arith.constant dense<0.000000e+00> : vector<8xf32>
    %42 = vector.multi_reduction <add>, %41, %cst_25 [1] : vector<8x8xf32> to vector<8xf32>
    %43 = vector.shape_cast %42 : vector<8xf32> to vector<8x1xf32>
    %44 = tpu.reciprocal %43 {approx = true} : vector<8x1xf32> -> vector<8x1xf32>
    %45 = vector.broadcast %44 : vector<8x1xf32> to vector<8x8xf32>
    %46 = arith.mulf %41, %45 : vector<8x8xf32>
    %47 = arith.truncf %46 : vector<8x8xf32> to vector<8x8xbf16>
    "tpu.trace_start"() <{level = 10 : i32, message = "qk,kd->qd"}> : () -> ()
    %cst_26 = arith.constant dense<0.000000e+00> : vector<8x8xf32>
    %48 = tpu.matmul %47, %34, %cst_26 {dimension_numbers = #tpu.dot_dimension_numbers<[1], [0], [0], [1], [0, 0, 1, 1], [], []>} : vector<8x8xbf16>, vector<8x8xbf16>, vector<8x8xf32> -> vector<8x8xf32>
    "tpu.trace_stop"() : () -> ()
    %49 = arith.truncf %48 : vector<8x8xf32> to vector<8x8xbf16>
    %c0_27 = arith.constant 0 : index
    %c0_28 = arith.constant 0 : index
    %c8_29 = arith.constant 8 : index
    %50 = vector.load %arg4[%c0_27, %c0_28, %c8_29] : memref<1x8x32xbf16, #tpu.memory_space<vmem>>, vector<1x8x8xbf16>
    %51 = vector.shape_cast %50 : vector<1x8x8xbf16> to vector<8x8xbf16>
    %52 = vector.shape_cast %49 : vector<8x8xbf16> to vector<1x8x8xbf16>
    tpu.vector_store %arg4[%c0_27, %c0_28, %c8_29], %52 {strides = array<i32>} : memref<1x8x32xbf16, #tpu.memory_space<vmem>>, vector<1x8x8xbf16>,
    %c0_30 = arith.constant 0 : index
    %c0_31 = arith.constant 0 : index
    %c16 = arith.constant 16 : index
    %53 = vector.load %arg1[%c0_30, %c0_31, %c16] : memref<1x8x96xbf16, #tpu.memory_space<vmem>>, vector<1x8x8xbf16>
    %54 = vector.shape_cast %53 : vector<1x8x8xbf16> to vector<8x8xbf16>
    %c0_32 = arith.constant 0 : index
    %c0_33 = arith.constant 0 : index
    %c48 = arith.constant 48 : index
    %55 = vector.load %arg1[%c0_32, %c0_33, %c48] : memref<1x8x96xbf16, #tpu.memory_space<vmem>>, vector<1x8x8xbf16>
    %56 = vector.shape_cast %55 : vector<1x8x8xbf16> to vector<8x8xbf16>
    %c0_34 = arith.constant 0 : index
    %c0_35 = arith.constant 0 : index
    %c80 = arith.constant 80 : index
    %57 = vector.load %arg1[%c0_34, %c0_35, %c80] : memref<1x8x96xbf16, #tpu.memory_space<vmem>>, vector<1x8x8xbf16>
    %58 = vector.shape_cast %57 : vector<1x8x8xbf16> to vector<8x8xbf16>
    "tpu.trace_start"() <{level = 10 : i32, message = "qd,kd->qk"}> : () -> ()
    %cst_36 = arith.constant dense<0.000000e+00> : vector<8x8xf32>
    %59 = tpu.matmul %54, %56, %cst_36 {dimension_numbers = #tpu.dot_dimension_numbers<[1], [1], [0], [0], [0, 0, 1, 0], [], []>} : vector<8x8xbf16>, vector<8x8xbf16>, vector<8x8xf32> -> vector<8x8xf32>
    "tpu.trace_stop"() : () -> ()
    %60 = arith.addf %59, %4 : vector<8x8xf32>
    %cst_37 = arith.constant dense<0xFF800000> : vector<8xf32>
    %61 = vector.multi_reduction <maximumf>, %60, %cst_37 [1] : vector<8x8xf32> to vector<8xf32>
    %62 = vector.shape_cast %61 : vector<8xf32> to vector<8x1xf32>
    %63 = vector.broadcast %62 : vector<8x1xf32> to vector<8x8xf32>
    %64 = arith.subf %60, %63 : vector<8x8xf32>
    %65 = math.exp %64 : vector<8x8xf32>
    %cst_38 = arith.constant dense<0.000000e+00> : vector<8xf32>
    %66 = vector.multi_reduction <add>, %65, %cst_38 [1] : vector<8x8xf32> to vector<8xf32>
    %67 = vector.shape_cast %66 : vector<8xf32> to vector<8x1xf32>
    %68 = tpu.reciprocal %67 {approx = true} : vector<8x1xf32> -> vector<8x1xf32>
    %69 = vector.broadcast %68 : vector<8x1xf32> to vector<8x8xf32>
    %70 = arith.mulf %65, %69 : vector<8x8xf32>
    %71 = arith.truncf %70 : vector<8x8xf32> to vector<8x8xbf16>
    "tpu.trace_start"() <{level = 10 : i32, message = "qk,kd->qd"}> : () -> ()
    %cst_39 = arith.constant dense<0.000000e+00> : vector<8x8xf32>
    %72 = tpu.matmul %71, %58, %cst_39 {dimension_numbers = #tpu.dot_dimension_numbers<[1], [0], [0], [1], [0, 0, 1, 1], [], []>} : vector<8x8xbf16>, vector<8x8xbf16>, vector<8x8xf32> -> vector<8x8xf32>
    "tpu.trace_stop"() : () -> ()
    %73 = arith.truncf %72 : vector<8x8xf32> to vector<8x8xbf16>
    %c0_40 = arith.constant 0 : index
    %c0_41 = arith.constant 0 : index
    %c16_42 = arith.constant 16 : index
    %74 = vector.load %arg4[%c0_40, %c0_41, %c16_42] : memref<1x8x32xbf16, #tpu.memory_space<vmem>>, vector<1x8x8xbf16>
    %75 = vector.shape_cast %74 : vector<1x8x8xbf16> to vector<8x8xbf16>
    %76 = vector.shape_cast %73 : vector<8x8xbf16> to vector<1x8x8xbf16>
    tpu.vector_store %arg4[%c0_40, %c0_41, %c16_42], %76 {strides = array<i32>} : memref<1x8x32xbf16, #tpu.memory_space<vmem>>, vector<1x8x8xbf16>,
    %c0_43 = arith.constant 0 : index
    %c0_44 = arith.constant 0 : index
    %c24 = arith.constant 24 : index
    %77 = vector.load %arg1[%c0_43, %c0_44, %c24] : memref<1x8x96xbf16, #tpu.memory_space<vmem>>, vector<1x8x8xbf16>
    %78 = vector.shape_cast %77 : vector<1x8x8xbf16> to vector<8x8xbf16>
    %c0_45 = arith.constant 0 : index
    %c0_46 = arith.constant 0 : index
    %c56 = arith.constant 56 : index
    %79 = vector.load %arg1[%c0_45, %c0_46, %c56] : memref<1x8x96xbf16, #tpu.memory_space<vmem>>, vector<1x8x8xbf16>
    %80 = vector.shape_cast %79 : vector<1x8x8xbf16> to vector<8x8xbf16>
    %c0_47 = arith.constant 0 : index
    %c0_48 = arith.constant 0 : index
    %c88 = arith.constant 88 : index
    %81 = vector.load %arg1[%c0_47, %c0_48, %c88] : memref<1x8x96xbf16, #tpu.memory_space<vmem>>, vector<1x8x8xbf16>
    %82 = vector.shape_cast %81 : vector<1x8x8xbf16> to vector<8x8xbf16>
    "tpu.trace_start"() <{level = 10 : i32, message = "qd,kd->qk"}> : () -> ()
    %cst_49 = arith.constant dense<0.000000e+00> : vector<8x8xf32>
    %83 = tpu.matmul %78, %80, %cst_49 {dimension_numbers = #tpu.dot_dimension_numbers<[1], [1], [0], [0], [0, 0, 1, 0], [], []>} : vector<8x8xbf16>, vector<8x8xbf16>, vector<8x8xf32> -> vector<8x8xf32>
    "tpu.trace_stop"() : () -> ()
    %84 = arith.addf %83, %4 : vector<8x8xf32>
    %cst_50 = arith.constant dense<0xFF800000> : vector<8xf32>
    %85 = vector.multi_reduction <maximumf>, %84, %cst_50 [1] : vector<8x8xf32> to vector<8xf32>
    %86 = vector.shape_cast %85 : vector<8xf32> to vector<8x1xf32>
    %87 = vector.broadcast %86 : vector<8x1xf32> to vector<8x8xf32>
    %88 = arith.subf %84, %87 : vector<8x8xf32>
    %89 = math.exp %88 : vector<8x8xf32>
    %cst_51 = arith.constant dense<0.000000e+00> : vector<8xf32>
    %90 = vector.multi_reduction <add>, %89, %cst_51 [1] : vector<8x8xf32> to vector<8xf32>
    %91 = vector.shape_cast %90 : vector<8xf32> to vector<8x1xf32>
    %92 = tpu.reciprocal %91 {approx = true} : vector<8x1xf32> -> vector<8x1xf32>
    %93 = vector.broadcast %92 : vector<8x1xf32> to vector<8x8xf32>
    %94 = arith.mulf %89, %93 : vector<8x8xf32>
    %95 = arith.truncf %94 : vector<8x8xf32> to vector<8x8xbf16>
    "tpu.trace_start"() <{level = 10 : i32, message = "qk,kd->qd"}> : () -> ()
    %cst_52 = arith.constant dense<0.000000e+00> : vector<8x8xf32>
    %96 = tpu.matmul %95, %82, %cst_52 {dimension_numbers = #tpu.dot_dimension_numbers<[1], [0], [0], [1], [0, 0, 1, 1], [], []>} : vector<8x8xbf16>, vector<8x8xbf16>, vector<8x8xf32> -> vector<8x8xf32>
    "tpu.trace_stop"() : () -> ()
    %97 = arith.truncf %96 : vector<8x8xf32> to vector<8x8xbf16>
    %c0_53 = arith.constant 0 : index
    %c0_54 = arith.constant 0 : index
    %c24_55 = arith.constant 24 : index
    %98 = vector.load %arg4[%c0_53, %c0_54, %c24_55] : memref<1x8x32xbf16, #tpu.memory_space<vmem>>, vector<1x8x8xbf16>
    %99 = vector.shape_cast %98 : vector<1x8x8xbf16> to vector<8x8xbf16>
    %100 = vector.shape_cast %97 : vector<8x8xbf16> to vector<1x8x8xbf16>
    tpu.vector_store %arg4[%c0_53, %c0_54, %c24_55], %100 {strides = array<i32>} : memref<1x8x32xbf16, #tpu.memory_space<vmem>>, vector<1x8x8xbf16>,
    return
  }
  func.func @transform_0(%arg0: i32) -> (i32, i32, i32) {
    %c0_i32 = arith.constant 0 : i32
    %c0_i32_0 = arith.constant 0 : i32
    %c0_i32_1 = arith.constant 0 : i32
    return %arg0, %c0_i32, %c0_i32_0 : i32, i32, i32
  }
  func.func @transform_1(%arg0: i32) -> (i32, i32) {
    %c0_i32 = arith.constant 0 : i32
    %c0_i32_0 = arith.constant 0 : i32
    %c0_i32_1 = arith.constant 0 : i32
    return %c0_i32, %c0_i32_0 : i32, i32
  }
  func.func @transform_2(%arg0: i32) -> (i32, i32, i32) {
    %c0_i32 = arith.constant 0 : i32
    %c0_i32_0 = arith.constant 0 : i32
    %c0_i32_1 = arith.constant 0 : i32
    return %arg0, %c0_i32, %c0_i32_0 : i32, i32, i32
  }
  func.func @transform_3(%arg0: i32) -> (i32, i32, i32) {
    %c0_i32 = arith.constant 0 : i32
    %c0_i32_0 = arith.constant 0 : i32
    %c0_i32_1 = arith.constant 0 : i32
    return %arg0, %c0_i32, %c0_i32_0 : i32, i32, i32
  }
}

module attributes {stable_mosaic.version = 11 : i64} {
  func.func @_linear_res_ln_kernel(%arg0: i32, %arg1: i32, %arg2: memref<16x32xbf16, #tpu.memory_space<vmem>>, %arg3: memref<32x32xbf16, #tpu.memory_space<vmem>>, %arg4: memref<1x32xf32, #tpu.memory_space<vmem>>, %arg5: memref<16x32xf32, #tpu.memory_space<vmem>>, %arg6: memref<1x32xf32, #tpu.memory_space<vmem>>, %arg7: memref<1x32xf32, #tpu.memory_space<vmem>>, %arg8: memref<16x32xf32, #tpu.memory_space<vmem>>, %arg9: memref<16x32xf32, #tpu.memory_space<vmem>>) attributes {dimension_semantics = [#tpu.dimension_semantics<parallel>, #tpu.dimension_semantics<arbitrary>], iteration_bounds = array<i64: 1, 1>, scalar_prefetch = 0 : i64, scratch_operands = 1 : i64, tpu.core_type = #tpu.core_type<tc>, window_params = [{transform_indices = @transform_0, window_bounds = array<i64: 16, 32>}, {transform_indices = @transform_1, window_bounds = array<i64: 32, 32>}, {pipeline_mode = #tpu.pipeline_mode<synchronous>, transform_indices = @transform_2, window_bounds = array<i64: 1, 32>}, {transform_indices = @transform_3, window_bounds = array<i64: 16, 32>}, {pipeline_mode = #tpu.pipeline_mode<synchronous>, transform_indices = @transform_4, window_bounds = array<i64: 1, 32>}, {pipeline_mode = #tpu.pipeline_mode<synchronous>, transform_indices = @transform_5, window_bounds = array<i64: 1, 32>}, {transform_indices = @transform_6, window_bounds = array<i64: 16, 32>}]} {
    %c0_i32 = arith.constant 0 : i32
    %0 = arith.cmpi eq, %arg1, %c0_i32 : i32
    %1 = arith.extui %0 : i1 to i32
    %c0_i32_0 = arith.constant 0 : i32
    %2 = arith.cmpi ne, %1, %c0_i32_0 : i32
    scf.if %2 {
      %cst_10 = arith.constant 0.000000e+00 : f32
      %12 = vector.broadcast %cst_10 : f32 to vector<16x32xf32>
      %c0_11 = arith.constant 0 : index
      %c0_12 = arith.constant 0 : index
      %13 = vector.load %arg9[%c0_11, %c0_12] : memref<16x32xf32, #tpu.memory_space<vmem>>, vector<16x32xf32>
      tpu.vector_store %arg9[%c0_11, %c0_12], %12 {strides = array<i32>} : memref<16x32xf32, #tpu.memory_space<vmem>>, vector<16x32xf32>,
    } else {
    }
    %c0 = arith.constant 0 : index
    %c0_1 = arith.constant 0 : index
    %3 = vector.load %arg9[%c0, %c0_1] : memref<16x32xf32, #tpu.memory_space<vmem>>, vector<16x32xf32>
    %c0_2 = arith.constant 0 : index
    %c0_3 = arith.constant 0 : index
    %4 = vector.load %arg2[%c0_2, %c0_3] : memref<16x32xbf16, #tpu.memory_space<vmem>>, vector<16x32xbf16>
    %c0_4 = arith.constant 0 : index
    %c0_5 = arith.constant 0 : index
    %5 = vector.load %arg3[%c0_4, %c0_5] : memref<32x32xbf16, #tpu.memory_space<vmem>>, vector<32x32xbf16>
    %cst = arith.constant dense<0.000000e+00> : vector<16x32xf32>
    %6 = tpu.matmul %4, %5, %cst {dimension_numbers = #tpu.dot_dimension_numbers<[1], [0], [0], [1], [0, 0, 1, 1], [], []>} : vector<16x32xbf16>, vector<32x32xbf16>, vector<16x32xf32> -> vector<16x32xf32>
    %7 = arith.addf %3, %6 : vector<16x32xf32>
    %c0_6 = arith.constant 0 : index
    %c0_7 = arith.constant 0 : index
    %8 = vector.load %arg9[%c0_6, %c0_7] : memref<16x32xf32, #tpu.memory_space<vmem>>, vector<16x32xf32>
    tpu.vector_store %arg9[%c0_6, %c0_7], %7 {strides = array<i32>} : memref<16x32xf32, #tpu.memory_space<vmem>>, vector<16x32xf32>,
    %c0_i32_8 = arith.constant 0 : i32
    %9 = arith.cmpi eq, %arg1, %c0_i32_8 : i32
    %10 = arith.extui %9 : i1 to i32
    %c0_i32_9 = arith.constant 0 : i32
    %11 = arith.cmpi ne, %10, %c0_i32_9 : i32
    scf.if %11 {
      %c0_10 = arith.constant 0 : index
      %c0_11 = arith.constant 0 : index
      %12 = vector.load %arg5[%c0_10, %c0_11] : memref<16x32xf32, #tpu.memory_space<vmem>>, vector<16x32xf32>
      %c0_12 = arith.constant 0 : index
      %c0_13 = arith.constant 0 : index
      %13 = vector.load %arg9[%c0_12, %c0_13] : memref<16x32xf32, #tpu.memory_space<vmem>>, vector<16x32xf32>
      %14 = arith.addf %12, %13 : vector<16x32xf32>
      %c0_14 = arith.constant 0 : index
      %c0_15 = arith.constant 0 : index
      %15 = vector.load %arg4[%c0_14, %c0_15] : memref<1x32xf32, #tpu.memory_space<vmem>>, vector<1x32xf32>
      %16 = vector.broadcast %15 : vector<1x32xf32> to vector<16x32xf32>
      %17 = arith.addf %14, %16 : vector<16x32xf32>
      %cst_16 = arith.constant dense<0.000000e+00> : vector<16xf32>
      %18 = vector.multi_reduction <add>, %17, %cst_16 [1] : vector<16x32xf32> to vector<16xf32>
      %19 = vector.shape_cast %18 : vector<16xf32> to vector<16x1xf32>
      %cst_17 = arith.constant 3.200000e+01 : f32
      %20 = vector.broadcast %cst_17 : f32 to vector<16x1xf32>
      %21 = arith.divf %19, %20 : vector<16x1xf32>
      %22 = vector.broadcast %21 : vector<16x1xf32> to vector<16x32xf32>
      %23 = arith.subf %17, %22 : vector<16x32xf32>
      %24 = arith.mulf %23, %23 : vector<16x32xf32>
      %cst_18 = arith.constant dense<0.000000e+00> : vector<16xf32>
      %25 = vector.multi_reduction <add>, %24, %cst_18 [1] : vector<16x32xf32> to vector<16xf32>
      %26 = vector.shape_cast %25 : vector<16xf32> to vector<16x1xf32>
      %cst_19 = arith.constant 3.200000e+01 : f32
      %27 = vector.broadcast %cst_19 : f32 to vector<16x1xf32>
      %28 = arith.divf %26, %27 : vector<16x1xf32>
      %29 = vector.broadcast %21 : vector<16x1xf32> to vector<16x32xf32>
      %30 = arith.subf %17, %29 : vector<16x32xf32>
      %cst_20 = arith.constant 9.99999974E-6 : f32
      %31 = vector.broadcast %cst_20 : f32 to vector<16x1xf32>
      %32 = arith.addf %28, %31 : vector<16x1xf32>
      %33 = math.rsqrt %32 : vector<16x1xf32>
      %34 = vector.broadcast %33 : vector<16x1xf32> to vector<16x32xf32>
      %35 = arith.mulf %30, %34 : vector<16x32xf32>
      %c0_21 = arith.constant 0 : index
      %c0_22 = arith.constant 0 : index
      %36 = vector.load %arg6[%c0_21, %c0_22] : memref<1x32xf32, #tpu.memory_space<vmem>>, vector<1x32xf32>
      %37 = vector.broadcast %36 : vector<1x32xf32> to vector<16x32xf32>
      %38 = arith.mulf %35, %37 : vector<16x32xf32>
      %c0_23 = arith.constant 0 : index
      %c0_24 = arith.constant 0 : index
      %39 = vector.load %arg7[%c0_23, %c0_24] : memref<1x32xf32, #tpu.memory_space<vmem>>, vector<1x32xf32>
      %40 = vector.broadcast %39 : vector<1x32xf32> to vector<16x32xf32>
      %41 = arith.addf %38, %40 : vector<16x32xf32>
      %c0_25 = arith.constant 0 : index
      %c0_26 = arith.constant 0 : index
      %42 = vector.load %arg8[%c0_25, %c0_26] : memref<16x32xf32, #tpu.memory_space<vmem>>, vector<16x32xf32>
      tpu.vector_store %arg8[%c0_25, %c0_26], %41 {strides = array<i32>} : memref<16x32xf32, #tpu.memory_space<vmem>>, vector<16x32xf32>,
    } else {
    }
    return
  }
  func.func @transform_0(%arg0: i32, %arg1: i32) -> (i32, i32) {
    %c0_i32 = arith.constant 0 : i32
    return %arg0, %arg1 : i32, i32
  }
  func.func @transform_1(%arg0: i32, %arg1: i32) -> (i32, i32) {
    %c0_i32 = arith.constant 0 : i32
    %c0_i32_0 = arith.constant 0 : i32
    return %arg1, %c0_i32 : i32, i32
  }
  func.func @transform_2(%arg0: i32, %arg1: i32) -> (i32, i32) {
    %c0_i32 = arith.constant 0 : i32
    %c0_i32_0 = arith.constant 0 : i32
    %c0_i32_1 = arith.constant 0 : i32
    return %c0_i32, %c0_i32_0 : i32, i32
  }
  func.func @transform_3(%arg0: i32, %arg1: i32) -> (i32, i32) {
    %c0_i32 = arith.constant 0 : i32
    %c0_i32_0 = arith.constant 0 : i32
    return %arg0, %c0_i32 : i32, i32
  }
  func.func @transform_4(%arg0: i32, %arg1: i32) -> (i32, i32) {
    %c0_i32 = arith.constant 0 : i32
    %c0_i32_0 = arith.constant 0 : i32
    %c0_i32_1 = arith.constant 0 : i32
    return %c0_i32, %c0_i32_0 : i32, i32
  }
  func.func @transform_5(%arg0: i32, %arg1: i32) -> (i32, i32) {
    %c0_i32 = arith.constant 0 : i32
    %c0_i32_0 = arith.constant 0 : i32
    %c0_i32_1 = arith.constant 0 : i32
    return %c0_i32, %c0_i32_0 : i32, i32
  }
  func.func @transform_6(%arg0: i32, %arg1: i32) -> (i32, i32) {
    %c0_i32 = arith.constant 0 : i32
    %c0_i32_0 = arith.constant 0 : i32
    return %arg0, %c0_i32 : i32, i32
  }
}

module attributes {stable_mosaic.version = 11 : i64} {
  func.func @_ffn_res_ln_kernel(%arg0: i32, %arg1: memref<16x32xf32, #tpu.memory_space<vmem>>, %arg2: memref<32x64xbf16, #tpu.memory_space<vmem>>, %arg3: memref<1x64xf32, #tpu.memory_space<vmem>>, %arg4: memref<64x32xbf16, #tpu.memory_space<vmem>>, %arg5: memref<1x32xf32, #tpu.memory_space<vmem>>, %arg6: memref<1x32xf32, #tpu.memory_space<vmem>>, %arg7: memref<1x32xf32, #tpu.memory_space<vmem>>, %arg8: memref<16x32xf32, #tpu.memory_space<vmem>>) attributes {dimension_semantics = [#tpu.dimension_semantics<parallel>], iteration_bounds = array<i64: 1>, scalar_prefetch = 0 : i64, scratch_operands = 0 : i64, tpu.core_type = #tpu.core_type<tc>, window_params = [{transform_indices = @transform_0, window_bounds = array<i64: 16, 32>}, {pipeline_mode = #tpu.pipeline_mode<synchronous>, transform_indices = @transform_1, window_bounds = array<i64: 32, 64>}, {pipeline_mode = #tpu.pipeline_mode<synchronous>, transform_indices = @transform_2, window_bounds = array<i64: 1, 64>}, {pipeline_mode = #tpu.pipeline_mode<synchronous>, transform_indices = @transform_3, window_bounds = array<i64: 64, 32>}, {pipeline_mode = #tpu.pipeline_mode<synchronous>, transform_indices = @transform_4, window_bounds = array<i64: 1, 32>}, {pipeline_mode = #tpu.pipeline_mode<synchronous>, transform_indices = @transform_5, window_bounds = array<i64: 1, 32>}, {pipeline_mode = #tpu.pipeline_mode<synchronous>, transform_indices = @transform_6, window_bounds = array<i64: 1, 32>}, {transform_indices = @transform_7, window_bounds = array<i64: 16, 32>}]} {
    %c0 = arith.constant 0 : index
    %c0_0 = arith.constant 0 : index
    %0 = vector.load %arg1[%c0, %c0_0] : memref<16x32xf32, #tpu.memory_space<vmem>>, vector<16x32xf32>
    %1 = arith.truncf %0 : vector<16x32xf32> to vector<16x32xbf16>
    %c0_1 = arith.constant 0 : index
    %c0_2 = arith.constant 0 : index
    %2 = vector.load %arg2[%c0_1, %c0_2] : memref<32x64xbf16, #tpu.memory_space<vmem>>, vector<32x64xbf16>
    %cst = arith.constant dense<0.000000e+00> : vector<16x64xf32>
    %3 = tpu.matmul %1, %2, %cst {dimension_numbers = #tpu.dot_dimension_numbers<[1], [0], [0], [1], [0, 0, 1, 1], [], []>} : vector<16x32xbf16>, vector<32x64xbf16>, vector<16x64xf32> -> vector<16x64xf32>
    %c0_3 = arith.constant 0 : index
    %c0_4 = arith.constant 0 : index
    %4 = vector.load %arg3[%c0_3, %c0_4] : memref<1x64xf32, #tpu.memory_space<vmem>>, vector<1x64xf32>
    %5 = vector.broadcast %4 : vector<1x64xf32> to vector<16x64xf32>
    %6 = arith.addf %3, %5 : vector<16x64xf32>
    %cst_5 = arith.constant 0.000000e+00 : f32
    %7 = vector.broadcast %cst_5 : f32 to vector<16x64xf32>
    %8 = arith.maximumf %6, %7 : vector<16x64xf32>
    %9 = arith.truncf %8 : vector<16x64xf32> to vector<16x64xbf16>
    %c0_6 = arith.constant 0 : index
    %c0_7 = arith.constant 0 : index
    %10 = vector.load %arg4[%c0_6, %c0_7] : memref<64x32xbf16, #tpu.memory_space<vmem>>, vector<64x32xbf16>
    %cst_8 = arith.constant dense<0.000000e+00> : vector<16x32xf32>
    %11 = tpu.matmul %9, %10, %cst_8 {dimension_numbers = #tpu.dot_dimension_numbers<[1], [0], [0], [1], [0, 0, 1, 1], [], []>} : vector<16x64xbf16>, vector<64x32xbf16>, vector<16x32xf32> -> vector<16x32xf32>
    %c0_9 = arith.constant 0 : index
    %c0_10 = arith.constant 0 : index
    %12 = vector.load %arg5[%c0_9, %c0_10] : memref<1x32xf32, #tpu.memory_space<vmem>>, vector<1x32xf32>
    %13 = vector.broadcast %12 : vector<1x32xf32> to vector<16x32xf32>
    %14 = arith.addf %11, %13 : vector<16x32xf32>
    %15 = arith.addf %0, %14 : vector<16x32xf32>
    %cst_11 = arith.constant dense<0.000000e+00> : vector<16xf32>
    %16 = vector.multi_reduction <add>, %15, %cst_11 [1] : vector<16x32xf32> to vector<16xf32>
    %17 = vector.shape_cast %16 : vector<16xf32> to vector<16x1xf32>
    %cst_12 = arith.constant 3.200000e+01 : f32
    %18 = vector.broadcast %cst_12 : f32 to vector<16x1xf32>
    %19 = arith.divf %17, %18 : vector<16x1xf32>
    %20 = vector.broadcast %19 : vector<16x1xf32> to vector<16x32xf32>
    %21 = arith.subf %15, %20 : vector<16x32xf32>
    %22 = arith.mulf %21, %21 : vector<16x32xf32>
    %cst_13 = arith.constant dense<0.000000e+00> : vector<16xf32>
    %23 = vector.multi_reduction <add>, %22, %cst_13 [1] : vector<16x32xf32> to vector<16xf32>
    %24 = vector.shape_cast %23 : vector<16xf32> to vector<16x1xf32>
    %cst_14 = arith.constant 3.200000e+01 : f32
    %25 = vector.broadcast %cst_14 : f32 to vector<16x1xf32>
    %26 = arith.divf %24, %25 : vector<16x1xf32>
    %27 = vector.broadcast %19 : vector<16x1xf32> to vector<16x32xf32>
    %28 = arith.subf %15, %27 : vector<16x32xf32>
    %cst_15 = arith.constant 9.99999974E-6 : f32
    %29 = vector.broadcast %cst_15 : f32 to vector<16x1xf32>
    %30 = arith.addf %26, %29 : vector<16x1xf32>
    %31 = math.rsqrt %30 : vector<16x1xf32>
    %32 = vector.broadcast %31 : vector<16x1xf32> to vector<16x32xf32>
    %33 = arith.mulf %28, %32 : vector<16x32xf32>
    %c0_16 = arith.constant 0 : index
    %c0_17 = arith.constant 0 : index
    %34 = vector.load %arg6[%c0_16, %c0_17] : memref<1x32xf32, #tpu.memory_space<vmem>>, vector<1x32xf32>
    %35 = vector.broadcast %34 : vector<1x32xf32> to vector<16x32xf32>
    %36 = arith.mulf %33, %35 : vector<16x32xf32>
    %c0_18 = arith.constant 0 : index
    %c0_19 = arith.constant 0 : index
    %37 = vector.load %arg7[%c0_18, %c0_19] : memref<1x32xf32, #tpu.memory_space<vmem>>, vector<1x32xf32>
    %38 = vector.broadcast %37 : vector<1x32xf32> to vector<16x32xf32>
    %39 = arith.addf %36, %38 : vector<16x32xf32>
    %c0_20 = arith.constant 0 : index
    %c0_21 = arith.constant 0 : index
    %40 = vector.load %arg8[%c0_20, %c0_21] : memref<16x32xf32, #tpu.memory_space<vmem>>, vector<16x32xf32>
    tpu.vector_store %arg8[%c0_20, %c0_21], %39 {strides = array<i32>} : memref<16x32xf32, #tpu.memory_space<vmem>>, vector<16x32xf32>,
    return
  }
  func.func @transform_0(%arg0: i32) -> (i32, i32) {
    %c0_i32 = arith.constant 0 : i32
    %c0_i32_0 = arith.constant 0 : i32
    return %arg0, %c0_i32 : i32, i32
  }
  func.func @transform_1(%arg0: i32) -> (i32, i32) {
    %c0_i32 = arith.constant 0 : i32
    %c0_i32_0 = arith.constant 0 : i32
    %c0_i32_1 = arith.constant 0 : i32
    return %c0_i32, %c0_i32_0 : i32, i32
  }
  func.func @transform_2(%arg0: i32) -> (i32, i32) {
    %c0_i32 = arith.constant 0 : i32
    %c0_i32_0 = arith.constant 0 : i32
    %c0_i32_1 = arith.constant 0 : i32
    return %c0_i32, %c0_i32_0 : i32, i32
  }
  func.func @transform_3(%arg0: i32) -> (i32, i32) {
    %c0_i32 = arith.constant 0 : i32
    %c0_i32_0 = arith.constant 0 : i32
    %c0_i32_1 = arith.constant 0 : i32
    return %c0_i32, %c0_i32_0 : i32, i32
  }
  func.func @transform_4(%arg0: i32) -> (i32, i32) {
    %c0_i32 = arith.constant 0 : i32
    %c0_i32_0 = arith.constant 0 : i32
    %c0_i32_1 = arith.constant 0 : i32
    return %c0_i32, %c0_i32_0 : i32, i32
  }
  func.func @transform_5(%arg0: i32) -> (i32, i32) {
    %c0_i32 = arith.constant 0 : i32
    %c0_i32_0 = arith.constant 0 : i32
    %c0_i32_1 = arith.constant 0 : i32
    return %c0_i32, %c0_i32_0 : i32, i32
  }
  func.func @transform_6(%arg0: i32) -> (i32, i32) {
    %c0_i32 = arith.constant 0 : i32
    %c0_i32_0 = arith.constant 0 : i32
    %c0_i32_1 = arith.constant 0 : i32
    return %c0_i32, %c0_i32_0 : i32, i32
  }
  func.func @transform_7(%arg0: i32) -> (i32, i32) {
    %c0_i32 = arith.constant 0 : i32
    %c0_i32_0 = arith.constant 0 : i32
    return %arg0, %c0_i32 : i32, i32
  }
}

module attributes {stable_mosaic.version = 11 : i64} {
  func.func @_linear_kernel(%arg0: i32, %arg1: i32, %arg2: i32, %arg3: memref<16x32xf32, #tpu.memory_space<vmem>>, %arg4: memref<32x64xbf16, #tpu.memory_space<vmem>>, %arg5: memref<1x64xf32, #tpu.memory_space<vmem>>, %arg6: memref<16x64xbf16, #tpu.memory_space<vmem>>, %arg7: memref<16x64xf32, #tpu.memory_space<vmem>>) attributes {dimension_semantics = [#tpu.dimension_semantics<parallel>, #tpu.dimension_semantics<parallel>, #tpu.dimension_semantics<arbitrary>], iteration_bounds = array<i64: 1, 1, 1>, scalar_prefetch = 0 : i64, scratch_operands = 1 : i64, tpu.core_type = #tpu.core_type<tc>, window_params = [{transform_indices = @transform_0, window_bounds = array<i64: 16, 32>}, {transform_indices = @transform_1, window_bounds = array<i64: 32, 64>}, {transform_indices = @transform_2, window_bounds = array<i64: 1, 64>}, {transform_indices = @transform_3, window_bounds = array<i64: 16, 64>}]} {
    %c0_i32 = arith.constant 0 : i32
    %0 = arith.cmpi eq, %arg2, %c0_i32 : i32
    %1 = arith.extui %0 : i1 to i32
    %c0_i32_0 = arith.constant 0 : i32
    %2 = arith.cmpi ne, %1, %c0_i32_0 : i32
    scf.if %2 {
      %cst_10 = arith.constant 0.000000e+00 : f32
      %13 = vector.broadcast %cst_10 : f32 to vector<16x64xf32>
      %c0_11 = arith.constant 0 : index
      %c0_12 = arith.constant 0 : index
      %14 = vector.load %arg7[%c0_11, %c0_12] : memref<16x64xf32, #tpu.memory_space<vmem>>, vector<16x64xf32>
      tpu.vector_store %arg7[%c0_11, %c0_12], %13 {strides = array<i32>} : memref<16x64xf32, #tpu.memory_space<vmem>>, vector<16x64xf32>,
    } else {
    }
    %c0 = arith.constant 0 : index
    %c0_1 = arith.constant 0 : index
    %3 = vector.load %arg7[%c0, %c0_1] : memref<16x64xf32, #tpu.memory_space<vmem>>, vector<16x64xf32>
    %c0_2 = arith.constant 0 : index
    %c0_3 = arith.constant 0 : index
    %4 = vector.load %arg3[%c0_2, %c0_3] : memref<16x32xf32, #tpu.memory_space<vmem>>, vector<16x32xf32>
    %5 = arith.truncf %4 : vector<16x32xf32> to vector<16x32xbf16>
    %c0_4 = arith.constant 0 : index
    %c0_5 = arith.constant 0 : index
    %6 = vector.load %arg4[%c0_4, %c0_5] : memref<32x64xbf16, #tpu.memory_space<vmem>>, vector<32x64xbf16>
    %cst = arith.constant dense<0.000000e+00> : vector<16x64xf32>
    %7 = tpu.matmul %5, %6, %cst {dimension_numbers = #tpu.dot_dimension_numbers<[1], [0], [0], [1], [0, 0, 1, 1], [], []>} : vector<16x32xbf16>, vector<32x64xbf16>, vector<16x64xf32> -> vector<16x64xf32>
    %8 = arith.addf %3, %7 : vector<16x64xf32>
    %c0_6 = arith.constant 0 : index
    %c0_7 = arith.constant 0 : index
    %9 = vector.load %arg7[%c0_6, %c0_7] : memref<16x64xf32, #tpu.memory_space<vmem>>, vector<16x64xf32>
    tpu.vector_store %arg7[%c0_6, %c0_7], %8 {strides = array<i32>} : memref<16x64xf32, #tpu.memory_space<vmem>>, vector<16x64xf32>,
    %c0_i32_8 = arith.constant 0 : i32
    %10 = arith.cmpi eq, %arg2, %c0_i32_8 : i32
    %11 = arith.extui %10 : i1 to i32
    %c0_i32_9 = arith.constant 0 : i32
    %12 = arith.cmpi ne, %11, %c0_i32_9 : i32
    scf.if %12 {
      %c0_10 = arith.constant 0 : index
      %c0_11 = arith.constant 0 : index
      %13 = vector.load %arg7[%c0_10, %c0_11] : memref<16x64xf32, #tpu.memory_space<vmem>>, vector<16x64xf32>
      %c0_12 = arith.constant 0 : index
      %c0_13 = arith.constant 0 : index
      %14 = vector.load %arg5[%c0_12, %c0_13] : memref<1x64xf32, #tpu.memory_space<vmem>>, vector<1x64xf32>
      %15 = vector.broadcast %14 : vector<1x64xf32> to vector<16x64xf32>
      %16 = arith.addf %13, %15 : vector<16x64xf32>
      %17 = arith.truncf %16 : vector<16x64xf32> to vector<16x64xbf16>
      %c0_14 = arith.constant 0 : index
      %c0_15 = arith.constant 0 : index
      %18 = vector.load %arg6[%c0_14, %c0_15] : memref<16x64xbf16, #tpu.memory_space<vmem>>, vector<16x64xbf16>
      tpu.vector_store %arg6[%c0_14, %c0_15], %17 {strides = array<i32>} : memref<16x64xbf16, #tpu.memory_space<vmem>>, vector<16x64xbf16>,
    } else {
    }
    return
  }
  func.func @transform_0(%arg0: i32, %arg1: i32, %arg2: i32) -> (i32, i32) {
    %c0_i32 = arith.constant 0 : i32
    return %arg0, %arg2 : i32, i32
  }
  func.func @transform_1(%arg0: i32, %arg1: i32, %arg2: i32) -> (i32, i32) {
    %c0_i32 = arith.constant 0 : i32
    return %arg2, %arg1 : i32, i32
  }
  func.func @transform_2(%arg0: i32, %arg1: i32, %arg2: i32) -> (i32, i32) {
    %c0_i32 = arith.constant 0 : i32
    %c0_i32_0 = arith.constant 0 : i32
    return %c0_i32, %arg1 : i32, i32
  }
  func.func @transform_3(%arg0: i32, %arg1: i32, %arg2: i32) -> (i32, i32) {
    %c0_i32 = arith.constant 0 : i32
    return %arg0, %arg1 : i32, i32
  }
}

module attributes {stable_mosaic.version = 11 : i64} {
  func.func @_self_attn_kernel(%arg0: i32, %arg1: memref<1x10x96xbf16, #tpu.memory_space<vmem>>, %arg2: memref<10x10xf32, #tpu.memory_space<vmem>>, %arg3: memref<1x1x10xf32, #tpu.memory_space<vmem>>, %arg4: memref<1x10x32xbf16, #tpu.memory_space<vmem>>) attributes {dimension_semantics = [#tpu.dimension_semantics<parallel>], iteration_bounds = array<i64: 2>, scalar_prefetch = 0 : i64, scratch_operands = 0 : i64, tpu.core_type = #tpu.core_type<tc>, window_params = [{transform_indices = @transform_0, window_bounds = array<i64: 1, 10, 96>}, {pipeline_mode = #tpu.pipeline_mode<synchronous>, transform_indices = @transform_1, window_bounds = array<i64: 10, 10>}, {transform_indices = @transform_2, window_bounds = array<i64: 1, 1, 10>}, {transform_indices = @transform_3, window_bounds = array<i64: 1, 10, 32>}]} {
    %c0 = arith.constant 0 : index
    %c0_0 = arith.constant 0 : index
    %0 = vector.load %arg2[%c0, %c0_0] : memref<10x10xf32, #tpu.memory_space<vmem>>, vector<10x10xf32>
    %c0_1 = arith.constant 0 : index
    %c0_2 = arith.constant 0 : index
    %c0_3 = arith.constant 0 : index
    %1 = vector.load %arg3[%c0_1, %c0_2, %c0_3] : memref<1x1x10xf32, #tpu.memory_space<vmem>>, vector<1x1x10xf32>
    %2 = vector.shape_cast %1 : vector<1x1x10xf32> to vector<1x10xf32>
    %3 = vector.broadcast %2 : vector<1x10xf32> to vector<10x10xf32>
    %4 = arith.addf %0, %3 : vector<10x10xf32>
    %c0_4 = arith.constant 0 : index
    %c0_5 = arith.constant 0 : index
    %c0_6 = arith.constant 0 : index
    %5 = vector.load %arg1[%c0_4, %c0_5, %c0_6] : memref<1x10x96xbf16, #tpu.memory_space<vmem>>, vector<1x10x8xbf16>
    %6 = vector.shape_cast %5 : vector<1x10x8xbf16> to vector<10x8xbf16>
    %c0_7 = arith.constant 0 : index
    %c0_8 = arith.constant 0 : index
    %c32 = arith.constant 32 : index
    %7 = vector.load %arg1[%c0_7, %c0_8, %c32] : memref<1x10x96xbf16, #tpu.memory_space<vmem>>, vector<1x10x8xbf16>
    %8 = vector.shape_cast %7 : vector<1x10x8xbf16> to vector<10x8xbf16>
    %c0_9 = arith.constant 0 : index
    %c0_10 = arith.constant 0 : index
    %c64 = arith.constant 64 : index
    %9 = vector.load %arg1[%c0_9, %c0_10, %c64] : memref<1x10x96xbf16, #tpu.memory_space<vmem>>, vector<1x10x8xbf16>
    %10 = vector.shape_cast %9 : vector<1x10x8xbf16> to vector<10x8xbf16>
    "tpu.trace_start"() <{level = 10 : i32, message = "qd,kd->qk"}> : () -> ()
    %cst = arith.constant dense<0.000000e+00> : vector<10x10xf32>
    %11 = tpu.matmul %6, %8, %cst {dimension_numbers = #tpu.dot_dimension_numbers<[1], [1], [0], [0], [0, 0, 1, 0], [], []>} : vector<10x8xbf16>, vector<10x8xbf16>, vector<10x10xf32> -> vector<10x10xf32>
    "tpu.trace_stop"() : () -> ()
    %12 = arith.addf %11, %4 : vector<10x10xf32>
    %cst_11 = arith.constant dense<0xFF800000> : vector<10xf32>
    %13 = vector.multi_reduction <maximumf>, %12, %cst_11 [1] : vector<10x10xf32> to vector<10xf32>
    %14 = vector.shape_cast %13 : vector<10xf32> to vector<10x1xf32>
    %15 = vector.broadcast %14 : vector<10x1xf32> to vector<10x10xf32>
    %16 = arith.subf %12, %15 : vector<10x10xf32>
    %17 = math.exp %16 : vector<10x10xf32>
    %cst_12 = arith.constant dense<0.000000e+00> : vector<10xf32>
    %18 = vector.multi_reduction <add>, %17, %cst_12 [1] : vector<10x10xf32> to vector<10xf32>
    %19 = vector.shape_cast %18 : vector<10xf32> to vector<10x1xf32>
    %20 = tpu.reciprocal %19 {approx = true} : vector<10x1xf32> -> vector<10x1xf32>
    %21 = vector.broadcast %20 : vector<10x1xf32> to vector<10x10xf32>
    %22 = arith.mulf %17, %21 : vector<10x10xf32>
    %23 = arith.truncf %22 : vector<10x10xf32> to vector<10x10xbf16>
    "tpu.trace_start"() <{level = 10 : i32, message = "qk,kd->qd"}> : () -> ()
    %cst_13 = arith.constant dense<0.000000e+00> : vector<10x8xf32>
    %24 = tpu.matmul %23, %10, %cst_13 {dimension_numbers = #tpu.dot_dimension_numbers<[1], [0], [0], [1], [0, 0, 1, 1], [], []>} : vector<10x10xbf16>, vector<10x8xbf16>, vector<10x8xf32> -> vector<10x8xf32>
    "tpu.trace_stop"() : () -> ()
    %25 = arith.truncf %24 : vector<10x8xf32> to vector<10x8xbf16>
    %c0_14 = arith.constant 0 : index
    %c0_15 = arith.constant 0 : index
    %c0_16 = arith.constant 0 : index
    %26 = vector.load %arg4[%c0_14, %c0_15, %c0_16] : memref<1x10x32xbf16, #tpu.memory_space<vmem>>, vector<1x10x8xbf16>
    %27 = vector.shape_cast %26 : vector<1x10x8xbf16> to vector<10x8xbf16>
    %28 = vector.shape_cast %25 : vector<10x8xbf16> to vector<1x10x8xbf16>
    tpu.vector_store %arg4[%c0_14, %c0_15, %c0_16], %28 {strides = array<i32>} : memref<1x10x32xbf16, #tpu.memory_space<vmem>>, vector<1x10x8xbf16>,
    %c0_17 = arith.constant 0 : index
    %c0_18 = arith.constant 0 : index
    %c8 = arith.constant 8 : index
    %29 = vector.load %arg1[%c0_17, %c0_18, %c8] : memref<1x10x96xbf16, #tpu.memory_space<vmem>>, vector<1x10x8xbf16>
    %30 = vector.shape_cast %29 : vector<1x10x8xbf16> to vector<10x8xbf16>
    %c0_19 = arith.constant 0 : index
    %c0_20 = arith.constant 0 : index
    %c40 = arith.constant 40 : index
    %31 = vector.load %arg1[%c0_19, %c0_20, %c40] : memref<1x10x96xbf16, #tpu.memory_space<vmem>>, vector<1x10x8xbf16>
    %32 = vector.shape_cast %31 : vector<1x10x8xbf16> to vector<10x8xbf16>
    %c0_21 = arith.constant 0 : index
    %c0_22 = arith.constant 0 : index
    %c72 = arith.constant 72 : index
    %33 = vector.load %arg1[%c0_21, %c0_22, %c72] : memref<1x10x96xbf16, #tpu.memory_space<vmem>>, vector<1x10x8xbf16>
    %34 = vector.shape_cast %33 : vector<1x10x8xbf16> to vector<10x8xbf16>
    "tpu.trace_start"() <{level = 10 : i32, message = "qd,kd->qk"}> : () -> ()
    %cst_23 = arith.constant dense<0.000000e+00> : vector<10x10xf32>
    %35 = tpu.matmul %30, %32, %cst_23 {dimension_numbers = #tpu.dot_dimension_numbers<[1], [1], [0], [0], [0, 0, 1, 0], [], []>} : vector<10x8xbf16>, vector<10x8xbf16>, vector<10x10xf32> -> vector<10x10xf32>
    "tpu.trace_stop"() : () -> ()
    %36 = arith.addf %35, %4 : vector<10x10xf32>
    %cst_24 = arith.constant dense<0xFF800000> : vector<10xf32>
    %37 = vector.multi_reduction <maximumf>, %36, %cst_24 [1] : vector<10x10xf32> to vector<10xf32>
    %38 = vector.shape_cast %37 : vector<10xf32> to vector<10x1xf32>
    %39 = vector.broadcast %38 : vector<10x1xf32> to vector<10x10xf32>
    %40 = arith.subf %36, %39 : vector<10x10xf32>
    %41 = math.exp %40 : vector<10x10xf32>
    %cst_25 = arith.constant dense<0.000000e+00> : vector<10xf32>
    %42 = vector.multi_reduction <add>, %41, %cst_25 [1] : vector<10x10xf32> to vector<10xf32>
    %43 = vector.shape_cast %42 : vector<10xf32> to vector<10x1xf32>
    %44 = tpu.reciprocal %43 {approx = true} : vector<10x1xf32> -> vector<10x1xf32>
    %45 = vector.broadcast %44 : vector<10x1xf32> to vector<10x10xf32>
    %46 = arith.mulf %41, %45 : vector<10x10xf32>
    %47 = arith.truncf %46 : vector<10x10xf32> to vector<10x10xbf16>
    "tpu.trace_start"() <{level = 10 : i32, message = "qk,kd->qd"}> : () -> ()
    %cst_26 = arith.constant dense<0.000000e+00> : vector<10x8xf32>
    %48 = tpu.matmul %47, %34, %cst_26 {dimension_numbers = #tpu.dot_dimension_numbers<[1], [0], [0], [1], [0, 0, 1, 1], [], []>} : vector<10x10xbf16>, vector<10x8xbf16>, vector<10x8xf32> -> vector<10x8xf32>
    "tpu.trace_stop"() : () -> ()
    %49 = arith.truncf %48 : vector<10x8xf32> to vector<10x8xbf16>
    %c0_27 = arith.constant 0 : index
    %c0_28 = arith.constant 0 : index
    %c8_29 = arith.constant 8 : index
    %50 = vector.load %arg4[%c0_27, %c0_28, %c8_29] : memref<1x10x32xbf16, #tpu.memory_space<vmem>>, vector<1x10x8xbf16>
    %51 = vector.shape_cast %50 : vector<1x10x8xbf16> to vector<10x8xbf16>
    %52 = vector.shape_cast %49 : vector<10x8xbf16> to vector<1x10x8xbf16>
    tpu.vector_store %arg4[%c0_27, %c0_28, %c8_29], %52 {strides = array<i32>} : memref<1x10x32xbf16, #tpu.memory_space<vmem>>, vector<1x10x8xbf16>,
    %c0_30 = arith.constant 0 : index
    %c0_31 = arith.constant 0 : index
    %c16 = arith.constant 16 : index
    %53 = vector.load %arg1[%c0_30, %c0_31, %c16] : memref<1x10x96xbf16, #tpu.memory_space<vmem>>, vector<1x10x8xbf16>
    %54 = vector.shape_cast %53 : vector<1x10x8xbf16> to vector<10x8xbf16>
    %c0_32 = arith.constant 0 : index
    %c0_33 = arith.constant 0 : index
    %c48 = arith.constant 48 : index
    %55 = vector.load %arg1[%c0_32, %c0_33, %c48] : memref<1x10x96xbf16, #tpu.memory_space<vmem>>, vector<1x10x8xbf16>
    %56 = vector.shape_cast %55 : vector<1x10x8xbf16> to vector<10x8xbf16>
    %c0_34 = arith.constant 0 : index
    %c0_35 = arith.constant 0 : index
    %c80 = arith.constant 80 : index
    %57 = vector.load %arg1[%c0_34, %c0_35, %c80] : memref<1x10x96xbf16, #tpu.memory_space<vmem>>, vector<1x10x8xbf16>
    %58 = vector.shape_cast %57 : vector<1x10x8xbf16> to vector<10x8xbf16>
    "tpu.trace_start"() <{level = 10 : i32, message = "qd,kd->qk"}> : () -> ()
    %cst_36 = arith.constant dense<0.000000e+00> : vector<10x10xf32>
    %59 = tpu.matmul %54, %56, %cst_36 {dimension_numbers = #tpu.dot_dimension_numbers<[1], [1], [0], [0], [0, 0, 1, 0], [], []>} : vector<10x8xbf16>, vector<10x8xbf16>, vector<10x10xf32> -> vector<10x10xf32>
    "tpu.trace_stop"() : () -> ()
    %60 = arith.addf %59, %4 : vector<10x10xf32>
    %cst_37 = arith.constant dense<0xFF800000> : vector<10xf32>
    %61 = vector.multi_reduction <maximumf>, %60, %cst_37 [1] : vector<10x10xf32> to vector<10xf32>
    %62 = vector.shape_cast %61 : vector<10xf32> to vector<10x1xf32>
    %63 = vector.broadcast %62 : vector<10x1xf32> to vector<10x10xf32>
    %64 = arith.subf %60, %63 : vector<10x10xf32>
    %65 = math.exp %64 : vector<10x10xf32>
    %cst_38 = arith.constant dense<0.000000e+00> : vector<10xf32>
    %66 = vector.multi_reduction <add>, %65, %cst_38 [1] : vector<10x10xf32> to vector<10xf32>
    %67 = vector.shape_cast %66 : vector<10xf32> to vector<10x1xf32>
    %68 = tpu.reciprocal %67 {approx = true} : vector<10x1xf32> -> vector<10x1xf32>
    %69 = vector.broadcast %68 : vector<10x1xf32> to vector<10x10xf32>
    %70 = arith.mulf %65, %69 : vector<10x10xf32>
    %71 = arith.truncf %70 : vector<10x10xf32> to vector<10x10xbf16>
    "tpu.trace_start"() <{level = 10 : i32, message = "qk,kd->qd"}> : () -> ()
    %cst_39 = arith.constant dense<0.000000e+00> : vector<10x8xf32>
    %72 = tpu.matmul %71, %58, %cst_39 {dimension_numbers = #tpu.dot_dimension_numbers<[1], [0], [0], [1], [0, 0, 1, 1], [], []>} : vector<10x10xbf16>, vector<10x8xbf16>, vector<10x8xf32> -> vector<10x8xf32>
    "tpu.trace_stop"() : () -> ()
    %73 = arith.truncf %72 : vector<10x8xf32> to vector<10x8xbf16>
    %c0_40 = arith.constant 0 : index
    %c0_41 = arith.constant 0 : index
    %c16_42 = arith.constant 16 : index
    %74 = vector.load %arg4[%c0_40, %c0_41, %c16_42] : memref<1x10x32xbf16, #tpu.memory_space<vmem>>, vector<1x10x8xbf16>
    %75 = vector.shape_cast %74 : vector<1x10x8xbf16> to vector<10x8xbf16>
    %76 = vector.shape_cast %73 : vector<10x8xbf16> to vector<1x10x8xbf16>
    tpu.vector_store %arg4[%c0_40, %c0_41, %c16_42], %76 {strides = array<i32>} : memref<1x10x32xbf16, #tpu.memory_space<vmem>>, vector<1x10x8xbf16>,
    %c0_43 = arith.constant 0 : index
    %c0_44 = arith.constant 0 : index
    %c24 = arith.constant 24 : index
    %77 = vector.load %arg1[%c0_43, %c0_44, %c24] : memref<1x10x96xbf16, #tpu.memory_space<vmem>>, vector<1x10x8xbf16>
    %78 = vector.shape_cast %77 : vector<1x10x8xbf16> to vector<10x8xbf16>
    %c0_45 = arith.constant 0 : index
    %c0_46 = arith.constant 0 : index
    %c56 = arith.constant 56 : index
    %79 = vector.load %arg1[%c0_45, %c0_46, %c56] : memref<1x10x96xbf16, #tpu.memory_space<vmem>>, vector<1x10x8xbf16>
    %80 = vector.shape_cast %79 : vector<1x10x8xbf16> to vector<10x8xbf16>
    %c0_47 = arith.constant 0 : index
    %c0_48 = arith.constant 0 : index
    %c88 = arith.constant 88 : index
    %81 = vector.load %arg1[%c0_47, %c0_48, %c88] : memref<1x10x96xbf16, #tpu.memory_space<vmem>>, vector<1x10x8xbf16>
    %82 = vector.shape_cast %81 : vector<1x10x8xbf16> to vector<10x8xbf16>
    "tpu.trace_start"() <{level = 10 : i32, message = "qd,kd->qk"}> : () -> ()
    %cst_49 = arith.constant dense<0.000000e+00> : vector<10x10xf32>
    %83 = tpu.matmul %78, %80, %cst_49 {dimension_numbers = #tpu.dot_dimension_numbers<[1], [1], [0], [0], [0, 0, 1, 0], [], []>} : vector<10x8xbf16>, vector<10x8xbf16>, vector<10x10xf32> -> vector<10x10xf32>
    "tpu.trace_stop"() : () -> ()
    %84 = arith.addf %83, %4 : vector<10x10xf32>
    %cst_50 = arith.constant dense<0xFF800000> : vector<10xf32>
    %85 = vector.multi_reduction <maximumf>, %84, %cst_50 [1] : vector<10x10xf32> to vector<10xf32>
    %86 = vector.shape_cast %85 : vector<10xf32> to vector<10x1xf32>
    %87 = vector.broadcast %86 : vector<10x1xf32> to vector<10x10xf32>
    %88 = arith.subf %84, %87 : vector<10x10xf32>
    %89 = math.exp %88 : vector<10x10xf32>
    %cst_51 = arith.constant dense<0.000000e+00> : vector<10xf32>
    %90 = vector.multi_reduction <add>, %89, %cst_51 [1] : vector<10x10xf32> to vector<10xf32>
    %91 = vector.shape_cast %90 : vector<10xf32> to vector<10x1xf32>
    %92 = tpu.reciprocal %91 {approx = true} : vector<10x1xf32> -> vector<10x1xf32>
    %93 = vector.broadcast %92 : vector<10x1xf32> to vector<10x10xf32>
    %94 = arith.mulf %89, %93 : vector<10x10xf32>
    %95 = arith.truncf %94 : vector<10x10xf32> to vector<10x10xbf16>
    "tpu.trace_start"() <{level = 10 : i32, message = "qk,kd->qd"}> : () -> ()
    %cst_52 = arith.constant dense<0.000000e+00> : vector<10x8xf32>
    %96 = tpu.matmul %95, %82, %cst_52 {dimension_numbers = #tpu.dot_dimension_numbers<[1], [0], [0], [1], [0, 0, 1, 1], [], []>} : vector<10x10xbf16>, vector<10x8xbf16>, vector<10x8xf32> -> vector<10x8xf32>
    "tpu.trace_stop"() : () -> ()
    %97 = arith.truncf %96 : vector<10x8xf32> to vector<10x8xbf16>
    %c0_53 = arith.constant 0 : index
    %c0_54 = arith.constant 0 : index
    %c24_55 = arith.constant 24 : index
    %98 = vector.load %arg4[%c0_53, %c0_54, %c24_55] : memref<1x10x32xbf16, #tpu.memory_space<vmem>>, vector<1x10x8xbf16>
    %99 = vector.shape_cast %98 : vector<1x10x8xbf16> to vector<10x8xbf16>
    %100 = vector.shape_cast %97 : vector<10x8xbf16> to vector<1x10x8xbf16>
    tpu.vector_store %arg4[%c0_53, %c0_54, %c24_55], %100 {strides = array<i32>} : memref<1x10x32xbf16, #tpu.memory_space<vmem>>, vector<1x10x8xbf16>,
    return
  }
  func.func @transform_0(%arg0: i32) -> (i32, i32, i32) {
    %c0_i32 = arith.constant 0 : i32
    %c0_i32_0 = arith.constant 0 : i32
    %c0_i32_1 = arith.constant 0 : i32
    return %arg0, %c0_i32, %c0_i32_0 : i32, i32, i32
  }
  func.func @transform_1(%arg0: i32) -> (i32, i32) {
    %c0_i32 = arith.constant 0 : i32
    %c0_i32_0 = arith.constant 0 : i32
    %c0_i32_1 = arith.constant 0 : i32
    return %c0_i32, %c0_i32_0 : i32, i32
  }
  func.func @transform_2(%arg0: i32) -> (i32, i32, i32) {
    %c0_i32 = arith.constant 0 : i32
    %c0_i32_0 = arith.constant 0 : i32
    %c0_i32_1 = arith.constant 0 : i32
    return %arg0, %c0_i32, %c0_i32_0 : i32, i32, i32
  }
  func.func @transform_3(%arg0: i32) -> (i32, i32, i32) {
    %c0_i32 = arith.constant 0 : i32
    %c0_i32_0 = arith.constant 0 : i32
    %c0_i32_1 = arith.constant 0 : i32
    return %arg0, %c0_i32, %c0_i32_0 : i32, i32, i32
  }
}

module attributes {stable_mosaic.version = 11 : i64} {
  func.func @_linear_kernel(%arg0: i32, %arg1: i32, %arg2: i32, %arg3: memref<20x32xf32, #tpu.memory_space<vmem>>, %arg4: memref<32x96xbf16, #tpu.memory_space<vmem>>, %arg5: memref<1x96xf32, #tpu.memory_space<vmem>>, %arg6: memref<20x96xbf16, #tpu.memory_space<vmem>>, %arg7: memref<20x96xf32, #tpu.memory_space<vmem>>) attributes {dimension_semantics = [#tpu.dimension_semantics<parallel>, #tpu.dimension_semantics<parallel>, #tpu.dimension_semantics<arbitrary>], iteration_bounds = array<i64: 1, 1, 1>, scalar_prefetch = 0 : i64, scratch_operands = 1 : i64, tpu.core_type = #tpu.core_type<tc>, window_params = [{transform_indices = @transform_0, window_bounds = array<i64: 20, 32>}, {transform_indices = @transform_1, window_bounds = array<i64: 32, 96>}, {transform_indices = @transform_2, window_bounds = array<i64: 1, 96>}, {transform_indices = @transform_3, window_bounds = array<i64: 20, 96>}]} {
    %c0_i32 = arith.constant 0 : i32
    %0 = arith.cmpi eq, %arg2, %c0_i32 : i32
    %1 = arith.extui %0 : i1 to i32
    %c0_i32_0 = arith.constant 0 : i32
    %2 = arith.cmpi ne, %1, %c0_i32_0 : i32
    scf.if %2 {
      %cst_10 = arith.constant 0.000000e+00 : f32
      %13 = vector.broadcast %cst_10 : f32 to vector<20x96xf32>
      %c0_11 = arith.constant 0 : index
      %c0_12 = arith.constant 0 : index
      %14 = vector.load %arg7[%c0_11, %c0_12] : memref<20x96xf32, #tpu.memory_space<vmem>>, vector<20x96xf32>
      tpu.vector_store %arg7[%c0_11, %c0_12], %13 {strides = array<i32>} : memref<20x96xf32, #tpu.memory_space<vmem>>, vector<20x96xf32>,
    } else {
    }
    %c0 = arith.constant 0 : index
    %c0_1 = arith.constant 0 : index
    %3 = vector.load %arg7[%c0, %c0_1] : memref<20x96xf32, #tpu.memory_space<vmem>>, vector<20x96xf32>
    %c0_2 = arith.constant 0 : index
    %c0_3 = arith.constant 0 : index
    %4 = vector.load %arg3[%c0_2, %c0_3] : memref<20x32xf32, #tpu.memory_space<vmem>>, vector<20x32xf32>
    %5 = arith.truncf %4 : vector<20x32xf32> to vector<20x32xbf16>
    %c0_4 = arith.constant 0 : index
    %c0_5 = arith.constant 0 : index
    %6 = vector.load %arg4[%c0_4, %c0_5] : memref<32x96xbf16, #tpu.memory_space<vmem>>, vector<32x96xbf16>
    %cst = arith.constant dense<0.000000e+00> : vector<20x96xf32>
    %7 = tpu.matmul %5, %6, %cst {dimension_numbers = #tpu.dot_dimension_numbers<[1], [0], [0], [1], [0, 0, 1, 1], [], []>} : vector<20x32xbf16>, vector<32x96xbf16>, vector<20x96xf32> -> vector<20x96xf32>
    %8 = arith.addf %3, %7 : vector<20x96xf32>
    %c0_6 = arith.constant 0 : index
    %c0_7 = arith.constant 0 : index
    %9 = vector.load %arg7[%c0_6, %c0_7] : memref<20x96xf32, #tpu.memory_space<vmem>>, vector<20x96xf32>
    tpu.vector_store %arg7[%c0_6, %c0_7], %8 {strides = array<i32>} : memref<20x96xf32, #tpu.memory_space<vmem>>, vector<20x96xf32>,
    %c0_i32_8 = arith.constant 0 : i32
    %10 = arith.cmpi eq, %arg2, %c0_i32_8 : i32
    %11 = arith.extui %10 : i1 to i32
    %c0_i32_9 = arith.constant 0 : i32
    %12 = arith.cmpi ne, %11, %c0_i32_9 : i32
    scf.if %12 {
      %c0_10 = arith.constant 0 : index
      %c0_11 = arith.constant 0 : index
      %13 = vector.load %arg7[%c0_10, %c0_11] : memref<20x96xf32, #tpu.memory_space<vmem>>, vector<20x96xf32>
      %c0_12 = arith.constant 0 : index
      %c0_13 = arith.constant 0 : index
      %14 = vector.load %arg5[%c0_12, %c0_13] : memref<1x96xf32, #tpu.memory_space<vmem>>, vector<1x96xf32>
      %15 = vector.broadcast %14 : vector<1x96xf32> to vector<20x96xf32>
      %16 = arith.addf %13, %15 : vector<20x96xf32>
      %17 = arith.truncf %16 : vector<20x96xf32> to vector<20x96xbf16>
      %c0_14 = arith.constant 0 : index
      %c0_15 = arith.constant 0 : index
      %18 = vector.load %arg6[%c0_14, %c0_15] : memref<20x96xbf16, #tpu.memory_space<vmem>>, vector<20x96xbf16>
      tpu.vector_store %arg6[%c0_14, %c0_15], %17 {strides = array<i32>} : memref<20x96xbf16, #tpu.memory_space<vmem>>, vector<20x96xbf16>,
    } else {
    }
    return
  }
  func.func @transform_0(%arg0: i32, %arg1: i32, %arg2: i32) -> (i32, i32) {
    %c0_i32 = arith.constant 0 : i32
    return %arg0, %arg2 : i32, i32
  }
  func.func @transform_1(%arg0: i32, %arg1: i32, %arg2: i32) -> (i32, i32) {
    %c0_i32 = arith.constant 0 : i32
    return %arg2, %arg1 : i32, i32
  }
  func.func @transform_2(%arg0: i32, %arg1: i32, %arg2: i32) -> (i32, i32) {
    %c0_i32 = arith.constant 0 : i32
    %c0_i32_0 = arith.constant 0 : i32
    return %c0_i32, %arg1 : i32, i32
  }
  func.func @transform_3(%arg0: i32, %arg1: i32, %arg2: i32) -> (i32, i32) {
    %c0_i32 = arith.constant 0 : i32
    return %arg0, %arg1 : i32, i32
  }
}

module attributes {stable_mosaic.version = 11 : i64} {
  func.func @_linear_res_ln_kernel(%arg0: i32, %arg1: i32, %arg2: memref<20x32xbf16, #tpu.memory_space<vmem>>, %arg3: memref<32x32xbf16, #tpu.memory_space<vmem>>, %arg4: memref<1x32xf32, #tpu.memory_space<vmem>>, %arg5: memref<20x32xf32, #tpu.memory_space<vmem>>, %arg6: memref<1x32xf32, #tpu.memory_space<vmem>>, %arg7: memref<1x32xf32, #tpu.memory_space<vmem>>, %arg8: memref<20x32xf32, #tpu.memory_space<vmem>>, %arg9: memref<20x32xf32, #tpu.memory_space<vmem>>) attributes {dimension_semantics = [#tpu.dimension_semantics<parallel>, #tpu.dimension_semantics<arbitrary>], iteration_bounds = array<i64: 1, 1>, scalar_prefetch = 0 : i64, scratch_operands = 1 : i64, tpu.core_type = #tpu.core_type<tc>, window_params = [{transform_indices = @transform_0, window_bounds = array<i64: 20, 32>}, {transform_indices = @transform_1, window_bounds = array<i64: 32, 32>}, {pipeline_mode = #tpu.pipeline_mode<synchronous>, transform_indices = @transform_2, window_bounds = array<i64: 1, 32>}, {transform_indices = @transform_3, window_bounds = array<i64: 20, 32>}, {pipeline_mode = #tpu.pipeline_mode<synchronous>, transform_indices = @transform_4, window_bounds = array<i64: 1, 32>}, {pipeline_mode = #tpu.pipeline_mode<synchronous>, transform_indices = @transform_5, window_bounds = array<i64: 1, 32>}, {transform_indices = @transform_6, window_bounds = array<i64: 20, 32>}]} {
    %c0_i32 = arith.constant 0 : i32
    %0 = arith.cmpi eq, %arg1, %c0_i32 : i32
    %1 = arith.extui %0 : i1 to i32
    %c0_i32_0 = arith.constant 0 : i32
    %2 = arith.cmpi ne, %1, %c0_i32_0 : i32
    scf.if %2 {
      %cst_10 = arith.constant 0.000000e+00 : f32
      %12 = vector.broadcast %cst_10 : f32 to vector<20x32xf32>
      %c0_11 = arith.constant 0 : index
      %c0_12 = arith.constant 0 : index
      %13 = vector.load %arg9[%c0_11, %c0_12] : memref<20x32xf32, #tpu.memory_space<vmem>>, vector<20x32xf32>
      tpu.vector_store %arg9[%c0_11, %c0_12], %12 {strides = array<i32>} : memref<20x32xf32, #tpu.memory_space<vmem>>, vector<20x32xf32>,
    } else {
    }
    %c0 = arith.constant 0 : index
    %c0_1 = arith.constant 0 : index
    %3 = vector.load %arg9[%c0, %c0_1] : memref<20x32xf32, #tpu.memory_space<vmem>>, vector<20x32xf32>
    %c0_2 = arith.constant 0 : index
    %c0_3 = arith.constant 0 : index
    %4 = vector.load %arg2[%c0_2, %c0_3] : memref<20x32xbf16, #tpu.memory_space<vmem>>, vector<20x32xbf16>
    %c0_4 = arith.constant 0 : index
    %c0_5 = arith.constant 0 : index
    %5 = vector.load %arg3[%c0_4, %c0_5] : memref<32x32xbf16, #tpu.memory_space<vmem>>, vector<32x32xbf16>
    %cst = arith.constant dense<0.000000e+00> : vector<20x32xf32>
    %6 = tpu.matmul %4, %5, %cst {dimension_numbers = #tpu.dot_dimension_numbers<[1], [0], [0], [1], [0, 0, 1, 1], [], []>} : vector<20x32xbf16>, vector<32x32xbf16>, vector<20x32xf32> -> vector<20x32xf32>
    %7 = arith.addf %3, %6 : vector<20x32xf32>
    %c0_6 = arith.constant 0 : index
    %c0_7 = arith.constant 0 : index
    %8 = vector.load %arg9[%c0_6, %c0_7] : memref<20x32xf32, #tpu.memory_space<vmem>>, vector<20x32xf32>
    tpu.vector_store %arg9[%c0_6, %c0_7], %7 {strides = array<i32>} : memref<20x32xf32, #tpu.memory_space<vmem>>, vector<20x32xf32>,
    %c0_i32_8 = arith.constant 0 : i32
    %9 = arith.cmpi eq, %arg1, %c0_i32_8 : i32
    %10 = arith.extui %9 : i1 to i32
    %c0_i32_9 = arith.constant 0 : i32
    %11 = arith.cmpi ne, %10, %c0_i32_9 : i32
    scf.if %11 {
      %c0_10 = arith.constant 0 : index
      %c0_11 = arith.constant 0 : index
      %12 = vector.load %arg5[%c0_10, %c0_11] : memref<20x32xf32, #tpu.memory_space<vmem>>, vector<20x32xf32>
      %c0_12 = arith.constant 0 : index
      %c0_13 = arith.constant 0 : index
      %13 = vector.load %arg9[%c0_12, %c0_13] : memref<20x32xf32, #tpu.memory_space<vmem>>, vector<20x32xf32>
      %14 = arith.addf %12, %13 : vector<20x32xf32>
      %c0_14 = arith.constant 0 : index
      %c0_15 = arith.constant 0 : index
      %15 = vector.load %arg4[%c0_14, %c0_15] : memref<1x32xf32, #tpu.memory_space<vmem>>, vector<1x32xf32>
      %16 = vector.broadcast %15 : vector<1x32xf32> to vector<20x32xf32>
      %17 = arith.addf %14, %16 : vector<20x32xf32>
      %cst_16 = arith.constant dense<0.000000e+00> : vector<20xf32>
      %18 = vector.multi_reduction <add>, %17, %cst_16 [1] : vector<20x32xf32> to vector<20xf32>
      %19 = vector.shape_cast %18 : vector<20xf32> to vector<20x1xf32>
      %cst_17 = arith.constant 3.200000e+01 : f32
      %20 = vector.broadcast %cst_17 : f32 to vector<20x1xf32>
      %21 = arith.divf %19, %20 : vector<20x1xf32>
      %22 = vector.broadcast %21 : vector<20x1xf32> to vector<20x32xf32>
      %23 = arith.subf %17, %22 : vector<20x32xf32>
      %24 = arith.mulf %23, %23 : vector<20x32xf32>
      %cst_18 = arith.constant dense<0.000000e+00> : vector<20xf32>
      %25 = vector.multi_reduction <add>, %24, %cst_18 [1] : vector<20x32xf32> to vector<20xf32>
      %26 = vector.shape_cast %25 : vector<20xf32> to vector<20x1xf32>
      %cst_19 = arith.constant 3.200000e+01 : f32
      %27 = vector.broadcast %cst_19 : f32 to vector<20x1xf32>
      %28 = arith.divf %26, %27 : vector<20x1xf32>
      %29 = vector.broadcast %21 : vector<20x1xf32> to vector<20x32xf32>
      %30 = arith.subf %17, %29 : vector<20x32xf32>
      %cst_20 = arith.constant 9.99999974E-6 : f32
      %31 = vector.broadcast %cst_20 : f32 to vector<20x1xf32>
      %32 = arith.addf %28, %31 : vector<20x1xf32>
      %33 = math.rsqrt %32 : vector<20x1xf32>
      %34 = vector.broadcast %33 : vector<20x1xf32> to vector<20x32xf32>
      %35 = arith.mulf %30, %34 : vector<20x32xf32>
      %c0_21 = arith.constant 0 : index
      %c0_22 = arith.constant 0 : index
      %36 = vector.load %arg6[%c0_21, %c0_22] : memref<1x32xf32, #tpu.memory_space<vmem>>, vector<1x32xf32>
      %37 = vector.broadcast %36 : vector<1x32xf32> to vector<20x32xf32>
      %38 = arith.mulf %35, %37 : vector<20x32xf32>
      %c0_23 = arith.constant 0 : index
      %c0_24 = arith.constant 0 : index
      %39 = vector.load %arg7[%c0_23, %c0_24] : memref<1x32xf32, #tpu.memory_space<vmem>>, vector<1x32xf32>
      %40 = vector.broadcast %39 : vector<1x32xf32> to vector<20x32xf32>
      %41 = arith.addf %38, %40 : vector<20x32xf32>
      %c0_25 = arith.constant 0 : index
      %c0_26 = arith.constant 0 : index
      %42 = vector.load %arg8[%c0_25, %c0_26] : memref<20x32xf32, #tpu.memory_space<vmem>>, vector<20x32xf32>
      tpu.vector_store %arg8[%c0_25, %c0_26], %41 {strides = array<i32>} : memref<20x32xf32, #tpu.memory_space<vmem>>, vector<20x32xf32>,
    } else {
    }
    return
  }
  func.func @transform_0(%arg0: i32, %arg1: i32) -> (i32, i32) {
    %c0_i32 = arith.constant 0 : i32
    return %arg0, %arg1 : i32, i32
  }
  func.func @transform_1(%arg0: i32, %arg1: i32) -> (i32, i32) {
    %c0_i32 = arith.constant 0 : i32
    %c0_i32_0 = arith.constant 0 : i32
    return %arg1, %c0_i32 : i32, i32
  }
  func.func @transform_2(%arg0: i32, %arg1: i32) -> (i32, i32) {
    %c0_i32 = arith.constant 0 : i32
    %c0_i32_0 = arith.constant 0 : i32
    %c0_i32_1 = arith.constant 0 : i32
    return %c0_i32, %c0_i32_0 : i32, i32
  }
  func.func @transform_3(%arg0: i32, %arg1: i32) -> (i32, i32) {
    %c0_i32 = arith.constant 0 : i32
    %c0_i32_0 = arith.constant 0 : i32
    return %arg0, %c0_i32 : i32, i32
  }
  func.func @transform_4(%arg0: i32, %arg1: i32) -> (i32, i32) {
    %c0_i32 = arith.constant 0 : i32
    %c0_i32_0 = arith.constant 0 : i32
    %c0_i32_1 = arith.constant 0 : i32
    return %c0_i32, %c0_i32_0 : i32, i32
  }
  func.func @transform_5(%arg0: i32, %arg1: i32) -> (i32, i32) {
    %c0_i32 = arith.constant 0 : i32
    %c0_i32_0 = arith.constant 0 : i32
    %c0_i32_1 = arith.constant 0 : i32
    return %c0_i32, %c0_i32_0 : i32, i32
  }
  func.func @transform_6(%arg0: i32, %arg1: i32) -> (i32, i32) {
    %c0_i32 = arith.constant 0 : i32
    %c0_i32_0 = arith.constant 0 : i32
    return %arg0, %c0_i32 : i32, i32
  }
}

module attributes {stable_mosaic.version = 11 : i64} {
  func.func @_linear_kernel(%arg0: i32, %arg1: i32, %arg2: i32, %arg3: memref<20x32xf32, #tpu.memory_space<vmem>>, %arg4: memref<32x32xbf16, #tpu.memory_space<vmem>>, %arg5: memref<1x32xf32, #tpu.memory_space<vmem>>, %arg6: memref<20x32xbf16, #tpu.memory_space<vmem>>, %arg7: memref<20x32xf32, #tpu.memory_space<vmem>>) attributes {dimension_semantics = [#tpu.dimension_semantics<parallel>, #tpu.dimension_semantics<parallel>, #tpu.dimension_semantics<arbitrary>], iteration_bounds = array<i64: 1, 1, 1>, scalar_prefetch = 0 : i64, scratch_operands = 1 : i64, tpu.core_type = #tpu.core_type<tc>, window_params = [{transform_indices = @transform_0, window_bounds = array<i64: 20, 32>}, {transform_indices = @transform_1, window_bounds = array<i64: 32, 32>}, {transform_indices = @transform_2, window_bounds = array<i64: 1, 32>}, {transform_indices = @transform_3, window_bounds = array<i64: 20, 32>}]} {
    %c0_i32 = arith.constant 0 : i32
    %0 = arith.cmpi eq, %arg2, %c0_i32 : i32
    %1 = arith.extui %0 : i1 to i32
    %c0_i32_0 = arith.constant 0 : i32
    %2 = arith.cmpi ne, %1, %c0_i32_0 : i32
    scf.if %2 {
      %cst_10 = arith.constant 0.000000e+00 : f32
      %13 = vector.broadcast %cst_10 : f32 to vector<20x32xf32>
      %c0_11 = arith.constant 0 : index
      %c0_12 = arith.constant 0 : index
      %14 = vector.load %arg7[%c0_11, %c0_12] : memref<20x32xf32, #tpu.memory_space<vmem>>, vector<20x32xf32>
      tpu.vector_store %arg7[%c0_11, %c0_12], %13 {strides = array<i32>} : memref<20x32xf32, #tpu.memory_space<vmem>>, vector<20x32xf32>,
    } else {
    }
    %c0 = arith.constant 0 : index
    %c0_1 = arith.constant 0 : index
    %3 = vector.load %arg7[%c0, %c0_1] : memref<20x32xf32, #tpu.memory_space<vmem>>, vector<20x32xf32>
    %c0_2 = arith.constant 0 : index
    %c0_3 = arith.constant 0 : index
    %4 = vector.load %arg3[%c0_2, %c0_3] : memref<20x32xf32, #tpu.memory_space<vmem>>, vector<20x32xf32>
    %5 = arith.truncf %4 : vector<20x32xf32> to vector<20x32xbf16>
    %c0_4 = arith.constant 0 : index
    %c0_5 = arith.constant 0 : index
    %6 = vector.load %arg4[%c0_4, %c0_5] : memref<32x32xbf16, #tpu.memory_space<vmem>>, vector<32x32xbf16>
    %cst = arith.constant dense<0.000000e+00> : vector<20x32xf32>
    %7 = tpu.matmul %5, %6, %cst {dimension_numbers = #tpu.dot_dimension_numbers<[1], [0], [0], [1], [0, 0, 1, 1], [], []>} : vector<20x32xbf16>, vector<32x32xbf16>, vector<20x32xf32> -> vector<20x32xf32>
    %8 = arith.addf %3, %7 : vector<20x32xf32>
    %c0_6 = arith.constant 0 : index
    %c0_7 = arith.constant 0 : index
    %9 = vector.load %arg7[%c0_6, %c0_7] : memref<20x32xf32, #tpu.memory_space<vmem>>, vector<20x32xf32>
    tpu.vector_store %arg7[%c0_6, %c0_7], %8 {strides = array<i32>} : memref<20x32xf32, #tpu.memory_space<vmem>>, vector<20x32xf32>,
    %c0_i32_8 = arith.constant 0 : i32
    %10 = arith.cmpi eq, %arg2, %c0_i32_8 : i32
    %11 = arith.extui %10 : i1 to i32
    %c0_i32_9 = arith.constant 0 : i32
    %12 = arith.cmpi ne, %11, %c0_i32_9 : i32
    scf.if %12 {
      %c0_10 = arith.constant 0 : index
      %c0_11 = arith.constant 0 : index
      %13 = vector.load %arg7[%c0_10, %c0_11] : memref<20x32xf32, #tpu.memory_space<vmem>>, vector<20x32xf32>
      %c0_12 = arith.constant 0 : index
      %c0_13 = arith.constant 0 : index
      %14 = vector.load %arg5[%c0_12, %c0_13] : memref<1x32xf32, #tpu.memory_space<vmem>>, vector<1x32xf32>
      %15 = vector.broadcast %14 : vector<1x32xf32> to vector<20x32xf32>
      %16 = arith.addf %13, %15 : vector<20x32xf32>
      %17 = arith.truncf %16 : vector<20x32xf32> to vector<20x32xbf16>
      %c0_14 = arith.constant 0 : index
      %c0_15 = arith.constant 0 : index
      %18 = vector.load %arg6[%c0_14, %c0_15] : memref<20x32xbf16, #tpu.memory_space<vmem>>, vector<20x32xbf16>
      tpu.vector_store %arg6[%c0_14, %c0_15], %17 {strides = array<i32>} : memref<20x32xbf16, #tpu.memory_space<vmem>>, vector<20x32xbf16>,
    } else {
    }
    return
  }
  func.func @transform_0(%arg0: i32, %arg1: i32, %arg2: i32) -> (i32, i32) {
    %c0_i32 = arith.constant 0 : i32
    return %arg0, %arg2 : i32, i32
  }
  func.func @transform_1(%arg0: i32, %arg1: i32, %arg2: i32) -> (i32, i32) {
    %c0_i32 = arith.constant 0 : i32
    return %arg2, %arg1 : i32, i32
  }
  func.func @transform_2(%arg0: i32, %arg1: i32, %arg2: i32) -> (i32, i32) {
    %c0_i32 = arith.constant 0 : i32
    %c0_i32_0 = arith.constant 0 : i32
    return %c0_i32, %arg1 : i32, i32
  }
  func.func @transform_3(%arg0: i32, %arg1: i32, %arg2: i32) -> (i32, i32) {
    %c0_i32 = arith.constant 0 : i32
    return %arg0, %arg1 : i32, i32
  }
}

module attributes {stable_mosaic.version = 11 : i64} {
  func.func @_cross_attn_kernel(%arg0: i32, %arg1: memref<1x10x32xbf16, #tpu.memory_space<vmem>>, %arg2: memref<1x8x64xbf16, #tpu.memory_space<vmem>>, %arg3: memref<10x8xf32, #tpu.memory_space<vmem>>, %arg4: memref<1x1x8xf32, #tpu.memory_space<vmem>>, %arg5: memref<1x10x32xbf16, #tpu.memory_space<vmem>>) attributes {dimension_semantics = [#tpu.dimension_semantics<parallel>], iteration_bounds = array<i64: 2>, scalar_prefetch = 0 : i64, scratch_operands = 0 : i64, tpu.core_type = #tpu.core_type<tc>, window_params = [{transform_indices = @transform_0, window_bounds = array<i64: 1, 10, 32>}, {transform_indices = @transform_1, window_bounds = array<i64: 1, 8, 64>}, {pipeline_mode = #tpu.pipeline_mode<synchronous>, transform_indices = @transform_2, window_bounds = array<i64: 10, 8>}, {transform_indices = @transform_3, window_bounds = array<i64: 1, 1, 8>}, {transform_indices = @transform_4, window_bounds = array<i64: 1, 10, 32>}]} {
    %c0 = arith.constant 0 : index
    %c0_0 = arith.constant 0 : index
    %0 = vector.load %arg3[%c0, %c0_0] : memref<10x8xf32, #tpu.memory_space<vmem>>, vector<10x8xf32>
    %c0_1 = arith.constant 0 : index
    %c0_2 = arith.constant 0 : index
    %c0_3 = arith.constant 0 : index
    %1 = vector.load %arg4[%c0_1, %c0_2, %c0_3] : memref<1x1x8xf32, #tpu.memory_space<vmem>>, vector<1x1x8xf32>
    %2 = vector.shape_cast %1 : vector<1x1x8xf32> to vector<1x8xf32>
    %3 = vector.broadcast %2 : vector<1x8xf32> to vector<10x8xf32>
    %4 = arith.addf %0, %3 : vector<10x8xf32>
    %c0_4 = arith.constant 0 : index
    %c0_5 = arith.constant 0 : index
    %c0_6 = arith.constant 0 : index
    %5 = vector.load %arg1[%c0_4, %c0_5, %c0_6] : memref<1x10x32xbf16, #tpu.memory_space<vmem>>, vector<1x10x8xbf16>
    %6 = vector.shape_cast %5 : vector<1x10x8xbf16> to vector<10x8xbf16>
    %c0_7 = arith.constant 0 : index
    %c0_8 = arith.constant 0 : index
    %c0_9 = arith.constant 0 : index
    %7 = vector.load %arg2[%c0_7, %c0_8, %c0_9] : memref<1x8x64xbf16, #tpu.memory_space<vmem>>, vector<1x8x8xbf16>
    %8 = vector.shape_cast %7 : vector<1x8x8xbf16> to vector<8x8xbf16>
    %c0_10 = arith.constant 0 : index
    %c0_11 = arith.constant 0 : index
    %c32 = arith.constant 32 : index
    %9 = vector.load %arg2[%c0_10, %c0_11, %c32] : memref<1x8x64xbf16, #tpu.memory_space<vmem>>, vector<1x8x8xbf16>
    %10 = vector.shape_cast %9 : vector<1x8x8xbf16> to vector<8x8xbf16>
    "tpu.trace_start"() <{level = 10 : i32, message = "qd,kd->qk"}> : () -> ()
    %cst = arith.constant dense<0.000000e+00> : vector<10x8xf32>
    %11 = tpu.matmul %6, %8, %cst {dimension_numbers = #tpu.dot_dimension_numbers<[1], [1], [0], [0], [0, 0, 1, 0], [], []>} : vector<10x8xbf16>, vector<8x8xbf16>, vector<10x8xf32> -> vector<10x8xf32>
    "tpu.trace_stop"() : () -> ()
    %12 = arith.addf %11, %4 : vector<10x8xf32>
    %cst_12 = arith.constant dense<0xFF800000> : vector<10xf32>
    %13 = vector.multi_reduction <maximumf>, %12, %cst_12 [1] : vector<10x8xf32> to vector<10xf32>
    %14 = vector.shape_cast %13 : vector<10xf32> to vector<10x1xf32>
    %15 = vector.broadcast %14 : vector<10x1xf32> to vector<10x8xf32>
    %16 = arith.subf %12, %15 : vector<10x8xf32>
    %17 = math.exp %16 : vector<10x8xf32>
    %cst_13 = arith.constant dense<0.000000e+00> : vector<10xf32>
    %18 = vector.multi_reduction <add>, %17, %cst_13 [1] : vector<10x8xf32> to vector<10xf32>
    %19 = vector.shape_cast %18 : vector<10xf32> to vector<10x1xf32>
    %20 = tpu.reciprocal %19 {approx = true} : vector<10x1xf32> -> vector<10x1xf32>
    %21 = vector.broadcast %20 : vector<10x1xf32> to vector<10x8xf32>
    %22 = arith.mulf %17, %21 : vector<10x8xf32>
    %23 = arith.truncf %22 : vector<10x8xf32> to vector<10x8xbf16>
    "tpu.trace_start"() <{level = 10 : i32, message = "qk,kd->qd"}> : () -> ()
    %cst_14 = arith.constant dense<0.000000e+00> : vector<10x8xf32>
    %24 = tpu.matmul %23, %10, %cst_14 {dimension_numbers = #tpu.dot_dimension_numbers<[1], [0], [0], [1], [0, 0, 1, 1], [], []>} : vector<10x8xbf16>, vector<8x8xbf16>, vector<10x8xf32> -> vector<10x8xf32>
    "tpu.trace_stop"() : () -> ()
    %25 = arith.truncf %24 : vector<10x8xf32> to vector<10x8xbf16>
    %c0_15 = arith.constant 0 : index
    %c0_16 = arith.constant 0 : index
    %c0_17 = arith.constant 0 : index
    %26 = vector.load %arg5[%c0_15, %c0_16, %c0_17] : memref<1x10x32xbf16, #tpu.memory_space<vmem>>, vector<1x10x8xbf16>
    %27 = vector.shape_cast %26 : vector<1x10x8xbf16> to vector<10x8xbf16>
    %28 = vector.shape_cast %25 : vector<10x8xbf16> to vector<1x10x8xbf16>
    tpu.vector_store %arg5[%c0_15, %c0_16, %c0_17], %28 {strides = array<i32>} : memref<1x10x32xbf16, #tpu.memory_space<vmem>>, vector<1x10x8xbf16>,
    %c0_18 = arith.constant 0 : index
    %c0_19 = arith.constant 0 : index
    %c8 = arith.constant 8 : index
    %29 = vector.load %arg1[%c0_18, %c0_19, %c8] : memref<1x10x32xbf16, #tpu.memory_space<vmem>>, vector<1x10x8xbf16>
    %30 = vector.shape_cast %29 : vector<1x10x8xbf16> to vector<10x8xbf16>
    %c0_20 = arith.constant 0 : index
    %c0_21 = arith.constant 0 : index
    %c8_22 = arith.constant 8 : index
    %31 = vector.load %arg2[%c0_20, %c0_21, %c8_22] : memref<1x8x64xbf16, #tpu.memory_space<vmem>>, vector<1x8x8xbf16>
    %32 = vector.shape_cast %31 : vector<1x8x8xbf16> to vector<8x8xbf16>
    %c0_23 = arith.constant 0 : index
    %c0_24 = arith.constant 0 : index
    %c40 = arith.constant 40 : index
    %33 = vector.load %arg2[%c0_23, %c0_24, %c40] : memref<1x8x64xbf16, #tpu.memory_space<vmem>>, vector<1x8x8xbf16>
    %34 = vector.shape_cast %33 : vector<1x8x8xbf16> to vector<8x8xbf16>
    "tpu.trace_start"() <{level = 10 : i32, message = "qd,kd->qk"}> : () -> ()
    %cst_25 = arith.constant dense<0.000000e+00> : vector<10x8xf32>
    %35 = tpu.matmul %30, %32, %cst_25 {dimension_numbers = #tpu.dot_dimension_numbers<[1], [1], [0], [0], [0, 0, 1, 0], [], []>} : vector<10x8xbf16>, vector<8x8xbf16>, vector<10x8xf32> -> vector<10x8xf32>
    "tpu.trace_stop"() : () -> ()
    %36 = arith.addf %35, %4 : vector<10x8xf32>
    %cst_26 = arith.constant dense<0xFF800000> : vector<10xf32>
    %37 = vector.multi_reduction <maximumf>, %36, %cst_26 [1] : vector<10x8xf32> to vector<10xf32>
    %38 = vector.shape_cast %37 : vector<10xf32> to vector<10x1xf32>
    %39 = vector.broadcast %38 : vector<10x1xf32> to vector<10x8xf32>
    %40 = arith.subf %36, %39 : vector<10x8xf32>
    %41 = math.exp %40 : vector<10x8xf32>
    %cst_27 = arith.constant dense<0.000000e+00> : vector<10xf32>
    %42 = vector.multi_reduction <add>, %41, %cst_27 [1] : vector<10x8xf32> to vector<10xf32>
    %43 = vector.shape_cast %42 : vector<10xf32> to vector<10x1xf32>
    %44 = tpu.reciprocal %43 {approx = true} : vector<10x1xf32> -> vector<10x1xf32>
    %45 = vector.broadcast %44 : vector<10x1xf32> to vector<10x8xf32>
    %46 = arith.mulf %41, %45 : vector<10x8xf32>
    %47 = arith.truncf %46 : vector<10x8xf32> to vector<10x8xbf16>
    "tpu.trace_start"() <{level = 10 : i32, message = "qk,kd->qd"}> : () -> ()
    %cst_28 = arith.constant dense<0.000000e+00> : vector<10x8xf32>
    %48 = tpu.matmul %47, %34, %cst_28 {dimension_numbers = #tpu.dot_dimension_numbers<[1], [0], [0], [1], [0, 0, 1, 1], [], []>} : vector<10x8xbf16>, vector<8x8xbf16>, vector<10x8xf32> -> vector<10x8xf32>
    "tpu.trace_stop"() : () -> ()
    %49 = arith.truncf %48 : vector<10x8xf32> to vector<10x8xbf16>
    %c0_29 = arith.constant 0 : index
    %c0_30 = arith.constant 0 : index
    %c8_31 = arith.constant 8 : index
    %50 = vector.load %arg5[%c0_29, %c0_30, %c8_31] : memref<1x10x32xbf16, #tpu.memory_space<vmem>>, vector<1x10x8xbf16>
    %51 = vector.shape_cast %50 : vector<1x10x8xbf16> to vector<10x8xbf16>
    %52 = vector.shape_cast %49 : vector<10x8xbf16> to vector<1x10x8xbf16>
    tpu.vector_store %arg5[%c0_29, %c0_30, %c8_31], %52 {strides = array<i32>} : memref<1x10x32xbf16, #tpu.memory_space<vmem>>, vector<1x10x8xbf16>,
    %c0_32 = arith.constant 0 : index
    %c0_33 = arith.constant 0 : index
    %c16 = arith.constant 16 : index
    %53 = vector.load %arg1[%c0_32, %c0_33, %c16] : memref<1x10x32xbf16, #tpu.memory_space<vmem>>, vector<1x10x8xbf16>
    %54 = vector.shape_cast %53 : vector<1x10x8xbf16> to vector<10x8xbf16>
    %c0_34 = arith.constant 0 : index
    %c0_35 = arith.constant 0 : index
    %c16_36 = arith.constant 16 : index
    %55 = vector.load %arg2[%c0_34, %c0_35, %c16_36] : memref<1x8x64xbf16, #tpu.memory_space<vmem>>, vector<1x8x8xbf16>
    %56 = vector.shape_cast %55 : vector<1x8x8xbf16> to vector<8x8xbf16>
    %c0_37 = arith.constant 0 : index
    %c0_38 = arith.constant 0 : index
    %c48 = arith.constant 48 : index
    %57 = vector.load %arg2[%c0_37, %c0_38, %c48] : memref<1x8x64xbf16, #tpu.memory_space<vmem>>, vector<1x8x8xbf16>
    %58 = vector.shape_cast %57 : vector<1x8x8xbf16> to vector<8x8xbf16>
    "tpu.trace_start"() <{level = 10 : i32, message = "qd,kd->qk"}> : () -> ()
    %cst_39 = arith.constant dense<0.000000e+00> : vector<10x8xf32>
    %59 = tpu.matmul %54, %56, %cst_39 {dimension_numbers = #tpu.dot_dimension_numbers<[1], [1], [0], [0], [0, 0, 1, 0], [], []>} : vector<10x8xbf16>, vector<8x8xbf16>, vector<10x8xf32> -> vector<10x8xf32>
    "tpu.trace_stop"() : () -> ()
    %60 = arith.addf %59, %4 : vector<10x8xf32>
    %cst_40 = arith.constant dense<0xFF800000> : vector<10xf32>
    %61 = vector.multi_reduction <maximumf>, %60, %cst_40 [1] : vector<10x8xf32> to vector<10xf32>
    %62 = vector.shape_cast %61 : vector<10xf32> to vector<10x1xf32>
    %63 = vector.broadcast %62 : vector<10x1xf32> to vector<10x8xf32>
    %64 = arith.subf %60, %63 : vector<10x8xf32>
    %65 = math.exp %64 : vector<10x8xf32>
    %cst_41 = arith.constant dense<0.000000e+00> : vector<10xf32>
    %66 = vector.multi_reduction <add>, %65, %cst_41 [1] : vector<10x8xf32> to vector<10xf32>
    %67 = vector.shape_cast %66 : vector<10xf32> to vector<10x1xf32>
    %68 = tpu.reciprocal %67 {approx = true} : vector<10x1xf32> -> vector<10x1xf32>
    %69 = vector.broadcast %68 : vector<10x1xf32> to vector<10x8xf32>
    %70 = arith.mulf %65, %69 : vector<10x8xf32>
    %71 = arith.truncf %70 : vector<10x8xf32> to vector<10x8xbf16>
    "tpu.trace_start"() <{level = 10 : i32, message = "qk,kd->qd"}> : () -> ()
    %cst_42 = arith.constant dense<0.000000e+00> : vector<10x8xf32>
    %72 = tpu.matmul %71, %58, %cst_42 {dimension_numbers = #tpu.dot_dimension_numbers<[1], [0], [0], [1], [0, 0, 1, 1], [], []>} : vector<10x8xbf16>, vector<8x8xbf16>, vector<10x8xf32> -> vector<10x8xf32>
    "tpu.trace_stop"() : () -> ()
    %73 = arith.truncf %72 : vector<10x8xf32> to vector<10x8xbf16>
    %c0_43 = arith.constant 0 : index
    %c0_44 = arith.constant 0 : index
    %c16_45 = arith.constant 16 : index
    %74 = vector.load %arg5[%c0_43, %c0_44, %c16_45] : memref<1x10x32xbf16, #tpu.memory_space<vmem>>, vector<1x10x8xbf16>
    %75 = vector.shape_cast %74 : vector<1x10x8xbf16> to vector<10x8xbf16>
    %76 = vector.shape_cast %73 : vector<10x8xbf16> to vector<1x10x8xbf16>
    tpu.vector_store %arg5[%c0_43, %c0_44, %c16_45], %76 {strides = array<i32>} : memref<1x10x32xbf16, #tpu.memory_space<vmem>>, vector<1x10x8xbf16>,
    %c0_46 = arith.constant 0 : index
    %c0_47 = arith.constant 0 : index
    %c24 = arith.constant 24 : index
    %77 = vector.load %arg1[%c0_46, %c0_47, %c24] : memref<1x10x32xbf16, #tpu.memory_space<vmem>>, vector<1x10x8xbf16>
    %78 = vector.shape_cast %77 : vector<1x10x8xbf16> to vector<10x8xbf16>
    %c0_48 = arith.constant 0 : index
    %c0_49 = arith.constant 0 : index
    %c24_50 = arith.constant 24 : index
    %79 = vector.load %arg2[%c0_48, %c0_49, %c24_50] : memref<1x8x64xbf16, #tpu.memory_space<vmem>>, vector<1x8x8xbf16>
    %80 = vector.shape_cast %79 : vector<1x8x8xbf16> to vector<8x8xbf16>
    %c0_51 = arith.constant 0 : index
    %c0_52 = arith.constant 0 : index
    %c56 = arith.constant 56 : index
    %81 = vector.load %arg2[%c0_51, %c0_52, %c56] : memref<1x8x64xbf16, #tpu.memory_space<vmem>>, vector<1x8x8xbf16>
    %82 = vector.shape_cast %81 : vector<1x8x8xbf16> to vector<8x8xbf16>
    "tpu.trace_start"() <{level = 10 : i32, message = "qd,kd->qk"}> : () -> ()
    %cst_53 = arith.constant dense<0.000000e+00> : vector<10x8xf32>
    %83 = tpu.matmul %78, %80, %cst_53 {dimension_numbers = #tpu.dot_dimension_numbers<[1], [1], [0], [0], [0, 0, 1, 0], [], []>} : vector<10x8xbf16>, vector<8x8xbf16>, vector<10x8xf32> -> vector<10x8xf32>
    "tpu.trace_stop"() : () -> ()
    %84 = arith.addf %83, %4 : vector<10x8xf32>
    %cst_54 = arith.constant dense<0xFF800000> : vector<10xf32>
    %85 = vector.multi_reduction <maximumf>, %84, %cst_54 [1] : vector<10x8xf32> to vector<10xf32>
    %86 = vector.shape_cast %85 : vector<10xf32> to vector<10x1xf32>
    %87 = vector.broadcast %86 : vector<10x1xf32> to vector<10x8xf32>
    %88 = arith.subf %84, %87 : vector<10x8xf32>
    %89 = math.exp %88 : vector<10x8xf32>
    %cst_55 = arith.constant dense<0.000000e+00> : vector<10xf32>
    %90 = vector.multi_reduction <add>, %89, %cst_55 [1] : vector<10x8xf32> to vector<10xf32>
    %91 = vector.shape_cast %90 : vector<10xf32> to vector<10x1xf32>
    %92 = tpu.reciprocal %91 {approx = true} : vector<10x1xf32> -> vector<10x1xf32>
    %93 = vector.broadcast %92 : vector<10x1xf32> to vector<10x8xf32>
    %94 = arith.mulf %89, %93 : vector<10x8xf32>
    %95 = arith.truncf %94 : vector<10x8xf32> to vector<10x8xbf16>
    "tpu.trace_start"() <{level = 10 : i32, message = "qk,kd->qd"}> : () -> ()
    %cst_56 = arith.constant dense<0.000000e+00> : vector<10x8xf32>
    %96 = tpu.matmul %95, %82, %cst_56 {dimension_numbers = #tpu.dot_dimension_numbers<[1], [0], [0], [1], [0, 0, 1, 1], [], []>} : vector<10x8xbf16>, vector<8x8xbf16>, vector<10x8xf32> -> vector<10x8xf32>
    "tpu.trace_stop"() : () -> ()
    %97 = arith.truncf %96 : vector<10x8xf32> to vector<10x8xbf16>
    %c0_57 = arith.constant 0 : index
    %c0_58 = arith.constant 0 : index
    %c24_59 = arith.constant 24 : index
    %98 = vector.load %arg5[%c0_57, %c0_58, %c24_59] : memref<1x10x32xbf16, #tpu.memory_space<vmem>>, vector<1x10x8xbf16>
    %99 = vector.shape_cast %98 : vector<1x10x8xbf16> to vector<10x8xbf16>
    %100 = vector.shape_cast %97 : vector<10x8xbf16> to vector<1x10x8xbf16>
    tpu.vector_store %arg5[%c0_57, %c0_58, %c24_59], %100 {strides = array<i32>} : memref<1x10x32xbf16, #tpu.memory_space<vmem>>, vector<1x10x8xbf16>,
    return
  }
  func.func @transform_0(%arg0: i32) -> (i32, i32, i32) {
    %c0_i32 = arith.constant 0 : i32
    %c0_i32_0 = arith.constant 0 : i32
    %c0_i32_1 = arith.constant 0 : i32
    return %arg0, %c0_i32, %c0_i32_0 : i32, i32, i32
  }
  func.func @transform_1(%arg0: i32) -> (i32, i32, i32) {
    %c0_i32 = arith.constant 0 : i32
    %c0_i32_0 = arith.constant 0 : i32
    %c0_i32_1 = arith.constant 0 : i32
    return %arg0, %c0_i32, %c0_i32_0 : i32, i32, i32
  }
  func.func @transform_2(%arg0: i32) -> (i32, i32) {
    %c0_i32 = arith.constant 0 : i32
    %c0_i32_0 = arith.constant 0 : i32
    %c0_i32_1 = arith.constant 0 : i32
    return %c0_i32, %c0_i32_0 : i32, i32
  }
  func.func @transform_3(%arg0: i32) -> (i32, i32, i32) {
    %c0_i32 = arith.constant 0 : i32
    %c0_i32_0 = arith.constant 0 : i32
    %c0_i32_1 = arith.constant 0 : i32
    return %arg0, %c0_i32, %c0_i32_0 : i32, i32, i32
  }
  func.func @transform_4(%arg0: i32) -> (i32, i32, i32) {
    %c0_i32 = arith.constant 0 : i32
    %c0_i32_0 = arith.constant 0 : i32
    %c0_i32_1 = arith.constant 0 : i32
    return %arg0, %c0_i32, %c0_i32_0 : i32, i32, i32
  }
}

module attributes {stable_mosaic.version = 11 : i64} {
  func.func @_ffn_res_ln_kernel(%arg0: i32, %arg1: memref<20x32xf32, #tpu.memory_space<vmem>>, %arg2: memref<32x64xbf16, #tpu.memory_space<vmem>>, %arg3: memref<1x64xf32, #tpu.memory_space<vmem>>, %arg4: memref<64x32xbf16, #tpu.memory_space<vmem>>, %arg5: memref<1x32xf32, #tpu.memory_space<vmem>>, %arg6: memref<1x32xf32, #tpu.memory_space<vmem>>, %arg7: memref<1x32xf32, #tpu.memory_space<vmem>>, %arg8: memref<20x32xf32, #tpu.memory_space<vmem>>) attributes {dimension_semantics = [#tpu.dimension_semantics<parallel>], iteration_bounds = array<i64: 1>, scalar_prefetch = 0 : i64, scratch_operands = 0 : i64, tpu.core_type = #tpu.core_type<tc>, window_params = [{transform_indices = @transform_0, window_bounds = array<i64: 20, 32>}, {pipeline_mode = #tpu.pipeline_mode<synchronous>, transform_indices = @transform_1, window_bounds = array<i64: 32, 64>}, {pipeline_mode = #tpu.pipeline_mode<synchronous>, transform_indices = @transform_2, window_bounds = array<i64: 1, 64>}, {pipeline_mode = #tpu.pipeline_mode<synchronous>, transform_indices = @transform_3, window_bounds = array<i64: 64, 32>}, {pipeline_mode = #tpu.pipeline_mode<synchronous>, transform_indices = @transform_4, window_bounds = array<i64: 1, 32>}, {pipeline_mode = #tpu.pipeline_mode<synchronous>, transform_indices = @transform_5, window_bounds = array<i64: 1, 32>}, {pipeline_mode = #tpu.pipeline_mode<synchronous>, transform_indices = @transform_6, window_bounds = array<i64: 1, 32>}, {transform_indices = @transform_7, window_bounds = array<i64: 20, 32>}]} {
    %c0 = arith.constant 0 : index
    %c0_0 = arith.constant 0 : index
    %0 = vector.load %arg1[%c0, %c0_0] : memref<20x32xf32, #tpu.memory_space<vmem>>, vector<20x32xf32>
    %1 = arith.truncf %0 : vector<20x32xf32> to vector<20x32xbf16>
    %c0_1 = arith.constant 0 : index
    %c0_2 = arith.constant 0 : index
    %2 = vector.load %arg2[%c0_1, %c0_2] : memref<32x64xbf16, #tpu.memory_space<vmem>>, vector<32x64xbf16>
    %cst = arith.constant dense<0.000000e+00> : vector<20x64xf32>
    %3 = tpu.matmul %1, %2, %cst {dimension_numbers = #tpu.dot_dimension_numbers<[1], [0], [0], [1], [0, 0, 1, 1], [], []>} : vector<20x32xbf16>, vector<32x64xbf16>, vector<20x64xf32> -> vector<20x64xf32>
    %c0_3 = arith.constant 0 : index
    %c0_4 = arith.constant 0 : index
    %4 = vector.load %arg3[%c0_3, %c0_4] : memref<1x64xf32, #tpu.memory_space<vmem>>, vector<1x64xf32>
    %5 = vector.broadcast %4 : vector<1x64xf32> to vector<20x64xf32>
    %6 = arith.addf %3, %5 : vector<20x64xf32>
    %cst_5 = arith.constant 0.000000e+00 : f32
    %7 = vector.broadcast %cst_5 : f32 to vector<20x64xf32>
    %8 = arith.maximumf %6, %7 : vector<20x64xf32>
    %9 = arith.truncf %8 : vector<20x64xf32> to vector<20x64xbf16>
    %c0_6 = arith.constant 0 : index
    %c0_7 = arith.constant 0 : index
    %10 = vector.load %arg4[%c0_6, %c0_7] : memref<64x32xbf16, #tpu.memory_space<vmem>>, vector<64x32xbf16>
    %cst_8 = arith.constant dense<0.000000e+00> : vector<20x32xf32>
    %11 = tpu.matmul %9, %10, %cst_8 {dimension_numbers = #tpu.dot_dimension_numbers<[1], [0], [0], [1], [0, 0, 1, 1], [], []>} : vector<20x64xbf16>, vector<64x32xbf16>, vector<20x32xf32> -> vector<20x32xf32>
    %c0_9 = arith.constant 0 : index
    %c0_10 = arith.constant 0 : index
    %12 = vector.load %arg5[%c0_9, %c0_10] : memref<1x32xf32, #tpu.memory_space<vmem>>, vector<1x32xf32>
    %13 = vector.broadcast %12 : vector<1x32xf32> to vector<20x32xf32>
    %14 = arith.addf %11, %13 : vector<20x32xf32>
    %15 = arith.addf %0, %14 : vector<20x32xf32>
    %cst_11 = arith.constant dense<0.000000e+00> : vector<20xf32>
    %16 = vector.multi_reduction <add>, %15, %cst_11 [1] : vector<20x32xf32> to vector<20xf32>
    %17 = vector.shape_cast %16 : vector<20xf32> to vector<20x1xf32>
    %cst_12 = arith.constant 3.200000e+01 : f32
    %18 = vector.broadcast %cst_12 : f32 to vector<20x1xf32>
    %19 = arith.divf %17, %18 : vector<20x1xf32>
    %20 = vector.broadcast %19 : vector<20x1xf32> to vector<20x32xf32>
    %21 = arith.subf %15, %20 : vector<20x32xf32>
    %22 = arith.mulf %21, %21 : vector<20x32xf32>
    %cst_13 = arith.constant dense<0.000000e+00> : vector<20xf32>
    %23 = vector.multi_reduction <add>, %22, %cst_13 [1] : vector<20x32xf32> to vector<20xf32>
    %24 = vector.shape_cast %23 : vector<20xf32> to vector<20x1xf32>
    %cst_14 = arith.constant 3.200000e+01 : f32
    %25 = vector.broadcast %cst_14 : f32 to vector<20x1xf32>
    %26 = arith.divf %24, %25 : vector<20x1xf32>
    %27 = vector.broadcast %19 : vector<20x1xf32> to vector<20x32xf32>
    %28 = arith.subf %15, %27 : vector<20x32xf32>
    %cst_15 = arith.constant 9.99999974E-6 : f32
    %29 = vector.broadcast %cst_15 : f32 to vector<20x1xf32>
    %30 = arith.addf %26, %29 : vector<20x1xf32>
    %31 = math.rsqrt %30 : vector<20x1xf32>
    %32 = vector.broadcast %31 : vector<20x1xf32> to vector<20x32xf32>
    %33 = arith.mulf %28, %32 : vector<20x32xf32>
    %c0_16 = arith.constant 0 : index
    %c0_17 = arith.constant 0 : index
    %34 = vector.load %arg6[%c0_16, %c0_17] : memref<1x32xf32, #tpu.memory_space<vmem>>, vector<1x32xf32>
    %35 = vector.broadcast %34 : vector<1x32xf32> to vector<20x32xf32>
    %36 = arith.mulf %33, %35 : vector<20x32xf32>
    %c0_18 = arith.constant 0 : index
    %c0_19 = arith.constant 0 : index
    %37 = vector.load %arg7[%c0_18, %c0_19] : memref<1x32xf32, #tpu.memory_space<vmem>>, vector<1x32xf32>
    %38 = vector.broadcast %37 : vector<1x32xf32> to vector<20x32xf32>
    %39 = arith.addf %36, %38 : vector<20x32xf32>
    %c0_20 = arith.constant 0 : index
    %c0_21 = arith.constant 0 : index
    %40 = vector.load %arg8[%c0_20, %c0_21] : memref<20x32xf32, #tpu.memory_space<vmem>>, vector<20x32xf32>
    tpu.vector_store %arg8[%c0_20, %c0_21], %39 {strides = array<i32>} : memref<20x32xf32, #tpu.memory_space<vmem>>, vector<20x32xf32>,
    return
  }
  func.func @transform_0(%arg0: i32) -> (i32, i32) {
    %c0_i32 = arith.constant 0 : i32
    %c0_i32_0 = arith.constant 0 : i32
    return %arg0, %c0_i32 : i32, i32
  }
  func.func @transform_1(%arg0: i32) -> (i32, i32) {
    %c0_i32 = arith.constant 0 : i32
    %c0_i32_0 = arith.constant 0 : i32
    %c0_i32_1 = arith.constant 0 : i32
    return %c0_i32, %c0_i32_0 : i32, i32
  }
  func.func @transform_2(%arg0: i32) -> (i32, i32) {
    %c0_i32 = arith.constant 0 : i32
    %c0_i32_0 = arith.constant 0 : i32
    %c0_i32_1 = arith.constant 0 : i32
    return %c0_i32, %c0_i32_0 : i32, i32
  }
  func.func @transform_3(%arg0: i32) -> (i32, i32) {
    %c0_i32 = arith.constant 0 : i32
    %c0_i32_0 = arith.constant 0 : i32
    %c0_i32_1 = arith.constant 0 : i32
    return %c0_i32, %c0_i32_0 : i32, i32
  }
  func.func @transform_4(%arg0: i32) -> (i32, i32) {
    %c0_i32 = arith.constant 0 : i32
    %c0_i32_0 = arith.constant 0 : i32
    %c0_i32_1 = arith.constant 0 : i32
    return %c0_i32, %c0_i32_0 : i32, i32
  }
  func.func @transform_5(%arg0: i32) -> (i32, i32) {
    %c0_i32 = arith.constant 0 : i32
    %c0_i32_0 = arith.constant 0 : i32
    %c0_i32_1 = arith.constant 0 : i32
    return %c0_i32, %c0_i32_0 : i32, i32
  }
  func.func @transform_6(%arg0: i32) -> (i32, i32) {
    %c0_i32 = arith.constant 0 : i32
    %c0_i32_0 = arith.constant 0 : i32
    %c0_i32_1 = arith.constant 0 : i32
    return %c0_i32, %c0_i32_0 : i32, i32
  }
  func.func @transform_7(%arg0: i32) -> (i32, i32) {
    %c0_i32 = arith.constant 0 : i32
    %c0_i32_0 = arith.constant 0 : i32
    return %arg0, %c0_i32 : i32, i32
  }
}

module attributes {stable_mosaic.version = 11 : i64} {
  func.func @_linear_kernel(%arg0: i32, %arg1: i32, %arg2: i32, %arg3: memref<20x32xf32, #tpu.memory_space<vmem>>, %arg4: memref<32x41xbf16, #tpu.memory_space<vmem>>, %arg5: memref<1x41xf32, #tpu.memory_space<vmem>>, %arg6: memref<20x41xf32, #tpu.memory_space<vmem>>, %arg7: memref<20x41xf32, #tpu.memory_space<vmem>>) attributes {dimension_semantics = [#tpu.dimension_semantics<parallel>, #tpu.dimension_semantics<parallel>, #tpu.dimension_semantics<arbitrary>], iteration_bounds = array<i64: 1, 1, 1>, scalar_prefetch = 0 : i64, scratch_operands = 1 : i64, tpu.core_type = #tpu.core_type<tc>, window_params = [{transform_indices = @transform_0, window_bounds = array<i64: 20, 32>}, {transform_indices = @transform_1, window_bounds = array<i64: 32, 41>}, {transform_indices = @transform_2, window_bounds = array<i64: 1, 41>}, {transform_indices = @transform_3, window_bounds = array<i64: 20, 41>}]} {
    %c0_i32 = arith.constant 0 : i32
    %0 = arith.cmpi eq, %arg2, %c0_i32 : i32
    %1 = arith.extui %0 : i1 to i32
    %c0_i32_0 = arith.constant 0 : i32
    %2 = arith.cmpi ne, %1, %c0_i32_0 : i32
    scf.if %2 {
      %cst_10 = arith.constant 0.000000e+00 : f32
      %13 = vector.broadcast %cst_10 : f32 to vector<20x41xf32>
      %c0_11 = arith.constant 0 : index
      %c0_12 = arith.constant 0 : index
      %14 = vector.load %arg7[%c0_11, %c0_12] : memref<20x41xf32, #tpu.memory_space<vmem>>, vector<20x41xf32>
      tpu.vector_store %arg7[%c0_11, %c0_12], %13 {strides = array<i32>} : memref<20x41xf32, #tpu.memory_space<vmem>>, vector<20x41xf32>,
    } else {
    }
    %c0 = arith.constant 0 : index
    %c0_1 = arith.constant 0 : index
    %3 = vector.load %arg7[%c0, %c0_1] : memref<20x41xf32, #tpu.memory_space<vmem>>, vector<20x41xf32>
    %c0_2 = arith.constant 0 : index
    %c0_3 = arith.constant 0 : index
    %4 = vector.load %arg3[%c0_2, %c0_3] : memref<20x32xf32, #tpu.memory_space<vmem>>, vector<20x32xf32>
    %5 = arith.truncf %4 : vector<20x32xf32> to vector<20x32xbf16>
    %c0_4 = arith.constant 0 : index
    %c0_5 = arith.constant 0 : index
    %6 = vector.load %arg4[%c0_4, %c0_5] : memref<32x41xbf16, #tpu.memory_space<vmem>>, vector<32x41xbf16>
    %cst = arith.constant dense<0.000000e+00> : vector<20x41xf32>
    %7 = tpu.matmul %5, %6, %cst {dimension_numbers = #tpu.dot_dimension_numbers<[1], [0], [0], [1], [0, 0, 1, 1], [], []>} : vector<20x32xbf16>, vector<32x41xbf16>, vector<20x41xf32> -> vector<20x41xf32>
    %8 = arith.addf %3, %7 : vector<20x41xf32>
    %c0_6 = arith.constant 0 : index
    %c0_7 = arith.constant 0 : index
    %9 = vector.load %arg7[%c0_6, %c0_7] : memref<20x41xf32, #tpu.memory_space<vmem>>, vector<20x41xf32>
    tpu.vector_store %arg7[%c0_6, %c0_7], %8 {strides = array<i32>} : memref<20x41xf32, #tpu.memory_space<vmem>>, vector<20x41xf32>,
    %c0_i32_8 = arith.constant 0 : i32
    %10 = arith.cmpi eq, %arg2, %c0_i32_8 : i32
    %11 = arith.extui %10 : i1 to i32
    %c0_i32_9 = arith.constant 0 : i32
    %12 = arith.cmpi ne, %11, %c0_i32_9 : i32
    scf.if %12 {
      %c0_10 = arith.constant 0 : index
      %c0_11 = arith.constant 0 : index
      %13 = vector.load %arg7[%c0_10, %c0_11] : memref<20x41xf32, #tpu.memory_space<vmem>>, vector<20x41xf32>
      %c0_12 = arith.constant 0 : index
      %c0_13 = arith.constant 0 : index
      %14 = vector.load %arg5[%c0_12, %c0_13] : memref<1x41xf32, #tpu.memory_space<vmem>>, vector<1x41xf32>
      %15 = vector.broadcast %14 : vector<1x41xf32> to vector<20x41xf32>
      %16 = arith.addf %13, %15 : vector<20x41xf32>
      %c0_14 = arith.constant 0 : index
      %c0_15 = arith.constant 0 : index
      %17 = vector.load %arg6[%c0_14, %c0_15] : memref<20x41xf32, #tpu.memory_space<vmem>>, vector<20x41xf32>
      tpu.vector_store %arg6[%c0_14, %c0_15], %16 {strides = array<i32>} : memref<20x41xf32, #tpu.memory_space<vmem>>, vector<20x41xf32>,
    } else {
    }
    return
  }
  func.func @transform_0(%arg0: i32, %arg1: i32, %arg2: i32) -> (i32, i32) {
    %c0_i32 = arith.constant 0 : i32
    return %arg0, %arg2 : i32, i32
  }
  func.func @transform_1(%arg0: i32, %arg1: i32, %arg2: i32) -> (i32, i32) {
    %c0_i32 = arith.constant 0 : i32
    return %arg2, %arg1 : i32, i32
  }
  func.func @transform_2(%arg0: i32, %arg1: i32, %arg2: i32) -> (i32, i32) {
    %c0_i32 = arith.constant 0 : i32
    %c0_i32_0 = arith.constant 0 : i32
    return %c0_i32, %arg1 : i32, i32
  }
  func.func @transform_3(%arg0: i32, %arg1: i32, %arg2: i32) -> (i32, i32) {
    %c0_i32 = arith.constant 0 : i32
    return %arg0, %arg1 : i32, i32
  }
}

</mosaic_0001>

<llo_original>
// kernel: seq2seq_transformer_forward.25
$region0: #{seq2seq_transformer_forward.25}
  #allocation0 [shape = 'u32[]', space=smem, size = 0x4, offset = 0x4, fixed_abs, tag = 'smem constant byte address 0x4 - core index']
  #allocation1 [shape = 'u32[144,128]{1,0:T(1,128)}', space=vmem, size = 0x12000, scoped, tag = 'internal scratch']
  #allocation2 [shape = 'f32[16,96]{1,0:T(8,128)}', space=vmem, size = 0x2000, scoped, tag = 'scratch operand']
  %s0 = inlined_call_operand.vmem [shape: f32[16,32], index: 0, kind: input, shape index: {}]
  %s1 = inlined_call_operand.vmem [shape: bf16[32,96], index: 1, kind: input, shape index: {}]
  %s2 = inlined_call_operand.vmem [shape: f32[1,96], index: 2, kind: input, shape index: {}]
  %s3 = inlined_call_operand.vmem [shape: bf16[16,96], index: 3, kind: output, shape index: {}]
  %s4 = sld [smem:[#allocation0]]
  $region30: #{seq2seq_transformer_forward.25} parent=0
    _
  %s6 = ssub.s32 1, %s4
  %s7 = scalar_select 0, %s6, %s4
  // Predicated region
  $region2: #{seq2seq_transformer_forward.25} parent=0 // pred_check
    _
  $region3: #{seq2seq_transformer_forward.25} parent=0 // pred_check_branch
    %9 = sbr.rel (0) target = $region5
  $region4: #{seq2seq_transformer_forward.25} parent=0 // pred_region
    _
  $region5: #{seq2seq_transformer_forward.25} parent=0 // pred_fallthru
    _
  // Predicated region
  $region6: #{seq2seq_transformer_forward.25} parent=0 // pred_check
    _
  $region7: #{seq2seq_transformer_forward.25} parent=0 // pred_check_branch
    %11 = sbr.rel (0) target = $region9
  $region8: #{seq2seq_transformer_forward.25} parent=0 // pred_region
    _
  $region9: #{seq2seq_transformer_forward.25} parent=0 // pred_fallthru
    _
  // Predicated region
  $region10: #{seq2seq_transformer_forward.25} parent=0 // pred_check
    _
  $region11: #{seq2seq_transformer_forward.25} parent=0 // pred_check_branch
    %13 = sbr.rel (0) target = $region13
  $region12: #{seq2seq_transformer_forward.25} parent=0 // pred_region
    _
  $region13: #{seq2seq_transformer_forward.25} parent=0 // pred_fallthru
    _
  %p15 = scmp.eq.s32.totalorder 0, 0
  // Predicated region
  $region14: #{seq2seq_transformer_forward.25} parent=0 // pred_check
    %p16 = pneg %p15
  $region15: #{seq2seq_transformer_forward.25} parent=0 // pred_check_branch
    %18 = sbr.rel (%p16) target = $region17
  $region16: #{seq2seq_transformer_forward.25} parent=0 // pred_region
    %vm19 = vcmask 785408
    %20 = vst.msk [vmem:[#allocation2] sm:$0xff] %vm19, 0.0
    %21 = vst.msk [vmem:[#allocation2 + $0x8] sm:$0xff] %vm19, 0.0
  $region17: #{seq2seq_transformer_forward.25} parent=0 // pred_fallthru
    _
  %v22 = vld [vmem:[#allocation2] sm:$0xff]
  %v23 = vld [vmem:[#allocation2 + $0x8] sm:$0xff]
  %v24 = vld [vmem:[%s0] sm:$0xff]
  %v25 = vld [vmem:[%s0 + $0x8] sm:$0xff]
  %v26 = vpack.c.bf16 %v25, %v24
  %v27 = vld [vmem:[%s1] sm:$0xf]
  %v28 = vld [vmem:[%s1 + $0x4] sm:$0xf]
  %v29 = vld [vmem:[%s1 + $0x8] sm:$0xf]
  %v30 = vld [vmem:[%s1 + $0xc] sm:$0xf]
  %v35 = vunpack.c.l.b16 %v27
  %v36 = vunpack.c.l.b16 %v28
  %v37 = vunpack.c.l.b16 %v29
  %v38 = vunpack.c.l.b16 %v30
  %v39 = vpack.c.b16 %v36, %v35
  %v40 = vpack.c.b16 %v38, %v37
  %vm43 = vcmask 261120
  %v45 = vsel %vm43, %v26, 0
  %47 = vmatprep.subr.bf16.mxu0 0
  %48 = vmatpush1.bf16.msra.mxu0 %v39
  %49 = vmatprep.subr.bf16.mxu0 0
  %50 = vmatpush1.bf16.msra.mxu0 %v40
  %51 = vmatprep.subr.bf16.mxu0 0
  %52 = vmatpush1.bf16.msra.mxu0 0
  %53 = vmatprep.subr.bf16.mxu0 0
  %54 = vmatpush1.bf16.msra.mxu0 0
  %55 = vmatprep.subr.bf16.mxu0 0
  %56 = vmatpush1.bf16.msra.mxu0 0
  %57 = vmatprep.subr.bf16.mxu0 0
  %58 = vmatpush1.bf16.msra.mxu0 0
  %59 = vmatprep.subr.bf16.mxu0 0
  %60 = vmatpush1.bf16.msra.mxu0 0
  %61 = vmatprep.subr.bf16.mxu0 0
  %62 = vmatpush1.bf16.msra.mxu0 0
  %63 = vmatprep.subr.bf16.mxu0 0
  %64 = vmatpush1.bf16.msra.mxu0 0
  %65 = vmatprep.subr.bf16.mxu0 0
  %66 = vmatpush1.bf16.msra.mxu0 0
  %67 = vmatprep.subr.bf16.mxu0 0
  %68 = vmatpush1.bf16.msra.mxu0 0
  %69 = vmatprep.subr.bf16.mxu0 0
  %70 = vmatpush1.bf16.msra.mxu0 0
  %71 = vmatprep.subr.bf16.mxu0 0
  %72 = vmatpush1.bf16.msra.mxu0 0
  %73 = vmatprep.subr.bf16.mxu0 0
  %74 = vmatpush1.bf16.msra.mxu0 0
  %75 = vmatprep.subr.bf16.mxu0 0
  %76 = vmatpush1.bf16.msra.mxu0 0
  %77 = vmatprep.subr.bf16.mxu0 0
  %78 = vmatpush1.bf16.msra.mxu0 0
  %79 = vmatprep.mubr.bf16.mxu0 0
  %80 = vmatmul.mubr.bf16.gmra.mrb[0].mxu0 %v45
  %v81 = vpop.f32.mrb[0].mxu0
  %v82 = vadd.f32 0.0, %v81
  %v83 = vpop.f32.mrb[0].mxu0
  %v84 = vpop.f32.mrb[0].mxu0
  %v85 = vadd.f32 0.0, %v84
  %v86 = vpop.f32.mrb[0].mxu0
  %87 = vdwg.mxu0
  %v88 = vadd.f32 %v22, %v82
  %v89 = vadd.f32 %v23, %v85
  %vm90 = vcmask 785408
  %91 = vst.msk [vmem:[#allocation2] sm:$0xff] %vm90, %v88
  %92 = vst.msk [vmem:[#allocation2 + $0x8] sm:$0xff] %vm90, %v89
  // Predicated region
  $region18: #{seq2seq_transformer_forward.25} parent=0 // pred_check
    %p93 = pneg %p15
  $region19: #{seq2seq_transformer_forward.25} parent=0 // pred_check_branch
    %95 = sbr.rel (%p93) target = $region21
  $region20: #{seq2seq_transformer_forward.25} parent=0 // pred_region
    %v96 = vld [vmem:[#allocation2] sm:$0xff]
    %v97 = vld [vmem:[#allocation2 + $0x8] sm:$0xff]
    %v98 = vld [vmem:[%s2] sm:$0x1]
    %v100 = vlaneseq
    %v101 = vshrl.u32 %v100, 7
    %v102 = vsub.s32 0, %v101
    %v103 = vrot.slane %v98, %v102
    %v105 = vadd.f32 %v96, %v103
    %v106 = vadd.f32 %v97, %v103
    %v107 = vpack.c.bf16 %v106, %v105
    %v109 = vunpack.c.l.b16 %v107
    %v110 = vunpack.c.h.b16 %v107
    %v111 = vpack.c.b16 %v109, %v109
    %v112 = vpack.c.b16 %v110, %v110
    %vm115 = vcmask 781312
    %116 = vst.msk [vmem:[%s3] sm:$0xf] %vm115, %v111
    %117 = vst.msk [vmem:[%s3 + $0x4] sm:$0xf] %vm115, %v112
  $region21: #{seq2seq_transformer_forward.25} parent=0 // pred_fallthru
    _
  // Predicated region
  $region22: #{seq2seq_transformer_forward.25} parent=0 // pred_check
    _
  $region23: #{seq2seq_transformer_forward.25} parent=0 // pred_check_branch
    %119 = sbr.rel (0) target = $region25
  $region24: #{seq2seq_transformer_forward.25} parent=0 // pred_region
    _
  $region25: #{seq2seq_transformer_forward.25} parent=0 // pred_fallthru
    _
  // Predicated region
  $region26: #{seq2seq_transformer_forward.25} parent=0 // pred_check
    _
  $region27: #{seq2seq_transformer_forward.25} parent=0 // pred_check_branch
    %121 = sbr.rel (0) target = $region29
  $region28: #{seq2seq_transformer_forward.25} parent=0 // pred_region
    _
  $region29: #{seq2seq_transformer_forward.25} parent=0 // pred_fallthru
    _

// kernel: seq2seq_transformer_forward.27
$region0: #{seq2seq_transformer_forward.27}
  #allocation0 [shape = 'u32[]', space=smem, size = 0x4, offset = 0x4, fixed_abs, tag = 'smem constant byte address 0x4 - core index']
  #allocation1 [shape = 'u32[144,128]{1,0:T(1,128)}', space=vmem, size = 0x12000, scoped, tag = 'internal scratch']
  #allocation2 [shape = 'f32[16,32]{1,0:T(8,128)}', space=vmem, size = 0x2000, scoped, tag = 'scratch operand']
  %s0 = inlined_call_operand.vmem [shape: bf16[16,32], index: 0, kind: input, shape index: {}]
  %s1 = inlined_call_operand.vmem [shape: bf16[32,32], index: 1, kind: input, shape index: {}]
  %s2 = inlined_call_operand.vmem [shape: f32[1,32], index: 2, kind: input, shape index: {}]
  %s3 = inlined_call_operand.vmem [shape: f32[16,32], index: 3, kind: input, shape index: {}]
  %s4 = inlined_call_operand.vmem [shape: f32[1,32], index: 4, kind: input, shape index: {}]
  %s5 = inlined_call_operand.vmem [shape: f32[1,32], index: 5, kind: input, shape index: {}]
  %s6 = inlined_call_operand.vmem [shape: f32[16,32], index: 6, kind: output, shape index: {}]
  %s7 = sld [smem:[#allocation0]]
  $region42: #{seq2seq_transformer_forward.27} parent=0
    _
  %s9 = ssub.s32 1, %s7
  %s10 = scalar_select 0, %s9, %s7
  // Predicated region
  $region2: #{seq2seq_transformer_forward.27} parent=0 // pred_check
    _
  $region3: #{seq2seq_transformer_forward.27} parent=0 // pred_check_branch
    %12 = sbr.rel (0) target = $region5
  $region4: #{seq2seq_transformer_forward.27} parent=0 // pred_region
    _
  $region5: #{seq2seq_transformer_forward.27} parent=0 // pred_fallthru
    _
  // Predicated region
  $region6: #{seq2seq_transformer_forward.27} parent=0 // pred_check
    _
  $region7: #{seq2seq_transformer_forward.27} parent=0 // pred_check_branch
    %14 = sbr.rel (0) target = $region9
  $region8: #{seq2seq_transformer_forward.27} parent=0 // pred_region
    _
  $region9: #{seq2seq_transformer_forward.27} parent=0 // pred_fallthru
    _
  // Predicated region
  $region10: #{seq2seq_transformer_forward.27} parent=0 // pred_check
    _
  $region11: #{seq2seq_transformer_forward.27} parent=0 // pred_check_branch
    %16 = sbr.rel (0) target = $region13
  $region12: #{seq2seq_transformer_forward.27} parent=0 // pred_region
    _
  $region13: #{seq2seq_transformer_forward.27} parent=0 // pred_fallthru
    _
  // Predicated region
  $region14: #{seq2seq_transformer_forward.27} parent=0 // pred_check
    _
  $region15: #{seq2seq_transformer_forward.27} parent=0 // pred_check_branch
    %18 = sbr.rel (0) target = $region17
  $region16: #{seq2seq_transformer_forward.27} parent=0 // pred_region
    _
  $region17: #{seq2seq_transformer_forward.27} parent=0 // pred_fallthru
    _
  // Predicated region
  $region18: #{seq2seq_transformer_forward.27} parent=0 // pred_check
    _
  $region19: #{seq2seq_transformer_forward.27} parent=0 // pred_check_branch
    %20 = sbr.rel (0) target = $region21
  $region20: #{seq2seq_transformer_forward.27} parent=0 // pred_region
    _
  $region21: #{seq2seq_transformer_forward.27} parent=0 // pred_fallthru
    _
  // Predicated region
  $region22: #{seq2seq_transformer_forward.27} parent=0 // pred_check
    _
  $region23: #{seq2seq_transformer_forward.27} parent=0 // pred_check_branch
    %22 = sbr.rel (0) target = $region25
  $region24: #{seq2seq_transformer_forward.27} parent=0 // pred_region
    _
  $region25: #{seq2seq_transformer_forward.27} parent=0 // pred_fallthru
    _
  %p24 = scmp.eq.s32.totalorder 0, 0
  // Predicated region
  $region26: #{seq2seq_transformer_forward.27} parent=0 // pred_check
    %p25 = pneg %p24
  $region27: #{seq2seq_transformer_forward.27} parent=0 // pred_check_branch
    %27 = sbr.rel (%p25) target = $region29
  $region28: #{seq2seq_transformer_forward.27} parent=0 // pred_region
    %vm28 = vcmask 261120
    %29 = vst.msk [vmem:[#allocation2] sm:$0xff] %vm28, 0.0
    %30 = vst.msk [vmem:[#allocation2 + $0x8] sm:$0xff] %vm28, 0.0
  $region29: #{seq2seq_transformer_forward.27} parent=0 // pred_fallthru
    _
  %v31 = vld [vmem:[#allocation2] sm:$0xff]
  %v32 = vld [vmem:[#allocation2 + $0x8] sm:$0xff]
  %v33 = vld [vmem:[%s0] sm:$0xf]
  %v34 = vld [vmem:[%s0 + $0x4] sm:$0xf]
  %v35 = vld [vmem:[%s1] sm:$0xf]
  %v36 = vld [vmem:[%s1 + $0x4] sm:$0xf]
  %v37 = vld [vmem:[%s1 + $0x8] sm:$0xf]
  %v38 = vld [vmem:[%s1 + $0xc] sm:$0xf]
  %v41 = vunpack.c.l.b16 %v33
  %v42 = vunpack.c.l.b16 %v34
  %v43 = vpack.c.b16 %v42, %v41
  %v48 = vunpack.c.l.b16 %v35
  %v49 = vunpack.c.l.b16 %v36
  %v50 = vunpack.c.l.b16 %v37
  %v51 = vunpack.c.l.b16 %v38
  %v52 = vpack.c.b16 %v49, %v48
  %v53 = vpack.c.b16 %v51, %v50
  %vm56 = vcmask 261120
  %v58 = vsel %vm56, %v43, 0
  %60 = vmatprep.subr.bf16.mxu0 0
  %61 = vmatpush1.bf16.msra.mxu0 %v52
  %62 = vmatprep.subr.bf16.mxu0 0
  %63 = vmatpush1.bf16.msra.mxu0 %v53
  %64 = vmatprep.subr.bf16.mxu0 0
  %65 = vmatpush1.bf16.msra.mxu0 0
  %66 = vmatprep.subr.bf16.mxu0 0
  %67 = vmatpush1.bf16.msra.mxu0 0
  %68 = vmatprep.subr.bf16.mxu0 0
  %69 = vmatpush1.bf16.msra.mxu0 0
  %70 = vmatprep.subr.bf16.mxu0 0
  %71 = vmatpush1.bf16.msra.mxu0 0
  %72 = vmatprep.subr.bf16.mxu0 0
  %73 = vmatpush1.bf16.msra.mxu0 0
  %74 = vmatprep.subr.bf16.mxu0 0
  %75 = vmatpush1.bf16.msra.mxu0 0
  %76 = vmatprep.subr.bf16.mxu0 0
  %77 = vmatpush1.bf16.msra.mxu0 0
  %78 = vmatprep.subr.bf16.mxu0 0
  %79 = vmatpush1.bf16.msra.mxu0 0
  %80 = vmatprep.subr.bf16.mxu0 0
  %81 = vmatpush1.bf16.msra.mxu0 0
  %82 = vmatprep.subr.bf16.mxu0 0
  %83 = vmatpush1.bf16.msra.mxu0 0
  %84 = vmatprep.subr.bf16.mxu0 0
  %85 = vmatpush1.bf16.msra.mxu0 0
  %86 = vmatprep.subr.bf16.mxu0 0
  %87 = vmatpush1.bf16.msra.mxu0 0
  %88 = vmatprep.subr.bf16.mxu0 0
  %89 = vmatpush1.bf16.msra.mxu0 0
  %90 = vmatprep.subr.bf16.mxu0 0
  %91 = vmatpush1.bf16.msra.mxu0 0
  %92 = vmatprep.mubr.bf16.mxu0 0
  %93 = vmatmul.mubr.bf16.gmra.mrb[0].mxu0 %v58
  %v94 = vpop.f32.mrb[0].mxu0
  %v95 = vadd.f32 0.0, %v94
  %v96 = vpop.f32.mrb[0].mxu0
  %v97 = vpop.f32.mrb[0].mxu0
  %v98 = vadd.f32 0.0, %v97
  %v99 = vpop.f32.mrb[0].mxu0
  %100 = vdwg.mxu0
  %v101 = vadd.f32 %v31, %v95
  %v102 = vadd.f32 %v32, %v98
  %103 = vst.msk [vmem:[#allocation2] sm:$0xff] %vm56, %v101
  %104 = vst.msk [vmem:[#allocation2 + $0x8] sm:$0xff] %vm56, %v102
  // Predicated region
  $region30: #{seq2seq_transformer_forward.27} parent=0 // pred_check
    %p105 = pneg %p24
  $region31: #{seq2seq_transformer_forward.27} parent=0 // pred_check_branch
    %107 = sbr.rel (%p105) target = $region33
  $region32: #{seq2seq_transformer_forward.27} parent=0 // pred_region
    %v108 = vld [vmem:[%s3] sm:$0xff]
    %v109 = vld [vmem:[%s3 + $0x8] sm:$0xff]
    %v110 = vld [vmem:[#allocation2] sm:$0xff]
    %v111 = vld [vmem:[#allocation2 + $0x8] sm:$0xff]
    %v112 = vadd.f32 %v108, %v110
    %v113 = vadd.f32 %v109, %v111
    %v114 = vld [vmem:[%s2] sm:$0x1]
    %v116 = vlaneseq
    %v117 = vshrl.u32 %v116, 7
    %v118 = vsub.s32 0, %v117
    %v119 = vrot.slane %v114, %v118
    %v121 = vadd.f32 %v112, %v119
    %v122 = vadd.f32 %v113, %v119
    %v123 = vsel %vm56, %v121, 0.0
    %124 = vadd.xlane.f32.xlu0 %v123
    %v125 = vpop.xlane.xlu0 %124
    %v126 = vsel %vm56, %v122, 0.0
    %127 = vadd.xlane.f32.xlu0 %v126
    %v128 = vpop.xlane.xlu0 %127
    %v129 = vrcp.pop 32.0
    %v130 = vmul.f32 %v125, %v129
    %v131 = vmul.f32 %v128, %v129
    %v132 = vsub.f32 %v121, %v130
    %v133 = vsub.f32 %v122, %v131
    %v134 = vmul.f32 %v132, %v132
    %v135 = vmul.f32 %v133, %v133
    %v136 = vsel %vm56, %v134, 0.0
    %137 = vadd.xlane.f32.xlu0 %v136
    %v138 = vpop.xlane.xlu0 %137
    %v139 = vsel %vm56, %v135, 0.0
    %140 = vadd.xlane.f32.xlu0 %v139
    %v141 = vpop.xlane.xlu0 %140
    %v142 = vmul.f32 %v138, %v129
    %v143 = vmul.f32 %v141, %v129
    %v144 = vadd.f32 %v142, 1e-05
    %v145 = vadd.f32 %v143, 1e-05
    %v146 = vrsqrt.pop %v144
    %v147 = vrsqrt.pop %v145
    %v148 = vmul.f32 %v132, %v146
    %v149 = vmul.f32 %v133, %v147
    %v150 = vld [vmem:[%s4] sm:$0x1]
    %v152 = vlaneseq
    %v153 = vshrl.u32 %v152, 7
    %v154 = vsub.s32 0, %v153
    %v155 = vrot.slane %v150, %v154
    %v157 = vmul.f32 %v148, %v155
    %v158 = vmul.f32 %v149, %v155
    %v159 = vld [vmem:[%s5] sm:$0x1]
    %v161 = vlaneseq
    %v162 = vshrl.u32 %v161, 7
    %v163 = vsub.s32 0, %v162
    %v164 = vrot.slane %v159, %v163
    %v166 = vadd.f32 %v157, %v164
    %v167 = vadd.f32 %v158, %v164
    %168 = vst.msk [vmem:[%s6] sm:$0xff] %vm56, %v166
    %169 = vst.msk [vmem:[%s6 + $0x8] sm:$0xff] %vm56, %v167
  $region33: #{seq2seq_transformer_forward.27} parent=0 // pred_fallthru
    _
  // Predicated region
  $region34: #{seq2seq_transformer_forward.27} parent=0 // pred_check
    _
  $region35: #{seq2seq_transformer_forward.27} parent=0 // pred_check_branch
    %171 = sbr.rel (0) target = $region37
  $region36: #{seq2seq_transformer_forward.27} parent=0 // pred_region
    _
  $region37: #{seq2seq_transformer_forward.27} parent=0 // pred_fallthru
    _
  // Predicated region
  $region38: #{seq2seq_transformer_forward.27} parent=0 // pred_check
    _
  $region39: #{seq2seq_transformer_forward.27} parent=0 // pred_check_branch
    %173 = sbr.rel (0) target = $region41
  $region40: #{seq2seq_transformer_forward.27} parent=0 // pred_region
    _
  $region41: #{seq2seq_transformer_forward.27} parent=0 // pred_fallthru
    _

// kernel: seq2seq_transformer_forward.26
$region0: #{seq2seq_transformer_forward.26}
  #allocation0 [shape = 'u32[]', space=smem, size = 0x4, offset = 0x4, fixed_abs, tag = 'smem constant byte address 0x4 - core index']
  #allocation1 [shape = 'u32[144,128]{1,0:T(1,128)}', space=vmem, size = 0x12000, scoped, tag = 'internal scratch']
  %s0 = inlined_call_operand.vmem [shape: bf16[2,8,96], index: 0, kind: input, shape index: {}]
  %s1 = inlined_call_operand.vmem [shape: f32[8,8], index: 1, kind: input, shape index: {}]
  %s2 = inlined_call_operand.vmem [shape: f32[2,1,8], index: 2, kind: input, shape index: {}]
  %s3 = inlined_call_operand.vmem [shape: bf16[2,8,32], index: 3, kind: output, shape index: {}]
  %s4 = sld [smem:[#allocation0]]
  $region45: #{seq2seq_transformer_forward.26} parent=0
    _
  %s6 = ssub.s32 1, %s4
  %s7 = scalar_select 0, %s6, %s4
  loop: start=0, step=1, limit=4
  $region2: #{seq2seq_transformer_forward.26} parent=0 // loop_pre_header
    _
  $region3: #{seq2seq_transformer_forward.26} parent=0 // loop_header
    %s9 = sphi 0, %s13
    %p10 = scmp.ge.s32.totalorder %s9, 4
    %s19 = sphi 0, %s21
    %s22 = sphi 0, %s19
    %s23 = sphi 0, %s22
    %s39 = sphi 0, %s23
    %s43 = sphi 0, %s43
    %s45 = sphi 0, %s43
    %s46 = sphi 0, %s45
    %s60 = sphi 0, %s46
    %s66 = sphi 0, %s68
    %s69 = sphi 0, %s66
    %s70 = sphi 0, %s69
    %s86 = sphi 0, %s70
    %s92 = sphi 0, %s94
    %s95 = sphi 0, %s92
    %s96 = sphi 0, %s95
    %s112 = sphi 0, %s96
  $region4: #{seq2seq_transformer_forward.26} parent=0 // loop_header_branch
    %12 = sbr.rel (%p10) target = $region8
  $region5: #{seq2seq_transformer_forward.26} parent=0 // loop_body
    %s14 = ssub.s32 %s9, 1
    %s15 = ssub.s32 %s9, 2
    %s16 = sadd.s32 %s9, 1
    %s17 = ssub.s32 %s9, %s16
    %p18 = scmp.eq.s32.totalorder %s17, 0
    %s20 = sadd.s32 %s19, 1
    %s21 = scalar_select %p18, %s19, %s20
    %p24 = pneg %p18
    %p25 = scmp.eq.s32.totalorder %s9, 1
    %p26 = por %p24, %p25
    %p27 = scmp.ne.s32.totalorder %s19, %s22
    %p28 = scmp.eq.s32.totalorder %s9, 0
    %p29 = por %p27, %p28
    %p30 = scmp.ne.s32.totalorder %s19, %s22
    %p31 = scmp.eq.s32.totalorder %s14, 1
    %p32 = por %p30, %p31
    %p33 = scmp.ne.s32.totalorder %s22, %s23
    %p34 = scmp.eq.s32.totalorder %s14, 0
    %p35 = por %p33, %p34
    %p36 = scmp.ne.s32.totalorder %s22, %s23
    %p37 = scmp.eq.s32.totalorder %s15, 1
    %p38 = por %p36, %p37
    %p40 = scmp.ne.s32.totalorder %s23, %s39
    %p41 = scmp.eq.s32.totalorder %s15, 0
    %p42 = por %p40, %p41
    %s44 = sadd.s32 %s43, 1
    %p47 = scmp.eq.s32.totalorder %s9, 1
    %p48 = scmp.ne.s32.totalorder %s43, %s45
    %p49 = scmp.eq.s32.totalorder %s9, 0
    %p50 = por %p48, %p49
    %p51 = scmp.ne.s32.totalorder %s43, %s45
    %p52 = scmp.eq.s32.totalorder %s14, 1
    %p53 = por %p51, %p52
    %p54 = scmp.ne.s32.totalorder %s45, %s46
    %p55 = scmp.eq.s32.totalorder %s14, 0
    %p56 = por %p54, %p55
    %p57 = scmp.ne.s32.totalorder %s45, %s46
    %p58 = scmp.eq.s32.totalorder %s15, 1
    %p59 = por %p57, %p58
    %p61 = scmp.ne.s32.totalorder %s46, %s60
    %p62 = scmp.eq.s32.totalorder %s15, 0
    %p63 = por %p61, %p62
    %s64 = ssub.s32 %s9, %s16
    %p65 = scmp.eq.s32.totalorder %s64, 0
    %s67 = sadd.s32 %s66, 1
    %s68 = scalar_select %p65, %s66, %s67
    %p71 = pneg %p65
    %p72 = scmp.eq.s32.totalorder %s9, 1
    %p73 = por %p71, %p72
    %p74 = scmp.ne.s32.totalorder %s66, %s69
    %p75 = scmp.eq.s32.totalorder %s9, 0
    %p76 = por %p74, %p75
    %p77 = scmp.ne.s32.totalorder %s66, %s69
    %p78 = scmp.eq.s32.totalorder %s14, 1
    %p79 = por %p77, %p78
    %p80 = scmp.ne.s32.totalorder %s69, %s70
    %p81 = scmp.eq.s32.totalorder %s14, 0
    %p82 = por %p80, %p81
    %p83 = scmp.ne.s32.totalorder %s69, %s70
    %p84 = scmp.eq.s32.totalorder %s15, 1
    %p85 = por %p83, %p84
    %p87 = scmp.ne.s32.totalorder %s70, %s86
    %p88 = scmp.eq.s32.totalorder %s15, 0
    %p89 = por %p87, %p88
    %s90 = ssub.s32 %s9, %s16
    %p91 = scmp.eq.s32.totalorder %s90, 0
    %s93 = sadd.s32 %s92, 1
    %s94 = scalar_select %p91, %s92, %s93
    %p97 = pneg %p91
    %p98 = scmp.eq.s32.totalorder %s9, 1
    %p99 = por %p97, %p98
    %p100 = scmp.ne.s32.totalorder %s92, %s95
    %p101 = scmp.eq.s32.totalorder %s9, 0
    %p102 = por %p100, %p101
    %p103 = scmp.ne.s32.totalorder %s92, %s95
    %p104 = scmp.eq.s32.totalorder %s14, 1
    %p105 = por %p103, %p104
    %p106 = scmp.ne.s32.totalorder %s95, %s96
    %p107 = scmp.eq.s32.totalorder %s14, 0
    %p108 = por %p106, %p107
    %p109 = scmp.ne.s32.totalorder %s95, %s96
    %p110 = scmp.eq.s32.totalorder %s15, 1
    %p111 = por %p109, %p110
    %p113 = scmp.ne.s32.totalorder %s96, %s112
    %p114 = scmp.eq.s32.totalorder %s15, 0
    %p115 = por %p113, %p114
    %p116 = scmp.le.s32.totalorder 1, %s9
    %p117 = scmp.lt.s32.totalorder %s9, 3
    %p118 = pnand %p116, %p117
    %p119 = pneg %p118
    // Predicated region
    $region9: #{seq2seq_transformer_forward.26} parent=5 // pred_check
      _
    $region10: #{seq2seq_transformer_forward.26} parent=5 // pred_check_branch
      %121 = sbr.rel (%p118) target = $region12
    $region11: #{seq2seq_transformer_forward.26} parent=5 // pred_region
      %s122 = ssub.s32 %s9, 1
      // Predicated region
      $region13: #{seq2seq_transformer_forward.26} parent=11 // pred_check
        %p123 = pneg %p56
      $region14: #{seq2seq_transformer_forward.26} parent=11 // pred_check_branch
        %125 = sbr.rel (%p123) target = $region16
      $region15: #{seq2seq_transformer_forward.26} parent=11 // pred_region
        _
      $region16: #{seq2seq_transformer_forward.26} parent=11 // pred_fallthru
        _
    $region12: #{seq2seq_transformer_forward.26} parent=5 // pred_fallthru
      _
    %p126 = scmp.lt.s32.totalorder %s9, 2
    // Predicated region
    $region17: #{seq2seq_transformer_forward.26} parent=5 // pred_check
      %p127 = pneg %p126
    $region18: #{seq2seq_transformer_forward.26} parent=5 // pred_check_branch
      %129 = sbr.rel (%p127) target = $region20
    $region19: #{seq2seq_transformer_forward.26} parent=5 // pred_region
      // Predicated region
      $region21: #{seq2seq_transformer_forward.26} parent=19 // pred_check
        %p130 = pneg %p29
      $region22: #{seq2seq_transformer_forward.26} parent=19 // pred_check_branch
        %132 = sbr.rel (%p130) target = $region24
      $region23: #{seq2seq_transformer_forward.26} parent=19 // pred_region
        %p133 = scmp.lt.s32.totalorder %s9, 1
        %s134 = scalar_select %p133, %s9, 1
        %s135 = smul.addr %s134, 4
        %s136 = scalar_lea.vmem %s0, %s135
      $region24: #{seq2seq_transformer_forward.26} parent=19 // pred_fallthru
        _
      // Predicated region
      $region25: #{seq2seq_transformer_forward.26} parent=19 // pred_check
        %p137 = pneg %p76
      $region26: #{seq2seq_transformer_forward.26} parent=19 // pred_check_branch
        %139 = sbr.rel (%p137) target = $region28
      $region27: #{seq2seq_transformer_forward.26} parent=19 // pred_region
        %p140 = scmp.lt.s32.totalorder %s9, 1
        %s141 = scalar_select %p140, %s9, 1
        %s142 = scalar_lea.vmem %s2, %s141
      $region28: #{seq2seq_transformer_forward.26} parent=19 // pred_fallthru
        _
    $region20: #{seq2seq_transformer_forward.26} parent=5 // pred_fallthru
      _
    %p143 = scmp.le.s32.totalorder 1, %s9
    %p144 = scmp.lt.s32.totalorder %s9, 3
    %p145 = pnand %p143, %p144
    %p146 = pneg %p145
    // Predicated region
    $region29: #{seq2seq_transformer_forward.26} parent=5 // pred_check
      _
    $region30: #{seq2seq_transformer_forward.26} parent=5 // pred_check_branch
      %148 = sbr.rel (%p145) target = $region32
    $region31: #{seq2seq_transformer_forward.26} parent=5 // pred_region
      %s149 = ssub.s32 %s9, 1
      %p150 = scmp.lt.s32.totalorder %s14, 1
      %s151 = scalar_select %p150, %s14, 1
      %s152 = smul.addr %s151, 4
      %s153 = scalar_lea.vmem %s0, %s152
      %p154 = pneg %p35
      %p155 = pneg %p32
      %p156 = pneg %p56
      %p157 = pneg %p53
      %p158 = scmp.lt.s32.totalorder %s14, 1
      %s159 = scalar_select %p158, %s14, 1
      %s160 = scalar_lea.vmem %s2, %s159
      %p161 = pneg %p82
      %p162 = pneg %p79
      %p163 = pneg %p108
      %p164 = pneg %p105
      %p165 = scmp.lt.s32.totalorder %s14, 1
      %s166 = scalar_select %p165, %s14, 1
      %s167 = smul.addr %s166, 4
      %s168 = scalar_lea.vmem %s3, %s167
      %p169 = scmp.lt.s32.totalorder %s14, 1
      %s170 = scalar_select %p169, %s14, 1
      %s171 = smul.addr %s170, 4
      %s172 = scalar_lea.vmem %s0, %s171
      %p173 = scmp.lt.s32.totalorder %s14, 1
      %s174 = scalar_select %p173, %s14, 1
      %s175 = scalar_lea.vmem %s2, %s174
      %p176 = scmp.lt.s32.totalorder %s14, 1
      %s177 = scalar_select %p176, %s14, 1
      %s178 = smul.addr %s177, 4
      %s179 = scalar_lea.vmem %s3, %s178
      %v181 = vld [vmem:[%s1] sm:$0xff]
      %v182 = vld [vmem:[%s175] sm:$0x1]
      %v184 = vlaneseq
      %v185 = vshrl.u32 %v184, 7
      %v186 = vsub.s32 0, %v185
      %v187 = vrot.slane %v182, %v186
      %v189 = vadd.f32 %v181, %v187
      %v190 = vld [vmem:[%s172] sm:$0xf]
      %v192 = vunpack.c.l.b16 %v190
      %v193 = vpack.c.b16 %v192, %v192
      %194 = vrot.lane.b32.xlu0 %v193, 96
      %v195 = vpop.permute.xlu0 %194
      %vm196 = vcmask 64512
      %v198 = vsel %vm196, %v190, 0
      %v201 = vsel %vm196, %v195, 0
      %203 = vmatprep.subr.bf16.mxu0 0
      %204 = vmatpush1.bf16.xpose.msra.mxu0 %v201
      %205 = vmatprep.subr.bf16.mxu0 0
      %206 = vmatpush1.bf16.xpose.msra.mxu0 0
      %207 = vmatprep.subr.bf16.mxu0 0
      %208 = vmatpush1.bf16.xpose.msra.mxu0 0
      %209 = vmatprep.subr.bf16.mxu0 0
      %210 = vmatpush1.bf16.xpose.msra.mxu0 0
      %211 = vmatprep.subr.bf16.mxu0 0
      %212 = vmatpush1.bf16.xpose.msra.mxu0 0
      %213 = vmatprep.subr.bf16.mxu0 0
      %214 = vmatpush1.bf16.xpose.msra.mxu0 0
      %215 = vmatprep.subr.bf16.mxu0 0
      %216 = vmatpush1.bf16.xpose.msra.mxu0 0
      %217 = vmatprep.subr.bf16.mxu0 0
      %218 = vmatpush1.bf16.xpose.msra.mxu0 0
      %219 = vmatprep.subr.bf16.mxu0 0
      %220 = vmatpush1.bf16.xpose.msra.mxu0 0
      %221 = vmatprep.subr.bf16.mxu0 0
      %222 = vmatpush1.bf16.xpose.msra.mxu0 0
      %223 = vmatprep.subr.bf16.mxu0 0
      %224 = vmatpush1.bf16.xpose.msra.mxu0 0
      %225 = vmatprep.subr.bf16.mxu0 0
      %226 = vmatpush1.bf16.xpose.msra.mxu0 0
      %227 = vmatprep.subr.bf16.mxu0 0
      %228 = vmatpush1.bf16.xpose.msra.mxu0 0
      %229 = vmatprep.subr.bf16.mxu0 0
      %230 = vmatpush1.bf16.xpose.msra.mxu0 0
      %231 = vmatprep.subr.bf16.mxu0 0
      %232 = vmatpush1.bf16.xpose.msra.mxu0 0
      %233 = vmatprep.subr.bf16.mxu0 0
      %234 = vmatpush1.bf16.xpose.msra.mxu0 0
      %235 = vmatprep.mubr.bf16.mxu0 0
      %236 = vmatmul.mubr.bf16.gmra.mrb[0].mxu0 %v198
      %v237 = vpop.f32.mrb[0].mxu0
      %v238 = vadd.f32 %v189, %v237
      %v239 = vpop.f32.mrb[0].mxu0
      %v240 = vpop.f32.mrb[0].mxu0
      %v241 = vpop.f32.mrb[0].mxu0
      %242 = vdwg.mxu0
      %v243 = vsel %vm196, %v238, -inf
      %244 = vmax.xlane.f32.xlu0 %v243
      %v245 = vpop.xlane.xlu0 %244
      %v246 = vsub.f32 %v238, %v245
      %v247 = vmul.f32 %v246, 1.442695
      %v248 = vpow.pop %v247
      %v249 = vsel %vm196, %v248, 0.0
      %250 = vadd.xlane.f32.xlu0 %v249
      %v251 = vpop.xlane.xlu0 %250
      %v252 = vrcp.pop %v251
      %v253 = vmul.f32 %v248, %v252
      %v254 = vpack.c.bf16 %v253, %v253
      %255 = vrot.lane.b32.xlu0 %v193, 64
      %v256 = vpop.permute.xlu0 %255
      %v258 = vsel %vm196, %v254, 0
      %vm260 = vcmask 1043456
      %v262 = vsel %vm260, %v256, 0
      %264 = vmatprep.subr.bf16.mxu0 0
      %265 = vmatpush1.bf16.msra.mxu0 %v262
      %266 = vmatprep.subr.bf16.mxu0 0
      %267 = vmatpush1.bf16.msra.mxu0 0
      %268 = vmatprep.subr.bf16.mxu0 0
      %269 = vmatpush1.bf16.msra.mxu0 0
      %270 = vmatprep.subr.bf16.mxu0 0
      %271 = vmatpush1.bf16.msra.mxu0 0
      %272 = vmatprep.subr.bf16.mxu0 0
      %273 = vmatpush1.bf16.msra.mxu0 0
      %274 = vmatprep.subr.bf16.mxu0 0
      %275 = vmatpush1.bf16.msra.mxu0 0
      %276 = vmatprep.subr.bf16.mxu0 0
      %277 = vmatpush1.bf16.msra.mxu0 0
      %278 = vmatprep.subr.bf16.mxu0 0
      %279 = vmatpush1.bf16.msra.mxu0 0
      %280 = vmatprep.subr.bf16.mxu0 0
      %281 = vmatpush1.bf16.msra.mxu0 0
      %282 = vmatprep.subr.bf16.mxu0 0
      %283 = vmatpush1.bf16.msra.mxu0 0
      %284 = vmatprep.subr.bf16.mxu0 0
      %285 = vmatpush1.bf16.msra.mxu0 0
      %286 = vmatprep.subr.bf16.mxu0 0
      %287 = vmatpush1.bf16.msra.mxu0 0
      %288 = vmatprep.subr.bf16.mxu0 0
      %289 = vmatpush1.bf16.msra.mxu0 0
      %290 = vmatprep.subr.bf16.mxu0 0
      %291 = vmatpush1.bf16.msra.mxu0 0
      %292 = vmatprep.subr.bf16.mxu0 0
      %293 = vmatpush1.bf16.msra.mxu0 0
      %294 = vmatprep.subr.bf16.mxu0 0
      %295 = vmatpush1.bf16.msra.mxu0 0
      %296 = vmatprep.mubr.bf16.mxu0 0
      %297 = vmatmul.mubr.bf16.gmra.mrb[0].mxu0 %v258
      %v298 = vpop.f32.mrb[0].mxu0
      %v299 = vadd.f32 0.0, %v298
      %v300 = vpop.f32.mrb[0].mxu0
      %v301 = vpop.f32.mrb[0].mxu0
      %v302 = vpop.f32.mrb[0].mxu0
      %303 = vdwg.mxu0
      %v304 = vpack.c.bf16 %v299, %v299
      %vm305 = vcmask 60416
      %306 = vst.msk [vmem:[%s179] sm:$0xf] %vm305, %v304
      %v307 = vld [vmem:[%s172] sm:$0xf]
      %v309 = vunpack.c.l.b16 %v307
      %v310 = vpack.c.b16 %v309, %v309
      %311 = vrot.lane.b32.xlu0 %v310, 120
      %v312 = vpop.permute.xlu0 %311
      %313 = vrot.lane.b32.xlu0 %v310, 88
      %v314 = vpop.permute.xlu0 %313
      %v316 = vsel %vm196, %v312, 0
      %v319 = vsel %vm196, %v314, 0
      %321 = vmatprep.subr.bf16.mxu0 0
      %322 = vmatpush1.bf16.xpose.msra.mxu0 %v319
      %323 = vmatprep.subr.bf16.mxu0 0
      %324 = vmatpush1.bf16.xpose.msra.mxu0 0
      %325 = vmatprep.subr.bf16.mxu0 0
      %326 = vmatpush1.bf16.xpose.msra.mxu0 0
      %327 = vmatprep.subr.bf16.mxu0 0
      %328 = vmatpush1.bf16.xpose.msra.mxu0 0
      %329 = vmatprep.subr.bf16.mxu0 0
      %330 = vmatpush1.bf16.xpose.msra.mxu0 0
      %331 = vmatprep.subr.bf16.mxu0 0
      %332 = vmatpush1.bf16.xpose.msra.mxu0 0
      %333 = vmatprep.subr.bf16.mxu0 0
      %334 = vmatpush1.bf16.xpose.msra.mxu0 0
      %335 = vmatprep.subr.bf16.mxu0 0
      %336 = vmatpush1.bf16.xpose.msra.mxu0 0
      %337 = vmatprep.subr.bf16.mxu0 0
      %338 = vmatpush1.bf16.xpose.msra.mxu0 0
      %339 = vmatprep.subr.bf16.mxu0 0
      %340 = vmatpush1.bf16.xpose.msra.mxu0 0
      %341 = vmatprep.subr.bf16.mxu0 0
      %342 = vmatpush1.bf16.xpose.msra.mxu0 0
      %343 = vmatprep.subr.bf16.mxu0 0
      %344 = vmatpush1.bf16.xpose.msra.mxu0 0
      %345 = vmatprep.subr.bf16.mxu0 0
      %346 = vmatpush1.bf16.xpose.msra.mxu0 0
      %347 = vmatprep.subr.bf16.mxu0 0
      %348 = vmatpush1.bf16.xpose.msra.mxu0 0
      %349 = vmatprep.subr.bf16.mxu0 0
      %350 = vmatpush1.bf16.xpose.msra.mxu0 0
      %351 = vmatprep.subr.bf16.mxu0 0
      %352 = vmatpush1.bf16.xpose.msra.mxu0 0
      %353 = vmatprep.mubr.bf16.mxu0 0
      %354 = vmatmul.mubr.bf16.gmra.mrb[0].mxu0 %v316
      %v355 = vpop.f32.mrb[0].mxu0
      %v356 = vadd.f32 %v189, %v355
      %v357 = vpop.f32.mrb[0].mxu0
      %v358 = vpop.f32.mrb[0].mxu0
      %v359 = vpop.f32.mrb[0].mxu0
      %360 = vdwg.mxu0
      %v361 = vsel %vm196, %v356, -inf
      %362 = vmax.xlane.f32.xlu0 %v361
      %v363 = vpop.xlane.xlu0 %362
      %v364 = vsub.f32 %v356, %v363
      %v365 = vmul.f32 %v364, 1.442695
      %v366 = vpow.pop %v365
      %v367 = vsel %vm196, %v366, 0.0
      %368 = vadd.xlane.f32.xlu0 %v367
      %v369 = vpop.xlane.xlu0 %368
      %v370 = vrcp.pop %v369
      %v371 = vmul.f32 %v366, %v370
      %v372 = vpack.c.bf16 %v371, %v371
      %373 = vrot.lane.b32.xlu0 %v310, 56
      %v374 = vpop.permute.xlu0 %373
      %v376 = vsel %vm196, %v372, 0
      %v379 = vsel %vm260, %v374, 0
      %381 = vmatprep.subr.bf16.mxu0 0
      %382 = vmatpush1.bf16.msra.mxu0 %v379
      %383 = vmatprep.subr.bf16.mxu0 0
      %384 = vmatpush1.bf16.msra.mxu0 0
      %385 = vmatprep.subr.bf16.mxu0 0
      %386 = vmatpush1.bf16.msra.mxu0 0
      %387 = vmatprep.subr.bf16.mxu0 0
      %388 = vmatpush1.bf16.msra.mxu0 0
      %389 = vmatprep.subr.bf16.mxu0 0
      %390 = vmatpush1.bf16.msra.mxu0 0
      %391 = vmatprep.subr.bf16.mxu0 0
      %392 = vmatpush1.bf16.msra.mxu0 0
      %393 = vmatprep.subr.bf16.mxu0 0
      %394 = vmatpush1.bf16.msra.mxu0 0
      %395 = vmatprep.subr.bf16.mxu0 0
      %396 = vmatpush1.bf16.msra.mxu0 0
      %397 = vmatprep.subr.bf16.mxu0 0
      %398 = vmatpush1.bf16.msra.mxu0 0
      %399 = vmatprep.subr.bf16.mxu0 0
      %400 = vmatpush1.bf16.msra.mxu0 0
      %401 = vmatprep.subr.bf16.mxu0 0
      %402 = vmatpush1.bf16.msra.mxu0 0
      %403 = vmatprep.subr.bf16.mxu0 0
      %404 = vmatpush1.bf16.msra.mxu0 0
      %405 = vmatprep.subr.bf16.mxu0 0
      %406 = vmatpush1.bf16.msra.mxu0 0
      %407 = vmatprep.subr.bf16.mxu0 0
      %408 = vmatpush1.bf16.msra.mxu0 0
      %409 = vmatprep.subr.bf16.mxu0 0
      %410 = vmatpush1.bf16.msra.mxu0 0
      %411 = vmatprep.subr.bf16.mxu0 0
      %412 = vmatpush1.bf16.msra.mxu0 0
      %413 = vmatprep.mubr.bf16.mxu0 0
      %414 = vmatmul.mubr.bf16.gmra.mrb[0].mxu0 %v376
      %v415 = vpop.f32.mrb[0].mxu0
      %v416 = vadd.f32 0.0, %v415
      %v417 = vpop.f32.mrb[0].mxu0
      %v418 = vpop.f32.mrb[0].mxu0
      %v419 = vpop.f32.mrb[0].mxu0
      %420 = vdwg.mxu0
      %v421 = vpack.c.bf16 %v416, %v416
      %v423 = vunpack.c.l.b16 %v421
      %v424 = vpack.c.b16 %v423, %v423
      %425 = vrot.lane.b32.xlu0 %v424, 8
      %v426 = vpop.permute.xlu0 %425
      %vm428 = vcmask 126016
      %429 = vst.msk [vmem:[%s179] sm:$0xf] %vm428, %v426
      %v430 = vld [vmem:[%s172] sm:$0xf]
      %v432 = vunpack.c.l.b16 %v430
      %v433 = vpack.c.b16 %v432, %v432
      %434 = vrot.lane.b32.xlu0 %v433, 112
      %v435 = vpop.permute.xlu0 %434
      %436 = vrot.lane.b32.xlu0 %v433, 80
      %v437 = vpop.permute.xlu0 %436
      %v439 = vsel %vm196, %v435, 0
      %v442 = vsel %vm196, %v437, 0
      %444 = vmatprep.subr.bf16.mxu0 0
      %445 = vmatpush1.bf16.xpose.msra.mxu0 %v442
      %446 = vmatprep.subr.bf16.mxu0 0
      %447 = vmatpush1.bf16.xpose.msra.mxu0 0
      %448 = vmatprep.subr.bf16.mxu0 0
      %449 = vmatpush1.bf16.xpose.msra.mxu0 0
      %450 = vmatprep.subr.bf16.mxu0 0
      %451 = vmatpush1.bf16.xpose.msra.mxu0 0
      %452 = vmatprep.subr.bf16.mxu0 0
      %453 = vmatpush1.bf16.xpose.msra.mxu0 0
      %454 = vmatprep.subr.bf16.mxu0 0
      %455 = vmatpush1.bf16.xpose.msra.mxu0 0
      %456 = vmatprep.subr.bf16.mxu0 0
      %457 = vmatpush1.bf16.xpose.msra.mxu0 0
      %458 = vmatprep.subr.bf16.mxu0 0
      %459 = vmatpush1.bf16.xpose.msra.mxu0 0
      %460 = vmatprep.subr.bf16.mxu0 0
      %461 = vmatpush1.bf16.xpose.msra.mxu0 0
      %462 = vmatprep.subr.bf16.mxu0 0
      %463 = vmatpush1.bf16.xpose.msra.mxu0 0
      %464 = vmatprep.subr.bf16.mxu0 0
      %465 = vmatpush1.bf16.xpose.msra.mxu0 0
      %466 = vmatprep.subr.bf16.mxu0 0
      %467 = vmatpush1.bf16.xpose.msra.mxu0 0
      %468 = vmatprep.subr.bf16.mxu0 0
      %469 = vmatpush1.bf16.xpose.msra.mxu0 0
      %470 = vmatprep.subr.bf16.mxu0 0
      %471 = vmatpush1.bf16.xpose.msra.mxu0 0
      %472 = vmatprep.subr.bf16.mxu0 0
      %473 = vmatpush1.bf16.xpose.msra.mxu0 0
      %474 = vmatprep.subr.bf16.mxu0 0
      %475 = vmatpush1.bf16.xpose.msra.mxu0 0
      %476 = vmatprep.mubr.bf16.mxu0 0
      %477 = vmatmul.mubr.bf16.gmra.mrb[0].mxu0 %v439
      %v478 = vpop.f32.mrb[0].mxu0
      %v479 = vadd.f32 %v189, %v478
      %v480 = vpop.f32.mrb[0].mxu0
      %v481 = vpop.f32.mrb[0].mxu0
      %v482 = vpop.f32.mrb[0].mxu0
      %483 = vdwg.mxu0
      %v484 = vsel %vm196, %v479, -inf
      %485 = vmax.xlane.f32.xlu0 %v484
      %v486 = vpop.xlane.xlu0 %485
      %v487 = vsub.f32 %v479, %v486
      %v488 = vmul.f32 %v487, 1.442695
      %v489 = vpow.pop %v488
      %v490 = vsel %vm196, %v489, 0.0
      %491 = vadd.xlane.f32.xlu0 %v490
      %v492 = vpop.xlane.xlu0 %491
      %v493 = vrcp.pop %v492
      %v494 = vmul.f32 %v489, %v493
      %v495 = vpack.c.bf16 %v494, %v494
      %496 = vrot.lane.b32.xlu0 %v433, 48
      %v497 = vpop.permute.xlu0 %496
      %v499 = vsel %vm196, %v495, 0
      %v502 = vsel %vm260, %v497, 0
      %504 = vmatprep.subr.bf16.mxu0 0
      %505 = vmatpush1.bf16.msra.mxu0 %v502
      %506 = vmatprep.subr.bf16.mxu0 0
      %507 = vmatpush1.bf16.msra.mxu0 0
      %508 = vmatprep.subr.bf16.mxu0 0
      %509 = vmatpush1.bf16.msra.mxu0 0
      %510 = vmatprep.subr.bf16.mxu0 0
      %511 = vmatpush1.bf16.msra.mxu0 0
      %512 = vmatprep.subr.bf16.mxu0 0
      %513 = vmatpush1.bf16.msra.mxu0 0
      %514 = vmatprep.subr.bf16.mxu0 0
      %515 = vmatpush1.bf16.msra.mxu0 0
      %516 = vmatprep.subr.bf16.mxu0 0
      %517 = vmatpush1.bf16.msra.mxu0 0
      %518 = vmatprep.subr.bf16.mxu0 0
      %519 = vmatpush1.bf16.msra.mxu0 0
      %520 = vmatprep.subr.bf16.mxu0 0
      %521 = vmatpush1.bf16.msra.mxu0 0
      %522 = vmatprep.subr.bf16.mxu0 0
      %523 = vmatpush1.bf16.msra.mxu0 0
      %524 = vmatprep.subr.bf16.mxu0 0
      %525 = vmatpush1.bf16.msra.mxu0 0
      %526 = vmatprep.subr.bf16.mxu0 0
      %527 = vmatpush1.bf16.msra.mxu0 0
      %528 = vmatprep.subr.bf16.mxu0 0
      %529 = vmatpush1.bf16.msra.mxu0 0
      %530 = vmatprep.subr.bf16.mxu0 0
      %531 = vmatpush1.bf16.msra.mxu0 0
      %532 = vmatprep.subr.bf16.mxu0 0
      %533 = vmatpush1.bf16.msra.mxu0 0
      %534 = vmatprep.subr.bf16.mxu0 0
      %535 = vmatpush1.bf16.msra.mxu0 0
      %536 = vmatprep.mubr.bf16.mxu0 0
      %537 = vmatmul.mubr.bf16.gmra.mrb[0].mxu0 %v499
      %v538 = vpop.f32.mrb[0].mxu0
      %v539 = vadd.f32 0.0, %v538
      %v540 = vpop.f32.mrb[0].mxu0
      %v541 = vpop.f32.mrb[0].mxu0
      %v542 = vpop.f32.mrb[0].mxu0
      %543 = vdwg.mxu0
      %v544 = vpack.c.bf16 %v539, %v539
      %v546 = vunpack.c.l.b16 %v544
      %v547 = vpack.c.b16 %v546, %v546
      %548 = vrot.lane.b32.xlu0 %v547, 16
      %v549 = vpop.permute.xlu0 %548
      %vm551 = vcmask 191616
      %552 = vst.msk [vmem:[%s179] sm:$0xf] %vm551, %v549
      %v553 = vld [vmem:[%s172] sm:$0xf]
      %v555 = vunpack.c.l.b16 %v553
      %v556 = vpack.c.b16 %v555, %v555
      %557 = vrot.lane.b32.xlu0 %v556, 104
      %v558 = vpop.permute.xlu0 %557
      %559 = vrot.lane.b32.xlu0 %v556, 72
      %v560 = vpop.permute.xlu0 %559
      %v562 = vsel %vm196, %v558, 0
      %v565 = vsel %vm196, %v560, 0
      %567 = vmatprep.subr.bf16.mxu0 0
      %568 = vmatpush1.bf16.xpose.msra.mxu0 %v565
      %569 = vmatprep.subr.bf16.mxu0 0
      %570 = vmatpush1.bf16.xpose.msra.mxu0 0
      %571 = vmatprep.subr.bf16.mxu0 0
      %572 = vmatpush1.bf16.xpose.msra.mxu0 0
      %573 = vmatprep.subr.bf16.mxu0 0
      %574 = vmatpush1.bf16.xpose.msra.mxu0 0
      %575 = vmatprep.subr.bf16.mxu0 0
      %576 = vmatpush1.bf16.xpose.msra.mxu0 0
      %577 = vmatprep.subr.bf16.mxu0 0
      %578 = vmatpush1.bf16.xpose.msra.mxu0 0
      %579 = vmatprep.subr.bf16.mxu0 0
      %580 = vmatpush1.bf16.xpose.msra.mxu0 0
      %581 = vmatprep.subr.bf16.mxu0 0
      %582 = vmatpush1.bf16.xpose.msra.mxu0 0
      %583 = vmatprep.subr.bf16.mxu0 0
      %584 = vmatpush1.bf16.xpose.msra.mxu0 0
      %585 = vmatprep.subr.bf16.mxu0 0
      %586 = vmatpush1.bf16.xpose.msra.mxu0 0
      %587 = vmatprep.subr.bf16.mxu0 0
      %588 = vmatpush1.bf16.xpose.msra.mxu0 0
      %589 = vmatprep.subr.bf16.mxu0 0
      %590 = vmatpush1.bf16.xpose.msra.mxu0 0
      %591 = vmatprep.subr.bf16.mxu0 0
      %592 = vmatpush1.bf16.xpose.msra.mxu0 0
      %593 = vmatprep.subr.bf16.mxu0 0
      %594 = vmatpush1.bf16.xpose.msra.mxu0 0
      %595 = vmatprep.subr.bf16.mxu0 0
      %596 = vmatpush1.bf16.xpose.msra.mxu0 0
      %597 = vmatprep.subr.bf16.mxu0 0
      %598 = vmatpush1.bf16.xpose.msra.mxu0 0
      %599 = vmatprep.mubr.bf16.mxu0 0
      %600 = vmatmul.mubr.bf16.gmra.mrb[0].mxu0 %v562
      %v601 = vpop.f32.mrb[0].mxu0
      %v602 = vadd.f32 %v189, %v601
      %v603 = vpop.f32.mrb[0].mxu0
      %v604 = vpop.f32.mrb[0].mxu0
      %v605 = vpop.f32.mrb[0].mxu0
      %606 = vdwg.mxu0
      %v607 = vsel %vm196, %v602, -inf
      %608 = vmax.xlane.f32.xlu0 %v607
      %v609 = vpop.xlane.xlu0 %608
      %v610 = vsub.f32 %v602, %v609
      %v611 = vmul.f32 %v610, 1.442695
      %v612 = vpow.pop %v611
      %v613 = vsel %vm196, %v612, 0.0
      %614 = vadd.xlane.f32.xlu0 %v613
      %v615 = vpop.xlane.xlu0 %614
      %v616 = vrcp.pop %v615
      %v617 = vmul.f32 %v612, %v616
      %v618 = vpack.c.bf16 %v617, %v617
      %619 = vrot.lane.b32.xlu0 %v556, 40
      %v620 = vpop.permute.xlu0 %619
      %v622 = vsel %vm196, %v618, 0
      %v625 = vsel %vm260, %v620, 0
      %627 = vmatprep.subr.bf16.mxu0 0
      %628 = vmatpush1.bf16.msra.mxu0 %v625
      %629 = vmatprep.subr.bf16.mxu0 0
      %630 = vmatpush1.bf16.msra.mxu0 0
      %631 = vmatprep.subr.bf16.mxu0 0
      %632 = vmatpush1.bf16.msra.mxu0 0
      %633 = vmatprep.subr.bf16.mxu0 0
      %634 = vmatpush1.bf16.msra.mxu0 0
      %635 = vmatprep.subr.bf16.mxu0 0
      %636 = vmatpush1.bf16.msra.mxu0 0
      %637 = vmatprep.subr.bf16.mxu0 0
      %638 = vmatpush1.bf16.msra.mxu0 0
      %639 = vmatprep.subr.bf16.mxu0 0
      %640 = vmatpush1.bf16.msra.mxu0 0
      %641 = vmatprep.subr.bf16.mxu0 0
      %642 = vmatpush1.bf16.msra.mxu0 0
      %643 = vmatprep.subr.bf16.mxu0 0
      %644 = vmatpush1.bf16.msra.mxu0 0
      %645 = vmatprep.subr.bf16.mxu0 0
      %646 = vmatpush1.bf16.msra.mxu0 0
      %647 = vmatprep.subr.bf16.mxu0 0
      %648 = vmatpush1.bf16.msra.mxu0 0
      %649 = vmatprep.subr.bf16.mxu0 0
      %650 = vmatpush1.bf16.msra.mxu0 0
      %651 = vmatprep.subr.bf16.mxu0 0
      %652 = vmatpush1.bf16.msra.mxu0 0
      %653 = vmatprep.subr.bf16.mxu0 0
      %654 = vmatpush1.bf16.msra.mxu0 0
      %655 = vmatprep.subr.bf16.mxu0 0
      %656 = vmatpush1.bf16.msra.mxu0 0
      %657 = vmatprep.subr.bf16.mxu0 0
      %658 = vmatpush1.bf16.msra.mxu0 0
      %659 = vmatprep.mubr.bf16.mxu0 0
      %660 = vmatmul.mubr.bf16.gmra.mrb[0].mxu0 %v622
      %v661 = vpop.f32.mrb[0].mxu0
      %v662 = vadd.f32 0.0, %v661
      %v663 = vpop.f32.mrb[0].mxu0
      %v664 = vpop.f32.mrb[0].mxu0
      %v665 = vpop.f32.mrb[0].mxu0
      %666 = vdwg.mxu0
      %v667 = vpack.c.bf16 %v662, %v662
      %v669 = vunpack.c.l.b16 %v667
      %v670 = vpack.c.b16 %v669, %v669
      %671 = vrot.lane.b32.xlu0 %v670, 24
      %v672 = vpop.permute.xlu0 %671
      %vm674 = vcmask 257216
      %675 = vst.msk [vmem:[%s179] sm:$0xf] %vm674, %v672
      %p676 = scmp.lt.s32.totalorder %s14, 1
      %s677 = scalar_select %p676, %s14, 1
      %s678 = smul.addr %s677, 4
      %s679 = scalar_lea.vmem %s3, %s678
      // Predicated region
      $region33: #{seq2seq_transformer_forward.26} parent=31 // pred_check
        %p680 = pneg %p105
      $region34: #{seq2seq_transformer_forward.26} parent=31 // pred_check_branch
        %682 = sbr.rel (%p680) target = $region36
      $region35: #{seq2seq_transformer_forward.26} parent=31 // pred_region
        _
      $region36: #{seq2seq_transformer_forward.26} parent=31 // pred_fallthru
        _
    $region32: #{seq2seq_transformer_forward.26} parent=5 // pred_fallthru
      _
    %p683 = scmp.le.s32.totalorder 2, %s9
    // Predicated region
    $region37: #{seq2seq_transformer_forward.26} parent=5 // pred_check
      %p684 = pneg %p683
    $region38: #{seq2seq_transformer_forward.26} parent=5 // pred_check_branch
      %686 = sbr.rel (%p684) target = $region40
    $region39: #{seq2seq_transformer_forward.26} parent=5 // pred_region
      %s687 = ssub.s32 %s9, 2
      // Predicated region
      $region41: #{seq2seq_transformer_forward.26} parent=39 // pred_check
        %p688 = pneg %p111
      $region42: #{seq2seq_transformer_forward.26} parent=39 // pred_check_branch
        %690 = sbr.rel (%p688) target = $region44
      $region43: #{seq2seq_transformer_forward.26} parent=39 // pred_region
        %p691 = scmp.lt.s32.totalorder %s15, 1
        %s692 = scalar_select %p691, %s15, 1
        %s693 = smul.addr %s692, 4
        %s694 = scalar_lea.vmem %s3, %s693
      $region44: #{seq2seq_transformer_forward.26} parent=39 // pred_fallthru
        _
    $region40: #{seq2seq_transformer_forward.26} parent=5 // pred_fallthru
      _
  $region6: #{seq2seq_transformer_forward.26} parent=0 // loop_footer
    %s13 = sadd.s32 1, %s9
  $region7: #{seq2seq_transformer_forward.26} parent=0 // loop_footer_branch
    %8 = sbr.rel target = $region3
  $region8: #{seq2seq_transformer_forward.26} parent=0 // loop_exit
    _

// kernel: seq2seq_transformer_forward.28
$region0: #{seq2seq_transformer_forward.28}
  #allocation0 [shape = 'u32[]', space=smem, size = 0x4, offset = 0x4, fixed_abs, tag = 'smem constant byte address 0x4 - core index']
  #allocation1 [shape = 'u32[144,128]{1,0:T(1,128)}', space=vmem, size = 0x12000, scoped, tag = 'internal scratch']
  %s0 = inlined_call_operand.vmem [shape: f32[16,32], index: 0, kind: input, shape index: {}]
  %s1 = inlined_call_operand.vmem [shape: bf16[32,64], index: 1, kind: input, shape index: {}]
  %s2 = inlined_call_operand.vmem [shape: f32[1,64], index: 2, kind: input, shape index: {}]
  %s3 = inlined_call_operand.vmem [shape: bf16[64,32], index: 3, kind: input, shape index: {}]
  %s4 = inlined_call_operand.vmem [shape: f32[1,32], index: 4, kind: input, shape index: {}]
  %s5 = inlined_call_operand.vmem [shape: f32[1,32], index: 5, kind: input, shape index: {}]
  %s6 = inlined_call_operand.vmem [shape: f32[1,32], index: 6, kind: input, shape index: {}]
  %s7 = inlined_call_operand.vmem [shape: f32[16,32], index: 7, kind: output, shape index: {}]
  %s8 = sld [smem:[#allocation0]]
  $region38: #{seq2seq_transformer_forward.28} parent=0
    _
  %s10 = ssub.s32 1, %s8
  %s11 = scalar_select 0, %s10, %s8
  // Predicated region
  $region2: #{seq2seq_transformer_forward.28} parent=0 // pred_check
    _
  $region3: #{seq2seq_transformer_forward.28} parent=0 // pred_check_branch
    %13 = sbr.rel (0) target = $region5
  $region4: #{seq2seq_transformer_forward.28} parent=0 // pred_region
    _
  $region5: #{seq2seq_transformer_forward.28} parent=0 // pred_fallthru
    _
  // Predicated region
  $region6: #{seq2seq_transformer_forward.28} parent=0 // pred_check
    _
  $region7: #{seq2seq_transformer_forward.28} parent=0 // pred_check_branch
    %15 = sbr.rel (0) target = $region9
  $region8: #{seq2seq_transformer_forward.28} parent=0 // pred_region
    _
  $region9: #{seq2seq_transformer_forward.28} parent=0 // pred_fallthru
    _
  // Predicated region
  $region10: #{seq2seq_transformer_forward.28} parent=0 // pred_check
    _
  $region11: #{seq2seq_transformer_forward.28} parent=0 // pred_check_branch
    %17 = sbr.rel (0) target = $region13
  $region12: #{seq2seq_transformer_forward.28} parent=0 // pred_region
    _
  $region13: #{seq2seq_transformer_forward.28} parent=0 // pred_fallthru
    _
  // Predicated region
  $region14: #{seq2seq_transformer_forward.28} parent=0 // pred_check
    _
  $region15: #{seq2seq_transformer_forward.28} parent=0 // pred_check_branch
    %19 = sbr.rel (0) target = $region17
  $region16: #{seq2seq_transformer_forward.28} parent=0 // pred_region
    _
  $region17: #{seq2seq_transformer_forward.28} parent=0 // pred_fallthru
    _
  // Predicated region
  $region18: #{seq2seq_transformer_forward.28} parent=0 // pred_check
    _
  $region19: #{seq2seq_transformer_forward.28} parent=0 // pred_check_branch
    %21 = sbr.rel (0) target = $region21
  $region20: #{seq2seq_transformer_forward.28} parent=0 // pred_region
    _
  $region21: #{seq2seq_transformer_forward.28} parent=0 // pred_fallthru
    _
  // Predicated region
  $region22: #{seq2seq_transformer_forward.28} parent=0 // pred_check
    _
  $region23: #{seq2seq_transformer_forward.28} parent=0 // pred_check_branch
    %23 = sbr.rel (0) target = $region25
  $region24: #{seq2seq_transformer_forward.28} parent=0 // pred_region
    _
  $region25: #{seq2seq_transformer_forward.28} parent=0 // pred_fallthru
    _
  // Predicated region
  $region26: #{seq2seq_transformer_forward.28} parent=0 // pred_check
    _
  $region27: #{seq2seq_transformer_forward.28} parent=0 // pred_check_branch
    %25 = sbr.rel (0) target = $region29
  $region28: #{seq2seq_transformer_forward.28} parent=0 // pred_region
    _
  $region29: #{seq2seq_transformer_forward.28} parent=0 // pred_fallthru
    _
  %v27 = vld [vmem:[%s0] sm:$0xff]
  %v28 = vld [vmem:[%s0 + $0x8] sm:$0xff]
  %v29 = vpack.c.bf16 %v28, %v27
  %v30 = vld [vmem:[%s1] sm:$0xf]
  %v31 = vld [vmem:[%s1 + $0x4] sm:$0xf]
  %v32 = vld [vmem:[%s1 + $0x8] sm:$0xf]
  %v33 = vld [vmem:[%s1 + $0xc] sm:$0xf]
  %v34 = vld [vmem:[%s2] sm:$0x1]
  %v36 = vlaneseq
  %v37 = vshrl.u32 %v36, 7
  %v38 = vsub.s32 0, %v37
  %v39 = vrot.slane %v34, %v38
  %v45 = vunpack.c.l.b16 %v30
  %v46 = vunpack.c.l.b16 %v31
  %v47 = vunpack.c.l.b16 %v32
  %v48 = vunpack.c.l.b16 %v33
  %v49 = vpack.c.b16 %v46, %v45
  %v50 = vpack.c.b16 %v48, %v47
  %vm53 = vcmask 261120
  %v55 = vsel %vm53, %v29, 0
  %57 = vmatprep.subr.bf16.mxu0 0
  %58 = vmatpush1.bf16.msra.mxu0 %v49
  %59 = vmatprep.subr.bf16.mxu0 0
  %60 = vmatpush1.bf16.msra.mxu0 %v50
  %61 = vmatprep.subr.bf16.mxu0 0
  %62 = vmatpush1.bf16.msra.mxu0 0
  %63 = vmatprep.subr.bf16.mxu0 0
  %64 = vmatpush1.bf16.msra.mxu0 0
  %65 = vmatprep.subr.bf16.mxu0 0
  %66 = vmatpush1.bf16.msra.mxu0 0
  %67 = vmatprep.subr.bf16.mxu0 0
  %68 = vmatpush1.bf16.msra.mxu0 0
  %69 = vmatprep.subr.bf16.mxu0 0
  %70 = vmatpush1.bf16.msra.mxu0 0
  %71 = vmatprep.subr.bf16.mxu0 0
  %72 = vmatpush1.bf16.msra.mxu0 0
  %73 = vmatprep.subr.bf16.mxu0 0
  %74 = vmatpush1.bf16.msra.mxu0 0
  %75 = vmatprep.subr.bf16.mxu0 0
  %76 = vmatpush1.bf16.msra.mxu0 0
  %77 = vmatprep.subr.bf16.mxu0 0
  %78 = vmatpush1.bf16.msra.mxu0 0
  %79 = vmatprep.subr.bf16.mxu0 0
  %80 = vmatpush1.bf16.msra.mxu0 0
  %81 = vmatprep.subr.bf16.mxu0 0
  %82 = vmatpush1.bf16.msra.mxu0 0
  %83 = vmatprep.subr.bf16.mxu0 0
  %84 = vmatpush1.bf16.msra.mxu0 0
  %85 = vmatprep.subr.bf16.mxu0 0
  %86 = vmatpush1.bf16.msra.mxu0 0
  %87 = vmatprep.subr.bf16.mxu0 0
  %88 = vmatpush1.bf16.msra.mxu0 0
  %89 = vmatprep.mubr.bf16.mxu0 0
  %90 = vmatmul.mubr.bf16.gmra.mrb[0].mxu0 %v55
  %v91 = vpop.f32.mrb[0].mxu0
  %v92 = vadd.f32 %v39, %v91
  %v93 = vpop.f32.mrb[0].mxu0
  %v94 = vpop.f32.mrb[0].mxu0
  %v95 = vadd.f32 %v39, %v94
  %v96 = vpop.f32.mrb[0].mxu0
  %97 = vdwg.mxu0
  %v98 = vmax.f32 %v92, 0.0
  %v99 = vmax.f32 %v95, 0.0
  %v100 = vpack.c.bf16 %v99, %v98
  %v101 = vld [vmem:[%s3] sm:$0xf]
  %v102 = vld [vmem:[%s3 + $0x4] sm:$0xf]
  %v103 = vld [vmem:[%s3 + $0x8] sm:$0xf]
  %v104 = vld [vmem:[%s3 + $0xc] sm:$0xf]
  %v105 = vld [vmem:[%s3 + $0x10] sm:$0xf]
  %v106 = vld [vmem:[%s3 + $0x14] sm:$0xf]
  %v107 = vld [vmem:[%s3 + $0x18] sm:$0xf]
  %v108 = vld [vmem:[%s3 + $0x1c] sm:$0xf]
  %v109 = vld [vmem:[%s4] sm:$0x1]
  %v111 = vlaneseq
  %v112 = vshrl.u32 %v111, 7
  %v113 = vsub.s32 0, %v112
  %v114 = vrot.slane %v109, %v113
  %v124 = vunpack.c.l.b16 %v101
  %v125 = vunpack.c.l.b16 %v102
  %v126 = vunpack.c.l.b16 %v103
  %v127 = vunpack.c.l.b16 %v104
  %v128 = vunpack.c.l.b16 %v105
  %v129 = vunpack.c.l.b16 %v106
  %v130 = vunpack.c.l.b16 %v107
  %v131 = vunpack.c.l.b16 %v108
  %v132 = vpack.c.b16 %v125, %v124
  %v133 = vpack.c.b16 %v127, %v126
  %v134 = vpack.c.b16 %v129, %v128
  %v135 = vpack.c.b16 %v131, %v130
  %vm140 = vcmask 523264
  %v142 = vsel %vm140, %v100, 0
  %144 = vmatprep.subr.bf16.mxu0 0
  %145 = vmatpush1.bf16.msra.mxu0 %v132
  %146 = vmatprep.subr.bf16.mxu0 0
  %147 = vmatpush1.bf16.msra.mxu0 %v133
  %148 = vmatprep.subr.bf16.mxu0 0
  %149 = vmatpush1.bf16.msra.mxu0 %v134
  %150 = vmatprep.subr.bf16.mxu0 0
  %151 = vmatpush1.bf16.msra.mxu0 %v135
  %152 = vmatprep.subr.bf16.mxu0 0
  %153 = vmatpush1.bf16.msra.mxu0 0
  %154 = vmatprep.subr.bf16.mxu0 0
  %155 = vmatpush1.bf16.msra.mxu0 0
  %156 = vmatprep.subr.bf16.mxu0 0
  %157 = vmatpush1.bf16.msra.mxu0 0
  %158 = vmatprep.subr.bf16.mxu0 0
  %159 = vmatpush1.bf16.msra.mxu0 0
  %160 = vmatprep.subr.bf16.mxu0 0
  %161 = vmatpush1.bf16.msra.mxu0 0
  %162 = vmatprep.subr.bf16.mxu0 0
  %163 = vmatpush1.bf16.msra.mxu0 0
  %164 = vmatprep.subr.bf16.mxu0 0
  %165 = vmatpush1.bf16.msra.mxu0 0
  %166 = vmatprep.subr.bf16.mxu0 0
  %167 = vmatpush1.bf16.msra.mxu0 0
  %168 = vmatprep.subr.bf16.mxu0 0
  %169 = vmatpush1.bf16.msra.mxu0 0
  %170 = vmatprep.subr.bf16.mxu0 0
  %171 = vmatpush1.bf16.msra.mxu0 0
  %172 = vmatprep.subr.bf16.mxu0 0
  %173 = vmatpush1.bf16.msra.mxu0 0
  %174 = vmatprep.subr.bf16.mxu0 0
  %175 = vmatpush1.bf16.msra.mxu0 0
  %176 = vmatprep.mubr.bf16.mxu0 0
  %177 = vmatmul.mubr.bf16.gmra.mrb[0].mxu0 %v142
  %v178 = vpop.f32.mrb[0].mxu0
  %v179 = vadd.f32 %v114, %v178
  %v180 = vpop.f32.mrb[0].mxu0
  %v181 = vpop.f32.mrb[0].mxu0
  %v182 = vadd.f32 %v114, %v181
  %v183 = vpop.f32.mrb[0].mxu0
  %184 = vdwg.mxu0
  %v185 = vadd.f32 %v27, %v179
  %v186 = vadd.f32 %v28, %v182
  %v187 = vsel %vm53, %v185, 0.0
  %188 = vadd.xlane.f32.xlu0 %v187
  %v189 = vpop.xlane.xlu0 %188
  %v190 = vsel %vm53, %v186, 0.0
  %191 = vadd.xlane.f32.xlu0 %v190
  %v192 = vpop.xlane.xlu0 %191
  %v193 = vrcp.pop 32.0
  %v194 = vmul.f32 %v189, %v193
  %v195 = vmul.f32 %v192, %v193
  %v196 = vsub.f32 %v185, %v194
  %v197 = vsub.f32 %v186, %v195
  %v198 = vmul.f32 %v196, %v196
  %v199 = vmul.f32 %v197, %v197
  %v200 = vsel %vm53, %v198, 0.0
  %201 = vadd.xlane.f32.xlu0 %v200
  %v202 = vpop.xlane.xlu0 %201
  %v203 = vsel %vm53, %v199, 0.0
  %204 = vadd.xlane.f32.xlu0 %v203
  %v205 = vpop.xlane.xlu0 %204
  %v206 = vmul.f32 %v202, %v193
  %v207 = vmul.f32 %v205, %v193
  %v208 = vadd.f32 %v206, 1e-05
  %v209 = vadd.f32 %v207, 1e-05
  %v210 = vrsqrt.pop %v208
  %v211 = vrsqrt.pop %v209
  %v212 = vmul.f32 %v196, %v210
  %v213 = vmul.f32 %v197, %v211
  %v214 = vld [vmem:[%s5] sm:$0x1]
  %v216 = vlaneseq
  %v217 = vshrl.u32 %v216, 7
  %v218 = vsub.s32 0, %v217
  %v219 = vrot.slane %v214, %v218
  %v221 = vmul.f32 %v212, %v219
  %v222 = vmul.f32 %v213, %v219
  %v223 = vld [vmem:[%s6] sm:$0x1]
  %v225 = vlaneseq
  %v226 = vshrl.u32 %v225, 7
  %v227 = vsub.s32 0, %v226
  %v228 = vrot.slane %v223, %v227
  %v230 = vadd.f32 %v221, %v228
  %v231 = vadd.f32 %v222, %v228
  %232 = vst.msk [vmem:[%s7] sm:$0xff] %vm53, %v230
  %233 = vst.msk [vmem:[%s7 + $0x8] sm:$0xff] %vm53, %v231
  // Predicated region
  $region30: #{seq2seq_transformer_forward.28} parent=0 // pred_check
    _
  $region31: #{seq2seq_transformer_forward.28} parent=0 // pred_check_branch
    %235 = sbr.rel (0) target = $region33
  $region32: #{seq2seq_transformer_forward.28} parent=0 // pred_region
    _
  $region33: #{seq2seq_transformer_forward.28} parent=0 // pred_fallthru
    _
  // Predicated region
  $region34: #{seq2seq_transformer_forward.28} parent=0 // pred_check
    _
  $region35: #{seq2seq_transformer_forward.28} parent=0 // pred_check_branch
    %237 = sbr.rel (0) target = $region37
  $region36: #{seq2seq_transformer_forward.28} parent=0 // pred_region
    _
  $region37: #{seq2seq_transformer_forward.28} parent=0 // pred_fallthru
    _

// kernel: seq2seq_transformer_forward.37
$region0: #{seq2seq_transformer_forward.37}
  #allocation0 [shape = 'u32[]', space=smem, size = 0x4, offset = 0x4, fixed_abs, tag = 'smem constant byte address 0x4 - core index']
  #allocation1 [shape = 'u32[144,128]{1,0:T(1,128)}', space=vmem, size = 0x12000, scoped, tag = 'internal scratch']
  #allocation2 [shape = 'f32[16,64]{1,0:T(8,128)}', space=vmem, size = 0x2000, scoped, tag = 'scratch operand']
  %s0 = inlined_call_operand.vmem [shape: f32[16,32], index: 0, kind: input, shape index: {}]
  %s1 = inlined_call_operand.vmem [shape: bf16[32,64], index: 1, kind: input, shape index: {}]
  %s2 = inlined_call_operand.vmem [shape: f32[1,64], index: 2, kind: input, shape index: {}]
  %s3 = inlined_call_operand.vmem [shape: bf16[16,64], index: 3, kind: output, shape index: {}]
  %s4 = sld [smem:[#allocation0]]
  $region30: #{seq2seq_transformer_forward.37} parent=0
    _
  %s6 = ssub.s32 1, %s4
  %s7 = scalar_select 0, %s6, %s4
  // Predicated region
  $region2: #{seq2seq_transformer_forward.37} parent=0 // pred_check
    _
  $region3: #{seq2seq_transformer_forward.37} parent=0 // pred_check_branch
    %9 = sbr.rel (0) target = $region5
  $region4: #{seq2seq_transformer_forward.37} parent=0 // pred_region
    _
  $region5: #{seq2seq_transformer_forward.37} parent=0 // pred_fallthru
    _
  // Predicated region
  $region6: #{seq2seq_transformer_forward.37} parent=0 // pred_check
    _
  $region7: #{seq2seq_transformer_forward.37} parent=0 // pred_check_branch
    %11 = sbr.rel (0) target = $region9
  $region8: #{seq2seq_transformer_forward.37} parent=0 // pred_region
    _
  $region9: #{seq2seq_transformer_forward.37} parent=0 // pred_fallthru
    _
  // Predicated region
  $region10: #{seq2seq_transformer_forward.37} parent=0 // pred_check
    _
  $region11: #{seq2seq_transformer_forward.37} parent=0 // pred_check_branch
    %13 = sbr.rel (0) target = $region13
  $region12: #{seq2seq_transformer_forward.37} parent=0 // pred_region
    _
  $region13: #{seq2seq_transformer_forward.37} parent=0 // pred_fallthru
    _
  %p15 = scmp.eq.s32.totalorder 0, 0
  // Predicated region
  $region14: #{seq2seq_transformer_forward.37} parent=0 // pred_check
    %p16 = pneg %p15
  $region15: #{seq2seq_transformer_forward.37} parent=0 // pred_check_branch
    %18 = sbr.rel (%p16) target = $region17
  $region16: #{seq2seq_transformer_forward.37} parent=0 // pred_region
    %vm19 = vcmask 523264
    %20 = vst.msk [vmem:[#allocation2] sm:$0xff] %vm19, 0.0
    %21 = vst.msk [vmem:[#allocation2 + $0x8] sm:$0xff] %vm19, 0.0
  $region17: #{seq2seq_transformer_forward.37} parent=0 // pred_fallthru
    _
  %v22 = vld [vmem:[#allocation2] sm:$0xff]
  %v23 = vld [vmem:[#allocation2 + $0x8] sm:$0xff]
  %v24 = vld [vmem:[%s0] sm:$0xff]
  %v25 = vld [vmem:[%s0 + $0x8] sm:$0xff]
  %v26 = vpack.c.bf16 %v25, %v24
  %v27 = vld [vmem:[%s1] sm:$0xf]
  %v28 = vld [vmem:[%s1 + $0x4] sm:$0xf]
  %v29 = vld [vmem:[%s1 + $0x8] sm:$0xf]
  %v30 = vld [vmem:[%s1 + $0xc] sm:$0xf]
  %v35 = vunpack.c.l.b16 %v27
  %v36 = vunpack.c.l.b16 %v28
  %v37 = vunpack.c.l.b16 %v29
  %v38 = vunpack.c.l.b16 %v30
  %v39 = vpack.c.b16 %v36, %v35
  %v40 = vpack.c.b16 %v38, %v37
  %vm43 = vcmask 261120
  %v45 = vsel %vm43, %v26, 0
  %47 = vmatprep.subr.bf16.mxu0 0
  %48 = vmatpush1.bf16.msra.mxu0 %v39
  %49 = vmatprep.subr.bf16.mxu0 0
  %50 = vmatpush1.bf16.msra.mxu0 %v40
  %51 = vmatprep.subr.bf16.mxu0 0
  %52 = vmatpush1.bf16.msra.mxu0 0
  %53 = vmatprep.subr.bf16.mxu0 0
  %54 = vmatpush1.bf16.msra.mxu0 0
  %55 = vmatprep.subr.bf16.mxu0 0
  %56 = vmatpush1.bf16.msra.mxu0 0
  %57 = vmatprep.subr.bf16.mxu0 0
  %58 = vmatpush1.bf16.msra.mxu0 0
  %59 = vmatprep.subr.bf16.mxu0 0
  %60 = vmatpush1.bf16.msra.mxu0 0
  %61 = vmatprep.subr.bf16.mxu0 0
  %62 = vmatpush1.bf16.msra.mxu0 0
  %63 = vmatprep.subr.bf16.mxu0 0
  %64 = vmatpush1.bf16.msra.mxu0 0
  %65 = vmatprep.subr.bf16.mxu0 0
  %66 = vmatpush1.bf16.msra.mxu0 0
  %67 = vmatprep.subr.bf16.mxu0 0
  %68 = vmatpush1.bf16.msra.mxu0 0
  %69 = vmatprep.subr.bf16.mxu0 0
  %70 = vmatpush1.bf16.msra.mxu0 0
  %71 = vmatprep.subr.bf16.mxu0 0
  %72 = vmatpush1.bf16.msra.mxu0 0
  %73 = vmatprep.subr.bf16.mxu0 0
  %74 = vmatpush1.bf16.msra.mxu0 0
  %75 = vmatprep.subr.bf16.mxu0 0
  %76 = vmatpush1.bf16.msra.mxu0 0
  %77 = vmatprep.subr.bf16.mxu0 0
  %78 = vmatpush1.bf16.msra.mxu0 0
  %79 = vmatprep.mubr.bf16.mxu0 0
  %80 = vmatmul.mubr.bf16.gmra.mrb[0].mxu0 %v45
  %v81 = vpop.f32.mrb[0].mxu0
  %v82 = vadd.f32 0.0, %v81
  %v83 = vpop.f32.mrb[0].mxu0
  %v84 = vpop.f32.mrb[0].mxu0
  %v85 = vadd.f32 0.0, %v84
  %v86 = vpop.f32.mrb[0].mxu0
  %87 = vdwg.mxu0
  %v88 = vadd.f32 %v22, %v82
  %v89 = vadd.f32 %v23, %v85
  %vm90 = vcmask 523264
  %91 = vst.msk [vmem:[#allocation2] sm:$0xff] %vm90, %v88
  %92 = vst.msk [vmem:[#allocation2 + $0x8] sm:$0xff] %vm90, %v89
  // Predicated region
  $region18: #{seq2seq_transformer_forward.37} parent=0 // pred_check
    %p93 = pneg %p15
  $region19: #{seq2seq_transformer_forward.37} parent=0 // pred_check_branch
    %95 = sbr.rel (%p93) target = $region21
  $region20: #{seq2seq_transformer_forward.37} parent=0 // pred_region
    %v96 = vld [vmem:[#allocation2] sm:$0xff]
    %v97 = vld [vmem:[#allocation2 + $0x8] sm:$0xff]
    %v98 = vld [vmem:[%s2] sm:$0x1]
    %v100 = vlaneseq
    %v101 = vshrl.u32 %v100, 7
    %v102 = vsub.s32 0, %v101
    %v103 = vrot.slane %v98, %v102
    %v105 = vadd.f32 %v96, %v103
    %v106 = vadd.f32 %v97, %v103
    %v107 = vpack.c.bf16 %v106, %v105
    %v109 = vunpack.c.l.b16 %v107
    %v110 = vunpack.c.h.b16 %v107
    %v111 = vpack.c.b16 %v109, %v109
    %v112 = vpack.c.b16 %v110, %v110
    %vm115 = vcmask 519168
    %116 = vst.msk [vmem:[%s3] sm:$0xf] %vm115, %v111
    %117 = vst.msk [vmem:[%s3 + $0x4] sm:$0xf] %vm115, %v112
  $region21: #{seq2seq_transformer_forward.37} parent=0 // pred_fallthru
    _
  // Predicated region
  $region22: #{seq2seq_transformer_forward.37} parent=0 // pred_check
    _
  $region23: #{seq2seq_transformer_forward.37} parent=0 // pred_check_branch
    %119 = sbr.rel (0) target = $region25
  $region24: #{seq2seq_transformer_forward.37} parent=0 // pred_region
    _
  $region25: #{seq2seq_transformer_forward.37} parent=0 // pred_fallthru
    _
  // Predicated region
  $region26: #{seq2seq_transformer_forward.37} parent=0 // pred_check
    _
  $region27: #{seq2seq_transformer_forward.37} parent=0 // pred_check_branch
    %121 = sbr.rel (0) target = $region29
  $region28: #{seq2seq_transformer_forward.37} parent=0 // pred_region
    _
  $region29: #{seq2seq_transformer_forward.37} parent=0 // pred_fallthru
    _

// kernel: seq2seq_transformer_forward.33
$region0: #{seq2seq_transformer_forward.33}
  #allocation0 [shape = 'u32[]', space=smem, size = 0x4, offset = 0x4, fixed_abs, tag = 'smem constant byte address 0x4 - core index']
  #allocation1 [shape = 'u32[144,128]{1,0:T(1,128)}', space=vmem, size = 0x12000, scoped, tag = 'internal scratch']
  #allocation2 [shape = 'f32[20,96]{1,0:T(8,128)}', space=vmem, size = 0x3000, scoped, tag = 'scratch operand']
  %s0 = inlined_call_operand.vmem [shape: f32[20,32], index: 0, kind: input, shape index: {}]
  %s1 = inlined_call_operand.vmem [shape: bf16[32,96], index: 1, kind: input, shape index: {}]
  %s2 = inlined_call_operand.vmem [shape: f32[1,96], index: 2, kind: input, shape index: {}]
  %s3 = inlined_call_operand.vmem [shape: bf16[20,96], index: 3, kind: output, shape index: {}]
  %s4 = sld [smem:[#allocation0]]
  $region30: #{seq2seq_transformer_forward.33} parent=0
    _
  %s6 = ssub.s32 1, %s4
  %s7 = scalar_select 0, %s6, %s4
  // Predicated region
  $region2: #{seq2seq_transformer_forward.33} parent=0 // pred_check
    _
  $region3: #{seq2seq_transformer_forward.33} parent=0 // pred_check_branch
    %9 = sbr.rel (0) target = $region5
  $region4: #{seq2seq_transformer_forward.33} parent=0 // pred_region
    _
  $region5: #{seq2seq_transformer_forward.33} parent=0 // pred_fallthru
    _
  // Predicated region
  $region6: #{seq2seq_transformer_forward.33} parent=0 // pred_check
    _
  $region7: #{seq2seq_transformer_forward.33} parent=0 // pred_check_branch
    %11 = sbr.rel (0) target = $region9
  $region8: #{seq2seq_transformer_forward.33} parent=0 // pred_region
    _
  $region9: #{seq2seq_transformer_forward.33} parent=0 // pred_fallthru
    _
  // Predicated region
  $region10: #{seq2seq_transformer_forward.33} parent=0 // pred_check
    _
  $region11: #{seq2seq_transformer_forward.33} parent=0 // pred_check_branch
    %13 = sbr.rel (0) target = $region13
  $region12: #{seq2seq_transformer_forward.33} parent=0 // pred_region
    _
  $region13: #{seq2seq_transformer_forward.33} parent=0 // pred_fallthru
    _
  %p15 = scmp.eq.s32.totalorder 0, 0
  // Predicated region
  $region14: #{seq2seq_transformer_forward.33} parent=0 // pred_check
    %p16 = pneg %p15
  $region15: #{seq2seq_transformer_forward.33} parent=0 // pred_check_branch
    %18 = sbr.rel (%p16) target = $region17
  $region16: #{seq2seq_transformer_forward.33} parent=0 // pred_region
    %vm19 = vcmask 785408
    %20 = vst.msk [vmem:[#allocation2] sm:$0xff] %vm19, 0.0
    %21 = vst.msk [vmem:[#allocation2 + $0x8] sm:$0xff] %vm19, 0.0
    %vm22 = vcmask 781312
    %23 = vst.msk [vmem:[#allocation2 + $0x10] sm:$0xf] %vm22, 0.0
  $region17: #{seq2seq_transformer_forward.33} parent=0 // pred_fallthru
    _
  %v24 = vld [vmem:[#allocation2] sm:$0xff]
  %v25 = vld [vmem:[#allocation2 + $0x8] sm:$0xff]
  %v26 = vld [vmem:[#allocation2 + $0x10] sm:$0xf]
  %v27 = vld [vmem:[%s0] sm:$0xff]
  %v28 = vld [vmem:[%s0 + $0x8] sm:$0xff]
  %v29 = vld [vmem:[%s0 + $0x10] sm:$0xf]
  %v30 = vpack.c.bf16 %v28, %v27
  %v31 = vpack.c.bf16 %v29, %v29
  %v32 = vld [vmem:[%s1] sm:$0xf]
  %v33 = vld [vmem:[%s1 + $0x4] sm:$0xf]
  %v34 = vld [vmem:[%s1 + $0x8] sm:$0xf]
  %v35 = vld [vmem:[%s1 + $0xc] sm:$0xf]
  %v40 = vunpack.c.l.b16 %v32
  %v41 = vunpack.c.l.b16 %v33
  %v42 = vunpack.c.l.b16 %v34
  %v43 = vunpack.c.l.b16 %v35
  %v44 = vpack.c.b16 %v41, %v40
  %v45 = vpack.c.b16 %v43, %v42
  %vm48 = vcmask 261120
  %v50 = vsel %vm48, %v30, 0
  %v53 = vsel %vm48, %v31, 0
  %55 = vmatprep.subr.bf16.mxu0 0
  %56 = vmatpush1.bf16.msra.mxu0 %v44
  %57 = vmatprep.subr.bf16.mxu0 0
  %58 = vmatpush1.bf16.msra.mxu0 %v45
  %59 = vmatprep.subr.bf16.mxu0 0
  %60 = vmatpush1.bf16.msra.mxu0 0
  %61 = vmatprep.subr.bf16.mxu0 0
  %62 = vmatpush1.bf16.msra.mxu0 0
  %63 = vmatprep.subr.bf16.mxu0 0
  %64 = vmatpush1.bf16.msra.mxu0 0
  %65 = vmatprep.subr.bf16.mxu0 0
  %66 = vmatpush1.bf16.msra.mxu0 0
  %67 = vmatprep.subr.bf16.mxu0 0
  %68 = vmatpush1.bf16.msra.mxu0 0
  %69 = vmatprep.subr.bf16.mxu0 0
  %70 = vmatpush1.bf16.msra.mxu0 0
  %71 = vmatprep.subr.bf16.mxu0 0
  %72 = vmatpush1.bf16.msra.mxu0 0
  %73 = vmatprep.subr.bf16.mxu0 0
  %74 = vmatpush1.bf16.msra.mxu0 0
  %75 = vmatprep.subr.bf16.mxu0 0
  %76 = vmatpush1.bf16.msra.mxu0 0
  %77 = vmatprep.subr.bf16.mxu0 0
  %78 = vmatpush1.bf16.msra.mxu0 0
  %79 = vmatprep.subr.bf16.mxu0 0
  %80 = vmatpush1.bf16.msra.mxu0 0
  %81 = vmatprep.subr.bf16.mxu0 0
  %82 = vmatpush1.bf16.msra.mxu0 0
  %83 = vmatprep.subr.bf16.mxu0 0
  %84 = vmatpush1.bf16.msra.mxu0 0
  %85 = vmatprep.subr.bf16.mxu0 0
  %86 = vmatpush1.bf16.msra.mxu0 0
  %87 = vmatprep.mubr.bf16.mxu0 0
  %88 = vmatmul.mubr.bf16.gmra.mrb[0].mxu0 %v50
  %v89 = vpop.f32.mrb[0].mxu0
  %v90 = vadd.f32 0.0, %v89
  %v91 = vpop.f32.mrb[0].mxu0
  %v92 = vpop.f32.mrb[0].mxu0
  %v93 = vadd.f32 0.0, %v92
  %v94 = vpop.f32.mrb[0].mxu0
  %95 = vmatprep.mubr.bf16.mxu0 0
  %96 = vmatmul.mubr.bf16.gmra.mrb[0].mxu0 %v53
  %v97 = vpop.f32.mrb[0].mxu0
  %v98 = vadd.f32 0.0, %v97
  %v99 = vpop.f32.mrb[0].mxu0
  %v100 = vpop.f32.mrb[0].mxu0
  %v101 = vpop.f32.mrb[0].mxu0
  %102 = vdwg.mxu0
  %v103 = vadd.f32 %v24, %v90
  %v104 = vadd.f32 %v25, %v93
  %v105 = vadd.f32 %v26, %v98
  %vm106 = vcmask 785408
  %107 = vst.msk [vmem:[#allocation2] sm:$0xff] %vm106, %v103
  %108 = vst.msk [vmem:[#allocation2 + $0x8] sm:$0xff] %vm106, %v104
  %vm109 = vcmask 781312
  %110 = vst.msk [vmem:[#allocation2 + $0x10] sm:$0xf] %vm109, %v105
  // Predicated region
  $region18: #{seq2seq_transformer_forward.33} parent=0 // pred_check
    %p111 = pneg %p15
  $region19: #{seq2seq_transformer_forward.33} parent=0 // pred_check_branch
    %113 = sbr.rel (%p111) target = $region21
  $region20: #{seq2seq_transformer_forward.33} parent=0 // pred_region
    %v114 = vld [vmem:[#allocation2] sm:$0xff]
    %v115 = vld [vmem:[#allocation2 + $0x8] sm:$0xff]
    %v116 = vld [vmem:[#allocation2 + $0x10] sm:$0xf]
    %v117 = vld [vmem:[%s2] sm:$0x1]
    %v119 = vlaneseq
    %v120 = vshrl.u32 %v119, 7
    %v121 = vsub.s32 0, %v120
    %v122 = vrot.slane %v117, %v121
    %v124 = vadd.f32 %v114, %v122
    %v125 = vadd.f32 %v115, %v122
    %v126 = vadd.f32 %v116, %v122
    %v127 = vpack.c.bf16 %v125, %v124
    %v128 = vpack.c.bf16 %v126, %v126
    %v131 = vunpack.c.l.b16 %v127
    %v132 = vunpack.c.h.b16 %v127
    %v133 = vunpack.c.l.b16 %v128
    %v134 = vpack.c.b16 %v131, %v131
    %v135 = vpack.c.b16 %v132, %v132
    %v136 = vpack.c.b16 %v133, %v133
    %140 = vst.msk [vmem:[%s3] sm:$0xf] %vm109, %v134
    %141 = vst.msk [vmem:[%s3 + $0x4] sm:$0xf] %vm109, %v135
    %vm142 = vcmask 779264
    %143 = vst.msk [vmem:[%s3 + $0x8] sm:$0x3] %vm142, %v136
  $region21: #{seq2seq_transformer_forward.33} parent=0 // pred_fallthru
    _
  // Predicated region
  $region22: #{seq2seq_transformer_forward.33} parent=0 // pred_check
    _
  $region23: #{seq2seq_transformer_forward.33} parent=0 // pred_check_branch
    %145 = sbr.rel (0) target = $region25
  $region24: #{seq2seq_transformer_forward.33} parent=0 // pred_region
    _
  $region25: #{seq2seq_transformer_forward.33} parent=0 // pred_fallthru
    _
  // Predicated region
  $region26: #{seq2seq_transformer_forward.33} parent=0 // pred_check
    _
  $region27: #{seq2seq_transformer_forward.33} parent=0 // pred_check_branch
    %147 = sbr.rel (0) target = $region29
  $region28: #{seq2seq_transformer_forward.33} parent=0 // pred_region
    _
  $region29: #{seq2seq_transformer_forward.33} parent=0 // pred_fallthru
    _

// kernel: seq2seq_transformer_forward.34
$region0: #{seq2seq_transformer_forward.34}
  #allocation0 [shape = 'u32[]', space=smem, size = 0x4, offset = 0x4, fixed_abs, tag = 'smem constant byte address 0x4 - core index']
  #allocation1 [shape = 'u32[144,128]{1,0:T(1,128)}', space=vmem, size = 0x12000, scoped, tag = 'internal scratch']
  %s0 = inlined_call_operand.vmem [shape: bf16[2,10,96], index: 0, kind: input, shape index: {}]
  %s1 = inlined_call_operand.vmem [shape: f32[10,10], index: 1, kind: input, shape index: {}]
  %s2 = inlined_call_operand.vmem [shape: f32[2,1,10], index: 2, kind: input, shape index: {}]
  %s3 = inlined_call_operand.vmem [shape: bf16[2,10,32], index: 3, kind: output, shape index: {}]
  %s4 = sld [smem:[#allocation0]]
  $region45: #{seq2seq_transformer_forward.34} parent=0
    _
  %s6 = ssub.s32 1, %s4
  %s7 = scalar_select 0, %s6, %s4
  loop: start=0, step=1, limit=4
  $region2: #{seq2seq_transformer_forward.34} parent=0 // loop_pre_header
    _
  $region3: #{seq2seq_transformer_forward.34} parent=0 // loop_header
    %s9 = sphi 0, %s13
    %p10 = scmp.ge.s32.totalorder %s9, 4
    %s19 = sphi 0, %s21
    %s22 = sphi 0, %s19
    %s23 = sphi 0, %s22
    %s39 = sphi 0, %s23
    %s43 = sphi 0, %s43
    %s45 = sphi 0, %s43
    %s46 = sphi 0, %s45
    %s60 = sphi 0, %s46
    %s66 = sphi 0, %s68
    %s69 = sphi 0, %s66
    %s70 = sphi 0, %s69
    %s86 = sphi 0, %s70
    %s92 = sphi 0, %s94
    %s95 = sphi 0, %s92
    %s96 = sphi 0, %s95
    %s112 = sphi 0, %s96
  $region4: #{seq2seq_transformer_forward.34} parent=0 // loop_header_branch
    %12 = sbr.rel (%p10) target = $region8
  $region5: #{seq2seq_transformer_forward.34} parent=0 // loop_body
    %s14 = ssub.s32 %s9, 1
    %s15 = ssub.s32 %s9, 2
    %s16 = sadd.s32 %s9, 1
    %s17 = ssub.s32 %s9, %s16
    %p18 = scmp.eq.s32.totalorder %s17, 0
    %s20 = sadd.s32 %s19, 1
    %s21 = scalar_select %p18, %s19, %s20
    %p24 = pneg %p18
    %p25 = scmp.eq.s32.totalorder %s9, 1
    %p26 = por %p24, %p25
    %p27 = scmp.ne.s32.totalorder %s19, %s22
    %p28 = scmp.eq.s32.totalorder %s9, 0
    %p29 = por %p27, %p28
    %p30 = scmp.ne.s32.totalorder %s19, %s22
    %p31 = scmp.eq.s32.totalorder %s14, 1
    %p32 = por %p30, %p31
    %p33 = scmp.ne.s32.totalorder %s22, %s23
    %p34 = scmp.eq.s32.totalorder %s14, 0
    %p35 = por %p33, %p34
    %p36 = scmp.ne.s32.totalorder %s22, %s23
    %p37 = scmp.eq.s32.totalorder %s15, 1
    %p38 = por %p36, %p37
    %p40 = scmp.ne.s32.totalorder %s23, %s39
    %p41 = scmp.eq.s32.totalorder %s15, 0
    %p42 = por %p40, %p41
    %s44 = sadd.s32 %s43, 1
    %p47 = scmp.eq.s32.totalorder %s9, 1
    %p48 = scmp.ne.s32.totalorder %s43, %s45
    %p49 = scmp.eq.s32.totalorder %s9, 0
    %p50 = por %p48, %p49
    %p51 = scmp.ne.s32.totalorder %s43, %s45
    %p52 = scmp.eq.s32.totalorder %s14, 1
    %p53 = por %p51, %p52
    %p54 = scmp.ne.s32.totalorder %s45, %s46
    %p55 = scmp.eq.s32.totalorder %s14, 0
    %p56 = por %p54, %p55
    %p57 = scmp.ne.s32.totalorder %s45, %s46
    %p58 = scmp.eq.s32.totalorder %s15, 1
    %p59 = por %p57, %p58
    %p61 = scmp.ne.s32.totalorder %s46, %s60
    %p62 = scmp.eq.s32.totalorder %s15, 0
    %p63 = por %p61, %p62
    %s64 = ssub.s32 %s9, %s16
    %p65 = scmp.eq.s32.totalorder %s64, 0
    %s67 = sadd.s32 %s66, 1
    %s68 = scalar_select %p65, %s66, %s67
    %p71 = pneg %p65
    %p72 = scmp.eq.s32.totalorder %s9, 1
    %p73 = por %p71, %p72
    %p74 = scmp.ne.s32.totalorder %s66, %s69
    %p75 = scmp.eq.s32.totalorder %s9, 0
    %p76 = por %p74, %p75
    %p77 = scmp.ne.s32.totalorder %s66, %s69
    %p78 = scmp.eq.s32.totalorder %s14, 1
    %p79 = por %p77, %p78
    %p80 = scmp.ne.s32.totalorder %s69, %s70
    %p81 = scmp.eq.s32.totalorder %s14, 0
    %p82 = por %p80, %p81
    %p83 = scmp.ne.s32.totalorder %s69, %s70
    %p84 = scmp.eq.s32.totalorder %s15, 1
    %p85 = por %p83, %p84
    %p87 = scmp.ne.s32.totalorder %s70, %s86
    %p88 = scmp.eq.s32.totalorder %s15, 0
    %p89 = por %p87, %p88
    %s90 = ssub.s32 %s9, %s16
    %p91 = scmp.eq.s32.totalorder %s90, 0
    %s93 = sadd.s32 %s92, 1
    %s94 = scalar_select %p91, %s92, %s93
    %p97 = pneg %p91
    %p98 = scmp.eq.s32.totalorder %s9, 1
    %p99 = por %p97, %p98
    %p100 = scmp.ne.s32.totalorder %s92, %s95
    %p101 = scmp.eq.s32.totalorder %s9, 0
    %p102 = por %p100, %p101
    %p103 = scmp.ne.s32.totalorder %s92, %s95
    %p104 = scmp.eq.s32.totalorder %s14, 1
    %p105 = por %p103, %p104
    %p106 = scmp.ne.s32.totalorder %s95, %s96
    %p107 = scmp.eq.s32.totalorder %s14, 0
    %p108 = por %p106, %p107
    %p109 = scmp.ne.s32.totalorder %s95, %s96
    %p110 = scmp.eq.s32.totalorder %s15, 1
    %p111 = por %p109, %p110
    %p113 = scmp.ne.s32.totalorder %s96, %s112
    %p114 = scmp.eq.s32.totalorder %s15, 0
    %p115 = por %p113, %p114
    %p116 = scmp.le.s32.totalorder 1, %s9
    %p117 = scmp.lt.s32.totalorder %s9, 3
    %p118 = pnand %p116, %p117
    %p119 = pneg %p118
    // Predicated region
    $region9: #{seq2seq_transformer_forward.34} parent=5 // pred_check
      _
    $region10: #{seq2seq_transformer_forward.34} parent=5 // pred_check_branch
      %121 = sbr.rel (%p118) target = $region12
    $region11: #{seq2seq_transformer_forward.34} parent=5 // pred_region
      %s122 = ssub.s32 %s9, 1
      // Predicated region
      $region13: #{seq2seq_transformer_forward.34} parent=11 // pred_check
        %p123 = pneg %p56
      $region14: #{seq2seq_transformer_forward.34} parent=11 // pred_check_branch
        %125 = sbr.rel (%p123) target = $region16
      $region15: #{seq2seq_transformer_forward.34} parent=11 // pred_region
        _
      $region16: #{seq2seq_transformer_forward.34} parent=11 // pred_fallthru
        _
    $region12: #{seq2seq_transformer_forward.34} parent=5 // pred_fallthru
      _
    %p126 = scmp.lt.s32.totalorder %s9, 2
    // Predicated region
    $region17: #{seq2seq_transformer_forward.34} parent=5 // pred_check
      %p127 = pneg %p126
    $region18: #{seq2seq_transformer_forward.34} parent=5 // pred_check_branch
      %129 = sbr.rel (%p127) target = $region20
    $region19: #{seq2seq_transformer_forward.34} parent=5 // pred_region
      // Predicated region
      $region21: #{seq2seq_transformer_forward.34} parent=19 // pred_check
        %p130 = pneg %p29
      $region22: #{seq2seq_transformer_forward.34} parent=19 // pred_check_branch
        %132 = sbr.rel (%p130) target = $region24
      $region23: #{seq2seq_transformer_forward.34} parent=19 // pred_region
        %p133 = scmp.lt.s32.totalorder %s9, 1
        %s134 = scalar_select %p133, %s9, 1
        %s135 = smul.addr %s134, 2
        %s136 = smul.addr %s135, 4
        %s137 = scalar_lea.vmem %s0, %s136
      $region24: #{seq2seq_transformer_forward.34} parent=19 // pred_fallthru
        _
      // Predicated region
      $region25: #{seq2seq_transformer_forward.34} parent=19 // pred_check
        %p138 = pneg %p76
      $region26: #{seq2seq_transformer_forward.34} parent=19 // pred_check_branch
        %140 = sbr.rel (%p138) target = $region28
      $region27: #{seq2seq_transformer_forward.34} parent=19 // pred_region
        %p141 = scmp.lt.s32.totalorder %s9, 1
        %s142 = scalar_select %p141, %s9, 1
        %s143 = scalar_lea.vmem %s2, %s142
      $region28: #{seq2seq_transformer_forward.34} parent=19 // pred_fallthru
        _
    $region20: #{seq2seq_transformer_forward.34} parent=5 // pred_fallthru
      _
    %p144 = scmp.le.s32.totalorder 1, %s9
    %p145 = scmp.lt.s32.totalorder %s9, 3
    %p146 = pnand %p144, %p145
    %p147 = pneg %p146
    // Predicated region
    $region29: #{seq2seq_transformer_forward.34} parent=5 // pred_check
      _
    $region30: #{seq2seq_transformer_forward.34} parent=5 // pred_check_branch
      %149 = sbr.rel (%p146) target = $region32
    $region31: #{seq2seq_transformer_forward.34} parent=5 // pred_region
      %s150 = ssub.s32 %s9, 1
      %p151 = scmp.lt.s32.totalorder %s14, 1
      %s152 = scalar_select %p151, %s14, 1
      %s153 = smul.addr %s152, 2
      %s154 = smul.addr %s153, 4
      %s155 = scalar_lea.vmem %s0, %s154
      %p156 = pneg %p35
      %p157 = pneg %p32
      %p158 = pneg %p56
      %p159 = pneg %p53
      %p160 = scmp.lt.s32.totalorder %s14, 1
      %s161 = scalar_select %p160, %s14, 1
      %s162 = scalar_lea.vmem %s2, %s161
      %p163 = pneg %p82
      %p164 = pneg %p79
      %p165 = pneg %p108
      %p166 = pneg %p105
      %p167 = scmp.lt.s32.totalorder %s14, 1
      %s168 = scalar_select %p167, %s14, 1
      %s169 = smul.addr %s168, 2
      %s170 = smul.addr %s169, 4
      %s171 = scalar_lea.vmem %s3, %s170
      %p172 = scmp.lt.s32.totalorder %s14, 1
      %s173 = scalar_select %p172, %s14, 1
      %s174 = smul.addr %s173, 2
      %s175 = smul.addr %s174, 4
      %s176 = scalar_lea.vmem %s0, %s175
      %p177 = scmp.lt.s32.totalorder %s14, 1
      %s178 = scalar_select %p177, %s14, 1
      %s179 = scalar_lea.vmem %s2, %s178
      %p180 = scmp.lt.s32.totalorder %s14, 1
      %s181 = scalar_select %p180, %s14, 1
      %s182 = smul.addr %s181, 2
      %s183 = smul.addr %s182, 4
      %s184 = scalar_lea.vmem %s3, %s183
      %v186 = vld [vmem:[%s1] sm:$0xff]
      %v187 = vld [vmem:[%s1 + $0x8] sm:$0x3]
      %v188 = vld [vmem:[%s179] sm:$0x1]
      %v190 = vlaneseq
      %v191 = vshrl.u32 %v190, 7
      %v192 = vsub.s32 0, %v191
      %v193 = vrot.slane %v188, %v192
      %v195 = vadd.f32 %v186, %v193
      %v196 = vadd.f32 %v187, %v193
      %v197 = vld [vmem:[%s176] sm:$0xf]
      %v198 = vld [vmem:[%s176 + $0x4] sm:$0x1]
      %v201 = vunpack.c.l.b16 %v197
      %v202 = vunpack.c.l.b16 %v198
      %v203 = vpack.c.b16 %v202, %v201
      %204 = vrot.lane.b32.xlu0 %v203, 96
      %v205 = vpop.permute.xlu0 %204
      %vm206 = vcmask 64512
      %v208 = vsel %vm206, %v203, 0
      %v211 = vsel %vm206, %v205, 0
      %213 = vmatprep.subr.bf16.mxu0 0
      %214 = vmatpush1.bf16.xpose.msra.mxu0 %v211
      %215 = vmatprep.subr.bf16.mxu0 0
      %216 = vmatpush1.bf16.xpose.msra.mxu0 0
      %217 = vmatprep.subr.bf16.mxu0 0
      %218 = vmatpush1.bf16.xpose.msra.mxu0 0
      %219 = vmatprep.subr.bf16.mxu0 0
      %220 = vmatpush1.bf16.xpose.msra.mxu0 0
      %221 = vmatprep.subr.bf16.mxu0 0
      %222 = vmatpush1.bf16.xpose.msra.mxu0 0
      %223 = vmatprep.subr.bf16.mxu0 0
      %224 = vmatpush1.bf16.xpose.msra.mxu0 0
      %225 = vmatprep.subr.bf16.mxu0 0
      %226 = vmatpush1.bf16.xpose.msra.mxu0 0
      %227 = vmatprep.subr.bf16.mxu0 0
      %228 = vmatpush1.bf16.xpose.msra.mxu0 0
      %229 = vmatprep.subr.bf16.mxu0 0
      %230 = vmatpush1.bf16.xpose.msra.mxu0 0
      %231 = vmatprep.subr.bf16.mxu0 0
      %232 = vmatpush1.bf16.xpose.msra.mxu0 0
      %233 = vmatprep.subr.bf16.mxu0 0
      %234 = vmatpush1.bf16.xpose.msra.mxu0 0
      %235 = vmatprep.subr.bf16.mxu0 0
      %236 = vmatpush1.bf16.xpose.msra.mxu0 0
      %237 = vmatprep.subr.bf16.mxu0 0
      %238 = vmatpush1.bf16.xpose.msra.mxu0 0
      %239 = vmatprep.subr.bf16.mxu0 0
      %240 = vmatpush1.bf16.xpose.msra.mxu0 0
      %241 = vmatprep.subr.bf16.mxu0 0
      %242 = vmatpush1.bf16.xpose.msra.mxu0 0
      %243 = vmatprep.subr.bf16.mxu0 0
      %244 = vmatpush1.bf16.xpose.msra.mxu0 0
      %245 = vmatprep.mubr.bf16.mxu0 0
      %246 = vmatmul.mubr.bf16.gmra.mrb[0].mxu0 %v208
      %v247 = vpop.f32.mrb[0].mxu0
      %v248 = vadd.f32 %v195, %v247
      %v249 = vpop.f32.mrb[0].mxu0
      %v250 = vpop.f32.mrb[0].mxu0
      %v251 = vadd.f32 %v196, %v250
      %v252 = vpop.f32.mrb[0].mxu0
      %253 = vdwg.mxu0
      %vm254 = vcmask 80896
      %v255 = vsel %vm254, %v248, -inf
      %256 = vmax.xlane.f32.xlu0 %v255
      %v257 = vpop.xlane.xlu0 %256
      %vm258 = vcmask 74752
      %v259 = vsel %vm258, %v251, -inf
      %260 = vmax.xlane.f32.xlu0 %v259
      %v261 = vpop.xlane.xlu0 %260
      %v262 = vsub.f32 %v248, %v257
      %v263 = vsub.f32 %v251, %v261
      %v264 = vmul.f32 %v262, 1.442695
      %v265 = vpow.pop %v264
      %v266 = vmul.f32 %v263, 1.442695
      %v267 = vpow.pop %v266
      %v268 = vsel %vm254, %v265, 0.0
      %269 = vadd.xlane.f32.xlu0 %v268
      %v270 = vpop.xlane.xlu0 %269
      %v271 = vsel %vm258, %v267, 0.0
      %272 = vadd.xlane.f32.xlu0 %v271
      %v273 = vpop.xlane.xlu0 %272
      %v274 = vrcp.pop %v270
      %v275 = vrcp.pop %v273
      %v276 = vmul.f32 %v265, %v274
      %v277 = vmul.f32 %v267, %v275
      %v278 = vpack.c.bf16 %v277, %v276
      %279 = vrot.lane.b32.xlu0 %v203, 64
      %v280 = vpop.permute.xlu0 %279
      %v282 = vsel %vm254, %v278, 0
      %vm284 = vcmask 1044480
      %v286 = vsel %vm284, %v280, 0
      %288 = vmatprep.subr.bf16.mxu0 0
      %289 = vmatpush1.bf16.msra.mxu0 %v286
      %290 = vmatprep.subr.bf16.mxu0 0
      %291 = vmatpush1.bf16.msra.mxu0 0
      %292 = vmatprep.subr.bf16.mxu0 0
      %293 = vmatpush1.bf16.msra.mxu0 0
      %294 = vmatprep.subr.bf16.mxu0 0
      %295 = vmatpush1.bf16.msra.mxu0 0
      %296 = vmatprep.subr.bf16.mxu0 0
      %297 = vmatpush1.bf16.msra.mxu0 0
      %298 = vmatprep.subr.bf16.mxu0 0
      %299 = vmatpush1.bf16.msra.mxu0 0
      %300 = vmatprep.subr.bf16.mxu0 0
      %301 = vmatpush1.bf16.msra.mxu0 0
      %302 = vmatprep.subr.bf16.mxu0 0
      %303 = vmatpush1.bf16.msra.mxu0 0
      %304 = vmatprep.subr.bf16.mxu0 0
      %305 = vmatpush1.bf16.msra.mxu0 0
      %306 = vmatprep.subr.bf16.mxu0 0
      %307 = vmatpush1.bf16.msra.mxu0 0
      %308 = vmatprep.subr.bf16.mxu0 0
      %309 = vmatpush1.bf16.msra.mxu0 0
      %310 = vmatprep.subr.bf16.mxu0 0
      %311 = vmatpush1.bf16.msra.mxu0 0
      %312 = vmatprep.subr.bf16.mxu0 0
      %313 = vmatpush1.bf16.msra.mxu0 0
      %314 = vmatprep.subr.bf16.mxu0 0
      %315 = vmatpush1.bf16.msra.mxu0 0
      %316 = vmatprep.subr.bf16.mxu0 0
      %317 = vmatpush1.bf16.msra.mxu0 0
      %318 = vmatprep.subr.bf16.mxu0 0
      %319 = vmatpush1.bf16.msra.mxu0 0
      %320 = vmatprep.mubr.bf16.mxu0 0
      %321 = vmatmul.mubr.bf16.gmra.mrb[0].mxu0 %v282
      %v322 = vpop.f32.mrb[0].mxu0
      %v323 = vadd.f32 0.0, %v322
      %v324 = vpop.f32.mrb[0].mxu0
      %v325 = vpop.f32.mrb[0].mxu0
      %v326 = vadd.f32 0.0, %v325
      %v327 = vpop.f32.mrb[0].mxu0
      %328 = vdwg.mxu0
      %v329 = vpack.c.bf16 %v326, %v323
      %v331 = vunpack.c.l.b16 %v329
      %v332 = vunpack.c.h.b16 %v329
      %v333 = vpack.c.b16 %v331, %v331
      %v334 = vpack.c.b16 %v332, %v332
      %vm337 = vcmask 60416
      %338 = vst.msk [vmem:[%s184] sm:$0xf] %vm337, %v333
      %vm339 = vcmask 57344
      %340 = vst.msk [vmem:[%s184 + $0x4] sm:$0x1] %vm339, %v334
      %v341 = vld [vmem:[%s176] sm:$0xf]
      %v342 = vld [vmem:[%s176 + $0x4] sm:$0x1]
      %v345 = vunpack.c.l.b16 %v341
      %v346 = vunpack.c.l.b16 %v342
      %v347 = vpack.c.b16 %v346, %v345
      %348 = vrot.lane.b32.xlu0 %v347, 120
      %v349 = vpop.permute.xlu0 %348
      %350 = vrot.lane.b32.xlu0 %v347, 88
      %v351 = vpop.permute.xlu0 %350
      %v353 = vsel %vm206, %v349, 0
      %v356 = vsel %vm206, %v351, 0
      %358 = vmatprep.subr.bf16.mxu0 0
      %359 = vmatpush1.bf16.xpose.msra.mxu0 %v356
      %360 = vmatprep.subr.bf16.mxu0 0
      %361 = vmatpush1.bf16.xpose.msra.mxu0 0
      %362 = vmatprep.subr.bf16.mxu0 0
      %363 = vmatpush1.bf16.xpose.msra.mxu0 0
      %364 = vmatprep.subr.bf16.mxu0 0
      %365 = vmatpush1.bf16.xpose.msra.mxu0 0
      %366 = vmatprep.subr.bf16.mxu0 0
      %367 = vmatpush1.bf16.xpose.msra.mxu0 0
      %368 = vmatprep.subr.bf16.mxu0 0
      %369 = vmatpush1.bf16.xpose.msra.mxu0 0
      %370 = vmatprep.subr.bf16.mxu0 0
      %371 = vmatpush1.bf16.xpose.msra.mxu0 0
      %372 = vmatprep.subr.bf16.mxu0 0
      %373 = vmatpush1.bf16.xpose.msra.mxu0 0
      %374 = vmatprep.subr.bf16.mxu0 0
      %375 = vmatpush1.bf16.xpose.msra.mxu0 0
      %376 = vmatprep.subr.bf16.mxu0 0
      %377 = vmatpush1.bf16.xpose.msra.mxu0 0
      %378 = vmatprep.subr.bf16.mxu0 0
      %379 = vmatpush1.bf16.xpose.msra.mxu0 0
      %380 = vmatprep.subr.bf16.mxu0 0
      %381 = vmatpush1.bf16.xpose.msra.mxu0 0
      %382 = vmatprep.subr.bf16.mxu0 0
      %383 = vmatpush1.bf16.xpose.msra.mxu0 0
      %384 = vmatprep.subr.bf16.mxu0 0
      %385 = vmatpush1.bf16.xpose.msra.mxu0 0
      %386 = vmatprep.subr.bf16.mxu0 0
      %387 = vmatpush1.bf16.xpose.msra.mxu0 0
      %388 = vmatprep.subr.bf16.mxu0 0
      %389 = vmatpush1.bf16.xpose.msra.mxu0 0
      %390 = vmatprep.mubr.bf16.mxu0 0
      %391 = vmatmul.mubr.bf16.gmra.mrb[0].mxu0 %v353
      %v392 = vpop.f32.mrb[0].mxu0
      %v393 = vadd.f32 %v195, %v392
      %v394 = vpop.f32.mrb[0].mxu0
      %v395 = vpop.f32.mrb[0].mxu0
      %v396 = vadd.f32 %v196, %v395
      %v397 = vpop.f32.mrb[0].mxu0
      %398 = vdwg.mxu0
      %v399 = vsel %vm254, %v393, -inf
      %400 = vmax.xlane.f32.xlu0 %v399
      %v401 = vpop.xlane.xlu0 %400
      %v402 = vsel %vm258, %v396, -inf
      %403 = vmax.xlane.f32.xlu0 %v402
      %v404 = vpop.xlane.xlu0 %403
      %v405 = vsub.f32 %v393, %v401
      %v406 = vsub.f32 %v396, %v404
      %v407 = vmul.f32 %v405, 1.442695
      %v408 = vpow.pop %v407
      %v409 = vmul.f32 %v406, 1.442695
      %v410 = vpow.pop %v409
      %v411 = vsel %vm254, %v408, 0.0
      %412 = vadd.xlane.f32.xlu0 %v411
      %v413 = vpop.xlane.xlu0 %412
      %v414 = vsel %vm258, %v410, 0.0
      %415 = vadd.xlane.f32.xlu0 %v414
      %v416 = vpop.xlane.xlu0 %415
      %v417 = vrcp.pop %v413
      %v418 = vrcp.pop %v416
      %v419 = vmul.f32 %v408, %v417
      %v420 = vmul.f32 %v410, %v418
      %v421 = vpack.c.bf16 %v420, %v419
      %422 = vrot.lane.b32.xlu0 %v347, 56
      %v423 = vpop.permute.xlu0 %422
      %v425 = vsel %vm254, %v421, 0
      %v428 = vsel %vm284, %v423, 0
      %430 = vmatprep.subr.bf16.mxu0 0
      %431 = vmatpush1.bf16.msra.mxu0 %v428
      %432 = vmatprep.subr.bf16.mxu0 0
      %433 = vmatpush1.bf16.msra.mxu0 0
      %434 = vmatprep.subr.bf16.mxu0 0
      %435 = vmatpush1.bf16.msra.mxu0 0
      %436 = vmatprep.subr.bf16.mxu0 0
      %437 = vmatpush1.bf16.msra.mxu0 0
      %438 = vmatprep.subr.bf16.mxu0 0
      %439 = vmatpush1.bf16.msra.mxu0 0
      %440 = vmatprep.subr.bf16.mxu0 0
      %441 = vmatpush1.bf16.msra.mxu0 0
      %442 = vmatprep.subr.bf16.mxu0 0
      %443 = vmatpush1.bf16.msra.mxu0 0
      %444 = vmatprep.subr.bf16.mxu0 0
      %445 = vmatpush1.bf16.msra.mxu0 0
      %446 = vmatprep.subr.bf16.mxu0 0
      %447 = vmatpush1.bf16.msra.mxu0 0
      %448 = vmatprep.subr.bf16.mxu0 0
      %449 = vmatpush1.bf16.msra.mxu0 0
      %450 = vmatprep.subr.bf16.mxu0 0
      %451 = vmatpush1.bf16.msra.mxu0 0
      %452 = vmatprep.subr.bf16.mxu0 0
      %453 = vmatpush1.bf16.msra.mxu0 0
      %454 = vmatprep.subr.bf16.mxu0 0
      %455 = vmatpush1.bf16.msra.mxu0 0
      %456 = vmatprep.subr.bf16.mxu0 0
      %457 = vmatpush1.bf16.msra.mxu0 0
      %458 = vmatprep.subr.bf16.mxu0 0
      %459 = vmatpush1.bf16.msra.mxu0 0
      %460 = vmatprep.subr.bf16.mxu0 0
      %461 = vmatpush1.bf16.msra.mxu0 0
      %462 = vmatprep.mubr.bf16.mxu0 0
      %463 = vmatmul.mubr.bf16.gmra.mrb[0].mxu0 %v425
      %v464 = vpop.f32.mrb[0].mxu0
      %v465 = vadd.f32 0.0, %v464
      %v466 = vpop.f32.mrb[0].mxu0
      %v467 = vpop.f32.mrb[0].mxu0
      %v468 = vadd.f32 0.0, %v467
      %v469 = vpop.f32.mrb[0].mxu0
      %470 = vdwg.mxu0
      %v471 = vpack.c.bf16 %v468, %v465
      %v473 = vunpack.c.l.b16 %v471
      %v474 = vunpack.c.h.b16 %v471
      %v475 = vpack.c.b16 %v473, %v473
      %v476 = vpack.c.b16 %v474, %v474
      %477 = vrot.lane.b32.xlu0 %v475, 8
      %v478 = vpop.permute.xlu0 %477
      %479 = vrot.lane.b32.xlu0 %v476, 8
      %v480 = vpop.permute.xlu0 %479
      %vm483 = vcmask 126016
      %484 = vst.msk [vmem:[%s184] sm:$0xf] %vm483, %v478
      %vm485 = vcmask 122944
      %486 = vst.msk [vmem:[%s184 + $0x4] sm:$0x1] %vm485, %v480
      %v487 = vld [vmem:[%s176] sm:$0xf]
      %v488 = vld [vmem:[%s176 + $0x4] sm:$0x1]
      %v491 = vunpack.c.l.b16 %v487
      %v492 = vunpack.c.l.b16 %v488
      %v493 = vpack.c.b16 %v492, %v491
      %494 = vrot.lane.b32.xlu0 %v493, 112
      %v495 = vpop.permute.xlu0 %494
      %496 = vrot.lane.b32.xlu0 %v493, 80
      %v497 = vpop.permute.xlu0 %496
      %v499 = vsel %vm206, %v495, 0
      %v502 = vsel %vm206, %v497, 0
      %504 = vmatprep.subr.bf16.mxu0 0
      %505 = vmatpush1.bf16.xpose.msra.mxu0 %v502
      %506 = vmatprep.subr.bf16.mxu0 0
      %507 = vmatpush1.bf16.xpose.msra.mxu0 0
      %508 = vmatprep.subr.bf16.mxu0 0
      %509 = vmatpush1.bf16.xpose.msra.mxu0 0
      %510 = vmatprep.subr.bf16.mxu0 0
      %511 = vmatpush1.bf16.xpose.msra.mxu0 0
      %512 = vmatprep.subr.bf16.mxu0 0
      %513 = vmatpush1.bf16.xpose.msra.mxu0 0
      %514 = vmatprep.subr.bf16.mxu0 0
      %515 = vmatpush1.bf16.xpose.msra.mxu0 0
      %516 = vmatprep.subr.bf16.mxu0 0
      %517 = vmatpush1.bf16.xpose.msra.mxu0 0
      %518 = vmatprep.subr.bf16.mxu0 0
      %519 = vmatpush1.bf16.xpose.msra.mxu0 0
      %520 = vmatprep.subr.bf16.mxu0 0
      %521 = vmatpush1.bf16.xpose.msra.mxu0 0
      %522 = vmatprep.subr.bf16.mxu0 0
      %523 = vmatpush1.bf16.xpose.msra.mxu0 0
      %524 = vmatprep.subr.bf16.mxu0 0
      %525 = vmatpush1.bf16.xpose.msra.mxu0 0
      %526 = vmatprep.subr.bf16.mxu0 0
      %527 = vmatpush1.bf16.xpose.msra.mxu0 0
      %528 = vmatprep.subr.bf16.mxu0 0
      %529 = vmatpush1.bf16.xpose.msra.mxu0 0
      %530 = vmatprep.subr.bf16.mxu0 0
      %531 = vmatpush1.bf16.xpose.msra.mxu0 0
      %532 = vmatprep.subr.bf16.mxu0 0
      %533 = vmatpush1.bf16.xpose.msra.mxu0 0
      %534 = vmatprep.subr.bf16.mxu0 0
      %535 = vmatpush1.bf16.xpose.msra.mxu0 0
      %536 = vmatprep.mubr.bf16.mxu0 0
      %537 = vmatmul.mubr.bf16.gmra.mrb[0].mxu0 %v499
      %v538 = vpop.f32.mrb[0].mxu0
      %v539 = vadd.f32 %v195, %v538
      %v540 = vpop.f32.mrb[0].mxu0
      %v541 = vpop.f32.mrb[0].mxu0
      %v542 = vadd.f32 %v196, %v541
      %v543 = vpop.f32.mrb[0].mxu0
      %544 = vdwg.mxu0
      %v545 = vsel %vm254, %v539, -inf
      %546 = vmax.xlane.f32.xlu0 %v545
      %v547 = vpop.xlane.xlu0 %546
      %v548 = vsel %vm258, %v542, -inf
      %549 = vmax.xlane.f32.xlu0 %v548
      %v550 = vpop.xlane.xlu0 %549
      %v551 = vsub.f32 %v539, %v547
      %v552 = vsub.f32 %v542, %v550
      %v553 = vmul.f32 %v551, 1.442695
      %v554 = vpow.pop %v553
      %v555 = vmul.f32 %v552, 1.442695
      %v556 = vpow.pop %v555
      %v557 = vsel %vm254, %v554, 0.0
      %558 = vadd.xlane.f32.xlu0 %v557
      %v559 = vpop.xlane.xlu0 %558
      %v560 = vsel %vm258, %v556, 0.0
      %561 = vadd.xlane.f32.xlu0 %v560
      %v562 = vpop.xlane.xlu0 %561
      %v563 = vrcp.pop %v559
      %v564 = vrcp.pop %v562
      %v565 = vmul.f32 %v554, %v563
      %v566 = vmul.f32 %v556, %v564
      %v567 = vpack.c.bf16 %v566, %v565
      %568 = vrot.lane.b32.xlu0 %v493, 48
      %v569 = vpop.permute.xlu0 %568
      %v571 = vsel %vm254, %v567, 0
      %v574 = vsel %vm284, %v569, 0
      %576 = vmatprep.subr.bf16.mxu0 0
      %577 = vmatpush1.bf16.msra.mxu0 %v574
      %578 = vmatprep.subr.bf16.mxu0 0
      %579 = vmatpush1.bf16.msra.mxu0 0
      %580 = vmatprep.subr.bf16.mxu0 0
      %581 = vmatpush1.bf16.msra.mxu0 0
      %582 = vmatprep.subr.bf16.mxu0 0
      %583 = vmatpush1.bf16.msra.mxu0 0
      %584 = vmatprep.subr.bf16.mxu0 0
      %585 = vmatpush1.bf16.msra.mxu0 0
      %586 = vmatprep.subr.bf16.mxu0 0
      %587 = vmatpush1.bf16.msra.mxu0 0
      %588 = vmatprep.subr.bf16.mxu0 0
      %589 = vmatpush1.bf16.msra.mxu0 0
      %590 = vmatprep.subr.bf16.mxu0 0
      %591 = vmatpush1.bf16.msra.mxu0 0
      %592 = vmatprep.subr.bf16.mxu0 0
      %593 = vmatpush1.bf16.msra.mxu0 0
      %594 = vmatprep.subr.bf16.mxu0 0
      %595 = vmatpush1.bf16.msra.mxu0 0
      %596 = vmatprep.subr.bf16.mxu0 0
      %597 = vmatpush1.bf16.msra.mxu0 0
      %598 = vmatprep.subr.bf16.mxu0 0
      %599 = vmatpush1.bf16.msra.mxu0 0
      %600 = vmatprep.subr.bf16.mxu0 0
      %601 = vmatpush1.bf16.msra.mxu0 0
      %602 = vmatprep.subr.bf16.mxu0 0
      %603 = vmatpush1.bf16.msra.mxu0 0
      %604 = vmatprep.subr.bf16.mxu0 0
      %605 = vmatpush1.bf16.msra.mxu0 0
      %606 = vmatprep.subr.bf16.mxu0 0
      %607 = vmatpush1.bf16.msra.mxu0 0
      %608 = vmatprep.mubr.bf16.mxu0 0
      %609 = vmatmul.mubr.bf16.gmra.mrb[0].mxu0 %v571
      %v610 = vpop.f32.mrb[0].mxu0
      %v611 = vadd.f32 0.0, %v610
      %v612 = vpop.f32.mrb[0].mxu0
      %v613 = vpop.f32.mrb[0].mxu0
      %v614 = vadd.f32 0.0, %v613
      %v615 = vpop.f32.mrb[0].mxu0
      %616 = vdwg.mxu0
      %v617 = vpack.c.bf16 %v614, %v611
      %v619 = vunpack.c.l.b16 %v617
      %v620 = vunpack.c.h.b16 %v617
      %v621 = vpack.c.b16 %v619, %v619
      %v622 = vpack.c.b16 %v620, %v620
      %623 = vrot.lane.b32.xlu0 %v621, 16
      %v624 = vpop.permute.xlu0 %623
      %625 = vrot.lane.b32.xlu0 %v622, 16
      %v626 = vpop.permute.xlu0 %625
      %vm629 = vcmask 191616
      %630 = vst.msk [vmem:[%s184] sm:$0xf] %vm629, %v624
      %vm631 = vcmask 188544
      %632 = vst.msk [vmem:[%s184 + $0x4] sm:$0x1] %vm631, %v626
      %v633 = vld [vmem:[%s176] sm:$0xf]
      %v634 = vld [vmem:[%s176 + $0x4] sm:$0x1]
      %v637 = vunpack.c.l.b16 %v633
      %v638 = vunpack.c.l.b16 %v634
      %v639 = vpack.c.b16 %v638, %v637
      %640 = vrot.lane.b32.xlu0 %v639, 104
      %v641 = vpop.permute.xlu0 %640
      %642 = vrot.lane.b32.xlu0 %v639, 72
      %v643 = vpop.permute.xlu0 %642
      %v645 = vsel %vm206, %v641, 0
      %v648 = vsel %vm206, %v643, 0
      %650 = vmatprep.subr.bf16.mxu0 0
      %651 = vmatpush1.bf16.xpose.msra.mxu0 %v648
      %652 = vmatprep.subr.bf16.mxu0 0
      %653 = vmatpush1.bf16.xpose.msra.mxu0 0
      %654 = vmatprep.subr.bf16.mxu0 0
      %655 = vmatpush1.bf16.xpose.msra.mxu0 0
      %656 = vmatprep.subr.bf16.mxu0 0
      %657 = vmatpush1.bf16.xpose.msra.mxu0 0
      %658 = vmatprep.subr.bf16.mxu0 0
      %659 = vmatpush1.bf16.xpose.msra.mxu0 0
      %660 = vmatprep.subr.bf16.mxu0 0
      %661 = vmatpush1.bf16.xpose.msra.mxu0 0
      %662 = vmatprep.subr.bf16.mxu0 0
      %663 = vmatpush1.bf16.xpose.msra.mxu0 0
      %664 = vmatprep.subr.bf16.mxu0 0
      %665 = vmatpush1.bf16.xpose.msra.mxu0 0
      %666 = vmatprep.subr.bf16.mxu0 0
      %667 = vmatpush1.bf16.xpose.msra.mxu0 0
      %668 = vmatprep.subr.bf16.mxu0 0
      %669 = vmatpush1.bf16.xpose.msra.mxu0 0
      %670 = vmatprep.subr.bf16.mxu0 0
      %671 = vmatpush1.bf16.xpose.msra.mxu0 0
      %672 = vmatprep.subr.bf16.mxu0 0
      %673 = vmatpush1.bf16.xpose.msra.mxu0 0
      %674 = vmatprep.subr.bf16.mxu0 0
      %675 = vmatpush1.bf16.xpose.msra.mxu0 0
      %676 = vmatprep.subr.bf16.mxu0 0
      %677 = vmatpush1.bf16.xpose.msra.mxu0 0
      %678 = vmatprep.subr.bf16.mxu0 0
      %679 = vmatpush1.bf16.xpose.msra.mxu0 0
      %680 = vmatprep.subr.bf16.mxu0 0
      %681 = vmatpush1.bf16.xpose.msra.mxu0 0
      %682 = vmatprep.mubr.bf16.mxu0 0
      %683 = vmatmul.mubr.bf16.gmra.mrb[0].mxu0 %v645
      %v684 = vpop.f32.mrb[0].mxu0
      %v685 = vadd.f32 %v195, %v684
      %v686 = vpop.f32.mrb[0].mxu0
      %v687 = vpop.f32.mrb[0].mxu0
      %v688 = vadd.f32 %v196, %v687
      %v689 = vpop.f32.mrb[0].mxu0
      %690 = vdwg.mxu0
      %v691 = vsel %vm254, %v685, -inf
      %692 = vmax.xlane.f32.xlu0 %v691
      %v693 = vpop.xlane.xlu0 %692
      %v694 = vsel %vm258, %v688, -inf
      %695 = vmax.xlane.f32.xlu0 %v694
      %v696 = vpop.xlane.xlu0 %695
      %v697 = vsub.f32 %v685, %v693
      %v698 = vsub.f32 %v688, %v696
      %v699 = vmul.f32 %v697, 1.442695
      %v700 = vpow.pop %v699
      %v701 = vmul.f32 %v698, 1.442695
      %v702 = vpow.pop %v701
      %v703 = vsel %vm254, %v700, 0.0
      %704 = vadd.xlane.f32.xlu0 %v703
      %v705 = vpop.xlane.xlu0 %704
      %v706 = vsel %vm258, %v702, 0.0
      %707 = vadd.xlane.f32.xlu0 %v706
      %v708 = vpop.xlane.xlu0 %707
      %v709 = vrcp.pop %v705
      %v710 = vrcp.pop %v708
      %v711 = vmul.f32 %v700, %v709
      %v712 = vmul.f32 %v702, %v710
      %v713 = vpack.c.bf16 %v712, %v711
      %714 = vrot.lane.b32.xlu0 %v639, 40
      %v715 = vpop.permute.xlu0 %714
      %v717 = vsel %vm254, %v713, 0
      %v720 = vsel %vm284, %v715, 0
      %722 = vmatprep.subr.bf16.mxu0 0
      %723 = vmatpush1.bf16.msra.mxu0 %v720
      %724 = vmatprep.subr.bf16.mxu0 0
      %725 = vmatpush1.bf16.msra.mxu0 0
      %726 = vmatprep.subr.bf16.mxu0 0
      %727 = vmatpush1.bf16.msra.mxu0 0
      %728 = vmatprep.subr.bf16.mxu0 0
      %729 = vmatpush1.bf16.msra.mxu0 0
      %730 = vmatprep.subr.bf16.mxu0 0
      %731 = vmatpush1.bf16.msra.mxu0 0
      %732 = vmatprep.subr.bf16.mxu0 0
      %733 = vmatpush1.bf16.msra.mxu0 0
      %734 = vmatprep.subr.bf16.mxu0 0
      %735 = vmatpush1.bf16.msra.mxu0 0
      %736 = vmatprep.subr.bf16.mxu0 0
      %737 = vmatpush1.bf16.msra.mxu0 0
      %738 = vmatprep.subr.bf16.mxu0 0
      %739 = vmatpush1.bf16.msra.mxu0 0
      %740 = vmatprep.subr.bf16.mxu0 0
      %741 = vmatpush1.bf16.msra.mxu0 0
      %742 = vmatprep.subr.bf16.mxu0 0
      %743 = vmatpush1.bf16.msra.mxu0 0
      %744 = vmatprep.subr.bf16.mxu0 0
      %745 = vmatpush1.bf16.msra.mxu0 0
      %746 = vmatprep.subr.bf16.mxu0 0
      %747 = vmatpush1.bf16.msra.mxu0 0
      %748 = vmatprep.subr.bf16.mxu0 0
      %749 = vmatpush1.bf16.msra.mxu0 0
      %750 = vmatprep.subr.bf16.mxu0 0
      %751 = vmatpush1.bf16.msra.mxu0 0
      %752 = vmatprep.subr.bf16.mxu0 0
      %753 = vmatpush1.bf16.msra.mxu0 0
      %754 = vmatprep.mubr.bf16.mxu0 0
      %755 = vmatmul.mubr.bf16.gmra.mrb[0].mxu0 %v717
      %v756 = vpop.f32.mrb[0].mxu0
      %v757 = vadd.f32 0.0, %v756
      %v758 = vpop.f32.mrb[0].mxu0
      %v759 = vpop.f32.mrb[0].mxu0
      %v760 = vadd.f32 0.0, %v759
      %v761 = vpop.f32.mrb[0].mxu0
      %762 = vdwg.mxu0
      %v763 = vpack.c.bf16 %v760, %v757
      %v765 = vunpack.c.l.b16 %v763
      %v766 = vunpack.c.h.b16 %v763
      %v767 = vpack.c.b16 %v765, %v765
      %v768 = vpack.c.b16 %v766, %v766
      %769 = vrot.lane.b32.xlu0 %v767, 24
      %v770 = vpop.permute.xlu0 %769
      %771 = vrot.lane.b32.xlu0 %v768, 24
      %v772 = vpop.permute.xlu0 %771
      %vm775 = vcmask 257216
      %776 = vst.msk [vmem:[%s184] sm:$0xf] %vm775, %v770
      %vm777 = vcmask 254144
      %778 = vst.msk [vmem:[%s184 + $0x4] sm:$0x1] %vm777, %v772
      %p779 = scmp.lt.s32.totalorder %s14, 1
      %s780 = scalar_select %p779, %s14, 1
      %s781 = smul.addr %s780, 2
      %s782 = smul.addr %s781, 4
      %s783 = scalar_lea.vmem %s3, %s782
      // Predicated region
      $region33: #{seq2seq_transformer_forward.34} parent=31 // pred_check
        %p784 = pneg %p105
      $region34: #{seq2seq_transformer_forward.34} parent=31 // pred_check_branch
        %786 = sbr.rel (%p784) target = $region36
      $region35: #{seq2seq_transformer_forward.34} parent=31 // pred_region
        _
      $region36: #{seq2seq_transformer_forward.34} parent=31 // pred_fallthru
        _
    $region32: #{seq2seq_transformer_forward.34} parent=5 // pred_fallthru
      _
    %p787 = scmp.le.s32.totalorder 2, %s9
    // Predicated region
    $region37: #{seq2seq_transformer_forward.34} parent=5 // pred_check
      %p788 = pneg %p787
    $region38: #{seq2seq_transformer_forward.34} parent=5 // pred_check_branch
      %790 = sbr.rel (%p788) target = $region40
    $region39: #{seq2seq_transformer_forward.34} parent=5 // pred_region
      %s791 = ssub.s32 %s9, 2
      // Predicated region
      $region41: #{seq2seq_transformer_forward.34} parent=39 // pred_check
        %p792 = pneg %p111
      $region42: #{seq2seq_transformer_forward.34} parent=39 // pred_check_branch
        %794 = sbr.rel (%p792) target = $region44
      $region43: #{seq2seq_transformer_forward.34} parent=39 // pred_region
        %p795 = scmp.lt.s32.totalorder %s15, 1
        %s796 = scalar_select %p795, %s15, 1
        %s797 = smul.addr %s796, 2
        %s798 = smul.addr %s797, 4
        %s799 = scalar_lea.vmem %s3, %s798
      $region44: #{seq2seq_transformer_forward.34} parent=39 // pred_fallthru
        _
    $region40: #{seq2seq_transformer_forward.34} parent=5 // pred_fallthru
      _
  $region6: #{seq2seq_transformer_forward.34} parent=0 // loop_footer
    %s13 = sadd.s32 1, %s9
  $region7: #{seq2seq_transformer_forward.34} parent=0 // loop_footer_branch
    %8 = sbr.rel target = $region3
  $region8: #{seq2seq_transformer_forward.34} parent=0 // loop_exit
    _

// kernel: seq2seq_transformer_forward.35
$region0: #{seq2seq_transformer_forward.35}
  #allocation0 [shape = 'u32[]', space=smem, size = 0x4, offset = 0x4, fixed_abs, tag = 'smem constant byte address 0x4 - core index']
  #allocation1 [shape = 'u32[144,128]{1,0:T(1,128)}', space=vmem, size = 0x12000, scoped, tag = 'internal scratch']
  #allocation2 [shape = 'f32[20,32]{1,0:T(8,128)}', space=vmem, size = 0x3000, scoped, tag = 'scratch operand']
  %s0 = inlined_call_operand.vmem [shape: bf16[20,32], index: 0, kind: input, shape index: {}]
  %s1 = inlined_call_operand.vmem [shape: bf16[32,32], index: 1, kind: input, shape index: {}]
  %s2 = inlined_call_operand.vmem [shape: f32[1,32], index: 2, kind: input, shape index: {}]
  %s3 = inlined_call_operand.vmem [shape: f32[20,32], index: 3, kind: input, shape index: {}]
  %s4 = inlined_call_operand.vmem [shape: f32[1,32], index: 4, kind: input, shape index: {}]
  %s5 = inlined_call_operand.vmem [shape: f32[1,32], index: 5, kind: input, shape index: {}]
  %s6 = inlined_call_operand.vmem [shape: f32[20,32], index: 6, kind: output, shape index: {}]
  %s7 = sld [smem:[#allocation0]]
  $region42: #{seq2seq_transformer_forward.35} parent=0
    _
  %s9 = ssub.s32 1, %s7
  %s10 = scalar_select 0, %s9, %s7
  // Predicated region
  $region2: #{seq2seq_transformer_forward.35} parent=0 // pred_check
    _
  $region3: #{seq2seq_transformer_forward.35} parent=0 // pred_check_branch
    %12 = sbr.rel (0) target = $region5
  $region4: #{seq2seq_transformer_forward.35} parent=0 // pred_region
    _
  $region5: #{seq2seq_transformer_forward.35} parent=0 // pred_fallthru
    _
  // Predicated region
  $region6: #{seq2seq_transformer_forward.35} parent=0 // pred_check
    _
  $region7: #{seq2seq_transformer_forward.35} parent=0 // pred_check_branch
    %14 = sbr.rel (0) target = $region9
  $region8: #{seq2seq_transformer_forward.35} parent=0 // pred_region
    _
  $region9: #{seq2seq_transformer_forward.35} parent=0 // pred_fallthru
    _
  // Predicated region
  $region10: #{seq2seq_transformer_forward.35} parent=0 // pred_check
    _
  $region11: #{seq2seq_transformer_forward.35} parent=0 // pred_check_branch
    %16 = sbr.rel (0) target = $region13
  $region12: #{seq2seq_transformer_forward.35} parent=0 // pred_region
    _
  $region13: #{seq2seq_transformer_forward.35} parent=0 // pred_fallthru
    _
  // Predicated region
  $region14: #{seq2seq_transformer_forward.35} parent=0 // pred_check
    _
  $region15: #{seq2seq_transformer_forward.35} parent=0 // pred_check_branch
    %18 = sbr.rel (0) target = $region17
  $region16: #{seq2seq_transformer_forward.35} parent=0 // pred_region
    _
  $region17: #{seq2seq_transformer_forward.35} parent=0 // pred_fallthru
    _
  // Predicated region
  $region18: #{seq2seq_transformer_forward.35} parent=0 // pred_check
    _
  $region19: #{seq2seq_transformer_forward.35} parent=0 // pred_check_branch
    %20 = sbr.rel (0) target = $region21
  $region20: #{seq2seq_transformer_forward.35} parent=0 // pred_region
    _
  $region21: #{seq2seq_transformer_forward.35} parent=0 // pred_fallthru
    _
  // Predicated region
  $region22: #{seq2seq_transformer_forward.35} parent=0 // pred_check
    _
  $region23: #{seq2seq_transformer_forward.35} parent=0 // pred_check_branch
    %22 = sbr.rel (0) target = $region25
  $region24: #{seq2seq_transformer_forward.35} parent=0 // pred_region
    _
  $region25: #{seq2seq_transformer_forward.35} parent=0 // pred_fallthru
    _
  %p24 = scmp.eq.s32.totalorder 0, 0
  // Predicated region
  $region26: #{seq2seq_transformer_forward.35} parent=0 // pred_check
    %p25 = pneg %p24
  $region27: #{seq2seq_transformer_forward.35} parent=0 // pred_check_branch
    %27 = sbr.rel (%p25) target = $region29
  $region28: #{seq2seq_transformer_forward.35} parent=0 // pred_region
    %vm28 = vcmask 261120
    %29 = vst.msk [vmem:[#allocation2] sm:$0xff] %vm28, 0.0
    %30 = vst.msk [vmem:[#allocation2 + $0x8] sm:$0xff] %vm28, 0.0
    %vm31 = vcmask 257024
    %32 = vst.msk [vmem:[#allocation2 + $0x10] sm:$0xf] %vm31, 0.0
  $region29: #{seq2seq_transformer_forward.35} parent=0 // pred_fallthru
    _
  %v33 = vld [vmem:[#allocation2] sm:$0xff]
  %v34 = vld [vmem:[#allocation2 + $0x8] sm:$0xff]
  %v35 = vld [vmem:[#allocation2 + $0x10] sm:$0xf]
  %v36 = vld [vmem:[%s0] sm:$0xf]
  %v37 = vld [vmem:[%s0 + $0x4] sm:$0xf]
  %v38 = vld [vmem:[%s0 + $0x8] sm:$0x3]
  %v39 = vld [vmem:[%s1] sm:$0xf]
  %v40 = vld [vmem:[%s1 + $0x4] sm:$0xf]
  %v41 = vld [vmem:[%s1 + $0x8] sm:$0xf]
  %v42 = vld [vmem:[%s1 + $0xc] sm:$0xf]
  %v46 = vunpack.c.l.b16 %v36
  %v47 = vunpack.c.l.b16 %v37
  %v48 = vunpack.c.l.b16 %v38
  %v49 = vpack.c.b16 %v47, %v46
  %v50 = vpack.c.b16 %v48, %v48
  %v55 = vunpack.c.l.b16 %v39
  %v56 = vunpack.c.l.b16 %v40
  %v57 = vunpack.c.l.b16 %v41
  %v58 = vunpack.c.l.b16 %v42
  %v59 = vpack.c.b16 %v56, %v55
  %v60 = vpack.c.b16 %v58, %v57
  %vm63 = vcmask 261120
  %v65 = vsel %vm63, %v49, 0
  %v68 = vsel %vm63, %v50, 0
  %70 = vmatprep.subr.bf16.mxu0 0
  %71 = vmatpush1.bf16.msra.mxu0 %v59
  %72 = vmatprep.subr.bf16.mxu0 0
  %73 = vmatpush1.bf16.msra.mxu0 %v60
  %74 = vmatprep.subr.bf16.mxu0 0
  %75 = vmatpush1.bf16.msra.mxu0 0
  %76 = vmatprep.subr.bf16.mxu0 0
  %77 = vmatpush1.bf16.msra.mxu0 0
  %78 = vmatprep.subr.bf16.mxu0 0
  %79 = vmatpush1.bf16.msra.mxu0 0
  %80 = vmatprep.subr.bf16.mxu0 0
  %81 = vmatpush1.bf16.msra.mxu0 0
  %82 = vmatprep.subr.bf16.mxu0 0
  %83 = vmatpush1.bf16.msra.mxu0 0
  %84 = vmatprep.subr.bf16.mxu0 0
  %85 = vmatpush1.bf16.msra.mxu0 0
  %86 = vmatprep.subr.bf16.mxu0 0
  %87 = vmatpush1.bf16.msra.mxu0 0
  %88 = vmatprep.subr.bf16.mxu0 0
  %89 = vmatpush1.bf16.msra.mxu0 0
  %90 = vmatprep.subr.bf16.mxu0 0
  %91 = vmatpush1.bf16.msra.mxu0 0
  %92 = vmatprep.subr.bf16.mxu0 0
  %93 = vmatpush1.bf16.msra.mxu0 0
  %94 = vmatprep.subr.bf16.mxu0 0
  %95 = vmatpush1.bf16.msra.mxu0 0
  %96 = vmatprep.subr.bf16.mxu0 0
  %97 = vmatpush1.bf16.msra.mxu0 0
  %98 = vmatprep.subr.bf16.mxu0 0
  %99 = vmatpush1.bf16.msra.mxu0 0
  %100 = vmatprep.subr.bf16.mxu0 0
  %101 = vmatpush1.bf16.msra.mxu0 0
  %102 = vmatprep.mubr.bf16.mxu0 0
  %103 = vmatmul.mubr.bf16.gmra.mrb[0].mxu0 %v65
  %v104 = vpop.f32.mrb[0].mxu0
  %v105 = vadd.f32 0.0, %v104
  %v106 = vpop.f32.mrb[0].mxu0
  %v107 = vpop.f32.mrb[0].mxu0
  %v108 = vadd.f32 0.0, %v107
  %v109 = vpop.f32.mrb[0].mxu0
  %110 = vmatprep.mubr.bf16.mxu0 0
  %111 = vmatmul.mubr.bf16.gmra.mrb[0].mxu0 %v68
  %v112 = vpop.f32.mrb[0].mxu0
  %v113 = vadd.f32 0.0, %v112
  %v114 = vpop.f32.mrb[0].mxu0
  %v115 = vpop.f32.mrb[0].mxu0
  %v116 = vpop.f32.mrb[0].mxu0
  %117 = vdwg.mxu0
  %v118 = vadd.f32 %v33, %v105
  %v119 = vadd.f32 %v34, %v108
  %v120 = vadd.f32 %v35, %v113
  %121 = vst.msk [vmem:[#allocation2] sm:$0xff] %vm63, %v118
  %122 = vst.msk [vmem:[#allocation2 + $0x8] sm:$0xff] %vm63, %v119
  %vm123 = vcmask 257024
  %124 = vst.msk [vmem:[#allocation2 + $0x10] sm:$0xf] %vm123, %v120
  // Predicated region
  $region30: #{seq2seq_transformer_forward.35} parent=0 // pred_check
    %p125 = pneg %p24
  $region31: #{seq2seq_transformer_forward.35} parent=0 // pred_check_branch
    %127 = sbr.rel (%p125) target = $region33
  $region32: #{seq2seq_transformer_forward.35} parent=0 // pred_region
    %v128 = vld [vmem:[%s3] sm:$0xff]
    %v129 = vld [vmem:[%s3 + $0x8] sm:$0xff]
    %v130 = vld [vmem:[%s3 + $0x10] sm:$0xf]
    %v131 = vld [vmem:[#allocation2] sm:$0xff]
    %v132 = vld [vmem:[#allocation2 + $0x8] sm:$0xff]
    %v133 = vld [vmem:[#allocation2 + $0x10] sm:$0xf]
    %v134 = vadd.f32 %v128, %v131
    %v135 = vadd.f32 %v129, %v132
    %v136 = vadd.f32 %v130, %v133
    %v137 = vld [vmem:[%s2] sm:$0x1]
    %v139 = vlaneseq
    %v140 = vshrl.u32 %v139, 7
    %v141 = vsub.s32 0, %v140
    %v142 = vrot.slane %v137, %v141
    %v144 = vadd.f32 %v134, %v142
    %v145 = vadd.f32 %v135, %v142
    %v146 = vadd.f32 %v136, %v142
    %v147 = vsel %vm63, %v144, 0.0
    %148 = vadd.xlane.f32.xlu0 %v147
    %v149 = vpop.xlane.xlu0 %148
    %v150 = vsel %vm63, %v145, 0.0
    %151 = vadd.xlane.f32.xlu0 %v150
    %v152 = vpop.xlane.xlu0 %151
    %v153 = vsel %vm123, %v146, 0.0
    %154 = vadd.xlane.f32.xlu0 %v153
    %v155 = vpop.xlane.xlu0 %154
    %v156 = vrcp.pop 32.0
    %v157 = vmul.f32 %v149, %v156
    %v158 = vmul.f32 %v152, %v156
    %v159 = vmul.f32 %v155, %v156
    %v160 = vsub.f32 %v144, %v157
    %v161 = vsub.f32 %v145, %v158
    %v162 = vsub.f32 %v146, %v159
    %v163 = vmul.f32 %v160, %v160
    %v164 = vmul.f32 %v161, %v161
    %v165 = vmul.f32 %v162, %v162
    %v166 = vsel %vm63, %v163, 0.0
    %167 = vadd.xlane.f32.xlu0 %v166
    %v168 = vpop.xlane.xlu0 %167
    %v169 = vsel %vm63, %v164, 0.0
    %170 = vadd.xlane.f32.xlu0 %v169
    %v171 = vpop.xlane.xlu0 %170
    %v172 = vsel %vm123, %v165, 0.0
    %173 = vadd.xlane.f32.xlu0 %v172
    %v174 = vpop.xlane.xlu0 %173
    %v175 = vmul.f32 %v168, %v156
    %v176 = vmul.f32 %v171, %v156
    %v177 = vmul.f32 %v174, %v156
    %v178 = vadd.f32 %v175, 1e-05
    %v179 = vadd.f32 %v176, 1e-05
    %v180 = vadd.f32 %v177, 1e-05
    %v181 = vrsqrt.pop %v178
    %v182 = vrsqrt.pop %v179
    %v183 = vrsqrt.pop %v180
    %v184 = vmul.f32 %v160, %v181
    %v185 = vmul.f32 %v161, %v182
    %v186 = vmul.f32 %v162, %v183
    %v187 = vld [vmem:[%s4] sm:$0x1]
    %v189 = vlaneseq
    %v190 = vshrl.u32 %v189, 7
    %v191 = vsub.s32 0, %v190
    %v192 = vrot.slane %v187, %v191
    %v194 = vmul.f32 %v184, %v192
    %v195 = vmul.f32 %v185, %v192
    %v196 = vmul.f32 %v186, %v192
    %v197 = vld [vmem:[%s5] sm:$0x1]
    %v199 = vlaneseq
    %v200 = vshrl.u32 %v199, 7
    %v201 = vsub.s32 0, %v200
    %v202 = vrot.slane %v197, %v201
    %v204 = vadd.f32 %v194, %v202
    %v205 = vadd.f32 %v195, %v202
    %v206 = vadd.f32 %v196, %v202
    %207 = vst.msk [vmem:[%s6] sm:$0xff] %vm63, %v204
    %208 = vst.msk [vmem:[%s6 + $0x8] sm:$0xff] %vm63, %v205
    %209 = vst.msk [vmem:[%s6 + $0x10] sm:$0xf] %vm123, %v206
  $region33: #{seq2seq_transformer_forward.35} parent=0 // pred_fallthru
    _
  // Predicated region
  $region34: #{seq2seq_transformer_forward.35} parent=0 // pred_check
    _
  $region35: #{seq2seq_transformer_forward.35} parent=0 // pred_check_branch
    %211 = sbr.rel (0) target = $region37
  $region36: #{seq2seq_transformer_forward.35} parent=0 // pred_region
    _
  $region37: #{seq2seq_transformer_forward.35} parent=0 // pred_fallthru
    _
  // Predicated region
  $region38: #{seq2seq_transformer_forward.35} parent=0 // pred_check
    _
  $region39: #{seq2seq_transformer_forward.35} parent=0 // pred_check_branch
    %213 = sbr.rel (0) target = $region41
  $region40: #{seq2seq_transformer_forward.35} parent=0 // pred_region
    _
  $region41: #{seq2seq_transformer_forward.35} parent=0 // pred_fallthru
    _

// kernel: seq2seq_transformer_forward.36
$region0: #{seq2seq_transformer_forward.36}
  #allocation0 [shape = 'u32[]', space=smem, size = 0x4, offset = 0x4, fixed_abs, tag = 'smem constant byte address 0x4 - core index']
  #allocation1 [shape = 'u32[144,128]{1,0:T(1,128)}', space=vmem, size = 0x12000, scoped, tag = 'internal scratch']
  #allocation2 [shape = 'f32[20,32]{1,0:T(8,128)}', space=vmem, size = 0x3000, scoped, tag = 'scratch operand']
  %s0 = inlined_call_operand.vmem [shape: f32[20,32], index: 0, kind: input, shape index: {}]
  %s1 = inlined_call_operand.vmem [shape: bf16[32,32], index: 1, kind: input, shape index: {}]
  %s2 = inlined_call_operand.vmem [shape: f32[1,32], index: 2, kind: input, shape index: {}]
  %s3 = inlined_call_operand.vmem [shape: bf16[20,32], index: 3, kind: output, shape index: {}]
  %s4 = sld [smem:[#allocation0]]
  $region30: #{seq2seq_transformer_forward.36} parent=0
    _
  %s6 = ssub.s32 1, %s4
  %s7 = scalar_select 0, %s6, %s4
  // Predicated region
  $region2: #{seq2seq_transformer_forward.36} parent=0 // pred_check
    _
  $region3: #{seq2seq_transformer_forward.36} parent=0 // pred_check_branch
    %9 = sbr.rel (0) target = $region5
  $region4: #{seq2seq_transformer_forward.36} parent=0 // pred_region
    _
  $region5: #{seq2seq_transformer_forward.36} parent=0 // pred_fallthru
    _
  // Predicated region
  $region6: #{seq2seq_transformer_forward.36} parent=0 // pred_check
    _
  $region7: #{seq2seq_transformer_forward.36} parent=0 // pred_check_branch
    %11 = sbr.rel (0) target = $region9
  $region8: #{seq2seq_transformer_forward.36} parent=0 // pred_region
    _
  $region9: #{seq2seq_transformer_forward.36} parent=0 // pred_fallthru
    _
  // Predicated region
  $region10: #{seq2seq_transformer_forward.36} parent=0 // pred_check
    _
  $region11: #{seq2seq_transformer_forward.36} parent=0 // pred_check_branch
    %13 = sbr.rel (0) target = $region13
  $region12: #{seq2seq_transformer_forward.36} parent=0 // pred_region
    _
  $region13: #{seq2seq_transformer_forward.36} parent=0 // pred_fallthru
    _
  %p15 = scmp.eq.s32.totalorder 0, 0
  // Predicated region
  $region14: #{seq2seq_transformer_forward.36} parent=0 // pred_check
    %p16 = pneg %p15
  $region15: #{seq2seq_transformer_forward.36} parent=0 // pred_check_branch
    %18 = sbr.rel (%p16) target = $region17
  $region16: #{seq2seq_transformer_forward.36} parent=0 // pred_region
    %vm19 = vcmask 261120
    %20 = vst.msk [vmem:[#allocation2] sm:$0xff] %vm19, 0.0
    %21 = vst.msk [vmem:[#allocation2 + $0x8] sm:$0xff] %vm19, 0.0
    %vm22 = vcmask 257024
    %23 = vst.msk [vmem:[#allocation2 + $0x10] sm:$0xf] %vm22, 0.0
  $region17: #{seq2seq_transformer_forward.36} parent=0 // pred_fallthru
    _
  %v24 = vld [vmem:[#allocation2] sm:$0xff]
  %v25 = vld [vmem:[#allocation2 + $0x8] sm:$0xff]
  %v26 = vld [vmem:[#allocation2 + $0x10] sm:$0xf]
  %v27 = vld [vmem:[%s0] sm:$0xff]
  %v28 = vld [vmem:[%s0 + $0x8] sm:$0xff]
  %v29 = vld [vmem:[%s0 + $0x10] sm:$0xf]
  %v30 = vpack.c.bf16 %v28, %v27
  %v31 = vpack.c.bf16 %v29, %v29
  %v32 = vld [vmem:[%s1] sm:$0xf]
  %v33 = vld [vmem:[%s1 + $0x4] sm:$0xf]
  %v34 = vld [vmem:[%s1 + $0x8] sm:$0xf]
  %v35 = vld [vmem:[%s1 + $0xc] sm:$0xf]
  %v40 = vunpack.c.l.b16 %v32
  %v41 = vunpack.c.l.b16 %v33
  %v42 = vunpack.c.l.b16 %v34
  %v43 = vunpack.c.l.b16 %v35
  %v44 = vpack.c.b16 %v41, %v40
  %v45 = vpack.c.b16 %v43, %v42
  %vm48 = vcmask 261120
  %v50 = vsel %vm48, %v30, 0
  %v53 = vsel %vm48, %v31, 0
  %55 = vmatprep.subr.bf16.mxu0 0
  %56 = vmatpush1.bf16.msra.mxu0 %v44
  %57 = vmatprep.subr.bf16.mxu0 0
  %58 = vmatpush1.bf16.msra.mxu0 %v45
  %59 = vmatprep.subr.bf16.mxu0 0
  %60 = vmatpush1.bf16.msra.mxu0 0
  %61 = vmatprep.subr.bf16.mxu0 0
  %62 = vmatpush1.bf16.msra.mxu0 0
  %63 = vmatprep.subr.bf16.mxu0 0
  %64 = vmatpush1.bf16.msra.mxu0 0
  %65 = vmatprep.subr.bf16.mxu0 0
  %66 = vmatpush1.bf16.msra.mxu0 0
  %67 = vmatprep.subr.bf16.mxu0 0
  %68 = vmatpush1.bf16.msra.mxu0 0
  %69 = vmatprep.subr.bf16.mxu0 0
  %70 = vmatpush1.bf16.msra.mxu0 0
  %71 = vmatprep.subr.bf16.mxu0 0
  %72 = vmatpush1.bf16.msra.mxu0 0
  %73 = vmatprep.subr.bf16.mxu0 0
  %74 = vmatpush1.bf16.msra.mxu0 0
  %75 = vmatprep.subr.bf16.mxu0 0
  %76 = vmatpush1.bf16.msra.mxu0 0
  %77 = vmatprep.subr.bf16.mxu0 0
  %78 = vmatpush1.bf16.msra.mxu0 0
  %79 = vmatprep.subr.bf16.mxu0 0
  %80 = vmatpush1.bf16.msra.mxu0 0
  %81 = vmatprep.subr.bf16.mxu0 0
  %82 = vmatpush1.bf16.msra.mxu0 0
  %83 = vmatprep.subr.bf16.mxu0 0
  %84 = vmatpush1.bf16.msra.mxu0 0
  %85 = vmatprep.subr.bf16.mxu0 0
  %86 = vmatpush1.bf16.msra.mxu0 0
  %87 = vmatprep.mubr.bf16.mxu0 0
  %88 = vmatmul.mubr.bf16.gmra.mrb[0].mxu0 %v50
  %v89 = vpop.f32.mrb[0].mxu0
  %v90 = vadd.f32 0.0, %v89
  %v91 = vpop.f32.mrb[0].mxu0
  %v92 = vpop.f32.mrb[0].mxu0
  %v93 = vadd.f32 0.0, %v92
  %v94 = vpop.f32.mrb[0].mxu0
  %95 = vmatprep.mubr.bf16.mxu0 0
  %96 = vmatmul.mubr.bf16.gmra.mrb[0].mxu0 %v53
  %v97 = vpop.f32.mrb[0].mxu0
  %v98 = vadd.f32 0.0, %v97
  %v99 = vpop.f32.mrb[0].mxu0
  %v100 = vpop.f32.mrb[0].mxu0
  %v101 = vpop.f32.mrb[0].mxu0
  %102 = vdwg.mxu0
  %v103 = vadd.f32 %v24, %v90
  %v104 = vadd.f32 %v25, %v93
  %v105 = vadd.f32 %v26, %v98
  %106 = vst.msk [vmem:[#allocation2] sm:$0xff] %vm48, %v103
  %107 = vst.msk [vmem:[#allocation2 + $0x8] sm:$0xff] %vm48, %v104
  %vm108 = vcmask 257024
  %109 = vst.msk [vmem:[#allocation2 + $0x10] sm:$0xf] %vm108, %v105
  // Predicated region
  $region18: #{seq2seq_transformer_forward.36} parent=0 // pred_check
    %p110 = pneg %p15
  $region19: #{seq2seq_transformer_forward.36} parent=0 // pred_check_branch
    %112 = sbr.rel (%p110) target = $region21
  $region20: #{seq2seq_transformer_forward.36} parent=0 // pred_region
    %v113 = vld [vmem:[#allocation2] sm:$0xff]
    %v114 = vld [vmem:[#allocation2 + $0x8] sm:$0xff]
    %v115 = vld [vmem:[#allocation2 + $0x10] sm:$0xf]
    %v116 = vld [vmem:[%s2] sm:$0x1]
    %v118 = vlaneseq
    %v119 = vshrl.u32 %v118, 7
    %v120 = vsub.s32 0, %v119
    %v121 = vrot.slane %v116, %v120
    %v123 = vadd.f32 %v113, %v121
    %v124 = vadd.f32 %v114, %v121
    %v125 = vadd.f32 %v115, %v121
    %v126 = vpack.c.bf16 %v124, %v123
    %v127 = vpack.c.bf16 %v125, %v125
    %v130 = vunpack.c.l.b16 %v126
    %v131 = vunpack.c.h.b16 %v126
    %v132 = vunpack.c.l.b16 %v127
    %v133 = vpack.c.b16 %v130, %v130
    %v134 = vpack.c.b16 %v131, %v131
    %v135 = vpack.c.b16 %v132, %v132
    %139 = vst.msk [vmem:[%s3] sm:$0xf] %vm108, %v133
    %140 = vst.msk [vmem:[%s3 + $0x4] sm:$0xf] %vm108, %v134
    %vm141 = vcmask 254976
    %142 = vst.msk [vmem:[%s3 + $0x8] sm:$0x3] %vm141, %v135
  $region21: #{seq2seq_transformer_forward.36} parent=0 // pred_fallthru
    _
  // Predicated region
  $region22: #{seq2seq_transformer_forward.36} parent=0 // pred_check
    _
  $region23: #{seq2seq_transformer_forward.36} parent=0 // pred_check_branch
    %144 = sbr.rel (0) target = $region25
  $region24: #{seq2seq_transformer_forward.36} parent=0 // pred_region
    _
  $region25: #{seq2seq_transformer_forward.36} parent=0 // pred_fallthru
    _
  // Predicated region
  $region26: #{seq2seq_transformer_forward.36} parent=0 // pred_check
    _
  $region27: #{seq2seq_transformer_forward.36} parent=0 // pred_check_branch
    %146 = sbr.rel (0) target = $region29
  $region28: #{seq2seq_transformer_forward.36} parent=0 // pred_region
    _
  $region29: #{seq2seq_transformer_forward.36} parent=0 // pred_fallthru
    _

// kernel: seq2seq_transformer_forward.40
$region0: #{seq2seq_transformer_forward.40}
  #allocation0 [shape = 'u32[]', space=smem, size = 0x4, offset = 0x4, fixed_abs, tag = 'smem constant byte address 0x4 - core index']
  #allocation1 [shape = 'u32[144,128]{1,0:T(1,128)}', space=vmem, size = 0x12000, scoped, tag = 'internal scratch']
  %s0 = inlined_call_operand.vmem [shape: f32[20,32], index: 0, kind: input, shape index: {}]
  %s1 = inlined_call_operand.vmem [shape: bf16[32,64], index: 1, kind: input, shape index: {}]
  %s2 = inlined_call_operand.vmem [shape: f32[1,64], index: 2, kind: input, shape index: {}]
  %s3 = inlined_call_operand.vmem [shape: bf16[64,32], index: 3, kind: input, shape index: {}]
  %s4 = inlined_call_operand.vmem [shape: f32[1,32], index: 4, kind: input, shape index: {}]
  %s5 = inlined_call_operand.vmem [shape: f32[1,32], index: 5, kind: input, shape index: {}]
  %s6 = inlined_call_operand.vmem [shape: f32[1,32], index: 6, kind: input, shape index: {}]
  %s7 = inlined_call_operand.vmem [shape: f32[20,32], index: 7, kind: output, shape index: {}]
  %s8 = sld [smem:[#allocation0]]
  $region38: #{seq2seq_transformer_forward.40} parent=0
    _
  %s10 = ssub.s32 1, %s8
  %s11 = scalar_select 0, %s10, %s8
  // Predicated region
  $region2: #{seq2seq_transformer_forward.40} parent=0 // pred_check
    _
  $region3: #{seq2seq_transformer_forward.40} parent=0 // pred_check_branch
    %13 = sbr.rel (0) target = $region5
  $region4: #{seq2seq_transformer_forward.40} parent=0 // pred_region
    _
  $region5: #{seq2seq_transformer_forward.40} parent=0 // pred_fallthru
    _
  // Predicated region
  $region6: #{seq2seq_transformer_forward.40} parent=0 // pred_check
    _
  $region7: #{seq2seq_transformer_forward.40} parent=0 // pred_check_branch
    %15 = sbr.rel (0) target = $region9
  $region8: #{seq2seq_transformer_forward.40} parent=0 // pred_region
    _
  $region9: #{seq2seq_transformer_forward.40} parent=0 // pred_fallthru
    _
  // Predicated region
  $region10: #{seq2seq_transformer_forward.40} parent=0 // pred_check
    _
  $region11: #{seq2seq_transformer_forward.40} parent=0 // pred_check_branch
    %17 = sbr.rel (0) target = $region13
  $region12: #{seq2seq_transformer_forward.40} parent=0 // pred_region
    _
  $region13: #{seq2seq_transformer_forward.40} parent=0 // pred_fallthru
    _
  // Predicated region
  $region14: #{seq2seq_transformer_forward.40} parent=0 // pred_check
    _
  $region15: #{seq2seq_transformer_forward.40} parent=0 // pred_check_branch
    %19 = sbr.rel (0) target = $region17
  $region16: #{seq2seq_transformer_forward.40} parent=0 // pred_region
    _
  $region17: #{seq2seq_transformer_forward.40} parent=0 // pred_fallthru
    _
  // Predicated region
  $region18: #{seq2seq_transformer_forward.40} parent=0 // pred_check
    _
  $region19: #{seq2seq_transformer_forward.40} parent=0 // pred_check_branch
    %21 = sbr.rel (0) target = $region21
  $region20: #{seq2seq_transformer_forward.40} parent=0 // pred_region
    _
  $region21: #{seq2seq_transformer_forward.40} parent=0 // pred_fallthru
    _
  // Predicated region
  $region22: #{seq2seq_transformer_forward.40} parent=0 // pred_check
    _
  $region23: #{seq2seq_transformer_forward.40} parent=0 // pred_check_branch
    %23 = sbr.rel (0) target = $region25
  $region24: #{seq2seq_transformer_forward.40} parent=0 // pred_region
    _
  $region25: #{seq2seq_transformer_forward.40} parent=0 // pred_fallthru
    _
  // Predicated region
  $region26: #{seq2seq_transformer_forward.40} parent=0 // pred_check
    _
  $region27: #{seq2seq_transformer_forward.40} parent=0 // pred_check_branch
    %25 = sbr.rel (0) target = $region29
  $region28: #{seq2seq_transformer_forward.40} parent=0 // pred_region
    _
  $region29: #{seq2seq_transformer_forward.40} parent=0 // pred_fallthru
    _
  %v27 = vld [vmem:[%s0] sm:$0xff]
  %v28 = vld [vmem:[%s0 + $0x8] sm:$0xff]
  %v29 = vld [vmem:[%s0 + $0x10] sm:$0xf]
  %v30 = vpack.c.bf16 %v28, %v27
  %v31 = vpack.c.bf16 %v29, %v29
  %v32 = vld [vmem:[%s1] sm:$0xf]
  %v33 = vld [vmem:[%s1 + $0x4] sm:$0xf]
  %v34 = vld [vmem:[%s1 + $0x8] sm:$0xf]
  %v35 = vld [vmem:[%s1 + $0xc] sm:$0xf]
  %v36 = vld [vmem:[%s2] sm:$0x1]
  %v38 = vlaneseq
  %v39 = vshrl.u32 %v38, 7
  %v40 = vsub.s32 0, %v39
  %v41 = vrot.slane %v36, %v40
  %v47 = vunpack.c.l.b16 %v32
  %v48 = vunpack.c.l.b16 %v33
  %v49 = vunpack.c.l.b16 %v34
  %v50 = vunpack.c.l.b16 %v35
  %v51 = vpack.c.b16 %v48, %v47
  %v52 = vpack.c.b16 %v50, %v49
  %vm55 = vcmask 261120
  %v57 = vsel %vm55, %v30, 0
  %v60 = vsel %vm55, %v31, 0
  %62 = vmatprep.subr.bf16.mxu0 0
  %63 = vmatpush1.bf16.msra.mxu0 %v51
  %64 = vmatprep.subr.bf16.mxu0 0
  %65 = vmatpush1.bf16.msra.mxu0 %v52
  %66 = vmatprep.subr.bf16.mxu0 0
  %67 = vmatpush1.bf16.msra.mxu0 0
  %68 = vmatprep.subr.bf16.mxu0 0
  %69 = vmatpush1.bf16.msra.mxu0 0
  %70 = vmatprep.subr.bf16.mxu0 0
  %71 = vmatpush1.bf16.msra.mxu0 0
  %72 = vmatprep.subr.bf16.mxu0 0
  %73 = vmatpush1.bf16.msra.mxu0 0
  %74 = vmatprep.subr.bf16.mxu0 0
  %75 = vmatpush1.bf16.msra.mxu0 0
  %76 = vmatprep.subr.bf16.mxu0 0
  %77 = vmatpush1.bf16.msra.mxu0 0
  %78 = vmatprep.subr.bf16.mxu0 0
  %79 = vmatpush1.bf16.msra.mxu0 0
  %80 = vmatprep.subr.bf16.mxu0 0
  %81 = vmatpush1.bf16.msra.mxu0 0
  %82 = vmatprep.subr.bf16.mxu0 0
  %83 = vmatpush1.bf16.msra.mxu0 0
  %84 = vmatprep.subr.bf16.mxu0 0
  %85 = vmatpush1.bf16.msra.mxu0 0
  %86 = vmatprep.subr.bf16.mxu0 0
  %87 = vmatpush1.bf16.msra.mxu0 0
  %88 = vmatprep.subr.bf16.mxu0 0
  %89 = vmatpush1.bf16.msra.mxu0 0
  %90 = vmatprep.subr.bf16.mxu0 0
  %91 = vmatpush1.bf16.msra.mxu0 0
  %92 = vmatprep.subr.bf16.mxu0 0
  %93 = vmatpush1.bf16.msra.mxu0 0
  %94 = vmatprep.mubr.bf16.mxu0 0
  %95 = vmatmul.mubr.bf16.gmra.mrb[0].mxu0 %v57
  %v96 = vpop.f32.mrb[0].mxu0
  %v97 = vadd.f32 %v41, %v96
  %v98 = vpop.f32.mrb[0].mxu0
  %v99 = vpop.f32.mrb[0].mxu0
  %v100 = vadd.f32 %v41, %v99
  %v101 = vpop.f32.mrb[0].mxu0
  %102 = vmatprep.mubr.bf16.mxu0 0
  %103 = vmatmul.mubr.bf16.gmra.mrb[0].mxu0 %v60
  %v104 = vpop.f32.mrb[0].mxu0
  %v105 = vadd.f32 %v41, %v104
  %v106 = vpop.f32.mrb[0].mxu0
  %v107 = vpop.f32.mrb[0].mxu0
  %v108 = vpop.f32.mrb[0].mxu0
  %109 = vdwg.mxu0
  %v110 = vmax.f32 %v97, 0.0
  %v111 = vmax.f32 %v100, 0.0
  %v112 = vmax.f32 %v105, 0.0
  %v113 = vpack.c.bf16 %v111, %v110
  %v114 = vpack.c.bf16 %v112, %v112
  %v115 = vld [vmem:[%s3] sm:$0xf]
  %v116 = vld [vmem:[%s3 + $0x4] sm:$0xf]
  %v117 = vld [vmem:[%s3 + $0x8] sm:$0xf]
  %v118 = vld [vmem:[%s3 + $0xc] sm:$0xf]
  %v119 = vld [vmem:[%s3 + $0x10] sm:$0xf]
  %v120 = vld [vmem:[%s3 + $0x14] sm:$0xf]
  %v121 = vld [vmem:[%s3 + $0x18] sm:$0xf]
  %v122 = vld [vmem:[%s3 + $0x1c] sm:$0xf]
  %v123 = vld [vmem:[%s4] sm:$0x1]
  %v125 = vlaneseq
  %v126 = vshrl.u32 %v125, 7
  %v127 = vsub.s32 0, %v126
  %v128 = vrot.slane %v123, %v127
  %v138 = vunpack.c.l.b16 %v115
  %v139 = vunpack.c.l.b16 %v116
  %v140 = vunpack.c.l.b16 %v117
  %v141 = vunpack.c.l.b16 %v118
  %v142 = vunpack.c.l.b16 %v119
  %v143 = vunpack.c.l.b16 %v120
  %v144 = vunpack.c.l.b16 %v121
  %v145 = vunpack.c.l.b16 %v122
  %v146 = vpack.c.b16 %v139, %v138
  %v147 = vpack.c.b16 %v141, %v140
  %v148 = vpack.c.b16 %v143, %v142
  %v149 = vpack.c.b16 %v145, %v144
  %vm154 = vcmask 523264
  %v156 = vsel %vm154, %v113, 0
  %v159 = vsel %vm154, %v114, 0
  %161 = vmatprep.subr.bf16.mxu0 0
  %162 = vmatpush1.bf16.msra.mxu0 %v146
  %163 = vmatprep.subr.bf16.mxu0 0
  %164 = vmatpush1.bf16.msra.mxu0 %v147
  %165 = vmatprep.subr.bf16.mxu0 0
  %166 = vmatpush1.bf16.msra.mxu0 %v148
  %167 = vmatprep.subr.bf16.mxu0 0
  %168 = vmatpush1.bf16.msra.mxu0 %v149
  %169 = vmatprep.subr.bf16.mxu0 0
  %170 = vmatpush1.bf16.msra.mxu0 0
  %171 = vmatprep.subr.bf16.mxu0 0
  %172 = vmatpush1.bf16.msra.mxu0 0
  %173 = vmatprep.subr.bf16.mxu0 0
  %174 = vmatpush1.bf16.msra.mxu0 0
  %175 = vmatprep.subr.bf16.mxu0 0
  %176 = vmatpush1.bf16.msra.mxu0 0
  %177 = vmatprep.subr.bf16.mxu0 0
  %178 = vmatpush1.bf16.msra.mxu0 0
  %179 = vmatprep.subr.bf16.mxu0 0
  %180 = vmatpush1.bf16.msra.mxu0 0
  %181 = vmatprep.subr.bf16.mxu0 0
  %182 = vmatpush1.bf16.msra.mxu0 0
  %183 = vmatprep.subr.bf16.mxu0 0
  %184 = vmatpush1.bf16.msra.mxu0 0
  %185 = vmatprep.subr.bf16.mxu0 0
  %186 = vmatpush1.bf16.msra.mxu0 0
  %187 = vmatprep.subr.bf16.mxu0 0
  %188 = vmatpush1.bf16.msra.mxu0 0
  %189 = vmatprep.subr.bf16.mxu0 0
  %190 = vmatpush1.bf16.msra.mxu0 0
  %191 = vmatprep.subr.bf16.mxu0 0
  %192 = vmatpush1.bf16.msra.mxu0 0
  %193 = vmatprep.mubr.bf16.mxu0 0
  %194 = vmatmul.mubr.bf16.gmra.mrb[0].mxu0 %v156
  %v195 = vpop.f32.mrb[0].mxu0
  %v196 = vadd.f32 %v128, %v195
  %v197 = vpop.f32.mrb[0].mxu0
  %v198 = vpop.f32.mrb[0].mxu0
  %v199 = vadd.f32 %v128, %v198
  %v200 = vpop.f32.mrb[0].mxu0
  %201 = vmatprep.mubr.bf16.mxu0 0
  %202 = vmatmul.mubr.bf16.gmra.mrb[0].mxu0 %v159
  %v203 = vpop.f32.mrb[0].mxu0
  %v204 = vadd.f32 %v128, %v203
  %v205 = vpop.f32.mrb[0].mxu0
  %v206 = vpop.f32.mrb[0].mxu0
  %v207 = vpop.f32.mrb[0].mxu0
  %208 = vdwg.mxu0
  %v209 = vadd.f32 %v27, %v196
  %v210 = vadd.f32 %v28, %v199
  %v211 = vadd.f32 %v29, %v204
  %v212 = vsel %vm55, %v209, 0.0
  %213 = vadd.xlane.f32.xlu0 %v212
  %v214 = vpop.xlane.xlu0 %213
  %v215 = vsel %vm55, %v210, 0.0
  %216 = vadd.xlane.f32.xlu0 %v215
  %v217 = vpop.xlane.xlu0 %216
  %vm218 = vcmask 257024
  %v219 = vsel %vm218, %v211, 0.0
  %220 = vadd.xlane.f32.xlu0 %v219
  %v221 = vpop.xlane.xlu0 %220
  %v222 = vrcp.pop 32.0
  %v223 = vmul.f32 %v214, %v222
  %v224 = vmul.f32 %v217, %v222
  %v225 = vmul.f32 %v221, %v222
  %v226 = vsub.f32 %v209, %v223
  %v227 = vsub.f32 %v210, %v224
  %v228 = vsub.f32 %v211, %v225
  %v229 = vmul.f32 %v226, %v226
  %v230 = vmul.f32 %v227, %v227
  %v231 = vmul.f32 %v228, %v228
  %v232 = vsel %vm55, %v229, 0.0
  %233 = vadd.xlane.f32.xlu0 %v232
  %v234 = vpop.xlane.xlu0 %233
  %v235 = vsel %vm55, %v230, 0.0
  %236 = vadd.xlane.f32.xlu0 %v235
  %v237 = vpop.xlane.xlu0 %236
  %v238 = vsel %vm218, %v231, 0.0
  %239 = vadd.xlane.f32.xlu0 %v238
  %v240 = vpop.xlane.xlu0 %239
  %v241 = vmul.f32 %v234, %v222
  %v242 = vmul.f32 %v237, %v222
  %v243 = vmul.f32 %v240, %v222
  %v244 = vadd.f32 %v241, 1e-05
  %v245 = vadd.f32 %v242, 1e-05
  %v246 = vadd.f32 %v243, 1e-05
  %v247 = vrsqrt.pop %v244
  %v248 = vrsqrt.pop %v245
  %v249 = vrsqrt.pop %v246
  %v250 = vmul.f32 %v226, %v247
  %v251 = vmul.f32 %v227, %v248
  %v252 = vmul.f32 %v228, %v249
  %v253 = vld [vmem:[%s5] sm:$0x1]
  %v255 = vlaneseq
  %v256 = vshrl.u32 %v255, 7
  %v257 = vsub.s32 0, %v256
  %v258 = vrot.slane %v253, %v257
  %v260 = vmul.f32 %v250, %v258
  %v261 = vmul.f32 %v251, %v258
  %v262 = vmul.f32 %v252, %v258
  %v263 = vld [vmem:[%s6] sm:$0x1]
  %v265 = vlaneseq
  %v266 = vshrl.u32 %v265, 7
  %v267 = vsub.s32 0, %v266
  %v268 = vrot.slane %v263, %v267
  %v270 = vadd.f32 %v260, %v268
  %v271 = vadd.f32 %v261, %v268
  %v272 = vadd.f32 %v262, %v268
  %273 = vst.msk [vmem:[%s7] sm:$0xff] %vm55, %v270
  %274 = vst.msk [vmem:[%s7 + $0x8] sm:$0xff] %vm55, %v271
  %275 = vst.msk [vmem:[%s7 + $0x10] sm:$0xf] %vm218, %v272
  // Predicated region
  $region30: #{seq2seq_transformer_forward.40} parent=0 // pred_check
    _
  $region31: #{seq2seq_transformer_forward.40} parent=0 // pred_check_branch
    %277 = sbr.rel (0) target = $region33
  $region32: #{seq2seq_transformer_forward.40} parent=0 // pred_region
    _
  $region33: #{seq2seq_transformer_forward.40} parent=0 // pred_fallthru
    _
  // Predicated region
  $region34: #{seq2seq_transformer_forward.40} parent=0 // pred_check
    _
  $region35: #{seq2seq_transformer_forward.40} parent=0 // pred_check_branch
    %279 = sbr.rel (0) target = $region37
  $region36: #{seq2seq_transformer_forward.40} parent=0 // pred_region
    _
  $region37: #{seq2seq_transformer_forward.40} parent=0 // pred_fallthru
    _

// kernel: seq2seq_transformer_forward.38
$region0: #{seq2seq_transformer_forward.38}
  #allocation0 [shape = 'u32[]', space=smem, size = 0x4, offset = 0x4, fixed_abs, tag = 'smem constant byte address 0x4 - core index']
  #allocation1 [shape = 'u32[144,128]{1,0:T(1,128)}', space=vmem, size = 0x12000, scoped, tag = 'internal scratch']
  %s0 = inlined_call_operand.vmem [shape: bf16[2,10,32], index: 0, kind: input, shape index: {}]
  %s1 = inlined_call_operand.vmem [shape: bf16[2,8,64], index: 1, kind: input, shape index: {}]
  %s2 = inlined_call_operand.vmem [shape: f32[10,8], index: 2, kind: input, shape index: {}]
  %s3 = inlined_call_operand.vmem [shape: f32[2,1,8], index: 3, kind: input, shape index: {}]
  %s4 = inlined_call_operand.vmem [shape: bf16[2,10,32], index: 4, kind: output, shape index: {}]
  %s5 = sld [smem:[#allocation0]]
  $region49: #{seq2seq_transformer_forward.38} parent=0
    _
  %s7 = ssub.s32 1, %s5
  %s8 = scalar_select 0, %s7, %s5
  loop: start=0, step=1, limit=4
  $region2: #{seq2seq_transformer_forward.38} parent=0 // loop_pre_header
    _
  $region3: #{seq2seq_transformer_forward.38} parent=0 // loop_header
    %s10 = sphi 0, %s14
    %p11 = scmp.ge.s32.totalorder %s10, 4
    %s20 = sphi 0, %s22
    %s23 = sphi 0, %s20
    %s24 = sphi 0, %s23
    %s40 = sphi 0, %s24
    %s46 = sphi 0, %s48
    %s49 = sphi 0, %s46
    %s50 = sphi 0, %s49
    %s66 = sphi 0, %s50
    %s70 = sphi 0, %s70
    %s72 = sphi 0, %s70
    %s73 = sphi 0, %s72
    %s87 = sphi 0, %s73
    %s93 = sphi 0, %s95
    %s96 = sphi 0, %s93
    %s97 = sphi 0, %s96
    %s113 = sphi 0, %s97
    %s119 = sphi 0, %s121
    %s122 = sphi 0, %s119
    %s123 = sphi 0, %s122
    %s139 = sphi 0, %s123
  $region4: #{seq2seq_transformer_forward.38} parent=0 // loop_header_branch
    %13 = sbr.rel (%p11) target = $region8
  $region5: #{seq2seq_transformer_forward.38} parent=0 // loop_body
    %s15 = ssub.s32 %s10, 1
    %s16 = ssub.s32 %s10, 2
    %s17 = sadd.s32 %s10, 1
    %s18 = ssub.s32 %s10, %s17
    %p19 = scmp.eq.s32.totalorder %s18, 0
    %s21 = sadd.s32 %s20, 1
    %s22 = scalar_select %p19, %s20, %s21
    %p25 = pneg %p19
    %p26 = scmp.eq.s32.totalorder %s10, 1
    %p27 = por %p25, %p26
    %p28 = scmp.ne.s32.totalorder %s20, %s23
    %p29 = scmp.eq.s32.totalorder %s10, 0
    %p30 = por %p28, %p29
    %p31 = scmp.ne.s32.totalorder %s20, %s23
    %p32 = scmp.eq.s32.totalorder %s15, 1
    %p33 = por %p31, %p32
    %p34 = scmp.ne.s32.totalorder %s23, %s24
    %p35 = scmp.eq.s32.totalorder %s15, 0
    %p36 = por %p34, %p35
    %p37 = scmp.ne.s32.totalorder %s23, %s24
    %p38 = scmp.eq.s32.totalorder %s16, 1
    %p39 = por %p37, %p38
    %p41 = scmp.ne.s32.totalorder %s24, %s40
    %p42 = scmp.eq.s32.totalorder %s16, 0
    %p43 = por %p41, %p42
    %s44 = ssub.s32 %s10, %s17
    %p45 = scmp.eq.s32.totalorder %s44, 0
    %s47 = sadd.s32 %s46, 1
    %s48 = scalar_select %p45, %s46, %s47
    %p51 = pneg %p45
    %p52 = scmp.eq.s32.totalorder %s10, 1
    %p53 = por %p51, %p52
    %p54 = scmp.ne.s32.totalorder %s46, %s49
    %p55 = scmp.eq.s32.totalorder %s10, 0
    %p56 = por %p54, %p55
    %p57 = scmp.ne.s32.totalorder %s46, %s49
    %p58 = scmp.eq.s32.totalorder %s15, 1
    %p59 = por %p57, %p58
    %p60 = scmp.ne.s32.totalorder %s49, %s50
    %p61 = scmp.eq.s32.totalorder %s15, 0
    %p62 = por %p60, %p61
    %p63 = scmp.ne.s32.totalorder %s49, %s50
    %p64 = scmp.eq.s32.totalorder %s16, 1
    %p65 = por %p63, %p64
    %p67 = scmp.ne.s32.totalorder %s50, %s66
    %p68 = scmp.eq.s32.totalorder %s16, 0
    %p69 = por %p67, %p68
    %s71 = sadd.s32 %s70, 1
    %p74 = scmp.eq.s32.totalorder %s10, 1
    %p75 = scmp.ne.s32.totalorder %s70, %s72
    %p76 = scmp.eq.s32.totalorder %s10, 0
    %p77 = por %p75, %p76
    %p78 = scmp.ne.s32.totalorder %s70, %s72
    %p79 = scmp.eq.s32.totalorder %s15, 1
    %p80 = por %p78, %p79
    %p81 = scmp.ne.s32.totalorder %s72, %s73
    %p82 = scmp.eq.s32.totalorder %s15, 0
    %p83 = por %p81, %p82
    %p84 = scmp.ne.s32.totalorder %s72, %s73
    %p85 = scmp.eq.s32.totalorder %s16, 1
    %p86 = por %p84, %p85
    %p88 = scmp.ne.s32.totalorder %s73, %s87
    %p89 = scmp.eq.s32.totalorder %s16, 0
    %p90 = por %p88, %p89
    %s91 = ssub.s32 %s10, %s17
    %p92 = scmp.eq.s32.totalorder %s91, 0
    %s94 = sadd.s32 %s93, 1
    %s95 = scalar_select %p92, %s93, %s94
    %p98 = pneg %p92
    %p99 = scmp.eq.s32.totalorder %s10, 1
    %p100 = por %p98, %p99
    %p101 = scmp.ne.s32.totalorder %s93, %s96
    %p102 = scmp.eq.s32.totalorder %s10, 0
    %p103 = por %p101, %p102
    %p104 = scmp.ne.s32.totalorder %s93, %s96
    %p105 = scmp.eq.s32.totalorder %s15, 1
    %p106 = por %p104, %p105
    %p107 = scmp.ne.s32.totalorder %s96, %s97
    %p108 = scmp.eq.s32.totalorder %s15, 0
    %p109 = por %p107, %p108
    %p110 = scmp.ne.s32.totalorder %s96, %s97
    %p111 = scmp.eq.s32.totalorder %s16, 1
    %p112 = por %p110, %p111
    %p114 = scmp.ne.s32.totalorder %s97, %s113
    %p115 = scmp.eq.s32.totalorder %s16, 0
    %p116 = por %p114, %p115
    %s117 = ssub.s32 %s10, %s17
    %p118 = scmp.eq.s32.totalorder %s117, 0
    %s120 = sadd.s32 %s119, 1
    %s121 = scalar_select %p118, %s119, %s120
    %p124 = pneg %p118
    %p125 = scmp.eq.s32.totalorder %s10, 1
    %p126 = por %p124, %p125
    %p127 = scmp.ne.s32.totalorder %s119, %s122
    %p128 = scmp.eq.s32.totalorder %s10, 0
    %p129 = por %p127, %p128
    %p130 = scmp.ne.s32.totalorder %s119, %s122
    %p131 = scmp.eq.s32.totalorder %s15, 1
    %p132 = por %p130, %p131
    %p133 = scmp.ne.s32.totalorder %s122, %s123
    %p134 = scmp.eq.s32.totalorder %s15, 0
    %p135 = por %p133, %p134
    %p136 = scmp.ne.s32.totalorder %s122, %s123
    %p137 = scmp.eq.s32.totalorder %s16, 1
    %p138 = por %p136, %p137
    %p140 = scmp.ne.s32.totalorder %s123, %s139
    %p141 = scmp.eq.s32.totalorder %s16, 0
    %p142 = por %p140, %p141
    %p143 = scmp.le.s32.totalorder 1, %s10
    %p144 = scmp.lt.s32.totalorder %s10, 3
    %p145 = pnand %p143, %p144
    %p146 = pneg %p145
    // Predicated region
    $region9: #{seq2seq_transformer_forward.38} parent=5 // pred_check
      _
    $region10: #{seq2seq_transformer_forward.38} parent=5 // pred_check_branch
      %148 = sbr.rel (%p145) target = $region12
    $region11: #{seq2seq_transformer_forward.38} parent=5 // pred_region
      %s149 = ssub.s32 %s10, 1
      // Predicated region
      $region13: #{seq2seq_transformer_forward.38} parent=11 // pred_check
        %p150 = pneg %p83
      $region14: #{seq2seq_transformer_forward.38} parent=11 // pred_check_branch
        %152 = sbr.rel (%p150) target = $region16
      $region15: #{seq2seq_transformer_forward.38} parent=11 // pred_region
        _
      $region16: #{seq2seq_transformer_forward.38} parent=11 // pred_fallthru
        _
    $region12: #{seq2seq_transformer_forward.38} parent=5 // pred_fallthru
      _
    %p153 = scmp.lt.s32.totalorder %s10, 2
    // Predicated region
    $region17: #{seq2seq_transformer_forward.38} parent=5 // pred_check
      %p154 = pneg %p153
    $region18: #{seq2seq_transformer_forward.38} parent=5 // pred_check_branch
      %156 = sbr.rel (%p154) target = $region20
    $region19: #{seq2seq_transformer_forward.38} parent=5 // pred_region
      // Predicated region
      $region21: #{seq2seq_transformer_forward.38} parent=19 // pred_check
        %p157 = pneg %p30
      $region22: #{seq2seq_transformer_forward.38} parent=19 // pred_check_branch
        %159 = sbr.rel (%p157) target = $region24
      $region23: #{seq2seq_transformer_forward.38} parent=19 // pred_region
        %p160 = scmp.lt.s32.totalorder %s10, 1
        %s161 = scalar_select %p160, %s10, 1
        %s162 = smul.addr %s161, 2
        %s163 = smul.addr %s162, 4
        %s164 = scalar_lea.vmem %s0, %s163
      $region24: #{seq2seq_transformer_forward.38} parent=19 // pred_fallthru
        _
      // Predicated region
      $region25: #{seq2seq_transformer_forward.38} parent=19 // pred_check
        %p165 = pneg %p56
      $region26: #{seq2seq_transformer_forward.38} parent=19 // pred_check_branch
        %167 = sbr.rel (%p165) target = $region28
      $region27: #{seq2seq_transformer_forward.38} parent=19 // pred_region
        %p168 = scmp.lt.s32.totalorder %s10, 1
        %s169 = scalar_select %p168, %s10, 1
        %s170 = smul.addr %s169, 4
        %s171 = scalar_lea.vmem %s1, %s170
      $region28: #{seq2seq_transformer_forward.38} parent=19 // pred_fallthru
        _
      // Predicated region
      $region29: #{seq2seq_transformer_forward.38} parent=19 // pred_check
        %p172 = pneg %p103
      $region30: #{seq2seq_transformer_forward.38} parent=19 // pred_check_branch
        %174 = sbr.rel (%p172) target = $region32
      $region31: #{seq2seq_transformer_forward.38} parent=19 // pred_region
        %p175 = scmp.lt.s32.totalorder %s10, 1
        %s176 = scalar_select %p175, %s10, 1
        %s177 = scalar_lea.vmem %s3, %s176
      $region32: #{seq2seq_transformer_forward.38} parent=19 // pred_fallthru
        _
    $region20: #{seq2seq_transformer_forward.38} parent=5 // pred_fallthru
      _
    %p178 = scmp.le.s32.totalorder 1, %s10
    %p179 = scmp.lt.s32.totalorder %s10, 3
    %p180 = pnand %p178, %p179
    %p181 = pneg %p180
    // Predicated region
    $region33: #{seq2seq_transformer_forward.38} parent=5 // pred_check
      _
    $region34: #{seq2seq_transformer_forward.38} parent=5 // pred_check_branch
      %183 = sbr.rel (%p180) target = $region36
    $region35: #{seq2seq_transformer_forward.38} parent=5 // pred_region
      %s184 = ssub.s32 %s10, 1
      %p185 = scmp.lt.s32.totalorder %s15, 1
      %s186 = scalar_select %p185, %s15, 1
      %s187 = smul.addr %s186, 2
      %s188 = smul.addr %s187, 4
      %s189 = scalar_lea.vmem %s0, %s188
      %p190 = pneg %p36
      %p191 = pneg %p33
      %p192 = scmp.lt.s32.totalorder %s15, 1
      %s193 = scalar_select %p192, %s15, 1
      %s194 = smul.addr %s193, 4
      %s195 = scalar_lea.vmem %s1, %s194
      %p196 = pneg %p62
      %p197 = pneg %p59
      %p198 = pneg %p83
      %p199 = pneg %p80
      %p200 = scmp.lt.s32.totalorder %s15, 1
      %s201 = scalar_select %p200, %s15, 1
      %s202 = scalar_lea.vmem %s3, %s201
      %p203 = pneg %p109
      %p204 = pneg %p106
      %p205 = pneg %p135
      %p206 = pneg %p132
      %p207 = scmp.lt.s32.totalorder %s15, 1
      %s208 = scalar_select %p207, %s15, 1
      %s209 = smul.addr %s208, 2
      %s210 = smul.addr %s209, 4
      %s211 = scalar_lea.vmem %s4, %s210
      %p212 = scmp.lt.s32.totalorder %s15, 1
      %s213 = scalar_select %p212, %s15, 1
      %s214 = smul.addr %s213, 2
      %s215 = smul.addr %s214, 4
      %s216 = scalar_lea.vmem %s0, %s215
      %p217 = scmp.lt.s32.totalorder %s15, 1
      %s218 = scalar_select %p217, %s15, 1
      %s219 = smul.addr %s218, 4
      %s220 = scalar_lea.vmem %s1, %s219
      %p221 = scmp.lt.s32.totalorder %s15, 1
      %s222 = scalar_select %p221, %s15, 1
      %s223 = scalar_lea.vmem %s3, %s222
      %p224 = scmp.lt.s32.totalorder %s15, 1
      %s225 = scalar_select %p224, %s15, 1
      %s226 = smul.addr %s225, 2
      %s227 = smul.addr %s226, 4
      %s228 = scalar_lea.vmem %s4, %s227
      %v230 = vld [vmem:[%s2] sm:$0xff]
      %v231 = vld [vmem:[%s2 + $0x8] sm:$0x3]
      %v232 = vld [vmem:[%s223] sm:$0x1]
      %v234 = vlaneseq
      %v235 = vshrl.u32 %v234, 7
      %v236 = vsub.s32 0, %v235
      %v237 = vrot.slane %v232, %v236
      %v239 = vadd.f32 %v230, %v237
      %v240 = vadd.f32 %v231, %v237
      %v241 = vld [vmem:[%s216] sm:$0xf]
      %v242 = vld [vmem:[%s216 + $0x4] sm:$0x1]
      %v243 = vld [vmem:[%s220] sm:$0xf]
      %v246 = vunpack.c.l.b16 %v241
      %v247 = vunpack.c.l.b16 %v242
      %v248 = vpack.c.b16 %v247, %v246
      %vm249 = vcmask 64512
      %v251 = vsel %vm249, %v248, 0
      %v254 = vsel %vm249, %v243, 0
      %256 = vmatprep.subr.bf16.mxu0 0
      %257 = vmatpush1.bf16.xpose.msra.mxu0 %v254
      %258 = vmatprep.subr.bf16.mxu0 0
      %259 = vmatpush1.bf16.xpose.msra.mxu0 0
      %260 = vmatprep.subr.bf16.mxu0 0
      %261 = vmatpush1.bf16.xpose.msra.mxu0 0
      %262 = vmatprep.subr.bf16.mxu0 0
      %263 = vmatpush1.bf16.xpose.msra.mxu0 0
      %264 = vmatprep.subr.bf16.mxu0 0
      %265 = vmatpush1.bf16.xpose.msra.mxu0 0
      %266 = vmatprep.subr.bf16.mxu0 0
      %267 = vmatpush1.bf16.xpose.msra.mxu0 0
      %268 = vmatprep.subr.bf16.mxu0 0
      %269 = vmatpush1.bf16.xpose.msra.mxu0 0
      %270 = vmatprep.subr.bf16.mxu0 0
      %271 = vmatpush1.bf16.xpose.msra.mxu0 0
      %272 = vmatprep.subr.bf16.mxu0 0
      %273 = vmatpush1.bf16.xpose.msra.mxu0 0
      %274 = vmatprep.subr.bf16.mxu0 0
      %275 = vmatpush1.bf16.xpose.msra.mxu0 0
      %276 = vmatprep.subr.bf16.mxu0 0
      %277 = vmatpush1.bf16.xpose.msra.mxu0 0
      %278 = vmatprep.subr.bf16.mxu0 0
      %279 = vmatpush1.bf16.xpose.msra.mxu0 0
      %280 = vmatprep.subr.bf16.mxu0 0
      %281 = vmatpush1.bf16.xpose.msra.mxu0 0
      %282 = vmatprep.subr.bf16.mxu0 0
      %283 = vmatpush1.bf16.xpose.msra.mxu0 0
      %284 = vmatprep.subr.bf16.mxu0 0
      %285 = vmatpush1.bf16.xpose.msra.mxu0 0
      %286 = vmatprep.subr.bf16.mxu0 0
      %287 = vmatpush1.bf16.xpose.msra.mxu0 0
      %288 = vmatprep.mubr.bf16.mxu0 0
      %289 = vmatmul.mubr.bf16.gmra.mrb[0].mxu0 %v251
      %v290 = vpop.f32.mrb[0].mxu0
      %v291 = vadd.f32 %v239, %v290
      %v292 = vpop.f32.mrb[0].mxu0
      %v293 = vpop.f32.mrb[0].mxu0
      %v294 = vadd.f32 %v240, %v293
      %v295 = vpop.f32.mrb[0].mxu0
      %296 = vdwg.mxu0
      %v297 = vsel %vm249, %v291, -inf
      %298 = vmax.xlane.f32.xlu0 %v297
      %v299 = vpop.xlane.xlu0 %298
      %vm300 = vcmask 58368
      %v301 = vsel %vm300, %v294, -inf
      %302 = vmax.xlane.f32.xlu0 %v301
      %v303 = vpop.xlane.xlu0 %302
      %v304 = vsub.f32 %v291, %v299
      %v305 = vsub.f32 %v294, %v303
      %v306 = vmul.f32 %v304, 1.442695
      %v307 = vpow.pop %v306
      %v308 = vmul.f32 %v305, 1.442695
      %v309 = vpow.pop %v308
      %v310 = vsel %vm249, %v307, 0.0
      %311 = vadd.xlane.f32.xlu0 %v310
      %v312 = vpop.xlane.xlu0 %311
      %v313 = vsel %vm300, %v309, 0.0
      %314 = vadd.xlane.f32.xlu0 %v313
      %v315 = vpop.xlane.xlu0 %314
      %v316 = vrcp.pop %v312
      %v317 = vrcp.pop %v315
      %v318 = vmul.f32 %v307, %v316
      %v319 = vmul.f32 %v309, %v317
      %v320 = vpack.c.bf16 %v319, %v318
      %v322 = vunpack.c.l.b16 %v243
      %v323 = vpack.c.b16 %v322, %v322
      %324 = vrot.lane.b32.xlu0 %v323, 96
      %v325 = vpop.permute.xlu0 %324
      %v327 = vsel %vm249, %v320, 0
      %vm329 = vcmask 1043456
      %v331 = vsel %vm329, %v325, 0
      %333 = vmatprep.subr.bf16.mxu0 0
      %334 = vmatpush1.bf16.msra.mxu0 %v331
      %335 = vmatprep.subr.bf16.mxu0 0
      %336 = vmatpush1.bf16.msra.mxu0 0
      %337 = vmatprep.subr.bf16.mxu0 0
      %338 = vmatpush1.bf16.msra.mxu0 0
      %339 = vmatprep.subr.bf16.mxu0 0
      %340 = vmatpush1.bf16.msra.mxu0 0
      %341 = vmatprep.subr.bf16.mxu0 0
      %342 = vmatpush1.bf16.msra.mxu0 0
      %343 = vmatprep.subr.bf16.mxu0 0
      %344 = vmatpush1.bf16.msra.mxu0 0
      %345 = vmatprep.subr.bf16.mxu0 0
      %346 = vmatpush1.bf16.msra.mxu0 0
      %347 = vmatprep.subr.bf16.mxu0 0
      %348 = vmatpush1.bf16.msra.mxu0 0
      %349 = vmatprep.subr.bf16.mxu0 0
      %350 = vmatpush1.bf16.msra.mxu0 0
      %351 = vmatprep.subr.bf16.mxu0 0
      %352 = vmatpush1.bf16.msra.mxu0 0
      %353 = vmatprep.subr.bf16.mxu0 0
      %354 = vmatpush1.bf16.msra.mxu0 0
      %355 = vmatprep.subr.bf16.mxu0 0
      %356 = vmatpush1.bf16.msra.mxu0 0
      %357 = vmatprep.subr.bf16.mxu0 0
      %358 = vmatpush1.bf16.msra.mxu0 0
      %359 = vmatprep.subr.bf16.mxu0 0
      %360 = vmatpush1.bf16.msra.mxu0 0
      %361 = vmatprep.subr.bf16.mxu0 0
      %362 = vmatpush1.bf16.msra.mxu0 0
      %363 = vmatprep.subr.bf16.mxu0 0
      %364 = vmatpush1.bf16.msra.mxu0 0
      %365 = vmatprep.mubr.bf16.mxu0 0
      %366 = vmatmul.mubr.bf16.gmra.mrb[0].mxu0 %v327
      %v367 = vpop.f32.mrb[0].mxu0
      %v368 = vadd.f32 0.0, %v367
      %v369 = vpop.f32.mrb[0].mxu0
      %v370 = vpop.f32.mrb[0].mxu0
      %v371 = vadd.f32 0.0, %v370
      %v372 = vpop.f32.mrb[0].mxu0
      %373 = vdwg.mxu0
      %v374 = vpack.c.bf16 %v371, %v368
      %v376 = vunpack.c.l.b16 %v374
      %v377 = vunpack.c.h.b16 %v374
      %v378 = vpack.c.b16 %v376, %v376
      %v379 = vpack.c.b16 %v377, %v377
      %vm382 = vcmask 60416
      %383 = vst.msk [vmem:[%s228] sm:$0xf] %vm382, %v378
      %vm384 = vcmask 57344
      %385 = vst.msk [vmem:[%s228 + $0x4] sm:$0x1] %vm384, %v379
      %v386 = vld [vmem:[%s216] sm:$0xf]
      %v387 = vld [vmem:[%s216 + $0x4] sm:$0x1]
      %v388 = vld [vmem:[%s220] sm:$0xf]
      %v391 = vunpack.c.l.b16 %v386
      %v392 = vunpack.c.l.b16 %v387
      %v393 = vpack.c.b16 %v392, %v391
      %394 = vrot.lane.b32.xlu0 %v393, 120
      %v395 = vpop.permute.xlu0 %394
      %v397 = vunpack.c.l.b16 %v388
      %v398 = vpack.c.b16 %v397, %v397
      %399 = vrot.lane.b32.xlu0 %v398, 120
      %v400 = vpop.permute.xlu0 %399
      %v402 = vsel %vm249, %v395, 0
      %v405 = vsel %vm249, %v400, 0
      %407 = vmatprep.subr.bf16.mxu0 0
      %408 = vmatpush1.bf16.xpose.msra.mxu0 %v405
      %409 = vmatprep.subr.bf16.mxu0 0
      %410 = vmatpush1.bf16.xpose.msra.mxu0 0
      %411 = vmatprep.subr.bf16.mxu0 0
      %412 = vmatpush1.bf16.xpose.msra.mxu0 0
      %413 = vmatprep.subr.bf16.mxu0 0
      %414 = vmatpush1.bf16.xpose.msra.mxu0 0
      %415 = vmatprep.subr.bf16.mxu0 0
      %416 = vmatpush1.bf16.xpose.msra.mxu0 0
      %417 = vmatprep.subr.bf16.mxu0 0
      %418 = vmatpush1.bf16.xpose.msra.mxu0 0
      %419 = vmatprep.subr.bf16.mxu0 0
      %420 = vmatpush1.bf16.xpose.msra.mxu0 0
      %421 = vmatprep.subr.bf16.mxu0 0
      %422 = vmatpush1.bf16.xpose.msra.mxu0 0
      %423 = vmatprep.subr.bf16.mxu0 0
      %424 = vmatpush1.bf16.xpose.msra.mxu0 0
      %425 = vmatprep.subr.bf16.mxu0 0
      %426 = vmatpush1.bf16.xpose.msra.mxu0 0
      %427 = vmatprep.subr.bf16.mxu0 0
      %428 = vmatpush1.bf16.xpose.msra.mxu0 0
      %429 = vmatprep.subr.bf16.mxu0 0
      %430 = vmatpush1.bf16.xpose.msra.mxu0 0
      %431 = vmatprep.subr.bf16.mxu0 0
      %432 = vmatpush1.bf16.xpose.msra.mxu0 0
      %433 = vmatprep.subr.bf16.mxu0 0
      %434 = vmatpush1.bf16.xpose.msra.mxu0 0
      %435 = vmatprep.subr.bf16.mxu0 0
      %436 = vmatpush1.bf16.xpose.msra.mxu0 0
      %437 = vmatprep.subr.bf16.mxu0 0
      %438 = vmatpush1.bf16.xpose.msra.mxu0 0
      %439 = vmatprep.mubr.bf16.mxu0 0
      %440 = vmatmul.mubr.bf16.gmra.mrb[0].mxu0 %v402
      %v441 = vpop.f32.mrb[0].mxu0
      %v442 = vadd.f32 %v239, %v441
      %v443 = vpop.f32.mrb[0].mxu0
      %v444 = vpop.f32.mrb[0].mxu0
      %v445 = vadd.f32 %v240, %v444
      %v446 = vpop.f32.mrb[0].mxu0
      %447 = vdwg.mxu0
      %v448 = vsel %vm249, %v442, -inf
      %449 = vmax.xlane.f32.xlu0 %v448
      %v450 = vpop.xlane.xlu0 %449
      %v451 = vsel %vm300, %v445, -inf
      %452 = vmax.xlane.f32.xlu0 %v451
      %v453 = vpop.xlane.xlu0 %452
      %v454 = vsub.f32 %v442, %v450
      %v455 = vsub.f32 %v445, %v453
      %v456 = vmul.f32 %v454, 1.442695
      %v457 = vpow.pop %v456
      %v458 = vmul.f32 %v455, 1.442695
      %v459 = vpow.pop %v458
      %v460 = vsel %vm249, %v457, 0.0
      %461 = vadd.xlane.f32.xlu0 %v460
      %v462 = vpop.xlane.xlu0 %461
      %v463 = vsel %vm300, %v459, 0.0
      %464 = vadd.xlane.f32.xlu0 %v463
      %v465 = vpop.xlane.xlu0 %464
      %v466 = vrcp.pop %v462
      %v467 = vrcp.pop %v465
      %v468 = vmul.f32 %v457, %v466
      %v469 = vmul.f32 %v459, %v467
      %v470 = vpack.c.bf16 %v469, %v468
      %471 = vrot.lane.b32.xlu0 %v398, 88
      %v472 = vpop.permute.xlu0 %471
      %v474 = vsel %vm249, %v470, 0
      %v477 = vsel %vm329, %v472, 0
      %479 = vmatprep.subr.bf16.mxu0 0
      %480 = vmatpush1.bf16.msra.mxu0 %v477
      %481 = vmatprep.subr.bf16.mxu0 0
      %482 = vmatpush1.bf16.msra.mxu0 0
      %483 = vmatprep.subr.bf16.mxu0 0
      %484 = vmatpush1.bf16.msra.mxu0 0
      %485 = vmatprep.subr.bf16.mxu0 0
      %486 = vmatpush1.bf16.msra.mxu0 0
      %487 = vmatprep.subr.bf16.mxu0 0
      %488 = vmatpush1.bf16.msra.mxu0 0
      %489 = vmatprep.subr.bf16.mxu0 0
      %490 = vmatpush1.bf16.msra.mxu0 0
      %491 = vmatprep.subr.bf16.mxu0 0
      %492 = vmatpush1.bf16.msra.mxu0 0
      %493 = vmatprep.subr.bf16.mxu0 0
      %494 = vmatpush1.bf16.msra.mxu0 0
      %495 = vmatprep.subr.bf16.mxu0 0
      %496 = vmatpush1.bf16.msra.mxu0 0
      %497 = vmatprep.subr.bf16.mxu0 0
      %498 = vmatpush1.bf16.msra.mxu0 0
      %499 = vmatprep.subr.bf16.mxu0 0
      %500 = vmatpush1.bf16.msra.mxu0 0
      %501 = vmatprep.subr.bf16.mxu0 0
      %502 = vmatpush1.bf16.msra.mxu0 0
      %503 = vmatprep.subr.bf16.mxu0 0
      %504 = vmatpush1.bf16.msra.mxu0 0
      %505 = vmatprep.subr.bf16.mxu0 0
      %506 = vmatpush1.bf16.msra.mxu0 0
      %507 = vmatprep.subr.bf16.mxu0 0
      %508 = vmatpush1.bf16.msra.mxu0 0
      %509 = vmatprep.subr.bf16.mxu0 0
      %510 = vmatpush1.bf16.msra.mxu0 0
      %511 = vmatprep.mubr.bf16.mxu0 0
      %512 = vmatmul.mubr.bf16.gmra.mrb[0].mxu0 %v474
      %v513 = vpop.f32.mrb[0].mxu0
      %v514 = vadd.f32 0.0, %v513
      %v515 = vpop.f32.mrb[0].mxu0
      %v516 = vpop.f32.mrb[0].mxu0
      %v517 = vadd.f32 0.0, %v516
      %v518 = vpop.f32.mrb[0].mxu0
      %519 = vdwg.mxu0
      %v520 = vpack.c.bf16 %v517, %v514
      %v522 = vunpack.c.l.b16 %v520
      %v523 = vunpack.c.h.b16 %v520
      %v524 = vpack.c.b16 %v522, %v522
      %v525 = vpack.c.b16 %v523, %v523
      %526 = vrot.lane.b32.xlu0 %v524, 8
      %v527 = vpop.permute.xlu0 %526
      %528 = vrot.lane.b32.xlu0 %v525, 8
      %v529 = vpop.permute.xlu0 %528
      %vm532 = vcmask 126016
      %533 = vst.msk [vmem:[%s228] sm:$0xf] %vm532, %v527
      %vm534 = vcmask 122944
      %535 = vst.msk [vmem:[%s228 + $0x4] sm:$0x1] %vm534, %v529
      %v536 = vld [vmem:[%s216] sm:$0xf]
      %v537 = vld [vmem:[%s216 + $0x4] sm:$0x1]
      %v538 = vld [vmem:[%s220] sm:$0xf]
      %v541 = vunpack.c.l.b16 %v536
      %v542 = vunpack.c.l.b16 %v537
      %v543 = vpack.c.b16 %v542, %v541
      %544 = vrot.lane.b32.xlu0 %v543, 112
      %v545 = vpop.permute.xlu0 %544
      %v547 = vunpack.c.l.b16 %v538
      %v548 = vpack.c.b16 %v547, %v547
      %549 = vrot.lane.b32.xlu0 %v548, 112
      %v550 = vpop.permute.xlu0 %549
      %v552 = vsel %vm249, %v545, 0
      %v555 = vsel %vm249, %v550, 0
      %557 = vmatprep.subr.bf16.mxu0 0
      %558 = vmatpush1.bf16.xpose.msra.mxu0 %v555
      %559 = vmatprep.subr.bf16.mxu0 0
      %560 = vmatpush1.bf16.xpose.msra.mxu0 0
      %561 = vmatprep.subr.bf16.mxu0 0
      %562 = vmatpush1.bf16.xpose.msra.mxu0 0
      %563 = vmatprep.subr.bf16.mxu0 0
      %564 = vmatpush1.bf16.xpose.msra.mxu0 0
      %565 = vmatprep.subr.bf16.mxu0 0
      %566 = vmatpush1.bf16.xpose.msra.mxu0 0
      %567 = vmatprep.subr.bf16.mxu0 0
      %568 = vmatpush1.bf16.xpose.msra.mxu0 0
      %569 = vmatprep.subr.bf16.mxu0 0
      %570 = vmatpush1.bf16.xpose.msra.mxu0 0
      %571 = vmatprep.subr.bf16.mxu0 0
      %572 = vmatpush1.bf16.xpose.msra.mxu0 0
      %573 = vmatprep.subr.bf16.mxu0 0
      %574 = vmatpush1.bf16.xpose.msra.mxu0 0
      %575 = vmatprep.subr.bf16.mxu0 0
      %576 = vmatpush1.bf16.xpose.msra.mxu0 0
      %577 = vmatprep.subr.bf16.mxu0 0
      %578 = vmatpush1.bf16.xpose.msra.mxu0 0
      %579 = vmatprep.subr.bf16.mxu0 0
      %580 = vmatpush1.bf16.xpose.msra.mxu0 0
      %581 = vmatprep.subr.bf16.mxu0 0
      %582 = vmatpush1.bf16.xpose.msra.mxu0 0
      %583 = vmatprep.subr.bf16.mxu0 0
      %584 = vmatpush1.bf16.xpose.msra.mxu0 0
      %585 = vmatprep.subr.bf16.mxu0 0
      %586 = vmatpush1.bf16.xpose.msra.mxu0 0
      %587 = vmatprep.subr.bf16.mxu0 0
      %588 = vmatpush1.bf16.xpose.msra.mxu0 0
      %589 = vmatprep.mubr.bf16.mxu0 0
      %590 = vmatmul.mubr.bf16.gmra.mrb[0].mxu0 %v552
      %v591 = vpop.f32.mrb[0].mxu0
      %v592 = vadd.f32 %v239, %v591
      %v593 = vpop.f32.mrb[0].mxu0
      %v594 = vpop.f32.mrb[0].mxu0
      %v595 = vadd.f32 %v240, %v594
      %v596 = vpop.f32.mrb[0].mxu0
      %597 = vdwg.mxu0
      %v598 = vsel %vm249, %v592, -inf
      %599 = vmax.xlane.f32.xlu0 %v598
      %v600 = vpop.xlane.xlu0 %599
      %v601 = vsel %vm300, %v595, -inf
      %602 = vmax.xlane.f32.xlu0 %v601
      %v603 = vpop.xlane.xlu0 %602
      %v604 = vsub.f32 %v592, %v600
      %v605 = vsub.f32 %v595, %v603
      %v606 = vmul.f32 %v604, 1.442695
      %v607 = vpow.pop %v606
      %v608 = vmul.f32 %v605, 1.442695
      %v609 = vpow.pop %v608
      %v610 = vsel %vm249, %v607, 0.0
      %611 = vadd.xlane.f32.xlu0 %v610
      %v612 = vpop.xlane.xlu0 %611
      %v613 = vsel %vm300, %v609, 0.0
      %614 = vadd.xlane.f32.xlu0 %v613
      %v615 = vpop.xlane.xlu0 %614
      %v616 = vrcp.pop %v612
      %v617 = vrcp.pop %v615
      %v618 = vmul.f32 %v607, %v616
      %v619 = vmul.f32 %v609, %v617
      %v620 = vpack.c.bf16 %v619, %v618
      %621 = vrot.lane.b32.xlu0 %v548, 80
      %v622 = vpop.permute.xlu0 %621
      %v624 = vsel %vm249, %v620, 0
      %v627 = vsel %vm329, %v622, 0
      %629 = vmatprep.subr.bf16.mxu0 0
      %630 = vmatpush1.bf16.msra.mxu0 %v627
      %631 = vmatprep.subr.bf16.mxu0 0
      %632 = vmatpush1.bf16.msra.mxu0 0
      %633 = vmatprep.subr.bf16.mxu0 0
      %634 = vmatpush1.bf16.msra.mxu0 0
      %635 = vmatprep.subr.bf16.mxu0 0
      %636 = vmatpush1.bf16.msra.mxu0 0
      %637 = vmatprep.subr.bf16.mxu0 0
      %638 = vmatpush1.bf16.msra.mxu0 0
      %639 = vmatprep.subr.bf16.mxu0 0
      %640 = vmatpush1.bf16.msra.mxu0 0
      %641 = vmatprep.subr.bf16.mxu0 0
      %642 = vmatpush1.bf16.msra.mxu0 0
      %643 = vmatprep.subr.bf16.mxu0 0
      %644 = vmatpush1.bf16.msra.mxu0 0
      %645 = vmatprep.subr.bf16.mxu0 0
      %646 = vmatpush1.bf16.msra.mxu0 0
      %647 = vmatprep.subr.bf16.mxu0 0
      %648 = vmatpush1.bf16.msra.mxu0 0
      %649 = vmatprep.subr.bf16.mxu0 0
      %650 = vmatpush1.bf16.msra.mxu0 0
      %651 = vmatprep.subr.bf16.mxu0 0
      %652 = vmatpush1.bf16.msra.mxu0 0
      %653 = vmatprep.subr.bf16.mxu0 0
      %654 = vmatpush1.bf16.msra.mxu0 0
      %655 = vmatprep.subr.bf16.mxu0 0
      %656 = vmatpush1.bf16.msra.mxu0 0
      %657 = vmatprep.subr.bf16.mxu0 0
      %658 = vmatpush1.bf16.msra.mxu0 0
      %659 = vmatprep.subr.bf16.mxu0 0
      %660 = vmatpush1.bf16.msra.mxu0 0
      %661 = vmatprep.mubr.bf16.mxu0 0
      %662 = vmatmul.mubr.bf16.gmra.mrb[0].mxu0 %v624
      %v663 = vpop.f32.mrb[0].mxu0
      %v664 = vadd.f32 0.0, %v663
      %v665 = vpop.f32.mrb[0].mxu0
      %v666 = vpop.f32.mrb[0].mxu0
      %v667 = vadd.f32 0.0, %v666
      %v668 = vpop.f32.mrb[0].mxu0
      %669 = vdwg.mxu0
      %v670 = vpack.c.bf16 %v667, %v664
      %v672 = vunpack.c.l.b16 %v670
      %v673 = vunpack.c.h.b16 %v670
      %v674 = vpack.c.b16 %v672, %v672
      %v675 = vpack.c.b16 %v673, %v673
      %676 = vrot.lane.b32.xlu0 %v674, 16
      %v677 = vpop.permute.xlu0 %676
      %678 = vrot.lane.b32.xlu0 %v675, 16
      %v679 = vpop.permute.xlu0 %678
      %vm682 = vcmask 191616
      %683 = vst.msk [vmem:[%s228] sm:$0xf] %vm682, %v677
      %vm684 = vcmask 188544
      %685 = vst.msk [vmem:[%s228 + $0x4] sm:$0x1] %vm684, %v679
      %v686 = vld [vmem:[%s216] sm:$0xf]
      %v687 = vld [vmem:[%s216 + $0x4] sm:$0x1]
      %v688 = vld [vmem:[%s220] sm:$0xf]
      %v691 = vunpack.c.l.b16 %v686
      %v692 = vunpack.c.l.b16 %v687
      %v693 = vpack.c.b16 %v692, %v691
      %694 = vrot.lane.b32.xlu0 %v693, 104
      %v695 = vpop.permute.xlu0 %694
      %v697 = vunpack.c.l.b16 %v688
      %v698 = vpack.c.b16 %v697, %v697
      %699 = vrot.lane.b32.xlu0 %v698, 104
      %v700 = vpop.permute.xlu0 %699
      %v702 = vsel %vm249, %v695, 0
      %v705 = vsel %vm249, %v700, 0
      %707 = vmatprep.subr.bf16.mxu0 0
      %708 = vmatpush1.bf16.xpose.msra.mxu0 %v705
      %709 = vmatprep.subr.bf16.mxu0 0
      %710 = vmatpush1.bf16.xpose.msra.mxu0 0
      %711 = vmatprep.subr.bf16.mxu0 0
      %712 = vmatpush1.bf16.xpose.msra.mxu0 0
      %713 = vmatprep.subr.bf16.mxu0 0
      %714 = vmatpush1.bf16.xpose.msra.mxu0 0
      %715 = vmatprep.subr.bf16.mxu0 0
      %716 = vmatpush1.bf16.xpose.msra.mxu0 0
      %717 = vmatprep.subr.bf16.mxu0 0
      %718 = vmatpush1.bf16.xpose.msra.mxu0 0
      %719 = vmatprep.subr.bf16.mxu0 0
      %720 = vmatpush1.bf16.xpose.msra.mxu0 0
      %721 = vmatprep.subr.bf16.mxu0 0
      %722 = vmatpush1.bf16.xpose.msra.mxu0 0
      %723 = vmatprep.subr.bf16.mxu0 0
      %724 = vmatpush1.bf16.xpose.msra.mxu0 0
      %725 = vmatprep.subr.bf16.mxu0 0
      %726 = vmatpush1.bf16.xpose.msra.mxu0 0
      %727 = vmatprep.subr.bf16.mxu0 0
      %728 = vmatpush1.bf16.xpose.msra.mxu0 0
      %729 = vmatprep.subr.bf16.mxu0 0
      %730 = vmatpush1.bf16.xpose.msra.mxu0 0
      %731 = vmatprep.subr.bf16.mxu0 0
      %732 = vmatpush1.bf16.xpose.msra.mxu0 0
      %733 = vmatprep.subr.bf16.mxu0 0
      %734 = vmatpush1.bf16.xpose.msra.mxu0 0
      %735 = vmatprep.subr.bf16.mxu0 0
      %736 = vmatpush1.bf16.xpose.msra.mxu0 0
      %737 = vmatprep.subr.bf16.mxu0 0
      %738 = vmatpush1.bf16.xpose.msra.mxu0 0
      %739 = vmatprep.mubr.bf16.mxu0 0
      %740 = vmatmul.mubr.bf16.gmra.mrb[0].mxu0 %v702
      %v741 = vpop.f32.mrb[0].mxu0
      %v742 = vadd.f32 %v239, %v741
      %v743 = vpop.f32.mrb[0].mxu0
      %v744 = vpop.f32.mrb[0].mxu0
      %v745 = vadd.f32 %v240, %v744
      %v746 = vpop.f32.mrb[0].mxu0
      %747 = vdwg.mxu0
      %v748 = vsel %vm249, %v742, -inf
      %749 = vmax.xlane.f32.xlu0 %v748
      %v750 = vpop.xlane.xlu0 %749
      %v751 = vsel %vm300, %v745, -inf
      %752 = vmax.xlane.f32.xlu0 %v751
      %v753 = vpop.xlane.xlu0 %752
      %v754 = vsub.f32 %v742, %v750
      %v755 = vsub.f32 %v745, %v753
      %v756 = vmul.f32 %v754, 1.442695
      %v757 = vpow.pop %v756
      %v758 = vmul.f32 %v755, 1.442695
      %v759 = vpow.pop %v758
      %v760 = vsel %vm249, %v757, 0.0
      %761 = vadd.xlane.f32.xlu0 %v760
      %v762 = vpop.xlane.xlu0 %761
      %v763 = vsel %vm300, %v759, 0.0
      %764 = vadd.xlane.f32.xlu0 %v763
      %v765 = vpop.xlane.xlu0 %764
      %v766 = vrcp.pop %v762
      %v767 = vrcp.pop %v765
      %v768 = vmul.f32 %v757, %v766
      %v769 = vmul.f32 %v759, %v767
      %v770 = vpack.c.bf16 %v769, %v768
      %771 = vrot.lane.b32.xlu0 %v698, 72
      %v772 = vpop.permute.xlu0 %771
      %v774 = vsel %vm249, %v770, 0
      %v777 = vsel %vm329, %v772, 0
      %779 = vmatprep.subr.bf16.mxu0 0
      %780 = vmatpush1.bf16.msra.mxu0 %v777
      %781 = vmatprep.subr.bf16.mxu0 0
      %782 = vmatpush1.bf16.msra.mxu0 0
      %783 = vmatprep.subr.bf16.mxu0 0
      %784 = vmatpush1.bf16.msra.mxu0 0
      %785 = vmatprep.subr.bf16.mxu0 0
      %786 = vmatpush1.bf16.msra.mxu0 0
      %787 = vmatprep.subr.bf16.mxu0 0
      %788 = vmatpush1.bf16.msra.mxu0 0
      %789 = vmatprep.subr.bf16.mxu0 0
      %790 = vmatpush1.bf16.msra.mxu0 0
      %791 = vmatprep.subr.bf16.mxu0 0
      %792 = vmatpush1.bf16.msra.mxu0 0
      %793 = vmatprep.subr.bf16.mxu0 0
      %794 = vmatpush1.bf16.msra.mxu0 0
      %795 = vmatprep.subr.bf16.mxu0 0
      %796 = vmatpush1.bf16.msra.mxu0 0
      %797 = vmatprep.subr.bf16.mxu0 0
      %798 = vmatpush1.bf16.msra.mxu0 0
      %799 = vmatprep.subr.bf16.mxu0 0
      %800 = vmatpush1.bf16.msra.mxu0 0
      %801 = vmatprep.subr.bf16.mxu0 0
      %802 = vmatpush1.bf16.msra.mxu0 0
      %803 = vmatprep.subr.bf16.mxu0 0
      %804 = vmatpush1.bf16.msra.mxu0 0
      %805 = vmatprep.subr.bf16.mxu0 0
      %806 = vmatpush1.bf16.msra.mxu0 0
      %807 = vmatprep.subr.bf16.mxu0 0
      %808 = vmatpush1.bf16.msra.mxu0 0
      %809 = vmatprep.subr.bf16.mxu0 0
      %810 = vmatpush1.bf16.msra.mxu0 0
      %811 = vmatprep.mubr.bf16.mxu0 0
      %812 = vmatmul.mubr.bf16.gmra.mrb[0].mxu0 %v774
      %v813 = vpop.f32.mrb[0].mxu0
      %v814 = vadd.f32 0.0, %v813
      %v815 = vpop.f32.mrb[0].mxu0
      %v816 = vpop.f32.mrb[0].mxu0
      %v817 = vadd.f32 0.0, %v816
      %v818 = vpop.f32.mrb[0].mxu0
      %819 = vdwg.mxu0
      %v820 = vpack.c.bf16 %v817, %v814
      %v822 = vunpack.c.l.b16 %v820
      %v823 = vunpack.c.h.b16 %v820
      %v824 = vpack.c.b16 %v822, %v822
      %v825 = vpack.c.b16 %v823, %v823
      %826 = vrot.lane.b32.xlu0 %v824, 24
      %v827 = vpop.permute.xlu0 %826
      %828 = vrot.lane.b32.xlu0 %v825, 24
      %v829 = vpop.permute.xlu0 %828
      %vm832 = vcmask 257216
      %833 = vst.msk [vmem:[%s228] sm:$0xf] %vm832, %v827
      %vm834 = vcmask 254144
      %835 = vst.msk [vmem:[%s228 + $0x4] sm:$0x1] %vm834, %v829
      %p836 = scmp.lt.s32.totalorder %s15, 1
      %s837 = scalar_select %p836, %s15, 1
      %s838 = smul.addr %s837, 2
      %s839 = smul.addr %s838, 4
      %s840 = scalar_lea.vmem %s4, %s839
      // Predicated region
      $region37: #{seq2seq_transformer_forward.38} parent=35 // pred_check
        %p841 = pneg %p132
      $region38: #{seq2seq_transformer_forward.38} parent=35 // pred_check_branch
        %843 = sbr.rel (%p841) target = $region40
      $region39: #{seq2seq_transformer_forward.38} parent=35 // pred_region
        _
      $region40: #{seq2seq_transformer_forward.38} parent=35 // pred_fallthru
        _
    $region36: #{seq2seq_transformer_forward.38} parent=5 // pred_fallthru
      _
    %p844 = scmp.le.s32.totalorder 2, %s10
    // Predicated region
    $region41: #{seq2seq_transformer_forward.38} parent=5 // pred_check
      %p845 = pneg %p844
    $region42: #{seq2seq_transformer_forward.38} parent=5 // pred_check_branch
      %847 = sbr.rel (%p845) target = $region44
    $region43: #{seq2seq_transformer_forward.38} parent=5 // pred_region
      %s848 = ssub.s32 %s10, 2
      // Predicated region
      $region45: #{seq2seq_transformer_forward.38} parent=43 // pred_check
        %p849 = pneg %p138
      $region46: #{seq2seq_transformer_forward.38} parent=43 // pred_check_branch
        %851 = sbr.rel (%p849) target = $region48
      $region47: #{seq2seq_transformer_forward.38} parent=43 // pred_region
        %p852 = scmp.lt.s32.totalorder %s16, 1
        %s853 = scalar_select %p852, %s16, 1
        %s854 = smul.addr %s853, 2
        %s855 = smul.addr %s854, 4
        %s856 = scalar_lea.vmem %s4, %s855
      $region48: #{seq2seq_transformer_forward.38} parent=43 // pred_fallthru
        _
    $region44: #{seq2seq_transformer_forward.38} parent=5 // pred_fallthru
      _
  $region6: #{seq2seq_transformer_forward.38} parent=0 // loop_footer
    %s14 = sadd.s32 1, %s10
  $region7: #{seq2seq_transformer_forward.38} parent=0 // loop_footer_branch
    %9 = sbr.rel target = $region3
  $region8: #{seq2seq_transformer_forward.38} parent=0 // loop_exit
    _

// kernel: seq2seq_transformer_forward.49
$region0: #{seq2seq_transformer_forward.49}
  #allocation0 [shape = 'u32[]', space=smem, size = 0x4, offset = 0x4, fixed_abs, tag = 'smem constant byte address 0x4 - core index']
  #allocation1 [shape = 'u32[144,128]{1,0:T(1,128)}', space=vmem, size = 0x12000, scoped, tag = 'internal scratch']
  #allocation2 [shape = 'f32[20,41]{1,0:T(8,128)}', space=vmem, size = 0x3000, scoped, tag = 'scratch operand']
  %s0 = inlined_call_operand.vmem [shape: f32[20,32], index: 0, kind: input, shape index: {}]
  %s1 = inlined_call_operand.vmem [shape: bf16[32,41], index: 1, kind: input, shape index: {}]
  %s2 = inlined_call_operand.vmem [shape: f32[1,41], index: 2, kind: input, shape index: {}]
  %s3 = inlined_call_operand.vmem [shape: f32[20,41], index: 3, kind: output, shape index: {}]
  %s4 = sld [smem:[#allocation0]]
  $region30: #{seq2seq_transformer_forward.49} parent=0
    _
  %s6 = ssub.s32 1, %s4
  %s7 = scalar_select 0, %s6, %s4
  // Predicated region
  $region2: #{seq2seq_transformer_forward.49} parent=0 // pred_check
    _
  $region3: #{seq2seq_transformer_forward.49} parent=0 // pred_check_branch
    %9 = sbr.rel (0) target = $region5
  $region4: #{seq2seq_transformer_forward.49} parent=0 // pred_region
    _
  $region5: #{seq2seq_transformer_forward.49} parent=0 // pred_fallthru
    _
  // Predicated region
  $region6: #{seq2seq_transformer_forward.49} parent=0 // pred_check
    _
  $region7: #{seq2seq_transformer_forward.49} parent=0 // pred_check_branch
    %11 = sbr.rel (0) target = $region9
  $region8: #{seq2seq_transformer_forward.49} parent=0 // pred_region
    _
  $region9: #{seq2seq_transformer_forward.49} parent=0 // pred_fallthru
    _
  // Predicated region
  $region10: #{seq2seq_transformer_forward.49} parent=0 // pred_check
    _
  $region11: #{seq2seq_transformer_forward.49} parent=0 // pred_check_branch
    %13 = sbr.rel (0) target = $region13
  $region12: #{seq2seq_transformer_forward.49} parent=0 // pred_region
    _
  $region13: #{seq2seq_transformer_forward.49} parent=0 // pred_fallthru
    _
  %p15 = scmp.eq.s32.totalorder 0, 0
  // Predicated region
  $region14: #{seq2seq_transformer_forward.49} parent=0 // pred_check
    %p16 = pneg %p15
  $region15: #{seq2seq_transformer_forward.49} parent=0 // pred_check_branch
    %18 = sbr.rel (%p16) target = $region17
  $region16: #{seq2seq_transformer_forward.49} parent=0 // pred_region
    %vm19 = vcmask 334848
    %20 = vst.msk [vmem:[#allocation2] sm:$0xff] %vm19, 0.0
    %21 = vst.msk [vmem:[#allocation2 + $0x8] sm:$0xff] %vm19, 0.0
    %vm22 = vcmask 330752
    %23 = vst.msk [vmem:[#allocation2 + $0x10] sm:$0xf] %vm22, 0.0
  $region17: #{seq2seq_transformer_forward.49} parent=0 // pred_fallthru
    _
  %v24 = vld [vmem:[#allocation2] sm:$0xff]
  %v25 = vld [vmem:[#allocation2 + $0x8] sm:$0xff]
  %v26 = vld [vmem:[#allocation2 + $0x10] sm:$0xf]
  %v27 = vld [vmem:[%s0] sm:$0xff]
  %v28 = vld [vmem:[%s0 + $0x8] sm:$0xff]
  %v29 = vld [vmem:[%s0 + $0x10] sm:$0xf]
  %v30 = vpack.c.bf16 %v28, %v27
  %v31 = vpack.c.bf16 %v29, %v29
  %v32 = vld [vmem:[%s1] sm:$0xf]
  %v33 = vld [vmem:[%s1 + $0x4] sm:$0xf]
  %v34 = vld [vmem:[%s1 + $0x8] sm:$0xf]
  %v35 = vld [vmem:[%s1 + $0xc] sm:$0xf]
  %v40 = vunpack.c.l.b16 %v32
  %v41 = vunpack.c.l.b16 %v33
  %v42 = vunpack.c.l.b16 %v34
  %v43 = vunpack.c.l.b16 %v35
  %v44 = vpack.c.b16 %v41, %v40
  %v45 = vpack.c.b16 %v43, %v42
  %vm48 = vcmask 261120
  %v50 = vsel %vm48, %v30, 0
  %v53 = vsel %vm48, %v31, 0
  %55 = vmatprep.subr.bf16.mxu0 0
  %56 = vmatpush1.bf16.msra.mxu0 %v44
  %57 = vmatprep.subr.bf16.mxu0 0
  %58 = vmatpush1.bf16.msra.mxu0 %v45
  %59 = vmatprep.subr.bf16.mxu0 0
  %60 = vmatpush1.bf16.msra.mxu0 0
  %61 = vmatprep.subr.bf16.mxu0 0
  %62 = vmatpush1.bf16.msra.mxu0 0
  %63 = vmatprep.subr.bf16.mxu0 0
  %64 = vmatpush1.bf16.msra.mxu0 0
  %65 = vmatprep.subr.bf16.mxu0 0
  %66 = vmatpush1.bf16.msra.mxu0 0
  %67 = vmatprep.subr.bf16.mxu0 0
  %68 = vmatpush1.bf16.msra.mxu0 0
  %69 = vmatprep.subr.bf16.mxu0 0
  %70 = vmatpush1.bf16.msra.mxu0 0
  %71 = vmatprep.subr.bf16.mxu0 0
  %72 = vmatpush1.bf16.msra.mxu0 0
  %73 = vmatprep.subr.bf16.mxu0 0
  %74 = vmatpush1.bf16.msra.mxu0 0
  %75 = vmatprep.subr.bf16.mxu0 0
  %76 = vmatpush1.bf16.msra.mxu0 0
  %77 = vmatprep.subr.bf16.mxu0 0
  %78 = vmatpush1.bf16.msra.mxu0 0
  %79 = vmatprep.subr.bf16.mxu0 0
  %80 = vmatpush1.bf16.msra.mxu0 0
  %81 = vmatprep.subr.bf16.mxu0 0
  %82 = vmatpush1.bf16.msra.mxu0 0
  %83 = vmatprep.subr.bf16.mxu0 0
  %84 = vmatpush1.bf16.msra.mxu0 0
  %85 = vmatprep.subr.bf16.mxu0 0
  %86 = vmatpush1.bf16.msra.mxu0 0
  %87 = vmatprep.mubr.bf16.mxu0 0
  %88 = vmatmul.mubr.bf16.gmra.mrb[0].mxu0 %v50
  %v89 = vpop.f32.mrb[0].mxu0
  %v90 = vadd.f32 0.0, %v89
  %v91 = vpop.f32.mrb[0].mxu0
  %v92 = vpop.f32.mrb[0].mxu0
  %v93 = vadd.f32 0.0, %v92
  %v94 = vpop.f32.mrb[0].mxu0
  %95 = vmatprep.mubr.bf16.mxu0 0
  %96 = vmatmul.mubr.bf16.gmra.mrb[0].mxu0 %v53
  %v97 = vpop.f32.mrb[0].mxu0
  %v98 = vadd.f32 0.0, %v97
  %v99 = vpop.f32.mrb[0].mxu0
  %v100 = vpop.f32.mrb[0].mxu0
  %v101 = vpop.f32.mrb[0].mxu0
  %102 = vdwg.mxu0
  %v103 = vadd.f32 %v24, %v90
  %v104 = vadd.f32 %v25, %v93
  %v105 = vadd.f32 %v26, %v98
  %vm106 = vcmask 334848
  %107 = vst.msk [vmem:[#allocation2] sm:$0xff] %vm106, %v103
  %108 = vst.msk [vmem:[#allocation2 + $0x8] sm:$0xff] %vm106, %v104
  %vm109 = vcmask 330752
  %110 = vst.msk [vmem:[#allocation2 + $0x10] sm:$0xf] %vm109, %v105
  // Predicated region
  $region18: #{seq2seq_transformer_forward.49} parent=0 // pred_check
    %p111 = pneg %p15
  $region19: #{seq2seq_transformer_forward.49} parent=0 // pred_check_branch
    %113 = sbr.rel (%p111) target = $region21
  $region20: #{seq2seq_transformer_forward.49} parent=0 // pred_region
    %v114 = vld [vmem:[#allocation2] sm:$0xff]
    %v115 = vld [vmem:[#allocation2 + $0x8] sm:$0xff]
    %v116 = vld [vmem:[#allocation2 + $0x10] sm:$0xf]
    %v117 = vld [vmem:[%s2] sm:$0x1]
    %v119 = vlaneseq
    %v120 = vshrl.u32 %v119, 7
    %v121 = vsub.s32 0, %v120
    %v122 = vrot.slane %v117, %v121
    %v124 = vadd.f32 %v114, %v122
    %v125 = vadd.f32 %v115, %v122
    %v126 = vadd.f32 %v116, %v122
    %127 = vst.msk [vmem:[%s3] sm:$0xff] %vm106, %v124
    %128 = vst.msk [vmem:[%s3 + $0x8] sm:$0xff] %vm106, %v125
    %129 = vst.msk [vmem:[%s3 + $0x10] sm:$0xf] %vm109, %v126
  $region21: #{seq2seq_transformer_forward.49} parent=0 // pred_fallthru
    _
  // Predicated region
  $region22: #{seq2seq_transformer_forward.49} parent=0 // pred_check
    _
  $region23: #{seq2seq_transformer_forward.49} parent=0 // pred_check_branch
    %131 = sbr.rel (0) target = $region25
  $region24: #{seq2seq_transformer_forward.49} parent=0 // pred_region
    _
  $region25: #{seq2seq_transformer_forward.49} parent=0 // pred_fallthru
    _
  // Predicated region
  $region26: #{seq2seq_transformer_forward.49} parent=0 // pred_check
    _
  $region27: #{seq2seq_transformer_forward.49} parent=0 // pred_check_branch
    %133 = sbr.rel (0) target = $region29
  $region28: #{seq2seq_transformer_forward.49} parent=0 // pred_region
    _
  $region29: #{seq2seq_transformer_forward.49} parent=0 // pred_fallthru
    _

</llo_original>
